<compile_context>
chip_gen: v7x
topology: tpu7x:2x2x1
jax: 0.10.0
libtpu: 0.0.40
codegen_flags: <defaults>
</compile_context>

<pallas_src>
import numpy as np
import jax
import jax.numpy as jnp
from jax.experimental import pallas as pl
from jax.experimental.pallas import tpu as pltpu

LEAKY_SLOPE = 0.2
BN_EPS = 0.8          # nn.BatchNorm2d(hidden_size, 0.8) -> eps = 0.8
HIDDEN = 128


# ------------------------------- helpers ------------------------------------

def _round_up(v, m):
    return ((v + m - 1) // m) * m


def _pick_tile(M):
    # Large tiles amortize per-grid-step overhead; keep >=2 grid steps when M
    # is large enough so dimension_semantics=("parallel",) can use both
    # TensorCores on v7x.  All resulting tiles are far below VMEM limits.
    if M <= 256:
        return _round_up(max(M, 8), 8)
    if M <= 1024:
        return _round_up((M + 1) // 2, 8)
    return 512


# ----------------------------- Pallas kernels -------------------------------

def _conv_gemm_kernel(x_ref, w_ref, b_ref, s_ref, t_ref, o_ref):
    # y = leaky_relu(x @ w + b) * scale + shift
    # bf16 operands on the MXU, f32 accumulation + f32 epilogue.
    y = jnp.dot(x_ref[...], w_ref[...], preferred_element_type=jnp.float32)
    y = y + b_ref[...]
    y = jnp.where(y >= 0.0, y, LEAKY_SLOPE * y)          # LeakyReLU(0.2)
    y = y * s_ref[...] + t_ref[...]                      # eval-mode BN affine
    o_ref[...] = y.astype(o_ref.dtype)


def _dual_linear_kernel(e_ref, s_ref, we_ref, ws_ref, be_ref, bs_ref,
                        oe_ref, os_ref):
    # emo_layer and spk_layer (128x128 Linears) in one launch.
    oe_ref[...] = (jnp.dot(e_ref[...], we_ref[...],
                           preferred_element_type=jnp.float32)
                   + be_ref[...]).astype(oe_ref.dtype)
    os_ref[...] = (jnp.dot(s_ref[...], ws_ref[...],
                           preferred_element_type=jnp.float32)
                   + bs_ref[...]).astype(os_ref.dtype)


def _adv_head_kernel(fu_ref, fe_ref, fs_ref, wu_ref, wc_ref, b_ref, o_ref):
    # Both adversarial heads in one launch: column 0 = emo validity,
    # column 1 = spk validity.  The shared uncond features are multiplied once.
    yu = jnp.dot(fu_ref[...], wu_ref[...], preferred_element_type=jnp.float32)
    ye = jnp.dot(fe_ref[...], wc_ref[...], preferred_element_type=jnp.float32)
    ys = jnp.dot(fs_ref[...], wc_ref[...], preferred_element_type=jnp.float32)
    col = jax.lax.broadcasted_iota(jnp.int32, yu.shape, 1)
    o_ref[...] = (yu + jnp.where(col == 0, ye, ys) + b_ref[...]).astype(o_ref.dtype)


# ------------------------------ wrappers -------------------------------------

def conv_gemm(x, w, b, scale, shift):
    """x:[M,K] bf16, w:[K,N] bf16, b/scale/shift:[N] f32 -> [M,N] bf16."""
    M, K = x.shape
    N = w.shape[1]
    TM = _pick_tile(M)
    Mp = _round_up(M, TM)
    xp = jnp.pad(x, ((0, Mp - M), (0, 0))) if Mp != M else x
    out = pl.pallas_call(
        _conv_gemm_kernel,
        out_shape=jax.ShapeDtypeStruct((Mp, N), jnp.bfloat16),
        grid=(Mp // TM,),
        in_specs=[
            pl.BlockSpec((TM, K), lambda i: (i, 0)),
            pl.BlockSpec((K, N), lambda i: (0, 0)),
            pl.BlockSpec((1, N), lambda i: (0, 0)),
            pl.BlockSpec((1, N), lambda i: (0, 0)),
            pl.BlockSpec((1, N), lambda i: (0, 0)),
        ],
        out_specs=pl.BlockSpec((TM, N), lambda i: (i, 0)),
        compiler_params=pltpu.CompilerParams(dimension_semantics=("parallel",)),
    )(xp, w, b.reshape(1, N), scale.reshape(1, N), shift.reshape(1, N))
    return out[:M] if Mp != M else out


def dual_linear(e, s, we, be, ws, bs):
    """emo/spk Linear(128,128) in one pallas_call. e,s:[B,128] -> ([B,128],[B,128])."""
    B, K = e.shape
    N = we.shape[1]
    Bp = _round_up(B, 8)
    ep = jnp.pad(e, ((0, Bp - B), (0, 0)))
    sp = jnp.pad(s, ((0, Bp - B), (0, 0)))
    oe, osv = pl.pallas_call(
        _dual_linear_kernel,
        out_shape=(jax.ShapeDtypeStruct((Bp, N), jnp.float32),
                   jax.ShapeDtypeStruct((Bp, N), jnp.float32)),
        grid=(1,),
        in_specs=[
            pl.BlockSpec((Bp, K), lambda i: (0, 0)),
            pl.BlockSpec((Bp, K), lambda i: (0, 0)),
            pl.BlockSpec((K, N), lambda i: (0, 0)),
            pl.BlockSpec((K, N), lambda i: (0, 0)),
            pl.BlockSpec((1, N), lambda i: (0, 0)),
            pl.BlockSpec((1, N), lambda i: (0, 0)),
        ],
        out_specs=(pl.BlockSpec((Bp, N), lambda i: (0, 0)),
                   pl.BlockSpec((Bp, N), lambda i: (0, 0))),
    )(ep, sp, we, ws, be.reshape(1, N), bs.reshape(1, N))
    return oe[:B], osv[:B]


def adv_head(f_u, f_e, f_s, wu2, wc2, b2):
    """Both adversarial heads. f_u:[B,Fu], f_e/f_s:[B,Fc] (bf16) -> [B,2] f32."""
    B, Fu = f_u.shape
    Fc = f_e.shape[1]
    Bp = _round_up(B, 8)

    def padB(a):
        return jnp.pad(a, ((0, Bp - B), (0, 0)))

    out = pl.pallas_call(
        _adv_head_kernel,
        out_shape=jax.ShapeDtypeStruct((Bp, 2), jnp.float32),
        grid=(1,),
        in_specs=[
            pl.BlockSpec((Bp, Fu), lambda i: (0, 0)),
            pl.BlockSpec((Bp, Fc), lambda i: (0, 0)),
            pl.BlockSpec((Bp, Fc), lambda i: (0, 0)),
            pl.BlockSpec((Fu, 2), lambda i: (0, 0)),
            pl.BlockSpec((Fc, 2), lambda i: (0, 0)),
            pl.BlockSpec((1, 2), lambda i: (0, 0)),
        ],
        out_specs=pl.BlockSpec((Bp, 2), lambda i: (0, 0)),
    )(padB(f_u), padB(f_e), padB(f_s), wu2, wc2, b2)
    return out[:B]


# ------------------------------ conv block -----------------------------------

def conv_block(x_nhwc, w_hwio, bias, bn_scale, bn_shift):
    """Conv2d(3x3, stride 2, pad 1) + LeakyReLU(0.2) + Dropout2d(eval=id) + BN affine.

    x_nhwc: [B, H, W, Cin] -> [B, ceil(H/2), ceil(W/2), Cout] (bf16)
    """
    B, H, W, Cin = x_nhwc.shape
    Ho, Wo = (H + 1) // 2, (W + 1) // 2
    xp = jnp.pad(x_nhwc, ((0, 0), (1, 1), (1, 1), (0, 0)))
    patches = [xp[:, kh:kh + 2 * Ho:2, kw:kw + 2 * Wo:2, :]
               for kh in range(3) for kw in range(3)]
    cols = jnp.concatenate(patches, axis=-1).reshape(B * Ho * Wo, 9 * Cin)
    wmat = w_hwio.reshape(9 * Cin, -1)
    K = 9 * Cin
    Kp = _round_up(K, 128)                 # lane-dense K (pads the Cin=1 block)
    if Kp != K:
        cols = jnp.pad(cols, ((0, 0), (0, Kp - K)))
        wmat = jnp.pad(wmat, ((0, Kp - K), (0, 0)))
    y = conv_gemm(cols.astype(jnp.bfloat16), wmat.astype(jnp.bfloat16),
                  bias, bn_scale, bn_shift)
    return y.reshape(B, Ho, Wo, -1)


def _bn_affine(gamma, beta, rmean, rvar):
    scale = gamma / jnp.sqrt(rvar + BN_EPS)
    shift = beta - rmean * scale
    return scale, shift


def _perm_flatten_weight(w, C, Ho, Wo):
    # Permute rows of a torch-NCHW-flatten weight chunk into NHWC-flatten order
    # (static op; folds the runtime transpose of activations into the weights).
    return w.reshape(C, Ho, Wo, -1).transpose(1, 2, 0, 3).reshape(Ho * Wo * C, -1)


# ------------------------------ parameters -----------------------------------

def _init_conv_stack(key, c_in, hidden):
    blocks = []
    cins = [c_in, hidden, hidden]
    for i in range(3):
        keys = jax.random.split(key, 7)
        key = keys[0]
        blk = {
            "w": 0.05 * jax.random.normal(keys[1], (3, 3, cins[i], hidden), jnp.float32),
            "b": 0.05 * jax.random.normal(keys[2], (hidden,), jnp.float32),
        }
        if i < 2:  # last block has no BatchNorm
            blk.update(
                gamma=1.0 + 0.1 * jax.random.normal(keys[3], (hidden,), jnp.float32),
                beta=0.1 * jax.random.normal(keys[4], (hidden,), jnp.float32),
                rmean=0.1 * jax.random.normal(keys[5], (hidden,), jnp.float32),
                rvar=1.0 + 0.1 * jnp.abs(jax.random.normal(keys[6], (hidden,), jnp.float32)),
            )
        blocks.append(blk)
    return blocks


def init_single_disc(key, time_length, freq_length, hidden=HIDDEN):
    ds0 = time_length // 2 ** 3
    ds1 = (freq_length + 7) // 2 ** 3 + (freq_length + 128 + 7) // 2 ** 3
    feat = hidden * ds0 * ds1
    k = jax.random.split(key, 9)
    return {
        "uncond": _init_conv_stack(k[0], 1, hidden),
        "emo_cond": _init_conv_stack(k[1], 1, hidden),
        # spk_cond_model exists in the PyTorch module but is never used in
        # forward (the reference re-uses emo_cond_model for the speaker branch).
        "spk_cond": _init_conv_stack(k[2], 1, hidden),
        "emo_layer": {"w": 0.05 * jax.random.normal(k[3], (128, 128), jnp.float32),
                      "b": 0.05 * jax.random.normal(k[4], (128,), jnp.float32)},
        "spk_layer": {"w": 0.05 * jax.random.normal(k[5], (128, 128), jnp.float32),
                      "b": 0.05 * jax.random.normal(k[6], (128,), jnp.float32)},
        "emo_adv": {"w": 0.01 * jax.random.normal(k[7], (feat, 1), jnp.float32),
                    "b": jnp.zeros((1,), jnp.float32)},
        "spk_adv": {"w": 0.01 * jax.random.normal(k[8], (feat, 1), jnp.float32),
                    "b": jnp.zeros((1,), jnp.float32)},
    }


# ------------------------------- forward --------------------------------------

@jax.jit
def single_disc_forward(params, x_nchw, emo_cond_embed, spk_cond_embed):
    """x_nchw: [B, 1, T, n_bins]; *_cond_embed: [B, 1, 128] -> ([B,1], [B,1])."""
    B, _, T, _ = x_nchw.shape
    x = jnp.transpose(x_nchw, (0, 2, 3, 1))          # NCHW -> NHWC [B,T,n_bins,1]

    emo, spk = dual_linear(emo_cond_embed[:, 0, :], spk_cond_embed[:, 0, :],
                           params["emo_layer"]["w"], params["emo_layer"]["b"],
                           params["spk_layer"]["w"], params["spk_layer"]["b"])

    emo_map = jnp.broadcast_to(emo[:, None, :, None], (B, T, HIDDEN, 1))
    spk_map = jnp.broadcast_to(spk[:, None, :, None], (B, T, HIDDEN, 1))
    x_emo = jnp.concatenate([x, emo_map], axis=2)    # cat along freq (torch dim=-1)
    x_spk = jnp.concatenate([x, spk_map], axis=2)
    # emo- and spk-conditioned branches use identical weights (reference reuses
    # emo_cond_model) and identical shapes -> batch them through one stack.
    x_cond = jnp.concatenate([x_emo, x_spk], axis=0)  # [2B, T, n_bins+128, 1]

    def run_stack(h, blocks):
        # TODO(synk): the whole 3-block stack could be fused into a single
        # pallas_call with VMEM-resident intermediates; kept as one fused
        # GEMM kernel per block for robustness.
        for blk in blocks:
            if "gamma" in blk:
                s, t = _bn_affine(blk["gamma"], blk["beta"], blk["rmean"], blk["rvar"])
            else:  # last block: no BatchNorm; Dropout2d is identity in eval mode
                s = jnp.ones((HIDDEN,), jnp.float32)
                t = jnp.zeros((HIDDEN,), jnp.float32)
            h = conv_block(h, blk["w"], blk["b"], s, t)
        return h

    h_u = run_stack(x, params["uncond"])              # [B,  Ho, Wu, 128]
    h_c = run_stack(x_cond, params["emo_cond"])       # [2B, Ho, Wc, 128]
    h_e, h_s = h_c[:B], h_c[B:]

    # NHWC flatten; torch's NCHW .view(B,-1) ordering is folded into a static
    # permutation of the adversarial weights (no runtime transposes/concats).
    f_u = h_u.reshape(B, -1)
    f_e = h_e.reshape(B, -1)
    f_s = h_s.reshape(B, -1)

    C = HIDDEN
    Ho_u, Wo_u = h_u.shape[1], h_u.shape[2]
    Ho_c, Wo_c = h_e.shape[1], h_e.shape[2]
    Fu = C * Ho_u * Wo_u

    def split_perm(w):
        wu = _perm_flatten_weight(w[:Fu], C, Ho_u, Wo_u)
        wc = _perm_flatten_weight(w[Fu:], C, Ho_c, Wo_c)
        return wu, wc

    wu_e, wc_e = split_perm(params["emo_adv"]["w"])
    wu_s, wc_s = split_perm(params["spk_adv"]["w"])
    wu2 = jnp.concatenate([wu_e, wu_s], axis=1).astype(jnp.bfloat16)   # [Fu, 2]
    wc2 = jnp.concatenate([wc_e, wc_s], axis=1).astype(jnp.bfloat16)   # [Fc, 2]
    b2 = jnp.concatenate([params["emo_adv"]["b"], params["spk_adv"]["b"]]).reshape(1, 2)

    out = adv_head(f_u, f_e, f_s, wu2, wc2, b2)       # [B, 2] f32
    return out[:, 0:1], out[:, 1:2]


def multi_window_forward(all_params, win_lengths, x, x_len,
                         emo_cond_embed, spk_cond_embed, start_frames_wins=None):
    """x: [B, c_in, T, n_bins]; x_len: [B]. Returns (e_sum, s_sum, start_frames_wins)."""
    if start_frames_wins is None:
        start_frames_wins = [None] * len(win_lengths)
    e_vals, s_vals = [], []
    T_max = int(np.max(np.asarray(x_len)))
    for i, (win, params) in enumerate(zip(win_lengths, all_params)):
        T_end = T_max - win
        if T_end < 0:
            continue
        if start_frames_wins[i] is None:
            start = int(np.random.randint(low=0, high=T_end + 1))   # host-side RNG
            start_frames_wins[i] = [start] * x.shape[0]
        else:
            start = start_frames_wins[i][0]
        x_clip = x[:, :, start:start + win, :]
        e, s = single_disc_forward(params, x_clip, emo_cond_embed, spk_cond_embed)
        e_vals.append(e)
        s_vals.append(s)
    if len(e_vals) != len(win_lengths):
        return None, None, start_frames_wins
    return sum(e_vals), sum(s_vals), start_frames_wins


# --------------------------------- main ---------------------------------------

if __name__ == "__main__":
    np.random.seed(0)
    key = jax.random.PRNGKey(0)

    B, c_in, T, n_bins = 2, 1, 24, 16
    time_lengths = (8, 16)

    key, kx, ke, ks = jax.random.split(key, 4)
    x = jax.random.normal(kx, (B, c_in, T, n_bins), jnp.float32)
    emo_cond_embed = jax.random.normal(ke, (B, 1, 128), jnp.float32)
    spk_cond_embed = jax.random.normal(ks, (B, 1, 128), jnp.float32)
    x_len = np.array([T, T - 4], dtype=np.int32)

    all_params = []
    for tl in time_lengths:
        key, sub = jax.random.split(key)
        all_params.append(init_single_disc(sub, tl, n_bins))

    e_val, s_val, sfw = multi_window_forward(
        all_params, time_lengths, x, x_len, emo_cond_embed, spk_cond_embed)

    e_val = jax.block_until_ready(e_val)
    s_val = jax.block_until_ready(s_val)
    assert e_val.shape == (B, 1) and s_val.shape == (B, 1)
    assert np.all(np.isfinite(np.asarray(e_val))) and np.all(np.isfinite(np.asarray(s_val)))
    print("KERNEL_OK")
</pallas_src>

<mosaic_0001>
module attributes {stable_mosaic.version = 11 : i64} {
  func.func @_dual_linear_kernel(%arg0: i32, %arg1: memref<8x128xf32, #tpu.memory_space<vmem>>, %arg2: memref<8x128xf32, #tpu.memory_space<vmem>>, %arg3: memref<128x128xf32, #tpu.memory_space<vmem>>, %arg4: memref<128x128xf32, #tpu.memory_space<vmem>>, %arg5: memref<1x128xf32, #tpu.memory_space<vmem>>, %arg6: memref<1x128xf32, #tpu.memory_space<vmem>>, %arg7: memref<8x128xf32, #tpu.memory_space<vmem>>, %arg8: memref<8x128xf32, #tpu.memory_space<vmem>>) attributes {dimension_semantics = [#tpu.dimension_semantics<arbitrary>], iteration_bounds = array<i64: 1>, scalar_prefetch = 0 : i64, scratch_operands = 0 : i64, tpu.core_type = #tpu.core_type<tc>, window_params = [{pipeline_mode = #tpu.pipeline_mode<synchronous>, transform_indices = @transform_0, window_bounds = array<i64: 8, 128>}, {pipeline_mode = #tpu.pipeline_mode<synchronous>, transform_indices = @transform_1, window_bounds = array<i64: 8, 128>}, {pipeline_mode = #tpu.pipeline_mode<synchronous>, transform_indices = @transform_2, window_bounds = array<i64: 128, 128>}, {pipeline_mode = #tpu.pipeline_mode<synchronous>, transform_indices = @transform_3, window_bounds = array<i64: 128, 128>}, {pipeline_mode = #tpu.pipeline_mode<synchronous>, transform_indices = @transform_4, window_bounds = array<i64: 1, 128>}, {pipeline_mode = #tpu.pipeline_mode<synchronous>, transform_indices = @transform_5, window_bounds = array<i64: 1, 128>}, {pipeline_mode = #tpu.pipeline_mode<synchronous>, transform_indices = @transform_6, window_bounds = array<i64: 8, 128>}, {pipeline_mode = #tpu.pipeline_mode<synchronous>, transform_indices = @transform_7, window_bounds = array<i64: 8, 128>}]} {
    %c0 = arith.constant 0 : index
    %c0_0 = arith.constant 0 : index
    %0 = vector.load %arg1[%c0, %c0_0] : memref<8x128xf32, #tpu.memory_space<vmem>>, vector<8x128xf32>
    %c0_1 = arith.constant 0 : index
    %c0_2 = arith.constant 0 : index
    %1 = vector.load %arg3[%c0_1, %c0_2] : memref<128x128xf32, #tpu.memory_space<vmem>>, vector<128x128xf32>
    %cst = arith.constant dense<0.000000e+00> : vector<8x128xf32>
    %2 = tpu.matmul %0, %1, %cst {dimension_numbers = #tpu.dot_dimension_numbers<[1], [0], [0], [1], [0, 0, 1, 1], [], []>} : vector<8x128xf32>, vector<128x128xf32>, vector<8x128xf32> -> vector<8x128xf32>
    %c0_3 = arith.constant 0 : index
    %c0_4 = arith.constant 0 : index
    %3 = vector.load %arg5[%c0_3, %c0_4] : memref<1x128xf32, #tpu.memory_space<vmem>>, vector<1x128xf32>
    %4 = vector.broadcast %3 : vector<1x128xf32> to vector<8x128xf32>
    %5 = arith.addf %2, %4 : vector<8x128xf32>
    %c0_5 = arith.constant 0 : index
    %c0_6 = arith.constant 0 : index
    %6 = vector.load %arg7[%c0_5, %c0_6] : memref<8x128xf32, #tpu.memory_space<vmem>>, vector<8x128xf32>
    tpu.vector_store %arg7[%c0_5, %c0_6], %5 {strides = array<i32>} : memref<8x128xf32, #tpu.memory_space<vmem>>, vector<8x128xf32>,
    %c0_7 = arith.constant 0 : index
    %c0_8 = arith.constant 0 : index
    %7 = vector.load %arg2[%c0_7, %c0_8] : memref<8x128xf32, #tpu.memory_space<vmem>>, vector<8x128xf32>
    %c0_9 = arith.constant 0 : index
    %c0_10 = arith.constant 0 : index
    %8 = vector.load %arg4[%c0_9, %c0_10] : memref<128x128xf32, #tpu.memory_space<vmem>>, vector<128x128xf32>
    %cst_11 = arith.constant dense<0.000000e+00> : vector<8x128xf32>
    %9 = tpu.matmul %7, %8, %cst_11 {dimension_numbers = #tpu.dot_dimension_numbers<[1], [0], [0], [1], [0, 0, 1, 1], [], []>} : vector<8x128xf32>, vector<128x128xf32>, vector<8x128xf32> -> vector<8x128xf32>
    %c0_12 = arith.constant 0 : index
    %c0_13 = arith.constant 0 : index
    %10 = vector.load %arg6[%c0_12, %c0_13] : memref<1x128xf32, #tpu.memory_space<vmem>>, vector<1x128xf32>
    %11 = vector.broadcast %10 : vector<1x128xf32> to vector<8x128xf32>
    %12 = arith.addf %9, %11 : vector<8x128xf32>
    %c0_14 = arith.constant 0 : index
    %c0_15 = arith.constant 0 : index
    %13 = vector.load %arg8[%c0_14, %c0_15] : memref<8x128xf32, #tpu.memory_space<vmem>>, vector<8x128xf32>
    tpu.vector_store %arg8[%c0_14, %c0_15], %12 {strides = array<i32>} : memref<8x128xf32, #tpu.memory_space<vmem>>, vector<8x128xf32>,
    return
  }
  func.func @transform_0(%arg0: i32) -> (i32, i32) {
    %c0_i32 = arith.constant 0 : i32
    %c0_i32_0 = arith.constant 0 : i32
    %c0_i32_1 = arith.constant 0 : i32
    return %c0_i32, %c0_i32_0 : i32, i32
  }
  func.func @transform_1(%arg0: i32) -> (i32, i32) {
    %c0_i32 = arith.constant 0 : i32
    %c0_i32_0 = arith.constant 0 : i32
    %c0_i32_1 = arith.constant 0 : i32
    return %c0_i32, %c0_i32_0 : i32, i32
  }
  func.func @transform_2(%arg0: i32) -> (i32, i32) {
    %c0_i32 = arith.constant 0 : i32
    %c0_i32_0 = arith.constant 0 : i32
    %c0_i32_1 = arith.constant 0 : i32
    return %c0_i32, %c0_i32_0 : i32, i32
  }
  func.func @transform_3(%arg0: i32) -> (i32, i32) {
    %c0_i32 = arith.constant 0 : i32
    %c0_i32_0 = arith.constant 0 : i32
    %c0_i32_1 = arith.constant 0 : i32
    return %c0_i32, %c0_i32_0 : i32, i32
  }
  func.func @transform_4(%arg0: i32) -> (i32, i32) {
    %c0_i32 = arith.constant 0 : i32
    %c0_i32_0 = arith.constant 0 : i32
    %c0_i32_1 = arith.constant 0 : i32
    return %c0_i32, %c0_i32_0 : i32, i32
  }
  func.func @transform_5(%arg0: i32) -> (i32, i32) {
    %c0_i32 = arith.constant 0 : i32
    %c0_i32_0 = arith.constant 0 : i32
    %c0_i32_1 = arith.constant 0 : i32
    return %c0_i32, %c0_i32_0 : i32, i32
  }
  func.func @transform_6(%arg0: i32) -> (i32, i32) {
    %c0_i32 = arith.constant 0 : i32
    %c0_i32_0 = arith.constant 0 : i32
    %c0_i32_1 = arith.constant 0 : i32
    return %c0_i32, %c0_i32_0 : i32, i32
  }
  func.func @transform_7(%arg0: i32) -> (i32, i32) {
    %c0_i32 = arith.constant 0 : i32
    %c0_i32_0 = arith.constant 0 : i32
    %c0_i32_1 = arith.constant 0 : i32
    return %c0_i32, %c0_i32_0 : i32, i32
  }
}

module attributes {stable_mosaic.version = 11 : i64} {
  func.func @_conv_gemm_kernel(%arg0: i32, %arg1: memref<512x128xbf16, #tpu.memory_space<vmem>>, %arg2: memref<128x128xbf16, #tpu.memory_space<vmem>>, %arg3: memref<1x128xf32, #tpu.memory_space<vmem>>, %arg4: memref<1x128xf32, #tpu.memory_space<vmem>>, %arg5: memref<1x128xf32, #tpu.memory_space<vmem>>, %arg6: memref<512x128xbf16, #tpu.memory_space<vmem>>) attributes {dimension_semantics = [#tpu.dimension_semantics<parallel>], iteration_bounds = array<i64: 3>, scalar_prefetch = 0 : i64, scratch_operands = 0 : i64, tpu.core_type = #tpu.core_type<tc>, window_params = [{transform_indices = @transform_0, window_bounds = array<i64: 512, 128>}, {pipeline_mode = #tpu.pipeline_mode<synchronous>, transform_indices = @transform_1, window_bounds = array<i64: 128, 128>}, {pipeline_mode = #tpu.pipeline_mode<synchronous>, transform_indices = @transform_2, window_bounds = array<i64: 1, 128>}, {pipeline_mode = #tpu.pipeline_mode<synchronous>, transform_indices = @transform_3, window_bounds = array<i64: 1, 128>}, {pipeline_mode = #tpu.pipeline_mode<synchronous>, transform_indices = @transform_4, window_bounds = array<i64: 1, 128>}, {transform_indices = @transform_5, window_bounds = array<i64: 512, 128>}]} {
    %c0 = arith.constant 0 : index
    %c0_0 = arith.constant 0 : index
    %0 = vector.load %arg1[%c0, %c0_0] : memref<512x128xbf16, #tpu.memory_space<vmem>>, vector<512x128xbf16>
    %c0_1 = arith.constant 0 : index
    %c0_2 = arith.constant 0 : index
    %1 = vector.load %arg2[%c0_1, %c0_2] : memref<128x128xbf16, #tpu.memory_space<vmem>>, vector<128x128xbf16>
    %cst = arith.constant dense<0.000000e+00> : vector<512x128xf32>
    %2 = tpu.matmul %0, %1, %cst {dimension_numbers = #tpu.dot_dimension_numbers<[1], [0], [0], [1], [0, 0, 1, 1], [], []>} : vector<512x128xbf16>, vector<128x128xbf16>, vector<512x128xf32> -> vector<512x128xf32>
    %c0_3 = arith.constant 0 : index
    %c0_4 = arith.constant 0 : index
    %3 = vector.load %arg3[%c0_3, %c0_4] : memref<1x128xf32, #tpu.memory_space<vmem>>, vector<1x128xf32>
    %4 = vector.broadcast %3 : vector<1x128xf32> to vector<512x128xf32>
    %5 = arith.addf %2, %4 : vector<512x128xf32>
    %cst_5 = arith.constant 0.000000e+00 : f32
    %6 = vector.broadcast %cst_5 : f32 to vector<512x128xf32>
    %7 = arith.cmpf oge, %5, %6 : vector<512x128xf32>
    %cst_6 = arith.constant 2.000000e-01 : f32
    %8 = vector.broadcast %cst_6 : f32 to vector<512x128xf32>
    %9 = arith.mulf %8, %5 : vector<512x128xf32>
    %10 = arith.select %7, %5, %9 : vector<512x128xi1>, vector<512x128xf32>
    %c0_7 = arith.constant 0 : index
    %c0_8 = arith.constant 0 : index
    %11 = vector.load %arg4[%c0_7, %c0_8] : memref<1x128xf32, #tpu.memory_space<vmem>>, vector<1x128xf32>
    %12 = vector.broadcast %11 : vector<1x128xf32> to vector<512x128xf32>
    %13 = arith.mulf %10, %12 : vector<512x128xf32>
    %c0_9 = arith.constant 0 : index
    %c0_10 = arith.constant 0 : index
    %14 = vector.load %arg5[%c0_9, %c0_10] : memref<1x128xf32, #tpu.memory_space<vmem>>, vector<1x128xf32>
    %15 = vector.broadcast %14 : vector<1x128xf32> to vector<512x128xf32>
    %16 = arith.addf %13, %15 : vector<512x128xf32>
    %17 = arith.truncf %16 : vector<512x128xf32> to vector<512x128xbf16>
    %c0_11 = arith.constant 0 : index
    %c0_12 = arith.constant 0 : index
    %18 = vector.load %arg6[%c0_11, %c0_12] : memref<512x128xbf16, #tpu.memory_space<vmem>>, vector<512x128xbf16>
    tpu.vector_store %arg6[%c0_11, %c0_12], %17 {strides = array<i32>} : memref<512x128xbf16, #tpu.memory_space<vmem>>, vector<512x128xbf16>,
    return
  }
  func.func @transform_0(%arg0: i32) -> (i32, i32) {
    %c0_i32 = arith.constant 0 : i32
    %c0_i32_0 = arith.constant 0 : i32
    return %arg0, %c0_i32 : i32, i32
  }
  func.func @transform_1(%arg0: i32) -> (i32, i32) {
    %c0_i32 = arith.constant 0 : i32
    %c0_i32_0 = arith.constant 0 : i32
    %c0_i32_1 = arith.constant 0 : i32
    return %c0_i32, %c0_i32_0 : i32, i32
  }
  func.func @transform_2(%arg0: i32) -> (i32, i32) {
    %c0_i32 = arith.constant 0 : i32
    %c0_i32_0 = arith.constant 0 : i32
    %c0_i32_1 = arith.constant 0 : i32
    return %c0_i32, %c0_i32_0 : i32, i32
  }
  func.func @transform_3(%arg0: i32) -> (i32, i32) {
    %c0_i32 = arith.constant 0 : i32
    %c0_i32_0 = arith.constant 0 : i32
    %c0_i32_1 = arith.constant 0 : i32
    return %c0_i32, %c0_i32_0 : i32, i32
  }
  func.func @transform_4(%arg0: i32) -> (i32, i32) {
    %c0_i32 = arith.constant 0 : i32
    %c0_i32_0 = arith.constant 0 : i32
    %c0_i32_1 = arith.constant 0 : i32
    return %c0_i32, %c0_i32_0 : i32, i32
  }
  func.func @transform_5(%arg0: i32) -> (i32, i32) {
    %c0_i32 = arith.constant 0 : i32
    %c0_i32_0 = arith.constant 0 : i32
    return %arg0, %c0_i32 : i32, i32
  }
}

module attributes {stable_mosaic.version = 11 : i64} {
  func.func @_conv_gemm_kernel(%arg0: i32, %arg1: memref<144x1152xbf16, #tpu.memory_space<vmem>>, %arg2: memref<1152x128xbf16, #tpu.memory_space<vmem>>, %arg3: memref<1x128xf32, #tpu.memory_space<vmem>>, %arg4: memref<1x128xf32, #tpu.memory_space<vmem>>, %arg5: memref<1x128xf32, #tpu.memory_space<vmem>>, %arg6: memref<144x128xbf16, #tpu.memory_space<vmem>>) attributes {dimension_semantics = [#tpu.dimension_semantics<parallel>], iteration_bounds = array<i64: 2>, scalar_prefetch = 0 : i64, scratch_operands = 0 : i64, tpu.core_type = #tpu.core_type<tc>, window_params = [{transform_indices = @transform_0, window_bounds = array<i64: 144, 1152>}, {pipeline_mode = #tpu.pipeline_mode<synchronous>, transform_indices = @transform_1, window_bounds = array<i64: 1152, 128>}, {pipeline_mode = #tpu.pipeline_mode<synchronous>, transform_indices = @transform_2, window_bounds = array<i64: 1, 128>}, {pipeline_mode = #tpu.pipeline_mode<synchronous>, transform_indices = @transform_3, window_bounds = array<i64: 1, 128>}, {pipeline_mode = #tpu.pipeline_mode<synchronous>, transform_indices = @transform_4, window_bounds = array<i64: 1, 128>}, {transform_indices = @transform_5, window_bounds = array<i64: 144, 128>}]} {
    %c0 = arith.constant 0 : index
    %c0_0 = arith.constant 0 : index
    %0 = vector.load %arg1[%c0, %c0_0] : memref<144x1152xbf16, #tpu.memory_space<vmem>>, vector<144x1152xbf16>
    %c0_1 = arith.constant 0 : index
    %c0_2 = arith.constant 0 : index
    %1 = vector.load %arg2[%c0_1, %c0_2] : memref<1152x128xbf16, #tpu.memory_space<vmem>>, vector<1152x128xbf16>
    %cst = arith.constant dense<0.000000e+00> : vector<144x128xf32>
    %2 = tpu.matmul %0, %1, %cst {dimension_numbers = #tpu.dot_dimension_numbers<[1], [0], [0], [1], [0, 0, 1, 1], [], []>} : vector<144x1152xbf16>, vector<1152x128xbf16>, vector<144x128xf32> -> vector<144x128xf32>
    %c0_3 = arith.constant 0 : index
    %c0_4 = arith.constant 0 : index
    %3 = vector.load %arg3[%c0_3, %c0_4] : memref<1x128xf32, #tpu.memory_space<vmem>>, vector<1x128xf32>
    %4 = vector.broadcast %3 : vector<1x128xf32> to vector<144x128xf32>
    %5 = arith.addf %2, %4 : vector<144x128xf32>
    %cst_5 = arith.constant 0.000000e+00 : f32
    %6 = vector.broadcast %cst_5 : f32 to vector<144x128xf32>
    %7 = arith.cmpf oge, %5, %6 : vector<144x128xf32>
    %cst_6 = arith.constant 2.000000e-01 : f32
    %8 = vector.broadcast %cst_6 : f32 to vector<144x128xf32>
    %9 = arith.mulf %8, %5 : vector<144x128xf32>
    %10 = arith.select %7, %5, %9 : vector<144x128xi1>, vector<144x128xf32>
    %c0_7 = arith.constant 0 : index
    %c0_8 = arith.constant 0 : index
    %11 = vector.load %arg4[%c0_7, %c0_8] : memref<1x128xf32, #tpu.memory_space<vmem>>, vector<1x128xf32>
    %12 = vector.broadcast %11 : vector<1x128xf32> to vector<144x128xf32>
    %13 = arith.mulf %10, %12 : vector<144x128xf32>
    %c0_9 = arith.constant 0 : index
    %c0_10 = arith.constant 0 : index
    %14 = vector.load %arg5[%c0_9, %c0_10] : memref<1x128xf32, #tpu.memory_space<vmem>>, vector<1x128xf32>
    %15 = vector.broadcast %14 : vector<1x128xf32> to vector<144x128xf32>
    %16 = arith.addf %13, %15 : vector<144x128xf32>
    %17 = arith.truncf %16 : vector<144x128xf32> to vector<144x128xbf16>
    %c0_11 = arith.constant 0 : index
    %c0_12 = arith.constant 0 : index
    %18 = vector.load %arg6[%c0_11, %c0_12] : memref<144x128xbf16, #tpu.memory_space<vmem>>, vector<144x128xbf16>
    tpu.vector_store %arg6[%c0_11, %c0_12], %17 {strides = array<i32>} : memref<144x128xbf16, #tpu.memory_space<vmem>>, vector<144x128xbf16>,
    return
  }
  func.func @transform_0(%arg0: i32) -> (i32, i32) {
    %c0_i32 = arith.constant 0 : i32
    %c0_i32_0 = arith.constant 0 : i32
    return %arg0, %c0_i32 : i32, i32
  }
  func.func @transform_1(%arg0: i32) -> (i32, i32) {
    %c0_i32 = arith.constant 0 : i32
    %c0_i32_0 = arith.constant 0 : i32
    %c0_i32_1 = arith.constant 0 : i32
    return %c0_i32, %c0_i32_0 : i32, i32
  }
  func.func @transform_2(%arg0: i32) -> (i32, i32) {
    %c0_i32 = arith.constant 0 : i32
    %c0_i32_0 = arith.constant 0 : i32
    %c0_i32_1 = arith.constant 0 : i32
    return %c0_i32, %c0_i32_0 : i32, i32
  }
  func.func @transform_3(%arg0: i32) -> (i32, i32) {
    %c0_i32 = arith.constant 0 : i32
    %c0_i32_0 = arith.constant 0 : i32
    %c0_i32_1 = arith.constant 0 : i32
    return %c0_i32, %c0_i32_0 : i32, i32
  }
  func.func @transform_4(%arg0: i32) -> (i32, i32) {
    %c0_i32 = arith.constant 0 : i32
    %c0_i32_0 = arith.constant 0 : i32
    %c0_i32_1 = arith.constant 0 : i32
    return %c0_i32, %c0_i32_0 : i32, i32
  }
  func.func @transform_5(%arg0: i32) -> (i32, i32) {
    %c0_i32 = arith.constant 0 : i32
    %c0_i32_0 = arith.constant 0 : i32
    return %arg0, %c0_i32 : i32, i32
  }
}

module attributes {stable_mosaic.version = 11 : i64} {
  func.func @_conv_gemm_kernel(%arg0: i32, %arg1: memref<72x1152xbf16, #tpu.memory_space<vmem>>, %arg2: memref<1152x128xbf16, #tpu.memory_space<vmem>>, %arg3: memref<1x128xf32, #tpu.memory_space<vmem>>, %arg4: memref<1x128xf32, #tpu.memory_space<vmem>>, %arg5: memref<1x128xf32, #tpu.memory_space<vmem>>, %arg6: memref<72x128xbf16, #tpu.memory_space<vmem>>) attributes {dimension_semantics = [#tpu.dimension_semantics<parallel>], iteration_bounds = array<i64: 1>, scalar_prefetch = 0 : i64, scratch_operands = 0 : i64, tpu.core_type = #tpu.core_type<tc>, window_params = [{transform_indices = @transform_0, window_bounds = array<i64: 72, 1152>}, {pipeline_mode = #tpu.pipeline_mode<synchronous>, transform_indices = @transform_1, window_bounds = array<i64: 1152, 128>}, {pipeline_mode = #tpu.pipeline_mode<synchronous>, transform_indices = @transform_2, window_bounds = array<i64: 1, 128>}, {pipeline_mode = #tpu.pipeline_mode<synchronous>, transform_indices = @transform_3, window_bounds = array<i64: 1, 128>}, {pipeline_mode = #tpu.pipeline_mode<synchronous>, transform_indices = @transform_4, window_bounds = array<i64: 1, 128>}, {transform_indices = @transform_5, window_bounds = array<i64: 72, 128>}]} {
    %c0 = arith.constant 0 : index
    %c0_0 = arith.constant 0 : index
    %0 = vector.load %arg1[%c0, %c0_0] : memref<72x1152xbf16, #tpu.memory_space<vmem>>, vector<72x1152xbf16>
    %c0_1 = arith.constant 0 : index
    %c0_2 = arith.constant 0 : index
    %1 = vector.load %arg2[%c0_1, %c0_2] : memref<1152x128xbf16, #tpu.memory_space<vmem>>, vector<1152x128xbf16>
    %cst = arith.constant dense<0.000000e+00> : vector<72x128xf32>
    %2 = tpu.matmul %0, %1, %cst {dimension_numbers = #tpu.dot_dimension_numbers<[1], [0], [0], [1], [0, 0, 1, 1], [], []>} : vector<72x1152xbf16>, vector<1152x128xbf16>, vector<72x128xf32> -> vector<72x128xf32>
    %c0_3 = arith.constant 0 : index
    %c0_4 = arith.constant 0 : index
    %3 = vector.load %arg3[%c0_3, %c0_4] : memref<1x128xf32, #tpu.memory_space<vmem>>, vector<1x128xf32>
    %4 = vector.broadcast %3 : vector<1x128xf32> to vector<72x128xf32>
    %5 = arith.addf %2, %4 : vector<72x128xf32>
    %cst_5 = arith.constant 0.000000e+00 : f32
    %6 = vector.broadcast %cst_5 : f32 to vector<72x128xf32>
    %7 = arith.cmpf oge, %5, %6 : vector<72x128xf32>
    %cst_6 = arith.constant 2.000000e-01 : f32
    %8 = vector.broadcast %cst_6 : f32 to vector<72x128xf32>
    %9 = arith.mulf %8, %5 : vector<72x128xf32>
    %10 = arith.select %7, %5, %9 : vector<72x128xi1>, vector<72x128xf32>
    %c0_7 = arith.constant 0 : index
    %c0_8 = arith.constant 0 : index
    %11 = vector.load %arg4[%c0_7, %c0_8] : memref<1x128xf32, #tpu.memory_space<vmem>>, vector<1x128xf32>
    %12 = vector.broadcast %11 : vector<1x128xf32> to vector<72x128xf32>
    %13 = arith.mulf %10, %12 : vector<72x128xf32>
    %c0_9 = arith.constant 0 : index
    %c0_10 = arith.constant 0 : index
    %14 = vector.load %arg5[%c0_9, %c0_10] : memref<1x128xf32, #tpu.memory_space<vmem>>, vector<1x128xf32>
    %15 = vector.broadcast %14 : vector<1x128xf32> to vector<72x128xf32>
    %16 = arith.addf %13, %15 : vector<72x128xf32>
    %17 = arith.truncf %16 : vector<72x128xf32> to vector<72x128xbf16>
    %c0_11 = arith.constant 0 : index
    %c0_12 = arith.constant 0 : index
    %18 = vector.load %arg6[%c0_11, %c0_12] : memref<72x128xbf16, #tpu.memory_space<vmem>>, vector<72x128xbf16>
    tpu.vector_store %arg6[%c0_11, %c0_12], %17 {strides = array<i32>} : memref<72x128xbf16, #tpu.memory_space<vmem>>, vector<72x128xbf16>,
    return
  }
  func.func @transform_0(%arg0: i32) -> (i32, i32) {
    %c0_i32 = arith.constant 0 : i32
    %c0_i32_0 = arith.constant 0 : i32
    return %arg0, %c0_i32 : i32, i32
  }
  func.func @transform_1(%arg0: i32) -> (i32, i32) {
    %c0_i32 = arith.constant 0 : i32
    %c0_i32_0 = arith.constant 0 : i32
    %c0_i32_1 = arith.constant 0 : i32
    return %c0_i32, %c0_i32_0 : i32, i32
  }
  func.func @transform_2(%arg0: i32) -> (i32, i32) {
    %c0_i32 = arith.constant 0 : i32
    %c0_i32_0 = arith.constant 0 : i32
    %c0_i32_1 = arith.constant 0 : i32
    return %c0_i32, %c0_i32_0 : i32, i32
  }
  func.func @transform_3(%arg0: i32) -> (i32, i32) {
    %c0_i32 = arith.constant 0 : i32
    %c0_i32_0 = arith.constant 0 : i32
    %c0_i32_1 = arith.constant 0 : i32
    return %c0_i32, %c0_i32_0 : i32, i32
  }
  func.func @transform_4(%arg0: i32) -> (i32, i32) {
    %c0_i32 = arith.constant 0 : i32
    %c0_i32_0 = arith.constant 0 : i32
    %c0_i32_1 = arith.constant 0 : i32
    return %c0_i32, %c0_i32_0 : i32, i32
  }
  func.func @transform_5(%arg0: i32) -> (i32, i32) {
    %c0_i32 = arith.constant 0 : i32
    %c0_i32_0 = arith.constant 0 : i32
    return %arg0, %c0_i32 : i32, i32
  }
}

module attributes {stable_mosaic.version = 11 : i64} {
  func.func @_conv_gemm_kernel(%arg0: i32, %arg1: memref<64x128xbf16, #tpu.memory_space<vmem>>, %arg2: memref<128x128xbf16, #tpu.memory_space<vmem>>, %arg3: memref<1x128xf32, #tpu.memory_space<vmem>>, %arg4: memref<1x128xf32, #tpu.memory_space<vmem>>, %arg5: memref<1x128xf32, #tpu.memory_space<vmem>>, %arg6: memref<64x128xbf16, #tpu.memory_space<vmem>>) attributes {dimension_semantics = [#tpu.dimension_semantics<parallel>], iteration_bounds = array<i64: 1>, scalar_prefetch = 0 : i64, scratch_operands = 0 : i64, tpu.core_type = #tpu.core_type<tc>, window_params = [{transform_indices = @transform_0, window_bounds = array<i64: 64, 128>}, {pipeline_mode = #tpu.pipeline_mode<synchronous>, transform_indices = @transform_1, window_bounds = array<i64: 128, 128>}, {pipeline_mode = #tpu.pipeline_mode<synchronous>, transform_indices = @transform_2, window_bounds = array<i64: 1, 128>}, {pipeline_mode = #tpu.pipeline_mode<synchronous>, transform_indices = @transform_3, window_bounds = array<i64: 1, 128>}, {pipeline_mode = #tpu.pipeline_mode<synchronous>, transform_indices = @transform_4, window_bounds = array<i64: 1, 128>}, {transform_indices = @transform_5, window_bounds = array<i64: 64, 128>}]} {
    %c0 = arith.constant 0 : index
    %c0_0 = arith.constant 0 : index
    %0 = vector.load %arg1[%c0, %c0_0] : memref<64x128xbf16, #tpu.memory_space<vmem>>, vector<64x128xbf16>
    %c0_1 = arith.constant 0 : index
    %c0_2 = arith.constant 0 : index
    %1 = vector.load %arg2[%c0_1, %c0_2] : memref<128x128xbf16, #tpu.memory_space<vmem>>, vector<128x128xbf16>
    %cst = arith.constant dense<0.000000e+00> : vector<64x128xf32>
    %2 = tpu.matmul %0, %1, %cst {dimension_numbers = #tpu.dot_dimension_numbers<[1], [0], [0], [1], [0, 0, 1, 1], [], []>} : vector<64x128xbf16>, vector<128x128xbf16>, vector<64x128xf32> -> vector<64x128xf32>
    %c0_3 = arith.constant 0 : index
    %c0_4 = arith.constant 0 : index
    %3 = vector.load %arg3[%c0_3, %c0_4] : memref<1x128xf32, #tpu.memory_space<vmem>>, vector<1x128xf32>
    %4 = vector.broadcast %3 : vector<1x128xf32> to vector<64x128xf32>
    %5 = arith.addf %2, %4 : vector<64x128xf32>
    %cst_5 = arith.constant 0.000000e+00 : f32
    %6 = vector.broadcast %cst_5 : f32 to vector<64x128xf32>
    %7 = arith.cmpf oge, %5, %6 : vector<64x128xf32>
    %cst_6 = arith.constant 2.000000e-01 : f32
    %8 = vector.broadcast %cst_6 : f32 to vector<64x128xf32>
    %9 = arith.mulf %8, %5 : vector<64x128xf32>
    %10 = arith.select %7, %5, %9 : vector<64x128xi1>, vector<64x128xf32>
    %c0_7 = arith.constant 0 : index
    %c0_8 = arith.constant 0 : index
    %11 = vector.load %arg4[%c0_7, %c0_8] : memref<1x128xf32, #tpu.memory_space<vmem>>, vector<1x128xf32>
    %12 = vector.broadcast %11 : vector<1x128xf32> to vector<64x128xf32>
    %13 = arith.mulf %10, %12 : vector<64x128xf32>
    %c0_9 = arith.constant 0 : index
    %c0_10 = arith.constant 0 : index
    %14 = vector.load %arg5[%c0_9, %c0_10] : memref<1x128xf32, #tpu.memory_space<vmem>>, vector<1x128xf32>
    %15 = vector.broadcast %14 : vector<1x128xf32> to vector<64x128xf32>
    %16 = arith.addf %13, %15 : vector<64x128xf32>
    %17 = arith.truncf %16 : vector<64x128xf32> to vector<64x128xbf16>
    %c0_11 = arith.constant 0 : index
    %c0_12 = arith.constant 0 : index
    %18 = vector.load %arg6[%c0_11, %c0_12] : memref<64x128xbf16, #tpu.memory_space<vmem>>, vector<64x128xbf16>
    tpu.vector_store %arg6[%c0_11, %c0_12], %17 {strides = array<i32>} : memref<64x128xbf16, #tpu.memory_space<vmem>>, vector<64x128xbf16>,
    return
  }
  func.func @transform_0(%arg0: i32) -> (i32, i32) {
    %c0_i32 = arith.constant 0 : i32
    %c0_i32_0 = arith.constant 0 : i32
    return %arg0, %c0_i32 : i32, i32
  }
  func.func @transform_1(%arg0: i32) -> (i32, i32) {
    %c0_i32 = arith.constant 0 : i32
    %c0_i32_0 = arith.constant 0 : i32
    %c0_i32_1 = arith.constant 0 : i32
    return %c0_i32, %c0_i32_0 : i32, i32
  }
  func.func @transform_2(%arg0: i32) -> (i32, i32) {
    %c0_i32 = arith.constant 0 : i32
    %c0_i32_0 = arith.constant 0 : i32
    %c0_i32_1 = arith.constant 0 : i32
    return %c0_i32, %c0_i32_0 : i32, i32
  }
  func.func @transform_3(%arg0: i32) -> (i32, i32) {
    %c0_i32 = arith.constant 0 : i32
    %c0_i32_0 = arith.constant 0 : i32
    %c0_i32_1 = arith.constant 0 : i32
    return %c0_i32, %c0_i32_0 : i32, i32
  }
  func.func @transform_4(%arg0: i32) -> (i32, i32) {
    %c0_i32 = arith.constant 0 : i32
    %c0_i32_0 = arith.constant 0 : i32
    %c0_i32_1 = arith.constant 0 : i32
    return %c0_i32, %c0_i32_0 : i32, i32
  }
  func.func @transform_5(%arg0: i32) -> (i32, i32) {
    %c0_i32 = arith.constant 0 : i32
    %c0_i32_0 = arith.constant 0 : i32
    return %arg0, %c0_i32 : i32, i32
  }
}

module attributes {stable_mosaic.version = 11 : i64} {
  func.func @_conv_gemm_kernel(%arg0: i32, %arg1: memref<16x1152xbf16, #tpu.memory_space<vmem>>, %arg2: memref<1152x128xbf16, #tpu.memory_space<vmem>>, %arg3: memref<1x128xf32, #tpu.memory_space<vmem>>, %arg4: memref<1x128xf32, #tpu.memory_space<vmem>>, %arg5: memref<1x128xf32, #tpu.memory_space<vmem>>, %arg6: memref<16x128xbf16, #tpu.memory_space<vmem>>) attributes {dimension_semantics = [#tpu.dimension_semantics<parallel>], iteration_bounds = array<i64: 1>, scalar_prefetch = 0 : i64, scratch_operands = 0 : i64, tpu.core_type = #tpu.core_type<tc>, window_params = [{transform_indices = @transform_0, window_bounds = array<i64: 16, 1152>}, {pipeline_mode = #tpu.pipeline_mode<synchronous>, transform_indices = @transform_1, window_bounds = array<i64: 1152, 128>}, {pipeline_mode = #tpu.pipeline_mode<synchronous>, transform_indices = @transform_2, window_bounds = array<i64: 1, 128>}, {pipeline_mode = #tpu.pipeline_mode<synchronous>, transform_indices = @transform_3, window_bounds = array<i64: 1, 128>}, {pipeline_mode = #tpu.pipeline_mode<synchronous>, transform_indices = @transform_4, window_bounds = array<i64: 1, 128>}, {transform_indices = @transform_5, window_bounds = array<i64: 16, 128>}]} {
    %c0 = arith.constant 0 : index
    %c0_0 = arith.constant 0 : index
    %0 = vector.load %arg1[%c0, %c0_0] : memref<16x1152xbf16, #tpu.memory_space<vmem>>, vector<16x1152xbf16>
    %c0_1 = arith.constant 0 : index
    %c0_2 = arith.constant 0 : index
    %1 = vector.load %arg2[%c0_1, %c0_2] : memref<1152x128xbf16, #tpu.memory_space<vmem>>, vector<1152x128xbf16>
    %cst = arith.constant dense<0.000000e+00> : vector<16x128xf32>
    %2 = tpu.matmul %0, %1, %cst {dimension_numbers = #tpu.dot_dimension_numbers<[1], [0], [0], [1], [0, 0, 1, 1], [], []>} : vector<16x1152xbf16>, vector<1152x128xbf16>, vector<16x128xf32> -> vector<16x128xf32>
    %c0_3 = arith.constant 0 : index
    %c0_4 = arith.constant 0 : index
    %3 = vector.load %arg3[%c0_3, %c0_4] : memref<1x128xf32, #tpu.memory_space<vmem>>, vector<1x128xf32>
    %4 = vector.broadcast %3 : vector<1x128xf32> to vector<16x128xf32>
    %5 = arith.addf %2, %4 : vector<16x128xf32>
    %cst_5 = arith.constant 0.000000e+00 : f32
    %6 = vector.broadcast %cst_5 : f32 to vector<16x128xf32>
    %7 = arith.cmpf oge, %5, %6 : vector<16x128xf32>
    %cst_6 = arith.constant 2.000000e-01 : f32
    %8 = vector.broadcast %cst_6 : f32 to vector<16x128xf32>
    %9 = arith.mulf %8, %5 : vector<16x128xf32>
    %10 = arith.select %7, %5, %9 : vector<16x128xi1>, vector<16x128xf32>
    %c0_7 = arith.constant 0 : index
    %c0_8 = arith.constant 0 : index
    %11 = vector.load %arg4[%c0_7, %c0_8] : memref<1x128xf32, #tpu.memory_space<vmem>>, vector<1x128xf32>
    %12 = vector.broadcast %11 : vector<1x128xf32> to vector<16x128xf32>
    %13 = arith.mulf %10, %12 : vector<16x128xf32>
    %c0_9 = arith.constant 0 : index
    %c0_10 = arith.constant 0 : index
    %14 = vector.load %arg5[%c0_9, %c0_10] : memref<1x128xf32, #tpu.memory_space<vmem>>, vector<1x128xf32>
    %15 = vector.broadcast %14 : vector<1x128xf32> to vector<16x128xf32>
    %16 = arith.addf %13, %15 : vector<16x128xf32>
    %17 = arith.truncf %16 : vector<16x128xf32> to vector<16x128xbf16>
    %c0_11 = arith.constant 0 : index
    %c0_12 = arith.constant 0 : index
    %18 = vector.load %arg6[%c0_11, %c0_12] : memref<16x128xbf16, #tpu.memory_space<vmem>>, vector<16x128xbf16>
    tpu.vector_store %arg6[%c0_11, %c0_12], %17 {strides = array<i32>} : memref<16x128xbf16, #tpu.memory_space<vmem>>, vector<16x128xbf16>,
    return
  }
  func.func @transform_0(%arg0: i32) -> (i32, i32) {
    %c0_i32 = arith.constant 0 : i32
    %c0_i32_0 = arith.constant 0 : i32
    return %arg0, %c0_i32 : i32, i32
  }
  func.func @transform_1(%arg0: i32) -> (i32, i32) {
    %c0_i32 = arith.constant 0 : i32
    %c0_i32_0 = arith.constant 0 : i32
    %c0_i32_1 = arith.constant 0 : i32
    return %c0_i32, %c0_i32_0 : i32, i32
  }
  func.func @transform_2(%arg0: i32) -> (i32, i32) {
    %c0_i32 = arith.constant 0 : i32
    %c0_i32_0 = arith.constant 0 : i32
    %c0_i32_1 = arith.constant 0 : i32
    return %c0_i32, %c0_i32_0 : i32, i32
  }
  func.func @transform_3(%arg0: i32) -> (i32, i32) {
    %c0_i32 = arith.constant 0 : i32
    %c0_i32_0 = arith.constant 0 : i32
    %c0_i32_1 = arith.constant 0 : i32
    return %c0_i32, %c0_i32_0 : i32, i32
  }
  func.func @transform_4(%arg0: i32) -> (i32, i32) {
    %c0_i32 = arith.constant 0 : i32
    %c0_i32_0 = arith.constant 0 : i32
    %c0_i32_1 = arith.constant 0 : i32
    return %c0_i32, %c0_i32_0 : i32, i32
  }
  func.func @transform_5(%arg0: i32) -> (i32, i32) {
    %c0_i32 = arith.constant 0 : i32
    %c0_i32_0 = arith.constant 0 : i32
    return %arg0, %c0_i32 : i32, i32
  }
}

module attributes {stable_mosaic.version = 11 : i64} {
  func.func @_conv_gemm_kernel(%arg0: i32, %arg1: memref<8x1152xbf16, #tpu.memory_space<vmem>>, %arg2: memref<1152x128xbf16, #tpu.memory_space<vmem>>, %arg3: memref<1x128xf32, #tpu.memory_space<vmem>>, %arg4: memref<1x128xf32, #tpu.memory_space<vmem>>, %arg5: memref<1x128xf32, #tpu.memory_space<vmem>>, %arg6: memref<8x128xbf16, #tpu.memory_space<vmem>>) attributes {dimension_semantics = [#tpu.dimension_semantics<parallel>], iteration_bounds = array<i64: 1>, scalar_prefetch = 0 : i64, scratch_operands = 0 : i64, tpu.core_type = #tpu.core_type<tc>, window_params = [{transform_indices = @transform_0, window_bounds = array<i64: 8, 1152>}, {pipeline_mode = #tpu.pipeline_mode<synchronous>, transform_indices = @transform_1, window_bounds = array<i64: 1152, 128>}, {pipeline_mode = #tpu.pipeline_mode<synchronous>, transform_indices = @transform_2, window_bounds = array<i64: 1, 128>}, {pipeline_mode = #tpu.pipeline_mode<synchronous>, transform_indices = @transform_3, window_bounds = array<i64: 1, 128>}, {pipeline_mode = #tpu.pipeline_mode<synchronous>, transform_indices = @transform_4, window_bounds = array<i64: 1, 128>}, {transform_indices = @transform_5, window_bounds = array<i64: 8, 128>}]} {
    %c0 = arith.constant 0 : index
    %c0_0 = arith.constant 0 : index
    %0 = vector.load %arg1[%c0, %c0_0] : memref<8x1152xbf16, #tpu.memory_space<vmem>>, vector<8x1152xbf16>
    %c0_1 = arith.constant 0 : index
    %c0_2 = arith.constant 0 : index
    %1 = vector.load %arg2[%c0_1, %c0_2] : memref<1152x128xbf16, #tpu.memory_space<vmem>>, vector<1152x128xbf16>
    %cst = arith.constant dense<0.000000e+00> : vector<8x128xf32>
    %2 = tpu.matmul %0, %1, %cst {dimension_numbers = #tpu.dot_dimension_numbers<[1], [0], [0], [1], [0, 0, 1, 1], [], []>} : vector<8x1152xbf16>, vector<1152x128xbf16>, vector<8x128xf32> -> vector<8x128xf32>
    %c0_3 = arith.constant 0 : index
    %c0_4 = arith.constant 0 : index
    %3 = vector.load %arg3[%c0_3, %c0_4] : memref<1x128xf32, #tpu.memory_space<vmem>>, vector<1x128xf32>
    %4 = vector.broadcast %3 : vector<1x128xf32> to vector<8x128xf32>
    %5 = arith.addf %2, %4 : vector<8x128xf32>
    %cst_5 = arith.constant 0.000000e+00 : f32
    %6 = vector.broadcast %cst_5 : f32 to vector<8x128xf32>
    %7 = arith.cmpf oge, %5, %6 : vector<8x128xf32>
    %cst_6 = arith.constant 2.000000e-01 : f32
    %8 = vector.broadcast %cst_6 : f32 to vector<8x128xf32>
    %9 = arith.mulf %8, %5 : vector<8x128xf32>
    %10 = arith.select %7, %5, %9 : vector<8x128xi1>, vector<8x128xf32>
    %c0_7 = arith.constant 0 : index
    %c0_8 = arith.constant 0 : index
    %11 = vector.load %arg4[%c0_7, %c0_8] : memref<1x128xf32, #tpu.memory_space<vmem>>, vector<1x128xf32>
    %12 = vector.broadcast %11 : vector<1x128xf32> to vector<8x128xf32>
    %13 = arith.mulf %10, %12 : vector<8x128xf32>
    %c0_9 = arith.constant 0 : index
    %c0_10 = arith.constant 0 : index
    %14 = vector.load %arg5[%c0_9, %c0_10] : memref<1x128xf32, #tpu.memory_space<vmem>>, vector<1x128xf32>
    %15 = vector.broadcast %14 : vector<1x128xf32> to vector<8x128xf32>
    %16 = arith.addf %13, %15 : vector<8x128xf32>
    %17 = arith.truncf %16 : vector<8x128xf32> to vector<8x128xbf16>
    %c0_11 = arith.constant 0 : index
    %c0_12 = arith.constant 0 : index
    %18 = vector.load %arg6[%c0_11, %c0_12] : memref<8x128xbf16, #tpu.memory_space<vmem>>, vector<8x128xbf16>
    tpu.vector_store %arg6[%c0_11, %c0_12], %17 {strides = array<i32>} : memref<8x128xbf16, #tpu.memory_space<vmem>>, vector<8x128xbf16>,
    return
  }
  func.func @transform_0(%arg0: i32) -> (i32, i32) {
    %c0_i32 = arith.constant 0 : i32
    %c0_i32_0 = arith.constant 0 : i32
    return %arg0, %c0_i32 : i32, i32
  }
  func.func @transform_1(%arg0: i32) -> (i32, i32) {
    %c0_i32 = arith.constant 0 : i32
    %c0_i32_0 = arith.constant 0 : i32
    %c0_i32_1 = arith.constant 0 : i32
    return %c0_i32, %c0_i32_0 : i32, i32
  }
  func.func @transform_2(%arg0: i32) -> (i32, i32) {
    %c0_i32 = arith.constant 0 : i32
    %c0_i32_0 = arith.constant 0 : i32
    %c0_i32_1 = arith.constant 0 : i32
    return %c0_i32, %c0_i32_0 : i32, i32
  }
  func.func @transform_3(%arg0: i32) -> (i32, i32) {
    %c0_i32 = arith.constant 0 : i32
    %c0_i32_0 = arith.constant 0 : i32
    %c0_i32_1 = arith.constant 0 : i32
    return %c0_i32, %c0_i32_0 : i32, i32
  }
  func.func @transform_4(%arg0: i32) -> (i32, i32) {
    %c0_i32 = arith.constant 0 : i32
    %c0_i32_0 = arith.constant 0 : i32
    %c0_i32_1 = arith.constant 0 : i32
    return %c0_i32, %c0_i32_0 : i32, i32
  }
  func.func @transform_5(%arg0: i32) -> (i32, i32) {
    %c0_i32 = arith.constant 0 : i32
    %c0_i32_0 = arith.constant 0 : i32
    return %arg0, %c0_i32 : i32, i32
  }
}

module attributes {stable_mosaic.version = 11 : i64} {
  func.func @_adv_head_kernel(%arg0: i32, %arg1: memref<8x256xbf16, #tpu.memory_space<vmem>>, %arg2: memref<8x2304xbf16, #tpu.memory_space<vmem>>, %arg3: memref<8x2304xbf16, #tpu.memory_space<vmem>>, %arg4: memref<256x2xbf16, #tpu.memory_space<vmem>>, %arg5: memref<2304x2xbf16, #tpu.memory_space<vmem>>, %arg6: memref<1x2xf32, #tpu.memory_space<vmem>>, %arg7: memref<8x2xf32, #tpu.memory_space<vmem>>) attributes {dimension_semantics = [#tpu.dimension_semantics<arbitrary>], iteration_bounds = array<i64: 1>, scalar_prefetch = 0 : i64, scratch_operands = 0 : i64, tpu.core_type = #tpu.core_type<tc>, window_params = [{pipeline_mode = #tpu.pipeline_mode<synchronous>, transform_indices = @transform_0, window_bounds = array<i64: 8, 256>}, {pipeline_mode = #tpu.pipeline_mode<synchronous>, transform_indices = @transform_1, window_bounds = array<i64: 8, 2304>}, {pipeline_mode = #tpu.pipeline_mode<synchronous>, transform_indices = @transform_2, window_bounds = array<i64: 8, 2304>}, {pipeline_mode = #tpu.pipeline_mode<synchronous>, transform_indices = @transform_3, window_bounds = array<i64: 256, 2>}, {pipeline_mode = #tpu.pipeline_mode<synchronous>, transform_indices = @transform_4, window_bounds = array<i64: 2304, 2>}, {pipeline_mode = #tpu.pipeline_mode<synchronous>, transform_indices = @transform_5, window_bounds = array<i64: 1, 2>}, {pipeline_mode = #tpu.pipeline_mode<synchronous>, transform_indices = @transform_6, window_bounds = array<i64: 8, 2>}]} {
    %c0 = arith.constant 0 : index
    %c0_0 = arith.constant 0 : index
    %0 = vector.load %arg1[%c0, %c0_0] : memref<8x256xbf16, #tpu.memory_space<vmem>>, vector<8x256xbf16>
    %c0_1 = arith.constant 0 : index
    %c0_2 = arith.constant 0 : index
    %1 = vector.load %arg4[%c0_1, %c0_2] : memref<256x2xbf16, #tpu.memory_space<vmem>>, vector<256x2xbf16>
    %cst = arith.constant dense<0.000000e+00> : vector<8x2xf32>
    %2 = tpu.matmul %0, %1, %cst {dimension_numbers = #tpu.dot_dimension_numbers<[1], [0], [0], [1], [0, 0, 1, 1], [], []>} : vector<8x256xbf16>, vector<256x2xbf16>, vector<8x2xf32> -> vector<8x2xf32>
    %c0_3 = arith.constant 0 : index
    %c0_4 = arith.constant 0 : index
    %3 = vector.load %arg2[%c0_3, %c0_4] : memref<8x2304xbf16, #tpu.memory_space<vmem>>, vector<8x2304xbf16>
    %c0_5 = arith.constant 0 : index
    %c0_6 = arith.constant 0 : index
    %4 = vector.load %arg5[%c0_5, %c0_6] : memref<2304x2xbf16, #tpu.memory_space<vmem>>, vector<2304x2xbf16>
    %cst_7 = arith.constant dense<0.000000e+00> : vector<8x2xf32>
    %5 = tpu.matmul %3, %4, %cst_7 {dimension_numbers = #tpu.dot_dimension_numbers<[1], [0], [0], [1], [0, 0, 1, 1], [], []>} : vector<8x2304xbf16>, vector<2304x2xbf16>, vector<8x2xf32> -> vector<8x2xf32>
    %c0_8 = arith.constant 0 : index
    %c0_9 = arith.constant 0 : index
    %6 = vector.load %arg3[%c0_8, %c0_9] : memref<8x2304xbf16, #tpu.memory_space<vmem>>, vector<8x2304xbf16>
    %c0_10 = arith.constant 0 : index
    %c0_11 = arith.constant 0 : index
    %7 = vector.load %arg5[%c0_10, %c0_11] : memref<2304x2xbf16, #tpu.memory_space<vmem>>, vector<2304x2xbf16>
    %cst_12 = arith.constant dense<0.000000e+00> : vector<8x2xf32>
    %8 = tpu.matmul %6, %7, %cst_12 {dimension_numbers = #tpu.dot_dimension_numbers<[1], [0], [0], [1], [0, 0, 1, 1], [], []>} : vector<8x2304xbf16>, vector<2304x2xbf16>, vector<8x2xf32> -> vector<8x2xf32>
    %9 = tpu.iota {dimensions = array<i32: 1>} : vector<8x2xi32>
    %c0_i32 = arith.constant 0 : i32
    %10 = vector.broadcast %c0_i32 : i32 to vector<8x2xi32>
    %11 = arith.cmpi eq, %9, %10 : vector<8x2xi32>
    %12 = arith.select %11, %5, %8 : vector<8x2xi1>, vector<8x2xf32>
    %13 = arith.addf %2, %12 : vector<8x2xf32>
    %c0_13 = arith.constant 0 : index
    %c0_14 = arith.constant 0 : index
    %14 = vector.load %arg6[%c0_13, %c0_14] : memref<1x2xf32, #tpu.memory_space<vmem>>, vector<1x2xf32>
    %15 = vector.broadcast %14 : vector<1x2xf32> to vector<8x2xf32>
    %16 = arith.addf %13, %15 : vector<8x2xf32>
    %c0_15 = arith.constant 0 : index
    %c0_16 = arith.constant 0 : index
    %17 = vector.load %arg7[%c0_15, %c0_16] : memref<8x2xf32, #tpu.memory_space<vmem>>, vector<8x2xf32>
    tpu.vector_store %arg7[%c0_15, %c0_16], %16 {strides = array<i32>} : memref<8x2xf32, #tpu.memory_space<vmem>>, vector<8x2xf32>,
    return
  }
  func.func @transform_0(%arg0: i32) -> (i32, i32) {
    %c0_i32 = arith.constant 0 : i32
    %c0_i32_0 = arith.constant 0 : i32
    %c0_i32_1 = arith.constant 0 : i32
    return %c0_i32, %c0_i32_0 : i32, i32
  }
  func.func @transform_1(%arg0: i32) -> (i32, i32) {
    %c0_i32 = arith.constant 0 : i32
    %c0_i32_0 = arith.constant 0 : i32
    %c0_i32_1 = arith.constant 0 : i32
    return %c0_i32, %c0_i32_0 : i32, i32
  }
  func.func @transform_2(%arg0: i32) -> (i32, i32) {
    %c0_i32 = arith.constant 0 : i32
    %c0_i32_0 = arith.constant 0 : i32
    %c0_i32_1 = arith.constant 0 : i32
    return %c0_i32, %c0_i32_0 : i32, i32
  }
  func.func @transform_3(%arg0: i32) -> (i32, i32) {
    %c0_i32 = arith.constant 0 : i32
    %c0_i32_0 = arith.constant 0 : i32
    %c0_i32_1 = arith.constant 0 : i32
    return %c0_i32, %c0_i32_0 : i32, i32
  }
  func.func @transform_4(%arg0: i32) -> (i32, i32) {
    %c0_i32 = arith.constant 0 : i32
    %c0_i32_0 = arith.constant 0 : i32
    %c0_i32_1 = arith.constant 0 : i32
    return %c0_i32, %c0_i32_0 : i32, i32
  }
  func.func @transform_5(%arg0: i32) -> (i32, i32) {
    %c0_i32 = arith.constant 0 : i32
    %c0_i32_0 = arith.constant 0 : i32
    %c0_i32_1 = arith.constant 0 : i32
    return %c0_i32, %c0_i32_0 : i32, i32
  }
  func.func @transform_6(%arg0: i32) -> (i32, i32) {
    %c0_i32 = arith.constant 0 : i32
    %c0_i32_0 = arith.constant 0 : i32
    %c0_i32_1 = arith.constant 0 : i32
    return %c0_i32, %c0_i32_0 : i32, i32
  }
}

</mosaic_0001>

<llo_original>
// kernel: single_disc_forward.8
$region0: #{single_disc_forward.8}
  #allocation0 [shape = 'u32[]', space=smem, size = 0x4, offset = 0x4, fixed_abs, tag = 'smem constant byte address 0x4 - core index']
  #allocation1 [shape = 'u32[144,128]{1,0:T(1,128)}', space=vmem, size = 0x12000, scoped, tag = 'internal scratch']
  %s0 = inlined_call_operand.vmem [shape: f32[8,128], index: 0, kind: input, shape index: {}]
  %s1 = inlined_call_operand.vmem [shape: f32[8,128], index: 1, kind: input, shape index: {}]
  %s2 = inlined_call_operand.vmem [shape: f32[128,128], index: 2, kind: input, shape index: {}]
  %s3 = inlined_call_operand.hbm [shape: f32[128,128], index: 3, kind: input, shape index: {}]
  %s4 = inlined_call_operand.vmem [shape: f32[1,128], index: 4, kind: input, shape index: {}]
  %s5 = inlined_call_operand.vmem [shape: f32[1,128], index: 5, kind: input, shape index: {}]
  %s6 = inlined_call_operand.vmem [shape: f32[8,128], index: 6, kind: output, shape index: {0}]
  %s7 = inlined_call_operand.vmem [shape: f32[8,128], index: 7, kind: output, shape index: {1}]
  %8 = xla_tuple %s6, %s7
  %s9 = sld [smem:[#allocation0]]
  $region46: #{single_disc_forward.8} parent=0
    _
  %s11 = ssub.s32 1, %s9
  %s12 = scalar_select 0, %s11, %s9
  $region1: #{single_disc_forward.8} parent=0
    #allocation2 [shape = 'u8[65536]{0}', space=vmem, size = 0x10000, scoped, tag = 'input window, operand 3, single buffered']
    #allocation3 [shape = 's32[1]{0}', space=sflag, size = 0x4, scoped, tag = 'scoped memory for single_disc_forward.8']
    %13 = vsyncpa [#allocation3], 0
    // Predicated region
    $region2: #{single_disc_forward.8} parent=1 // pred_check
      _
    $region3: #{single_disc_forward.8} parent=1 // pred_check_branch
      %15 = sbr.rel (0) target = $region5
    $region4: #{single_disc_forward.8} parent=1 // pred_region
      _
    $region5: #{single_disc_forward.8} parent=1 // pred_fallthru
      _
    // Predicated region
    $region6: #{single_disc_forward.8} parent=1 // pred_check
      _
    $region7: #{single_disc_forward.8} parent=1 // pred_check_branch
      %17 = sbr.rel (0) target = $region9
    $region8: #{single_disc_forward.8} parent=1 // pred_region
      _
    $region9: #{single_disc_forward.8} parent=1 // pred_fallthru
      _
    // Predicated region
    $region10: #{single_disc_forward.8} parent=1 // pred_check
      _
    $region11: #{single_disc_forward.8} parent=1 // pred_check_branch
      %19 = sbr.rel (0) target = $region13
    $region12: #{single_disc_forward.8} parent=1 // pred_region
      _
    $region13: #{single_disc_forward.8} parent=1 // pred_fallthru
      _
    // Predicated region
    $region14: #{single_disc_forward.8} parent=1 // pred_check
      _
    $region15: #{single_disc_forward.8} parent=1 // pred_check_branch
      %21 = sbr.rel (0) target = $region17
    $region16: #{single_disc_forward.8} parent=1 // pred_region
      %s23 = ssub.s32 2048, 2048
      %24 = vsyncadd [#allocation3], %s23
      %s25 = sshll.u32 [#allocation2], 4
      %s26 = int_to_ptr.vmem [resolvable:$true] %s25
      %31 = dma.hbm_to_vmem [thread:$0]  %s3, 2048, %s26, [#allocation3], 128, 128, 8
    $region17: #{single_disc_forward.8} parent=1 // pred_fallthru
      _
    // Predicated region
    $region18: #{single_disc_forward.8} parent=1 // pred_check
      _
    $region19: #{single_disc_forward.8} parent=1 // pred_check_branch
      %33 = sbr.rel (0) target = $region21
    $region20: #{single_disc_forward.8} parent=1 // pred_region
      _
    $region21: #{single_disc_forward.8} parent=1 // pred_fallthru
      _
    // Predicated region
    $region22: #{single_disc_forward.8} parent=1 // pred_check
      _
    $region23: #{single_disc_forward.8} parent=1 // pred_check_branch
      %35 = sbr.rel (0) target = $region25
    $region24: #{single_disc_forward.8} parent=1 // pred_region
      _
    $region25: #{single_disc_forward.8} parent=1 // pred_fallthru
      _
    // Predicated region
    $region26: #{single_disc_forward.8} parent=1 // pred_check
      _
    $region27: #{single_disc_forward.8} parent=1 // pred_check_branch
      %37 = sbr.rel (0) target = $region29
    $region28: #{single_disc_forward.8} parent=1 // pred_region
      %38 = dma.done [#allocation3], 2048
    $region29: #{single_disc_forward.8} parent=1 // pred_fallthru
      _
    %v39 = vld [vmem:[%s0] sm:$0xff]
    %v40 = vld [vmem:[%s2] sm:$0xff]
    %v41 = vld [vmem:[%s2 + $0x8] sm:$0xff]
    %v42 = vld [vmem:[%s2 + $0x10] sm:$0xff]
    %v43 = vld [vmem:[%s2 + $0x18] sm:$0xff]
    %v44 = vld [vmem:[%s2 + $0x20] sm:$0xff]
    %v45 = vld [vmem:[%s2 + $0x28] sm:$0xff]
    %v46 = vld [vmem:[%s2 + $0x30] sm:$0xff]
    %v47 = vld [vmem:[%s2 + $0x38] sm:$0xff]
    %v48 = vld [vmem:[%s2 + $0x40] sm:$0xff]
    %v49 = vld [vmem:[%s2 + $0x48] sm:$0xff]
    %v50 = vld [vmem:[%s2 + $0x50] sm:$0xff]
    %v51 = vld [vmem:[%s2 + $0x58] sm:$0xff]
    %v52 = vld [vmem:[%s2 + $0x60] sm:$0xff]
    %v53 = vld [vmem:[%s2 + $0x68] sm:$0xff]
    %v54 = vld [vmem:[%s2 + $0x70] sm:$0xff]
    %v55 = vld [vmem:[%s2 + $0x78] sm:$0xff]
    %v56 = vld [vmem:[%s4] sm:$0x1]
    %v58 = vlaneseq
    %v59 = vshrl.u32 %v58, 7
    %v60 = vsub.s32 0, %v59
    %v61 = vrot.slane %v56, %v60
    %63 = vmatprep.subr.mxu0 0.0
    %64 = vmatpush1.msra.mxu0 %v40
    %65 = vmatprep.subr.mxu0 0.0
    %66 = vmatpush1.msra.mxu0 %v41
    %67 = vmatprep.subr.mxu0 0.0
    %68 = vmatpush1.msra.mxu0 %v42
    %69 = vmatprep.subr.mxu0 0.0
    %70 = vmatpush1.msra.mxu0 %v43
    %71 = vmatprep.subr.mxu0 0.0
    %72 = vmatpush1.msra.mxu0 %v44
    %73 = vmatprep.subr.mxu0 0.0
    %74 = vmatpush1.msra.mxu0 %v45
    %75 = vmatprep.subr.mxu0 0.0
    %76 = vmatpush1.msra.mxu0 %v46
    %77 = vmatprep.subr.mxu0 0.0
    %78 = vmatpush1.msra.mxu0 %v47
    %79 = vmatprep.subr.mxu0 0.0
    %80 = vmatpush1.msra.mxu0 %v48
    %81 = vmatprep.subr.mxu0 0.0
    %82 = vmatpush1.msra.mxu0 %v49
    %83 = vmatprep.subr.mxu0 0.0
    %84 = vmatpush1.msra.mxu0 %v50
    %85 = vmatprep.subr.mxu0 0.0
    %86 = vmatpush1.msra.mxu0 %v51
    %87 = vmatprep.subr.mxu0 0.0
    %88 = vmatpush1.msra.mxu0 %v52
    %89 = vmatprep.subr.mxu0 0.0
    %90 = vmatpush1.msra.mxu0 %v53
    %91 = vmatprep.subr.mxu0 0.0
    %92 = vmatpush1.msra.mxu0 %v54
    %93 = vmatprep.subr.mxu0 0.0
    %94 = vmatpush1.msra.mxu0 %v55
    %95 = vmatprep.subr.mxu0 0.0
    %96 = vmatpush1.msra.mxu0 0.0
    %97 = vmatprep.subr.mxu0 0.0
    %98 = vmatpush1.msra.mxu0 0.0
    %99 = vmatprep.subr.mxu0 0.0
    %100 = vmatpush1.msra.mxu0 0.0
    %101 = vmatprep.subr.mxu0 0.0
    %102 = vmatpush1.msra.mxu0 0.0
    %103 = vmatprep.subr.mxu0 0.0
    %104 = vmatpush1.msra.mxu0 0.0
    %105 = vmatprep.subr.mxu0 0.0
    %106 = vmatpush1.msra.mxu0 0.0
    %107 = vmatprep.subr.mxu0 0.0
    %108 = vmatpush1.msra.mxu0 0.0
    %109 = vmatprep.subr.mxu0 0.0
    %110 = vmatpush1.msra.mxu0 0.0
    %111 = vmatprep.subr.mxu0 0.0
    %112 = vmatpush1.msra.mxu0 0.0
    %113 = vmatprep.subr.mxu0 0.0
    %114 = vmatpush1.msra.mxu0 0.0
    %115 = vmatprep.subr.mxu0 0.0
    %116 = vmatpush1.msra.mxu0 0.0
    %117 = vmatprep.subr.mxu0 0.0
    %118 = vmatpush1.msra.mxu0 0.0
    %119 = vmatprep.subr.mxu0 0.0
    %120 = vmatpush1.msra.mxu0 0.0
    %121 = vmatprep.subr.mxu0 0.0
    %122 = vmatpush1.msra.mxu0 0.0
    %123 = vmatprep.subr.mxu0 0.0
    %124 = vmatpush1.msra.mxu0 0.0
    %125 = vmatprep.subr.mxu0 0.0
    %126 = vmatpush1.msra.mxu0 0.0
    %127 = vmatprep.mubr.f32.mxu0 0.0
    %128 = vmatmul.mubr.f32.gmra.mrb[0].mxu0 %v39
    %v129 = vpop.f32.mrb[0].mxu0
    %v130 = vadd.f32 %v61, %v129
    %v131 = vpop.f32.mrb[0].mxu0
    %132 = vdwg.mxu0
    %133 = vst [vmem:[%s6] sm:$0xff] %v130
    %v134 = vld [vmem:[%s1] sm:$0xff]
    %v135 = vld [vmem:[#allocation2] sm:$0xff]
    %v136 = vld [vmem:[#allocation2 + $0x8] sm:$0xff]
    %v137 = vld [vmem:[#allocation2 + $0x10] sm:$0xff]
    %v138 = vld [vmem:[#allocation2 + $0x18] sm:$0xff]
    %v139 = vld [vmem:[#allocation2 + $0x20] sm:$0xff]
    %v140 = vld [vmem:[#allocation2 + $0x28] sm:$0xff]
    %v141 = vld [vmem:[#allocation2 + $0x30] sm:$0xff]
    %v142 = vld [vmem:[#allocation2 + $0x38] sm:$0xff]
    %v143 = vld [vmem:[#allocation2 + $0x40] sm:$0xff]
    %v144 = vld [vmem:[#allocation2 + $0x48] sm:$0xff]
    %v145 = vld [vmem:[#allocation2 + $0x50] sm:$0xff]
    %v146 = vld [vmem:[#allocation2 + $0x58] sm:$0xff]
    %v147 = vld [vmem:[#allocation2 + $0x60] sm:$0xff]
    %v148 = vld [vmem:[#allocation2 + $0x68] sm:$0xff]
    %v149 = vld [vmem:[#allocation2 + $0x70] sm:$0xff]
    %v150 = vld [vmem:[#allocation2 + $0x78] sm:$0xff]
    %v151 = vld [vmem:[%s5] sm:$0x1]
    %v153 = vlaneseq
    %v154 = vshrl.u32 %v153, 7
    %v155 = vsub.s32 0, %v154
    %v156 = vrot.slane %v151, %v155
    %158 = vmatprep.subr.mxu0 0.0
    %159 = vmatpush1.msra.mxu0 %v135
    %160 = vmatprep.subr.mxu0 0.0
    %161 = vmatpush1.msra.mxu0 %v136
    %162 = vmatprep.subr.mxu0 0.0
    %163 = vmatpush1.msra.mxu0 %v137
    %164 = vmatprep.subr.mxu0 0.0
    %165 = vmatpush1.msra.mxu0 %v138
    %166 = vmatprep.subr.mxu0 0.0
    %167 = vmatpush1.msra.mxu0 %v139
    %168 = vmatprep.subr.mxu0 0.0
    %169 = vmatpush1.msra.mxu0 %v140
    %170 = vmatprep.subr.mxu0 0.0
    %171 = vmatpush1.msra.mxu0 %v141
    %172 = vmatprep.subr.mxu0 0.0
    %173 = vmatpush1.msra.mxu0 %v142
    %174 = vmatprep.subr.mxu0 0.0
    %175 = vmatpush1.msra.mxu0 %v143
    %176 = vmatprep.subr.mxu0 0.0
    %177 = vmatpush1.msra.mxu0 %v144
    %178 = vmatprep.subr.mxu0 0.0
    %179 = vmatpush1.msra.mxu0 %v145
    %180 = vmatprep.subr.mxu0 0.0
    %181 = vmatpush1.msra.mxu0 %v146
    %182 = vmatprep.subr.mxu0 0.0
    %183 = vmatpush1.msra.mxu0 %v147
    %184 = vmatprep.subr.mxu0 0.0
    %185 = vmatpush1.msra.mxu0 %v148
    %186 = vmatprep.subr.mxu0 0.0
    %187 = vmatpush1.msra.mxu0 %v149
    %188 = vmatprep.subr.mxu0 0.0
    %189 = vmatpush1.msra.mxu0 %v150
    %190 = vmatprep.subr.mxu0 0.0
    %191 = vmatpush1.msra.mxu0 0.0
    %192 = vmatprep.subr.mxu0 0.0
    %193 = vmatpush1.msra.mxu0 0.0
    %194 = vmatprep.subr.mxu0 0.0
    %195 = vmatpush1.msra.mxu0 0.0
    %196 = vmatprep.subr.mxu0 0.0
    %197 = vmatpush1.msra.mxu0 0.0
    %198 = vmatprep.subr.mxu0 0.0
    %199 = vmatpush1.msra.mxu0 0.0
    %200 = vmatprep.subr.mxu0 0.0
    %201 = vmatpush1.msra.mxu0 0.0
    %202 = vmatprep.subr.mxu0 0.0
    %203 = vmatpush1.msra.mxu0 0.0
    %204 = vmatprep.subr.mxu0 0.0
    %205 = vmatpush1.msra.mxu0 0.0
    %206 = vmatprep.subr.mxu0 0.0
    %207 = vmatpush1.msra.mxu0 0.0
    %208 = vmatprep.subr.mxu0 0.0
    %209 = vmatpush1.msra.mxu0 0.0
    %210 = vmatprep.subr.mxu0 0.0
    %211 = vmatpush1.msra.mxu0 0.0
    %212 = vmatprep.subr.mxu0 0.0
    %213 = vmatpush1.msra.mxu0 0.0
    %214 = vmatprep.subr.mxu0 0.0
    %215 = vmatpush1.msra.mxu0 0.0
    %216 = vmatprep.subr.mxu0 0.0
    %217 = vmatpush1.msra.mxu0 0.0
    %218 = vmatprep.subr.mxu0 0.0
    %219 = vmatpush1.msra.mxu0 0.0
    %220 = vmatprep.subr.mxu0 0.0
    %221 = vmatpush1.msra.mxu0 0.0
    %222 = vmatprep.mubr.f32.mxu0 0.0
    %223 = vmatmul.mubr.f32.gmra.mrb[0].mxu0 %v134
    %v224 = vpop.f32.mrb[0].mxu0
    %v225 = vadd.f32 %v156, %v224
    %v226 = vpop.f32.mrb[0].mxu0
    %227 = vdwg.mxu0
    %228 = vst [vmem:[%s7] sm:$0xff] %v225
    // Predicated region
    $region30: #{single_disc_forward.8} parent=1 // pred_check
      _
    $region31: #{single_disc_forward.8} parent=1 // pred_check_branch
      %230 = sbr.rel (0) target = $region33
    $region32: #{single_disc_forward.8} parent=1 // pred_region
      _
    $region33: #{single_disc_forward.8} parent=1 // pred_fallthru
      _
    // Predicated region
    $region34: #{single_disc_forward.8} parent=1 // pred_check
      _
    $region35: #{single_disc_forward.8} parent=1 // pred_check_branch
      %232 = sbr.rel (0) target = $region37
    $region36: #{single_disc_forward.8} parent=1 // pred_region
      _
    $region37: #{single_disc_forward.8} parent=1 // pred_fallthru
      _
    // Predicated region
    $region38: #{single_disc_forward.8} parent=1 // pred_check
      _
    $region39: #{single_disc_forward.8} parent=1 // pred_check_branch
      %234 = sbr.rel (0) target = $region41
    $region40: #{single_disc_forward.8} parent=1 // pred_region
      _
    $region41: #{single_disc_forward.8} parent=1 // pred_fallthru
      _
    // Predicated region
    $region42: #{single_disc_forward.8} parent=1 // pred_check
      _
    $region43: #{single_disc_forward.8} parent=1 // pred_check_branch
      %236 = sbr.rel (0) target = $region45
    $region44: #{single_disc_forward.8} parent=1 // pred_region
      _
    $region45: #{single_disc_forward.8} parent=1 // pred_fallthru
      _
    %237 = vsyncpa [#allocation3], 1

// kernel: single_disc_forward.12
$region0: #{single_disc_forward.12}
  #allocation0 [shape = 'u32[]', space=smem, size = 0x4, offset = 0x4, fixed_abs, tag = 'smem constant byte address 0x4 - core index']
  #allocation1 [shape = 'u32[144,128]{1,0:T(1,128)}', space=vmem, size = 0x12000, scoped, tag = 'internal scratch']
  %s0 = inlined_call_operand.vmem [shape: bf16[1536,128], index: 0, kind: input, shape index: {}]
  %s1 = inlined_call_operand.vmem [shape: bf16[128,128], index: 1, kind: input, shape index: {}]
  %s2 = inlined_call_operand.vmem [shape: f32[1,128], index: 2, kind: input, shape index: {}]
  %s3 = inlined_call_operand.vmem [shape: f32[1,128], index: 3, kind: input, shape index: {}]
  %s4 = inlined_call_operand.vmem [shape: f32[1,128], index: 4, kind: input, shape index: {}]
  %s5 = inlined_call_operand.vmem [shape: bf16[1536,128], index: 5, kind: output, shape index: {}]
  %s6 = sld [smem:[#allocation0]]
  $region53: #{single_disc_forward.12} parent=0
    _
  %s8 = ssub.s32 1, %s6
  %s9 = scalar_select 0, %s8, %s6
  loop: start=0, step=1, limit=5
  $region2: #{single_disc_forward.12} parent=0 // loop_pre_header
    _
  $region3: #{single_disc_forward.12} parent=0 // loop_header
    %s11 = sphi 0, %s15
    %p12 = scmp.ge.s32.totalorder %s11, 5
    %s21 = sphi 0, %s23
    %s24 = sphi 0, %s21
    %s25 = sphi 0, %s24
    %s41 = sphi 0, %s25
    %s45 = sphi 0, %s45
    %s47 = sphi 0, %s45
    %s48 = sphi 0, %s47
    %s62 = sphi 0, %s48
    %s66 = sphi 0, %s66
    %s68 = sphi 0, %s66
    %s69 = sphi 0, %s68
    %s83 = sphi 0, %s69
    %s87 = sphi 0, %s87
    %s89 = sphi 0, %s87
    %s90 = sphi 0, %s89
    %s104 = sphi 0, %s90
    %s108 = sphi 0, %s108
    %s110 = sphi 0, %s108
    %s111 = sphi 0, %s110
    %s125 = sphi 0, %s111
    %s131 = sphi 0, %s133
    %s134 = sphi 0, %s131
    %s135 = sphi 0, %s134
    %s151 = sphi 0, %s135
  $region4: #{single_disc_forward.12} parent=0 // loop_header_branch
    %14 = sbr.rel (%p12) target = $region8
  $region5: #{single_disc_forward.12} parent=0 // loop_body
    %s16 = ssub.s32 %s11, 1
    %s17 = ssub.s32 %s11, 2
    %s18 = sadd.s32 %s11, 1
    %s19 = ssub.s32 %s11, %s18
    %p20 = scmp.eq.s32.totalorder %s19, 0
    %s22 = sadd.s32 %s21, 1
    %s23 = scalar_select %p20, %s21, %s22
    %p26 = pneg %p20
    %p27 = scmp.eq.s32.totalorder %s11, 2
    %p28 = por %p26, %p27
    %p29 = scmp.ne.s32.totalorder %s21, %s24
    %p30 = scmp.eq.s32.totalorder %s11, 0
    %p31 = por %p29, %p30
    %p32 = scmp.ne.s32.totalorder %s21, %s24
    %p33 = scmp.eq.s32.totalorder %s16, 2
    %p34 = por %p32, %p33
    %p35 = scmp.ne.s32.totalorder %s24, %s25
    %p36 = scmp.eq.s32.totalorder %s16, 0
    %p37 = por %p35, %p36
    %p38 = scmp.ne.s32.totalorder %s24, %s25
    %p39 = scmp.eq.s32.totalorder %s17, 2
    %p40 = por %p38, %p39
    %p42 = scmp.ne.s32.totalorder %s25, %s41
    %p43 = scmp.eq.s32.totalorder %s17, 0
    %p44 = por %p42, %p43
    %s46 = sadd.s32 %s45, 1
    %p49 = scmp.eq.s32.totalorder %s11, 2
    %p50 = scmp.ne.s32.totalorder %s45, %s47
    %p51 = scmp.eq.s32.totalorder %s11, 0
    %p52 = por %p50, %p51
    %p53 = scmp.ne.s32.totalorder %s45, %s47
    %p54 = scmp.eq.s32.totalorder %s16, 2
    %p55 = por %p53, %p54
    %p56 = scmp.ne.s32.totalorder %s47, %s48
    %p57 = scmp.eq.s32.totalorder %s16, 0
    %p58 = por %p56, %p57
    %p59 = scmp.ne.s32.totalorder %s47, %s48
    %p60 = scmp.eq.s32.totalorder %s17, 2
    %p61 = por %p59, %p60
    %p63 = scmp.ne.s32.totalorder %s48, %s62
    %p64 = scmp.eq.s32.totalorder %s17, 0
    %p65 = por %p63, %p64
    %s67 = sadd.s32 %s66, 1
    %p70 = scmp.eq.s32.totalorder %s11, 2
    %p71 = scmp.ne.s32.totalorder %s66, %s68
    %p72 = scmp.eq.s32.totalorder %s11, 0
    %p73 = por %p71, %p72
    %p74 = scmp.ne.s32.totalorder %s66, %s68
    %p75 = scmp.eq.s32.totalorder %s16, 2
    %p76 = por %p74, %p75
    %p77 = scmp.ne.s32.totalorder %s68, %s69
    %p78 = scmp.eq.s32.totalorder %s16, 0
    %p79 = por %p77, %p78
    %p80 = scmp.ne.s32.totalorder %s68, %s69
    %p81 = scmp.eq.s32.totalorder %s17, 2
    %p82 = por %p80, %p81
    %p84 = scmp.ne.s32.totalorder %s69, %s83
    %p85 = scmp.eq.s32.totalorder %s17, 0
    %p86 = por %p84, %p85
    %s88 = sadd.s32 %s87, 1
    %p91 = scmp.eq.s32.totalorder %s11, 2
    %p92 = scmp.ne.s32.totalorder %s87, %s89
    %p93 = scmp.eq.s32.totalorder %s11, 0
    %p94 = por %p92, %p93
    %p95 = scmp.ne.s32.totalorder %s87, %s89
    %p96 = scmp.eq.s32.totalorder %s16, 2
    %p97 = por %p95, %p96
    %p98 = scmp.ne.s32.totalorder %s89, %s90
    %p99 = scmp.eq.s32.totalorder %s16, 0
    %p100 = por %p98, %p99
    %p101 = scmp.ne.s32.totalorder %s89, %s90
    %p102 = scmp.eq.s32.totalorder %s17, 2
    %p103 = por %p101, %p102
    %p105 = scmp.ne.s32.totalorder %s90, %s104
    %p106 = scmp.eq.s32.totalorder %s17, 0
    %p107 = por %p105, %p106
    %s109 = sadd.s32 %s108, 1
    %p112 = scmp.eq.s32.totalorder %s11, 2
    %p113 = scmp.ne.s32.totalorder %s108, %s110
    %p114 = scmp.eq.s32.totalorder %s11, 0
    %p115 = por %p113, %p114
    %p116 = scmp.ne.s32.totalorder %s108, %s110
    %p117 = scmp.eq.s32.totalorder %s16, 2
    %p118 = por %p116, %p117
    %p119 = scmp.ne.s32.totalorder %s110, %s111
    %p120 = scmp.eq.s32.totalorder %s16, 0
    %p121 = por %p119, %p120
    %p122 = scmp.ne.s32.totalorder %s110, %s111
    %p123 = scmp.eq.s32.totalorder %s17, 2
    %p124 = por %p122, %p123
    %p126 = scmp.ne.s32.totalorder %s111, %s125
    %p127 = scmp.eq.s32.totalorder %s17, 0
    %p128 = por %p126, %p127
    %s129 = ssub.s32 %s11, %s18
    %p130 = scmp.eq.s32.totalorder %s129, 0
    %s132 = sadd.s32 %s131, 1
    %s133 = scalar_select %p130, %s131, %s132
    %p136 = pneg %p130
    %p137 = scmp.eq.s32.totalorder %s11, 2
    %p138 = por %p136, %p137
    %p139 = scmp.ne.s32.totalorder %s131, %s134
    %p140 = scmp.eq.s32.totalorder %s11, 0
    %p141 = por %p139, %p140
    %p142 = scmp.ne.s32.totalorder %s131, %s134
    %p143 = scmp.eq.s32.totalorder %s16, 2
    %p144 = por %p142, %p143
    %p145 = scmp.ne.s32.totalorder %s134, %s135
    %p146 = scmp.eq.s32.totalorder %s16, 0
    %p147 = por %p145, %p146
    %p148 = scmp.ne.s32.totalorder %s134, %s135
    %p149 = scmp.eq.s32.totalorder %s17, 2
    %p150 = por %p148, %p149
    %p152 = scmp.ne.s32.totalorder %s135, %s151
    %p153 = scmp.eq.s32.totalorder %s17, 0
    %p154 = por %p152, %p153
    %p155 = scmp.le.s32.totalorder 1, %s11
    %p156 = scmp.lt.s32.totalorder %s11, 4
    %p157 = pnand %p155, %p156
    %p158 = pneg %p157
    // Predicated region
    $region9: #{single_disc_forward.12} parent=5 // pred_check
      _
    $region10: #{single_disc_forward.12} parent=5 // pred_check_branch
      %160 = sbr.rel (%p157) target = $region12
    $region11: #{single_disc_forward.12} parent=5 // pred_region
      %s161 = ssub.s32 %s11, 1
      // Predicated region
      $region13: #{single_disc_forward.12} parent=11 // pred_check
        %p162 = pneg %p58
      $region14: #{single_disc_forward.12} parent=11 // pred_check_branch
        %164 = sbr.rel (%p162) target = $region16
      $region15: #{single_disc_forward.12} parent=11 // pred_region
        _
      $region16: #{single_disc_forward.12} parent=11 // pred_fallthru
        _
      // Predicated region
      $region17: #{single_disc_forward.12} parent=11 // pred_check
        %p165 = pneg %p79
      $region18: #{single_disc_forward.12} parent=11 // pred_check_branch
        %167 = sbr.rel (%p165) target = $region20
      $region19: #{single_disc_forward.12} parent=11 // pred_region
        _
      $region20: #{single_disc_forward.12} parent=11 // pred_fallthru
        _
      // Predicated region
      $region21: #{single_disc_forward.12} parent=11 // pred_check
        %p168 = pneg %p100
      $region22: #{single_disc_forward.12} parent=11 // pred_check_branch
        %170 = sbr.rel (%p168) target = $region24
      $region23: #{single_disc_forward.12} parent=11 // pred_region
        _
      $region24: #{single_disc_forward.12} parent=11 // pred_fallthru
        _
      // Predicated region
      $region25: #{single_disc_forward.12} parent=11 // pred_check
        %p171 = pneg %p121
      $region26: #{single_disc_forward.12} parent=11 // pred_check_branch
        %173 = sbr.rel (%p171) target = $region28
      $region27: #{single_disc_forward.12} parent=11 // pred_region
        _
      $region28: #{single_disc_forward.12} parent=11 // pred_fallthru
        _
    $region12: #{single_disc_forward.12} parent=5 // pred_fallthru
      _
    %p174 = scmp.lt.s32.totalorder %s11, 3
    // Predicated region
    $region29: #{single_disc_forward.12} parent=5 // pred_check
      %p175 = pneg %p174
    $region30: #{single_disc_forward.12} parent=5 // pred_check_branch
      %177 = sbr.rel (%p175) target = $region32
    $region31: #{single_disc_forward.12} parent=5 // pred_region
      // Predicated region
      $region33: #{single_disc_forward.12} parent=31 // pred_check
        %p178 = pneg %p31
      $region34: #{single_disc_forward.12} parent=31 // pred_check_branch
        %180 = sbr.rel (%p178) target = $region36
      $region35: #{single_disc_forward.12} parent=31 // pred_region
        %s181 = smul.u32 64, %s11
        %p182 = scmp.lt.s32.totalorder %s181, 191
        %s183 = scalar_select %p182, %s181, 191
        %s184 = smul.addr %s183, 4
        %s185 = scalar_lea.vmem %s0, %s184
        %s186 = smul.u32 64, %s11
      $region36: #{single_disc_forward.12} parent=31 // pred_fallthru
        _
    $region32: #{single_disc_forward.12} parent=5 // pred_fallthru
      _
    %p187 = scmp.le.s32.totalorder 1, %s11
    %p188 = scmp.lt.s32.totalorder %s11, 4
    %p189 = pnand %p187, %p188
    %p190 = pneg %p189
    // Predicated region
    $region37: #{single_disc_forward.12} parent=5 // pred_check
      _
    $region38: #{single_disc_forward.12} parent=5 // pred_check_branch
      %192 = sbr.rel (%p189) target = $region40
    $region39: #{single_disc_forward.12} parent=5 // pred_region
      %s193 = ssub.s32 %s11, 1
      %s194 = smul.u32 64, %s16
      %p195 = scmp.lt.s32.totalorder %s194, 191
      %s196 = scalar_select %p195, %s194, 191
      %s197 = smul.addr %s196, 4
      %s198 = scalar_lea.vmem %s0, %s197
      %p199 = pneg %p37
      %p200 = pneg %p34
      %p201 = pneg %p58
      %p202 = pneg %p55
      %p203 = pneg %p79
      %p204 = pneg %p76
      %p205 = pneg %p100
      %p206 = pneg %p97
      %p207 = pneg %p121
      %p208 = pneg %p118
      %p209 = pneg %p147
      %p210 = pneg %p144
      %s211 = smul.u32 64, %s16
      %p212 = scmp.lt.s32.totalorder %s211, 191
      %s213 = scalar_select %p212, %s211, 191
      %s214 = smul.addr %s213, 4
      %s215 = scalar_lea.vmem %s5, %s214
      %s216 = smul.u32 64, %s16
      %p217 = scmp.lt.s32.totalorder %s216, 191
      %s218 = scalar_select %p217, %s216, 191
      %s219 = smul.addr %s218, 4
      %s220 = scalar_lea.vmem %s0, %s219
      %s221 = smul.u32 64, %s16
      %s222 = smul.u32 64, %s16
      %p223 = scmp.lt.s32.totalorder %s222, 191
      %s224 = scalar_select %p223, %s222, 191
      %s225 = smul.addr %s224, 4
      %s226 = scalar_lea.vmem %s5, %s225
      %s227 = smul.u32 64, %s16
      %v229 = vld [vmem:[%s220] sm:$0xf]
      %v230 = vld [vmem:[%s220 + $0x4] sm:$0xf]
      %v231 = vld [vmem:[%s220 + $0x8] sm:$0xf]
      %v232 = vld [vmem:[%s220 + $0xc] sm:$0xf]
      %v233 = vld [vmem:[%s220 + $0x10] sm:$0xf]
      %v234 = vld [vmem:[%s220 + $0x14] sm:$0xf]
      %v235 = vld [vmem:[%s220 + $0x18] sm:$0xf]
      %v236 = vld [vmem:[%s220 + $0x1c] sm:$0xf]
      %v237 = vld [vmem:[%s220 + $0x20] sm:$0xf]
      %v238 = vld [vmem:[%s220 + $0x24] sm:$0xf]
      %v239 = vld [vmem:[%s220 + $0x28] sm:$0xf]
      %v240 = vld [vmem:[%s220 + $0x2c] sm:$0xf]
      %v241 = vld [vmem:[%s220 + $0x30] sm:$0xf]
      %v242 = vld [vmem:[%s220 + $0x34] sm:$0xf]
      %v243 = vld [vmem:[%s220 + $0x38] sm:$0xf]
      %v244 = vld [vmem:[%s220 + $0x3c] sm:$0xf]
      %v245 = vld [vmem:[%s220 + $0x40] sm:$0xf]
      %v246 = vld [vmem:[%s220 + $0x44] sm:$0xf]
      %v247 = vld [vmem:[%s220 + $0x48] sm:$0xf]
      %v248 = vld [vmem:[%s220 + $0x4c] sm:$0xf]
      %v249 = vld [vmem:[%s220 + $0x50] sm:$0xf]
      %v250 = vld [vmem:[%s220 + $0x54] sm:$0xf]
      %v251 = vld [vmem:[%s220 + $0x58] sm:$0xf]
      %v252 = vld [vmem:[%s220 + $0x5c] sm:$0xf]
      %v253 = vld [vmem:[%s220 + $0x60] sm:$0xf]
      %v254 = vld [vmem:[%s220 + $0x64] sm:$0xf]
      %v255 = vld [vmem:[%s220 + $0x68] sm:$0xf]
      %v256 = vld [vmem:[%s220 + $0x6c] sm:$0xf]
      %v257 = vld [vmem:[%s220 + $0x70] sm:$0xf]
      %v258 = vld [vmem:[%s220 + $0x74] sm:$0xf]
      %v259 = vld [vmem:[%s220 + $0x78] sm:$0xf]
      %v260 = vld [vmem:[%s220 + $0x7c] sm:$0xf]
      %v261 = vld [vmem:[%s220 + $0x80] sm:$0xf]
      %v262 = vld [vmem:[%s220 + $0x84] sm:$0xf]
      %v263 = vld [vmem:[%s220 + $0x88] sm:$0xf]
      %v264 = vld [vmem:[%s220 + $0x8c] sm:$0xf]
      %v265 = vld [vmem:[%s220 + $0x90] sm:$0xf]
      %v266 = vld [vmem:[%s220 + $0x94] sm:$0xf]
      %v267 = vld [vmem:[%s220 + $0x98] sm:$0xf]
      %v268 = vld [vmem:[%s220 + $0x9c] sm:$0xf]
      %v269 = vld [vmem:[%s220 + $0xa0] sm:$0xf]
      %v270 = vld [vmem:[%s220 + $0xa4] sm:$0xf]
      %v271 = vld [vmem:[%s220 + $0xa8] sm:$0xf]
      %v272 = vld [vmem:[%s220 + $0xac] sm:$0xf]
      %v273 = vld [vmem:[%s220 + $0xb0] sm:$0xf]
      %v274 = vld [vmem:[%s220 + $0xb4] sm:$0xf]
      %v275 = vld [vmem:[%s220 + $0xb8] sm:$0xf]
      %v276 = vld [vmem:[%s220 + $0xbc] sm:$0xf]
      %v277 = vld [vmem:[%s220 + $0xc0] sm:$0xf]
      %v278 = vld [vmem:[%s220 + $0xc4] sm:$0xf]
      %v279 = vld [vmem:[%s220 + $0xc8] sm:$0xf]
      %v280 = vld [vmem:[%s220 + $0xcc] sm:$0xf]
      %v281 = vld [vmem:[%s220 + $0xd0] sm:$0xf]
      %v282 = vld [vmem:[%s220 + $0xd4] sm:$0xf]
      %v283 = vld [vmem:[%s220 + $0xd8] sm:$0xf]
      %v284 = vld [vmem:[%s220 + $0xdc] sm:$0xf]
      %v285 = vld [vmem:[%s220 + $0xe0] sm:$0xf]
      %v286 = vld [vmem:[%s220 + $0xe4] sm:$0xf]
      %v287 = vld [vmem:[%s220 + $0xe8] sm:$0xf]
      %v288 = vld [vmem:[%s220 + $0xec] sm:$0xf]
      %v289 = vld [vmem:[%s220 + $0xf0] sm:$0xf]
      %v290 = vld [vmem:[%s220 + $0xf4] sm:$0xf]
      %v291 = vld [vmem:[%s220 + $0xf8] sm:$0xf]
      %v292 = vld [vmem:[%s220 + $0xfc] sm:$0xf]
      %v293 = vld [vmem:[%s1] sm:$0xf]
      %v294 = vld [vmem:[%s1 + $0x4] sm:$0xf]
      %v295 = vld [vmem:[%s1 + $0x8] sm:$0xf]
      %v296 = vld [vmem:[%s1 + $0xc] sm:$0xf]
      %v297 = vld [vmem:[%s1 + $0x10] sm:$0xf]
      %v298 = vld [vmem:[%s1 + $0x14] sm:$0xf]
      %v299 = vld [vmem:[%s1 + $0x18] sm:$0xf]
      %v300 = vld [vmem:[%s1 + $0x1c] sm:$0xf]
      %v301 = vld [vmem:[%s1 + $0x20] sm:$0xf]
      %v302 = vld [vmem:[%s1 + $0x24] sm:$0xf]
      %v303 = vld [vmem:[%s1 + $0x28] sm:$0xf]
      %v304 = vld [vmem:[%s1 + $0x2c] sm:$0xf]
      %v305 = vld [vmem:[%s1 + $0x30] sm:$0xf]
      %v306 = vld [vmem:[%s1 + $0x34] sm:$0xf]
      %v307 = vld [vmem:[%s1 + $0x38] sm:$0xf]
      %v308 = vld [vmem:[%s1 + $0x3c] sm:$0xf]
      %v309 = vld [vmem:[%s2] sm:$0x1]
      %v311 = vlaneseq
      %v312 = vshrl.u32 %v311, 7
      %v313 = vsub.s32 0, %v312
      %v314 = vrot.slane %v309, %v313
      %v380 = vunpack.c.l.b16 %v229
      %v381 = vunpack.c.l.b16 %v230
      %v382 = vunpack.c.l.b16 %v231
      %v383 = vunpack.c.l.b16 %v232
      %v384 = vunpack.c.l.b16 %v233
      %v385 = vunpack.c.l.b16 %v234
      %v386 = vunpack.c.l.b16 %v235
      %v387 = vunpack.c.l.b16 %v236
      %v388 = vunpack.c.l.b16 %v237
      %v389 = vunpack.c.l.b16 %v238
      %v390 = vunpack.c.l.b16 %v239
      %v391 = vunpack.c.l.b16 %v240
      %v392 = vunpack.c.l.b16 %v241
      %v393 = vunpack.c.l.b16 %v242
      %v394 = vunpack.c.l.b16 %v243
      %v395 = vunpack.c.l.b16 %v244
      %v396 = vunpack.c.l.b16 %v245
      %v397 = vunpack.c.l.b16 %v246
      %v398 = vunpack.c.l.b16 %v247
      %v399 = vunpack.c.l.b16 %v248
      %v400 = vunpack.c.l.b16 %v249
      %v401 = vunpack.c.l.b16 %v250
      %v402 = vunpack.c.l.b16 %v251
      %v403 = vunpack.c.l.b16 %v252
      %v404 = vunpack.c.l.b16 %v253
      %v405 = vunpack.c.l.b16 %v254
      %v406 = vunpack.c.l.b16 %v255
      %v407 = vunpack.c.l.b16 %v256
      %v408 = vunpack.c.l.b16 %v257
      %v409 = vunpack.c.l.b16 %v258
      %v410 = vunpack.c.l.b16 %v259
      %v411 = vunpack.c.l.b16 %v260
      %v412 = vunpack.c.l.b16 %v261
      %v413 = vunpack.c.l.b16 %v262
      %v414 = vunpack.c.l.b16 %v263
      %v415 = vunpack.c.l.b16 %v264
      %v416 = vunpack.c.l.b16 %v265
      %v417 = vunpack.c.l.b16 %v266
      %v418 = vunpack.c.l.b16 %v267
      %v419 = vunpack.c.l.b16 %v268
      %v420 = vunpack.c.l.b16 %v269
      %v421 = vunpack.c.l.b16 %v270
      %v422 = vunpack.c.l.b16 %v271
      %v423 = vunpack.c.l.b16 %v272
      %v424 = vunpack.c.l.b16 %v273
      %v425 = vunpack.c.l.b16 %v274
      %v426 = vunpack.c.l.b16 %v275
      %v427 = vunpack.c.l.b16 %v276
      %v428 = vunpack.c.l.b16 %v277
      %v429 = vunpack.c.l.b16 %v278
      %v430 = vunpack.c.l.b16 %v279
      %v431 = vunpack.c.l.b16 %v280
      %v432 = vunpack.c.l.b16 %v281
      %v433 = vunpack.c.l.b16 %v282
      %v434 = vunpack.c.l.b16 %v283
      %v435 = vunpack.c.l.b16 %v284
      %v436 = vunpack.c.l.b16 %v285
      %v437 = vunpack.c.l.b16 %v286
      %v438 = vunpack.c.l.b16 %v287
      %v439 = vunpack.c.l.b16 %v288
      %v440 = vunpack.c.l.b16 %v289
      %v441 = vunpack.c.l.b16 %v290
      %v442 = vunpack.c.l.b16 %v291
      %v443 = vunpack.c.l.b16 %v292
      %v444 = vpack.c.b16 %v381, %v380
      %v445 = vpack.c.b16 %v383, %v382
      %v446 = vpack.c.b16 %v385, %v384
      %v447 = vpack.c.b16 %v387, %v386
      %v448 = vpack.c.b16 %v389, %v388
      %v449 = vpack.c.b16 %v391, %v390
      %v450 = vpack.c.b16 %v393, %v392
      %v451 = vpack.c.b16 %v395, %v394
      %v452 = vpack.c.b16 %v397, %v396
      %v453 = vpack.c.b16 %v399, %v398
      %v454 = vpack.c.b16 %v401, %v400
      %v455 = vpack.c.b16 %v403, %v402
      %v456 = vpack.c.b16 %v405, %v404
      %v457 = vpack.c.b16 %v407, %v406
      %v458 = vpack.c.b16 %v409, %v408
      %v459 = vpack.c.b16 %v411, %v410
      %v460 = vpack.c.b16 %v413, %v412
      %v461 = vpack.c.b16 %v415, %v414
      %v462 = vpack.c.b16 %v417, %v416
      %v463 = vpack.c.b16 %v419, %v418
      %v464 = vpack.c.b16 %v421, %v420
      %v465 = vpack.c.b16 %v423, %v422
      %v466 = vpack.c.b16 %v425, %v424
      %v467 = vpack.c.b16 %v427, %v426
      %v468 = vpack.c.b16 %v429, %v428
      %v469 = vpack.c.b16 %v431, %v430
      %v470 = vpack.c.b16 %v433, %v432
      %v471 = vpack.c.b16 %v435, %v434
      %v472 = vpack.c.b16 %v437, %v436
      %v473 = vpack.c.b16 %v439, %v438
      %v474 = vpack.c.b16 %v441, %v440
      %v475 = vpack.c.b16 %v443, %v442
      %v524 = vunpack.c.l.b16 %v293
      %v525 = vunpack.c.l.b16 %v294
      %v526 = vunpack.c.l.b16 %v295
      %v527 = vunpack.c.l.b16 %v296
      %v528 = vunpack.c.l.b16 %v297
      %v529 = vunpack.c.l.b16 %v298
      %v530 = vunpack.c.l.b16 %v299
      %v531 = vunpack.c.l.b16 %v300
      %v532 = vunpack.c.l.b16 %v301
      %v533 = vunpack.c.l.b16 %v302
      %v534 = vunpack.c.l.b16 %v303
      %v535 = vunpack.c.l.b16 %v304
      %v536 = vunpack.c.l.b16 %v305
      %v537 = vunpack.c.l.b16 %v306
      %v538 = vunpack.c.l.b16 %v307
      %v539 = vunpack.c.l.b16 %v308
      %v540 = vpack.c.b16 %v525, %v524
      %v541 = vpack.c.b16 %v527, %v526
      %v542 = vpack.c.b16 %v529, %v528
      %v543 = vpack.c.b16 %v531, %v530
      %v544 = vpack.c.b16 %v533, %v532
      %v545 = vpack.c.b16 %v535, %v534
      %v546 = vpack.c.b16 %v537, %v536
      %v547 = vpack.c.b16 %v539, %v538
      %556 = vmatprep.subr.bf16.mxu0 0
      %557 = vmatpush1.bf16.msra.mxu0 %v540
      %558 = vmatprep.subr.bf16.mxu0 0
      %559 = vmatpush1.bf16.msra.mxu0 %v541
      %560 = vmatprep.subr.bf16.mxu0 0
      %561 = vmatpush1.bf16.msra.mxu0 %v542
      %562 = vmatprep.subr.bf16.mxu0 0
      %563 = vmatpush1.bf16.msra.mxu0 %v543
      %564 = vmatprep.subr.bf16.mxu0 0
      %565 = vmatpush1.bf16.msra.mxu0 %v544
      %566 = vmatprep.subr.bf16.mxu0 0
      %567 = vmatpush1.bf16.msra.mxu0 %v545
      %568 = vmatprep.subr.bf16.mxu0 0
      %569 = vmatpush1.bf16.msra.mxu0 %v546
      %570 = vmatprep.subr.bf16.mxu0 0
      %571 = vmatpush1.bf16.msra.mxu0 %v547
      %572 = vmatprep.subr.bf16.mxu0 0
      %573 = vmatpush1.bf16.msra.mxu0 0
      %574 = vmatprep.subr.bf16.mxu0 0
      %575 = vmatpush1.bf16.msra.mxu0 0
      %576 = vmatprep.subr.bf16.mxu0 0
      %577 = vmatpush1.bf16.msra.mxu0 0
      %578 = vmatprep.subr.bf16.mxu0 0
      %579 = vmatpush1.bf16.msra.mxu0 0
      %580 = vmatprep.subr.bf16.mxu0 0
      %581 = vmatpush1.bf16.msra.mxu0 0
      %582 = vmatprep.subr.bf16.mxu0 0
      %583 = vmatpush1.bf16.msra.mxu0 0
      %584 = vmatprep.subr.bf16.mxu0 0
      %585 = vmatpush1.bf16.msra.mxu0 0
      %586 = vmatprep.subr.bf16.mxu0 0
      %587 = vmatpush1.bf16.msra.mxu0 0
      %588 = vmatprep.mubr.bf16.mxu0 0
      %589 = vmatmul.mubr.bf16.gmra.mrb[0].mxu0 %v444
      %v590 = vpop.f32.mrb[0].mxu0
      %v591 = vadd.f32 %v314, %v590
      %v592 = vpop.f32.mrb[0].mxu0
      %v593 = vpop.f32.mrb[0].mxu0
      %v594 = vadd.f32 %v314, %v593
      %v595 = vpop.f32.mrb[0].mxu0
      %596 = vmatprep.mubr.bf16.mxu0 0
      %597 = vmatmul.mubr.bf16.gmra.mrb[0].mxu0 %v445
      %v598 = vpop.f32.mrb[0].mxu0
      %v599 = vadd.f32 %v314, %v598
      %v600 = vpop.f32.mrb[0].mxu0
      %v601 = vpop.f32.mrb[0].mxu0
      %v602 = vadd.f32 %v314, %v601
      %v603 = vpop.f32.mrb[0].mxu0
      %604 = vmatprep.mubr.bf16.mxu0 0
      %605 = vmatmul.mubr.bf16.gmra.mrb[0].mxu0 %v446
      %v606 = vpop.f32.mrb[0].mxu0
      %v607 = vadd.f32 %v314, %v606
      %v608 = vpop.f32.mrb[0].mxu0
      %v609 = vpop.f32.mrb[0].mxu0
      %v610 = vadd.f32 %v314, %v609
      %v611 = vpop.f32.mrb[0].mxu0
      %612 = vmatprep.mubr.bf16.mxu0 0
      %613 = vmatmul.mubr.bf16.gmra.mrb[0].mxu0 %v447
      %v614 = vpop.f32.mrb[0].mxu0
      %v615 = vadd.f32 %v314, %v614
      %v616 = vpop.f32.mrb[0].mxu0
      %v617 = vpop.f32.mrb[0].mxu0
      %v618 = vadd.f32 %v314, %v617
      %v619 = vpop.f32.mrb[0].mxu0
      %620 = vmatprep.mubr.bf16.mxu0 0
      %621 = vmatmul.mubr.bf16.gmra.mrb[0].mxu0 %v448
      %v622 = vpop.f32.mrb[0].mxu0
      %v623 = vadd.f32 %v314, %v622
      %v624 = vpop.f32.mrb[0].mxu0
      %v625 = vpop.f32.mrb[0].mxu0
      %v626 = vadd.f32 %v314, %v625
      %v627 = vpop.f32.mrb[0].mxu0
      %628 = vmatprep.mubr.bf16.mxu0 0
      %629 = vmatmul.mubr.bf16.gmra.mrb[0].mxu0 %v449
      %v630 = vpop.f32.mrb[0].mxu0
      %v631 = vadd.f32 %v314, %v630
      %v632 = vpop.f32.mrb[0].mxu0
      %v633 = vpop.f32.mrb[0].mxu0
      %v634 = vadd.f32 %v314, %v633
      %v635 = vpop.f32.mrb[0].mxu0
      %636 = vmatprep.mubr.bf16.mxu0 0
      %637 = vmatmul.mubr.bf16.gmra.mrb[0].mxu0 %v450
      %v638 = vpop.f32.mrb[0].mxu0
      %v639 = vadd.f32 %v314, %v638
      %v640 = vpop.f32.mrb[0].mxu0
      %v641 = vpop.f32.mrb[0].mxu0
      %v642 = vadd.f32 %v314, %v641
      %v643 = vpop.f32.mrb[0].mxu0
      %644 = vmatprep.mubr.bf16.mxu0 0
      %645 = vmatmul.mubr.bf16.gmra.mrb[0].mxu0 %v451
      %v646 = vpop.f32.mrb[0].mxu0
      %v647 = vadd.f32 %v314, %v646
      %v648 = vpop.f32.mrb[0].mxu0
      %v649 = vpop.f32.mrb[0].mxu0
      %v650 = vadd.f32 %v314, %v649
      %v651 = vpop.f32.mrb[0].mxu0
      %652 = vmatprep.mubr.bf16.mxu0 0
      %653 = vmatmul.mubr.bf16.gmra.mrb[0].mxu0 %v452
      %v654 = vpop.f32.mrb[0].mxu0
      %v655 = vadd.f32 %v314, %v654
      %v656 = vpop.f32.mrb[0].mxu0
      %v657 = vpop.f32.mrb[0].mxu0
      %v658 = vadd.f32 %v314, %v657
      %v659 = vpop.f32.mrb[0].mxu0
      %660 = vmatprep.mubr.bf16.mxu0 0
      %661 = vmatmul.mubr.bf16.gmra.mrb[0].mxu0 %v453
      %v662 = vpop.f32.mrb[0].mxu0
      %v663 = vadd.f32 %v314, %v662
      %v664 = vpop.f32.mrb[0].mxu0
      %v665 = vpop.f32.mrb[0].mxu0
      %v666 = vadd.f32 %v314, %v665
      %v667 = vpop.f32.mrb[0].mxu0
      %668 = vmatprep.mubr.bf16.mxu0 0
      %669 = vmatmul.mubr.bf16.gmra.mrb[0].mxu0 %v454
      %v670 = vpop.f32.mrb[0].mxu0
      %v671 = vadd.f32 %v314, %v670
      %v672 = vpop.f32.mrb[0].mxu0
      %v673 = vpop.f32.mrb[0].mxu0
      %v674 = vadd.f32 %v314, %v673
      %v675 = vpop.f32.mrb[0].mxu0
      %676 = vmatprep.mubr.bf16.mxu0 0
      %677 = vmatmul.mubr.bf16.gmra.mrb[0].mxu0 %v455
      %v678 = vpop.f32.mrb[0].mxu0
      %v679 = vadd.f32 %v314, %v678
      %v680 = vpop.f32.mrb[0].mxu0
      %v681 = vpop.f32.mrb[0].mxu0
      %v682 = vadd.f32 %v314, %v681
      %v683 = vpop.f32.mrb[0].mxu0
      %684 = vmatprep.mubr.bf16.mxu0 0
      %685 = vmatmul.mubr.bf16.gmra.mrb[0].mxu0 %v456
      %v686 = vpop.f32.mrb[0].mxu0
      %v687 = vadd.f32 %v314, %v686
      %v688 = vpop.f32.mrb[0].mxu0
      %v689 = vpop.f32.mrb[0].mxu0
      %v690 = vadd.f32 %v314, %v689
      %v691 = vpop.f32.mrb[0].mxu0
      %692 = vmatprep.mubr.bf16.mxu0 0
      %693 = vmatmul.mubr.bf16.gmra.mrb[0].mxu0 %v457
      %v694 = vpop.f32.mrb[0].mxu0
      %v695 = vadd.f32 %v314, %v694
      %v696 = vpop.f32.mrb[0].mxu0
      %v697 = vpop.f32.mrb[0].mxu0
      %v698 = vadd.f32 %v314, %v697
      %v699 = vpop.f32.mrb[0].mxu0
      %700 = vmatprep.mubr.bf16.mxu0 0
      %701 = vmatmul.mubr.bf16.gmra.mrb[0].mxu0 %v458
      %v702 = vpop.f32.mrb[0].mxu0
      %v703 = vadd.f32 %v314, %v702
      %v704 = vpop.f32.mrb[0].mxu0
      %v705 = vpop.f32.mrb[0].mxu0
      %v706 = vadd.f32 %v314, %v705
      %v707 = vpop.f32.mrb[0].mxu0
      %708 = vmatprep.mubr.bf16.mxu0 0
      %709 = vmatmul.mubr.bf16.gmra.mrb[0].mxu0 %v459
      %v710 = vpop.f32.mrb[0].mxu0
      %v711 = vadd.f32 %v314, %v710
      %v712 = vpop.f32.mrb[0].mxu0
      %v713 = vpop.f32.mrb[0].mxu0
      %v714 = vadd.f32 %v314, %v713
      %v715 = vpop.f32.mrb[0].mxu0
      %716 = vmatprep.mubr.bf16.mxu0 0
      %717 = vmatmul.mubr.bf16.gmra.mrb[0].mxu0 %v460
      %v718 = vpop.f32.mrb[0].mxu0
      %v719 = vadd.f32 %v314, %v718
      %v720 = vpop.f32.mrb[0].mxu0
      %v721 = vpop.f32.mrb[0].mxu0
      %v722 = vadd.f32 %v314, %v721
      %v723 = vpop.f32.mrb[0].mxu0
      %724 = vmatprep.mubr.bf16.mxu0 0
      %725 = vmatmul.mubr.bf16.gmra.mrb[0].mxu0 %v461
      %v726 = vpop.f32.mrb[0].mxu0
      %v727 = vadd.f32 %v314, %v726
      %v728 = vpop.f32.mrb[0].mxu0
      %v729 = vpop.f32.mrb[0].mxu0
      %v730 = vadd.f32 %v314, %v729
      %v731 = vpop.f32.mrb[0].mxu0
      %732 = vmatprep.mubr.bf16.mxu0 0
      %733 = vmatmul.mubr.bf16.gmra.mrb[0].mxu0 %v462
      %v734 = vpop.f32.mrb[0].mxu0
      %v735 = vadd.f32 %v314, %v734
      %v736 = vpop.f32.mrb[0].mxu0
      %v737 = vpop.f32.mrb[0].mxu0
      %v738 = vadd.f32 %v314, %v737
      %v739 = vpop.f32.mrb[0].mxu0
      %740 = vmatprep.mubr.bf16.mxu0 0
      %741 = vmatmul.mubr.bf16.gmra.mrb[0].mxu0 %v463
      %v742 = vpop.f32.mrb[0].mxu0
      %v743 = vadd.f32 %v314, %v742
      %v744 = vpop.f32.mrb[0].mxu0
      %v745 = vpop.f32.mrb[0].mxu0
      %v746 = vadd.f32 %v314, %v745
      %v747 = vpop.f32.mrb[0].mxu0
      %748 = vmatprep.mubr.bf16.mxu0 0
      %749 = vmatmul.mubr.bf16.gmra.mrb[0].mxu0 %v464
      %v750 = vpop.f32.mrb[0].mxu0
      %v751 = vadd.f32 %v314, %v750
      %v752 = vpop.f32.mrb[0].mxu0
      %v753 = vpop.f32.mrb[0].mxu0
      %v754 = vadd.f32 %v314, %v753
      %v755 = vpop.f32.mrb[0].mxu0
      %756 = vmatprep.mubr.bf16.mxu0 0
      %757 = vmatmul.mubr.bf16.gmra.mrb[0].mxu0 %v465
      %v758 = vpop.f32.mrb[0].mxu0
      %v759 = vadd.f32 %v314, %v758
      %v760 = vpop.f32.mrb[0].mxu0
      %v761 = vpop.f32.mrb[0].mxu0
      %v762 = vadd.f32 %v314, %v761
      %v763 = vpop.f32.mrb[0].mxu0
      %764 = vmatprep.mubr.bf16.mxu0 0
      %765 = vmatmul.mubr.bf16.gmra.mrb[0].mxu0 %v466
      %v766 = vpop.f32.mrb[0].mxu0
      %v767 = vadd.f32 %v314, %v766
      %v768 = vpop.f32.mrb[0].mxu0
      %v769 = vpop.f32.mrb[0].mxu0
      %v770 = vadd.f32 %v314, %v769
      %v771 = vpop.f32.mrb[0].mxu0
      %772 = vmatprep.mubr.bf16.mxu0 0
      %773 = vmatmul.mubr.bf16.gmra.mrb[0].mxu0 %v467
      %v774 = vpop.f32.mrb[0].mxu0
      %v775 = vadd.f32 %v314, %v774
      %v776 = vpop.f32.mrb[0].mxu0
      %v777 = vpop.f32.mrb[0].mxu0
      %v778 = vadd.f32 %v314, %v777
      %v779 = vpop.f32.mrb[0].mxu0
      %780 = vmatprep.mubr.bf16.mxu0 0
      %781 = vmatmul.mubr.bf16.gmra.mrb[0].mxu0 %v468
      %v782 = vpop.f32.mrb[0].mxu0
      %v783 = vadd.f32 %v314, %v782
      %v784 = vpop.f32.mrb[0].mxu0
      %v785 = vpop.f32.mrb[0].mxu0
      %v786 = vadd.f32 %v314, %v785
      %v787 = vpop.f32.mrb[0].mxu0
      %788 = vmatprep.mubr.bf16.mxu0 0
      %789 = vmatmul.mubr.bf16.gmra.mrb[0].mxu0 %v469
      %v790 = vpop.f32.mrb[0].mxu0
      %v791 = vadd.f32 %v314, %v790
      %v792 = vpop.f32.mrb[0].mxu0
      %v793 = vpop.f32.mrb[0].mxu0
      %v794 = vadd.f32 %v314, %v793
      %v795 = vpop.f32.mrb[0].mxu0
      %796 = vmatprep.mubr.bf16.mxu0 0
      %797 = vmatmul.mubr.bf16.gmra.mrb[0].mxu0 %v470
      %v798 = vpop.f32.mrb[0].mxu0
      %v799 = vadd.f32 %v314, %v798
      %v800 = vpop.f32.mrb[0].mxu0
      %v801 = vpop.f32.mrb[0].mxu0
      %v802 = vadd.f32 %v314, %v801
      %v803 = vpop.f32.mrb[0].mxu0
      %804 = vmatprep.mubr.bf16.mxu0 0
      %805 = vmatmul.mubr.bf16.gmra.mrb[0].mxu0 %v471
      %v806 = vpop.f32.mrb[0].mxu0
      %v807 = vadd.f32 %v314, %v806
      %v808 = vpop.f32.mrb[0].mxu0
      %v809 = vpop.f32.mrb[0].mxu0
      %v810 = vadd.f32 %v314, %v809
      %v811 = vpop.f32.mrb[0].mxu0
      %812 = vmatprep.mubr.bf16.mxu0 0
      %813 = vmatmul.mubr.bf16.gmra.mrb[0].mxu0 %v472
      %v814 = vpop.f32.mrb[0].mxu0
      %v815 = vadd.f32 %v314, %v814
      %v816 = vpop.f32.mrb[0].mxu0
      %v817 = vpop.f32.mrb[0].mxu0
      %v818 = vadd.f32 %v314, %v817
      %v819 = vpop.f32.mrb[0].mxu0
      %820 = vmatprep.mubr.bf16.mxu0 0
      %821 = vmatmul.mubr.bf16.gmra.mrb[0].mxu0 %v473
      %v822 = vpop.f32.mrb[0].mxu0
      %v823 = vadd.f32 %v314, %v822
      %v824 = vpop.f32.mrb[0].mxu0
      %v825 = vpop.f32.mrb[0].mxu0
      %v826 = vadd.f32 %v314, %v825
      %v827 = vpop.f32.mrb[0].mxu0
      %828 = vmatprep.mubr.bf16.mxu0 0
      %829 = vmatmul.mubr.bf16.gmra.mrb[0].mxu0 %v474
      %v830 = vpop.f32.mrb[0].mxu0
      %v831 = vadd.f32 %v314, %v830
      %v832 = vpop.f32.mrb[0].mxu0
      %v833 = vpop.f32.mrb[0].mxu0
      %v834 = vadd.f32 %v314, %v833
      %v835 = vpop.f32.mrb[0].mxu0
      %836 = vmatprep.mubr.bf16.mxu0 0
      %837 = vmatmul.mubr.bf16.gmra.mrb[0].mxu0 %v475
      %v838 = vpop.f32.mrb[0].mxu0
      %v839 = vadd.f32 %v314, %v838
      %v840 = vpop.f32.mrb[0].mxu0
      %v841 = vpop.f32.mrb[0].mxu0
      %v842 = vadd.f32 %v314, %v841
      %v843 = vpop.f32.mrb[0].mxu0
      %844 = vdwg.mxu0
      %vm845 = vcmp.ge.f32.partialorder %v591, 0.0
      %vm846 = vcmp.ge.f32.partialorder %v594, 0.0
      %vm847 = vcmp.ge.f32.partialorder %v599, 0.0
      %vm848 = vcmp.ge.f32.partialorder %v602, 0.0
      %vm849 = vcmp.ge.f32.partialorder %v607, 0.0
      %vm850 = vcmp.ge.f32.partialorder %v610, 0.0
      %vm851 = vcmp.ge.f32.partialorder %v615, 0.0
      %vm852 = vcmp.ge.f32.partialorder %v618, 0.0
      %vm853 = vcmp.ge.f32.partialorder %v623, 0.0
      %vm854 = vcmp.ge.f32.partialorder %v626, 0.0
      %vm855 = vcmp.ge.f32.partialorder %v631, 0.0
      %vm856 = vcmp.ge.f32.partialorder %v634, 0.0
      %vm857 = vcmp.ge.f32.partialorder %v639, 0.0
      %vm858 = vcmp.ge.f32.partialorder %v642, 0.0
      %vm859 = vcmp.ge.f32.partialorder %v647, 0.0
      %vm860 = vcmp.ge.f32.partialorder %v650, 0.0
      %vm861 = vcmp.ge.f32.partialorder %v655, 0.0
      %vm862 = vcmp.ge.f32.partialorder %v658, 0.0
      %vm863 = vcmp.ge.f32.partialorder %v663, 0.0
      %vm864 = vcmp.ge.f32.partialorder %v666, 0.0
      %vm865 = vcmp.ge.f32.partialorder %v671, 0.0
      %vm866 = vcmp.ge.f32.partialorder %v674, 0.0
      %vm867 = vcmp.ge.f32.partialorder %v679, 0.0
      %vm868 = vcmp.ge.f32.partialorder %v682, 0.0
      %vm869 = vcmp.ge.f32.partialorder %v687, 0.0
      %vm870 = vcmp.ge.f32.partialorder %v690, 0.0
      %vm871 = vcmp.ge.f32.partialorder %v695, 0.0
      %vm872 = vcmp.ge.f32.partialorder %v698, 0.0
      %vm873 = vcmp.ge.f32.partialorder %v703, 0.0
      %vm874 = vcmp.ge.f32.partialorder %v706, 0.0
      %vm875 = vcmp.ge.f32.partialorder %v711, 0.0
      %vm876 = vcmp.ge.f32.partialorder %v714, 0.0
      %vm877 = vcmp.ge.f32.partialorder %v719, 0.0
      %vm878 = vcmp.ge.f32.partialorder %v722, 0.0
      %vm879 = vcmp.ge.f32.partialorder %v727, 0.0
      %vm880 = vcmp.ge.f32.partialorder %v730, 0.0
      %vm881 = vcmp.ge.f32.partialorder %v735, 0.0
      %vm882 = vcmp.ge.f32.partialorder %v738, 0.0
      %vm883 = vcmp.ge.f32.partialorder %v743, 0.0
      %vm884 = vcmp.ge.f32.partialorder %v746, 0.0
      %vm885 = vcmp.ge.f32.partialorder %v751, 0.0
      %vm886 = vcmp.ge.f32.partialorder %v754, 0.0
      %vm887 = vcmp.ge.f32.partialorder %v759, 0.0
      %vm888 = vcmp.ge.f32.partialorder %v762, 0.0
      %vm889 = vcmp.ge.f32.partialorder %v767, 0.0
      %vm890 = vcmp.ge.f32.partialorder %v770, 0.0
      %vm891 = vcmp.ge.f32.partialorder %v775, 0.0
      %vm892 = vcmp.ge.f32.partialorder %v778, 0.0
      %vm893 = vcmp.ge.f32.partialorder %v783, 0.0
      %vm894 = vcmp.ge.f32.partialorder %v786, 0.0
      %vm895 = vcmp.ge.f32.partialorder %v791, 0.0
      %vm896 = vcmp.ge.f32.partialorder %v794, 0.0
      %vm897 = vcmp.ge.f32.partialorder %v799, 0.0
      %vm898 = vcmp.ge.f32.partialorder %v802, 0.0
      %vm899 = vcmp.ge.f32.partialorder %v807, 0.0
      %vm900 = vcmp.ge.f32.partialorder %v810, 0.0
      %vm901 = vcmp.ge.f32.partialorder %v815, 0.0
      %vm902 = vcmp.ge.f32.partialorder %v818, 0.0
      %vm903 = vcmp.ge.f32.partialorder %v823, 0.0
      %vm904 = vcmp.ge.f32.partialorder %v826, 0.0
      %vm905 = vcmp.ge.f32.partialorder %v831, 0.0
      %vm906 = vcmp.ge.f32.partialorder %v834, 0.0
      %vm907 = vcmp.ge.f32.partialorder %v839, 0.0
      %vm908 = vcmp.ge.f32.partialorder %v842, 0.0
      %v909 = vmul.f32 %v591, 0.2
      %v910 = vmul.f32 %v594, 0.2
      %v911 = vmul.f32 %v599, 0.2
      %v912 = vmul.f32 %v602, 0.2
      %v913 = vmul.f32 %v607, 0.2
      %v914 = vmul.f32 %v610, 0.2
      %v915 = vmul.f32 %v615, 0.2
      %v916 = vmul.f32 %v618, 0.2
      %v917 = vmul.f32 %v623, 0.2
      %v918 = vmul.f32 %v626, 0.2
      %v919 = vmul.f32 %v631, 0.2
      %v920 = vmul.f32 %v634, 0.2
      %v921 = vmul.f32 %v639, 0.2
      %v922 = vmul.f32 %v642, 0.2
      %v923 = vmul.f32 %v647, 0.2
      %v924 = vmul.f32 %v650, 0.2
      %v925 = vmul.f32 %v655, 0.2
      %v926 = vmul.f32 %v658, 0.2
      %v927 = vmul.f32 %v663, 0.2
      %v928 = vmul.f32 %v666, 0.2
      %v929 = vmul.f32 %v671, 0.2
      %v930 = vmul.f32 %v674, 0.2
      %v931 = vmul.f32 %v679, 0.2
      %v932 = vmul.f32 %v682, 0.2
      %v933 = vmul.f32 %v687, 0.2
      %v934 = vmul.f32 %v690, 0.2
      %v935 = vmul.f32 %v695, 0.2
      %v936 = vmul.f32 %v698, 0.2
      %v937 = vmul.f32 %v703, 0.2
      %v938 = vmul.f32 %v706, 0.2
      %v939 = vmul.f32 %v711, 0.2
      %v940 = vmul.f32 %v714, 0.2
      %v941 = vmul.f32 %v719, 0.2
      %v942 = vmul.f32 %v722, 0.2
      %v943 = vmul.f32 %v727, 0.2
      %v944 = vmul.f32 %v730, 0.2
      %v945 = vmul.f32 %v735, 0.2
      %v946 = vmul.f32 %v738, 0.2
      %v947 = vmul.f32 %v743, 0.2
      %v948 = vmul.f32 %v746, 0.2
      %v949 = vmul.f32 %v751, 0.2
      %v950 = vmul.f32 %v754, 0.2
      %v951 = vmul.f32 %v759, 0.2
      %v952 = vmul.f32 %v762, 0.2
      %v953 = vmul.f32 %v767, 0.2
      %v954 = vmul.f32 %v770, 0.2
      %v955 = vmul.f32 %v775, 0.2
      %v956 = vmul.f32 %v778, 0.2
      %v957 = vmul.f32 %v783, 0.2
      %v958 = vmul.f32 %v786, 0.2
      %v959 = vmul.f32 %v791, 0.2
      %v960 = vmul.f32 %v794, 0.2
      %v961 = vmul.f32 %v799, 0.2
      %v962 = vmul.f32 %v802, 0.2
      %v963 = vmul.f32 %v807, 0.2
      %v964 = vmul.f32 %v810, 0.2
      %v965 = vmul.f32 %v815, 0.2
      %v966 = vmul.f32 %v818, 0.2
      %v967 = vmul.f32 %v823, 0.2
      %v968 = vmul.f32 %v826, 0.2
      %v969 = vmul.f32 %v831, 0.2
      %v970 = vmul.f32 %v834, 0.2
      %v971 = vmul.f32 %v839, 0.2
      %v972 = vmul.f32 %v842, 0.2
      %v973 = vsel %vm845, %v591, %v909
      %v974 = vsel %vm846, %v594, %v910
      %v975 = vsel %vm847, %v599, %v911
      %v976 = vsel %vm848, %v602, %v912
      %v977 = vsel %vm849, %v607, %v913
      %v978 = vsel %vm850, %v610, %v914
      %v979 = vsel %vm851, %v615, %v915
      %v980 = vsel %vm852, %v618, %v916
      %v981 = vsel %vm853, %v623, %v917
      %v982 = vsel %vm854, %v626, %v918
      %v983 = vsel %vm855, %v631, %v919
      %v984 = vsel %vm856, %v634, %v920
      %v985 = vsel %vm857, %v639, %v921
      %v986 = vsel %vm858, %v642, %v922
      %v987 = vsel %vm859, %v647, %v923
      %v988 = vsel %vm860, %v650, %v924
      %v989 = vsel %vm861, %v655, %v925
      %v990 = vsel %vm862, %v658, %v926
      %v991 = vsel %vm863, %v663, %v927
      %v992 = vsel %vm864, %v666, %v928
      %v993 = vsel %vm865, %v671, %v929
      %v994 = vsel %vm866, %v674, %v930
      %v995 = vsel %vm867, %v679, %v931
      %v996 = vsel %vm868, %v682, %v932
      %v997 = vsel %vm869, %v687, %v933
      %v998 = vsel %vm870, %v690, %v934
      %v999 = vsel %vm871, %v695, %v935
      %v1000 = vsel %vm872, %v698, %v936
      %v1001 = vsel %vm873, %v703, %v937
      %v1002 = vsel %vm874, %v706, %v938
      %v1003 = vsel %vm875, %v711, %v939
      %v1004 = vsel %vm876, %v714, %v940
      %v1005 = vsel %vm877, %v719, %v941
      %v1006 = vsel %vm878, %v722, %v942
      %v1007 = vsel %vm879, %v727, %v943
      %v1008 = vsel %vm880, %v730, %v944
      %v1009 = vsel %vm881, %v735, %v945
      %v1010 = vsel %vm882, %v738, %v946
      %v1011 = vsel %vm883, %v743, %v947
      %v1012 = vsel %vm884, %v746, %v948
      %v1013 = vsel %vm885, %v751, %v949
      %v1014 = vsel %vm886, %v754, %v950
      %v1015 = vsel %vm887, %v759, %v951
      %v1016 = vsel %vm888, %v762, %v952
      %v1017 = vsel %vm889, %v767, %v953
      %v1018 = vsel %vm890, %v770, %v954
      %v1019 = vsel %vm891, %v775, %v955
      %v1020 = vsel %vm892, %v778, %v956
      %v1021 = vsel %vm893, %v783, %v957
      %v1022 = vsel %vm894, %v786, %v958
      %v1023 = vsel %vm895, %v791, %v959
      %v1024 = vsel %vm896, %v794, %v960
      %v1025 = vsel %vm897, %v799, %v961
      %v1026 = vsel %vm898, %v802, %v962
      %v1027 = vsel %vm899, %v807, %v963
      %v1028 = vsel %vm900, %v810, %v964
      %v1029 = vsel %vm901, %v815, %v965
      %v1030 = vsel %vm902, %v818, %v966
      %v1031 = vsel %vm903, %v823, %v967
      %v1032 = vsel %vm904, %v826, %v968
      %v1033 = vsel %vm905, %v831, %v969
      %v1034 = vsel %vm906, %v834, %v970
      %v1035 = vsel %vm907, %v839, %v971
      %v1036 = vsel %vm908, %v842, %v972
      %v1037 = vld [vmem:[%s3] sm:$0x1]
      %v1039 = vlaneseq
      %v1040 = vshrl.u32 %v1039, 7
      %v1041 = vsub.s32 0, %v1040
      %v1042 = vrot.slane %v1037, %v1041
      %v1044 = vmul.f32 %v973, %v1042
      %v1045 = vmul.f32 %v974, %v1042
      %v1046 = vmul.f32 %v975, %v1042
      %v1047 = vmul.f32 %v976, %v1042
      %v1048 = vmul.f32 %v977, %v1042
      %v1049 = vmul.f32 %v978, %v1042
      %v1050 = vmul.f32 %v979, %v1042
      %v1051 = vmul.f32 %v980, %v1042
      %v1052 = vmul.f32 %v981, %v1042
      %v1053 = vmul.f32 %v982, %v1042
      %v1054 = vmul.f32 %v983, %v1042
      %v1055 = vmul.f32 %v984, %v1042
      %v1056 = vmul.f32 %v985, %v1042
      %v1057 = vmul.f32 %v986, %v1042
      %v1058 = vmul.f32 %v987, %v1042
      %v1059 = vmul.f32 %v988, %v1042
      %v1060 = vmul.f32 %v989, %v1042
      %v1061 = vmul.f32 %v990, %v1042
      %v1062 = vmul.f32 %v991, %v1042
      %v1063 = vmul.f32 %v992, %v1042
      %v1064 = vmul.f32 %v993, %v1042
      %v1065 = vmul.f32 %v994, %v1042
      %v1066 = vmul.f32 %v995, %v1042
      %v1067 = vmul.f32 %v996, %v1042
      %v1068 = vmul.f32 %v997, %v1042
      %v1069 = vmul.f32 %v998, %v1042
      %v1070 = vmul.f32 %v999, %v1042
      %v1071 = vmul.f32 %v1000, %v1042
      %v1072 = vmul.f32 %v1001, %v1042
      %v1073 = vmul.f32 %v1002, %v1042
      %v1074 = vmul.f32 %v1003, %v1042
      %v1075 = vmul.f32 %v1004, %v1042
      %v1076 = vmul.f32 %v1005, %v1042
      %v1077 = vmul.f32 %v1006, %v1042
      %v1078 = vmul.f32 %v1007, %v1042
      %v1079 = vmul.f32 %v1008, %v1042
      %v1080 = vmul.f32 %v1009, %v1042
      %v1081 = vmul.f32 %v1010, %v1042
      %v1082 = vmul.f32 %v1011, %v1042
      %v1083 = vmul.f32 %v1012, %v1042
      %v1084 = vmul.f32 %v1013, %v1042
      %v1085 = vmul.f32 %v1014, %v1042
      %v1086 = vmul.f32 %v1015, %v1042
      %v1087 = vmul.f32 %v1016, %v1042
      %v1088 = vmul.f32 %v1017, %v1042
      %v1089 = vmul.f32 %v1018, %v1042
      %v1090 = vmul.f32 %v1019, %v1042
      %v1091 = vmul.f32 %v1020, %v1042
      %v1092 = vmul.f32 %v1021, %v1042
      %v1093 = vmul.f32 %v1022, %v1042
      %v1094 = vmul.f32 %v1023, %v1042
      %v1095 = vmul.f32 %v1024, %v1042
      %v1096 = vmul.f32 %v1025, %v1042
      %v1097 = vmul.f32 %v1026, %v1042
      %v1098 = vmul.f32 %v1027, %v1042
      %v1099 = vmul.f32 %v1028, %v1042
      %v1100 = vmul.f32 %v1029, %v1042
      %v1101 = vmul.f32 %v1030, %v1042
      %v1102 = vmul.f32 %v1031, %v1042
      %v1103 = vmul.f32 %v1032, %v1042
      %v1104 = vmul.f32 %v1033, %v1042
      %v1105 = vmul.f32 %v1034, %v1042
      %v1106 = vmul.f32 %v1035, %v1042
      %v1107 = vmul.f32 %v1036, %v1042
      %v1108 = vld [vmem:[%s4] sm:$0x1]
      %v1110 = vlaneseq
      %v1111 = vshrl.u32 %v1110, 7
      %v1112 = vsub.s32 0, %v1111
      %v1113 = vrot.slane %v1108, %v1112
      %v1115 = vadd.f32 %v1044, %v1113
      %v1116 = vadd.f32 %v1045, %v1113
      %v1117 = vadd.f32 %v1046, %v1113
      %v1118 = vadd.f32 %v1047, %v1113
      %v1119 = vadd.f32 %v1048, %v1113
      %v1120 = vadd.f32 %v1049, %v1113
      %v1121 = vadd.f32 %v1050, %v1113
      %v1122 = vadd.f32 %v1051, %v1113
      %v1123 = vadd.f32 %v1052, %v1113
      %v1124 = vadd.f32 %v1053, %v1113
      %v1125 = vadd.f32 %v1054, %v1113
      %v1126 = vadd.f32 %v1055, %v1113
      %v1127 = vadd.f32 %v1056, %v1113
      %v1128 = vadd.f32 %v1057, %v1113
      %v1129 = vadd.f32 %v1058, %v1113
      %v1130 = vadd.f32 %v1059, %v1113
      %v1131 = vadd.f32 %v1060, %v1113
      %v1132 = vadd.f32 %v1061, %v1113
      %v1133 = vadd.f32 %v1062, %v1113
      %v1134 = vadd.f32 %v1063, %v1113
      %v1135 = vadd.f32 %v1064, %v1113
      %v1136 = vadd.f32 %v1065, %v1113
      %v1137 = vadd.f32 %v1066, %v1113
      %v1138 = vadd.f32 %v1067, %v1113
      %v1139 = vadd.f32 %v1068, %v1113
      %v1140 = vadd.f32 %v1069, %v1113
      %v1141 = vadd.f32 %v1070, %v1113
      %v1142 = vadd.f32 %v1071, %v1113
      %v1143 = vadd.f32 %v1072, %v1113
      %v1144 = vadd.f32 %v1073, %v1113
      %v1145 = vadd.f32 %v1074, %v1113
      %v1146 = vadd.f32 %v1075, %v1113
      %v1147 = vadd.f32 %v1076, %v1113
      %v1148 = vadd.f32 %v1077, %v1113
      %v1149 = vadd.f32 %v1078, %v1113
      %v1150 = vadd.f32 %v1079, %v1113
      %v1151 = vadd.f32 %v1080, %v1113
      %v1152 = vadd.f32 %v1081, %v1113
      %v1153 = vadd.f32 %v1082, %v1113
      %v1154 = vadd.f32 %v1083, %v1113
      %v1155 = vadd.f32 %v1084, %v1113
      %v1156 = vadd.f32 %v1085, %v1113
      %v1157 = vadd.f32 %v1086, %v1113
      %v1158 = vadd.f32 %v1087, %v1113
      %v1159 = vadd.f32 %v1088, %v1113
      %v1160 = vadd.f32 %v1089, %v1113
      %v1161 = vadd.f32 %v1090, %v1113
      %v1162 = vadd.f32 %v1091, %v1113
      %v1163 = vadd.f32 %v1092, %v1113
      %v1164 = vadd.f32 %v1093, %v1113
      %v1165 = vadd.f32 %v1094, %v1113
      %v1166 = vadd.f32 %v1095, %v1113
      %v1167 = vadd.f32 %v1096, %v1113
      %v1168 = vadd.f32 %v1097, %v1113
      %v1169 = vadd.f32 %v1098, %v1113
      %v1170 = vadd.f32 %v1099, %v1113
      %v1171 = vadd.f32 %v1100, %v1113
      %v1172 = vadd.f32 %v1101, %v1113
      %v1173 = vadd.f32 %v1102, %v1113
      %v1174 = vadd.f32 %v1103, %v1113
      %v1175 = vadd.f32 %v1104, %v1113
      %v1176 = vadd.f32 %v1105, %v1113
      %v1177 = vadd.f32 %v1106, %v1113
      %v1178 = vadd.f32 %v1107, %v1113
      %v1179 = vpack.c.bf16 %v1116, %v1115
      %v1180 = vpack.c.bf16 %v1118, %v1117
      %v1181 = vpack.c.bf16 %v1120, %v1119
      %v1182 = vpack.c.bf16 %v1122, %v1121
      %v1183 = vpack.c.bf16 %v1124, %v1123
      %v1184 = vpack.c.bf16 %v1126, %v1125
      %v1185 = vpack.c.bf16 %v1128, %v1127
      %v1186 = vpack.c.bf16 %v1130, %v1129
      %v1187 = vpack.c.bf16 %v1132, %v1131
      %v1188 = vpack.c.bf16 %v1134, %v1133
      %v1189 = vpack.c.bf16 %v1136, %v1135
      %v1190 = vpack.c.bf16 %v1138, %v1137
      %v1191 = vpack.c.bf16 %v1140, %v1139
      %v1192 = vpack.c.bf16 %v1142, %v1141
      %v1193 = vpack.c.bf16 %v1144, %v1143
      %v1194 = vpack.c.bf16 %v1146, %v1145
      %v1195 = vpack.c.bf16 %v1148, %v1147
      %v1196 = vpack.c.bf16 %v1150, %v1149
      %v1197 = vpack.c.bf16 %v1152, %v1151
      %v1198 = vpack.c.bf16 %v1154, %v1153
      %v1199 = vpack.c.bf16 %v1156, %v1155
      %v1200 = vpack.c.bf16 %v1158, %v1157
      %v1201 = vpack.c.bf16 %v1160, %v1159
      %v1202 = vpack.c.bf16 %v1162, %v1161
      %v1203 = vpack.c.bf16 %v1164, %v1163
      %v1204 = vpack.c.bf16 %v1166, %v1165
      %v1205 = vpack.c.bf16 %v1168, %v1167
      %v1206 = vpack.c.bf16 %v1170, %v1169
      %v1207 = vpack.c.bf16 %v1172, %v1171
      %v1208 = vpack.c.bf16 %v1174, %v1173
      %v1209 = vpack.c.bf16 %v1176, %v1175
      %v1210 = vpack.c.bf16 %v1178, %v1177
      %v1243 = vunpack.c.l.b16 %v1179
      %v1244 = vunpack.c.h.b16 %v1179
      %v1245 = vunpack.c.l.b16 %v1180
      %v1246 = vunpack.c.h.b16 %v1180
      %v1247 = vunpack.c.l.b16 %v1181
      %v1248 = vunpack.c.h.b16 %v1181
      %v1249 = vunpack.c.l.b16 %v1182
      %v1250 = vunpack.c.h.b16 %v1182
      %v1251 = vunpack.c.l.b16 %v1183
      %v1252 = vunpack.c.h.b16 %v1183
      %v1253 = vunpack.c.l.b16 %v1184
      %v1254 = vunpack.c.h.b16 %v1184
      %v1255 = vunpack.c.l.b16 %v1185
      %v1256 = vunpack.c.h.b16 %v1185
      %v1257 = vunpack.c.l.b16 %v1186
      %v1258 = vunpack.c.h.b16 %v1186
      %v1259 = vunpack.c.l.b16 %v1187
      %v1260 = vunpack.c.h.b16 %v1187
      %v1261 = vunpack.c.l.b16 %v1188
      %v1262 = vunpack.c.h.b16 %v1188
      %v1263 = vunpack.c.l.b16 %v1189
      %v1264 = vunpack.c.h.b16 %v1189
      %v1265 = vunpack.c.l.b16 %v1190
      %v1266 = vunpack.c.h.b16 %v1190
      %v1267 = vunpack.c.l.b16 %v1191
      %v1268 = vunpack.c.h.b16 %v1191
      %v1269 = vunpack.c.l.b16 %v1192
      %v1270 = vunpack.c.h.b16 %v1192
      %v1271 = vunpack.c.l.b16 %v1193
      %v1272 = vunpack.c.h.b16 %v1193
      %v1273 = vunpack.c.l.b16 %v1194
      %v1274 = vunpack.c.h.b16 %v1194
      %v1275 = vunpack.c.l.b16 %v1195
      %v1276 = vunpack.c.h.b16 %v1195
      %v1277 = vunpack.c.l.b16 %v1196
      %v1278 = vunpack.c.h.b16 %v1196
      %v1279 = vunpack.c.l.b16 %v1197
      %v1280 = vunpack.c.h.b16 %v1197
      %v1281 = vunpack.c.l.b16 %v1198
      %v1282 = vunpack.c.h.b16 %v1198
      %v1283 = vunpack.c.l.b16 %v1199
      %v1284 = vunpack.c.h.b16 %v1199
      %v1285 = vunpack.c.l.b16 %v1200
      %v1286 = vunpack.c.h.b16 %v1200
      %v1287 = vunpack.c.l.b16 %v1201
      %v1288 = vunpack.c.h.b16 %v1201
      %v1289 = vunpack.c.l.b16 %v1202
      %v1290 = vunpack.c.h.b16 %v1202
      %v1291 = vunpack.c.l.b16 %v1203
      %v1292 = vunpack.c.h.b16 %v1203
      %v1293 = vunpack.c.l.b16 %v1204
      %v1294 = vunpack.c.h.b16 %v1204
      %v1295 = vunpack.c.l.b16 %v1205
      %v1296 = vunpack.c.h.b16 %v1205
      %v1297 = vunpack.c.l.b16 %v1206
      %v1298 = vunpack.c.h.b16 %v1206
      %v1299 = vunpack.c.l.b16 %v1207
      %v1300 = vunpack.c.h.b16 %v1207
      %v1301 = vunpack.c.l.b16 %v1208
      %v1302 = vunpack.c.h.b16 %v1208
      %v1303 = vunpack.c.l.b16 %v1209
      %v1304 = vunpack.c.h.b16 %v1209
      %v1305 = vunpack.c.l.b16 %v1210
      %v1306 = vunpack.c.h.b16 %v1210
      %v1307 = vpack.c.b16 %v1243, %v1243
      %v1308 = vpack.c.b16 %v1244, %v1244
      %v1309 = vpack.c.b16 %v1245, %v1245
      %v1310 = vpack.c.b16 %v1246, %v1246
      %v1311 = vpack.c.b16 %v1247, %v1247
      %v1312 = vpack.c.b16 %v1248, %v1248
      %v1313 = vpack.c.b16 %v1249, %v1249
      %v1314 = vpack.c.b16 %v1250, %v1250
      %v1315 = vpack.c.b16 %v1251, %v1251
      %v1316 = vpack.c.b16 %v1252, %v1252
      %v1317 = vpack.c.b16 %v1253, %v1253
      %v1318 = vpack.c.b16 %v1254, %v1254
      %v1319 = vpack.c.b16 %v1255, %v1255
      %v1320 = vpack.c.b16 %v1256, %v1256
      %v1321 = vpack.c.b16 %v1257, %v1257
      %v1322 = vpack.c.b16 %v1258, %v1258
      %v1323 = vpack.c.b16 %v1259, %v1259
      %v1324 = vpack.c.b16 %v1260, %v1260
      %v1325 = vpack.c.b16 %v1261, %v1261
      %v1326 = vpack.c.b16 %v1262, %v1262
      %v1327 = vpack.c.b16 %v1263, %v1263
      %v1328 = vpack.c.b16 %v1264, %v1264
      %v1329 = vpack.c.b16 %v1265, %v1265
      %v1330 = vpack.c.b16 %v1266, %v1266
      %v1331 = vpack.c.b16 %v1267, %v1267
      %v1332 = vpack.c.b16 %v1268, %v1268
      %v1333 = vpack.c.b16 %v1269, %v1269
      %v1334 = vpack.c.b16 %v1270, %v1270
      %v1335 = vpack.c.b16 %v1271, %v1271
      %v1336 = vpack.c.b16 %v1272, %v1272
      %v1337 = vpack.c.b16 %v1273, %v1273
      %v1338 = vpack.c.b16 %v1274, %v1274
      %v1339 = vpack.c.b16 %v1275, %v1275
      %v1340 = vpack.c.b16 %v1276, %v1276
      %v1341 = vpack.c.b16 %v1277, %v1277
      %v1342 = vpack.c.b16 %v1278, %v1278
      %v1343 = vpack.c.b16 %v1279, %v1279
      %v1344 = vpack.c.b16 %v1280, %v1280
      %v1345 = vpack.c.b16 %v1281, %v1281
      %v1346 = vpack.c.b16 %v1282, %v1282
      %v1347 = vpack.c.b16 %v1283, %v1283
      %v1348 = vpack.c.b16 %v1284, %v1284
      %v1349 = vpack.c.b16 %v1285, %v1285
      %v1350 = vpack.c.b16 %v1286, %v1286
      %v1351 = vpack.c.b16 %v1287, %v1287
      %v1352 = vpack.c.b16 %v1288, %v1288
      %v1353 = vpack.c.b16 %v1289, %v1289
      %v1354 = vpack.c.b16 %v1290, %v1290
      %v1355 = vpack.c.b16 %v1291, %v1291
      %v1356 = vpack.c.b16 %v1292, %v1292
      %v1357 = vpack.c.b16 %v1293, %v1293
      %v1358 = vpack.c.b16 %v1294, %v1294
      %v1359 = vpack.c.b16 %v1295, %v1295
      %v1360 = vpack.c.b16 %v1296, %v1296
      %v1361 = vpack.c.b16 %v1297, %v1297
      %v1362 = vpack.c.b16 %v1298, %v1298
      %v1363 = vpack.c.b16 %v1299, %v1299
      %v1364 = vpack.c.b16 %v1300, %v1300
      %v1365 = vpack.c.b16 %v1301, %v1301
      %v1366 = vpack.c.b16 %v1302, %v1302
      %v1367 = vpack.c.b16 %v1303, %v1303
      %v1368 = vpack.c.b16 %v1304, %v1304
      %v1369 = vpack.c.b16 %v1305, %v1305
      %v1370 = vpack.c.b16 %v1306, %v1306
      %1435 = vst [vmem:[%s226] sm:$0xf] %v1307
      %1436 = vst [vmem:[%s226 + $0x4] sm:$0xf] %v1308
      %1437 = vst [vmem:[%s226 + $0x8] sm:$0xf] %v1309
      %1438 = vst [vmem:[%s226 + $0xc] sm:$0xf] %v1310
      %1439 = vst [vmem:[%s226 + $0x10] sm:$0xf] %v1311
      %1440 = vst [vmem:[%s226 + $0x14] sm:$0xf] %v1312
      %1441 = vst [vmem:[%s226 + $0x18] sm:$0xf] %v1313
      %1442 = vst [vmem:[%s226 + $0x1c] sm:$0xf] %v1314
      %1443 = vst [vmem:[%s226 + $0x20] sm:$0xf] %v1315
      %1444 = vst [vmem:[%s226 + $0x24] sm:$0xf] %v1316
      %1445 = vst [vmem:[%s226 + $0x28] sm:$0xf] %v1317
      %1446 = vst [vmem:[%s226 + $0x2c] sm:$0xf] %v1318
      %1447 = vst [vmem:[%s226 + $0x30] sm:$0xf] %v1319
      %1448 = vst [vmem:[%s226 + $0x34] sm:$0xf] %v1320
      %1449 = vst [vmem:[%s226 + $0x38] sm:$0xf] %v1321
      %1450 = vst [vmem:[%s226 + $0x3c] sm:$0xf] %v1322
      %1451 = vst [vmem:[%s226 + $0x40] sm:$0xf] %v1323
      %1452 = vst [vmem:[%s226 + $0x44] sm:$0xf] %v1324
      %1453 = vst [vmem:[%s226 + $0x48] sm:$0xf] %v1325
      %1454 = vst [vmem:[%s226 + $0x4c] sm:$0xf] %v1326
      %1455 = vst [vmem:[%s226 + $0x50] sm:$0xf] %v1327
      %1456 = vst [vmem:[%s226 + $0x54] sm:$0xf] %v1328
      %1457 = vst [vmem:[%s226 + $0x58] sm:$0xf] %v1329
      %1458 = vst [vmem:[%s226 + $0x5c] sm:$0xf] %v1330
      %1459 = vst [vmem:[%s226 + $0x60] sm:$0xf] %v1331
      %1460 = vst [vmem:[%s226 + $0x64] sm:$0xf] %v1332
      %1461 = vst [vmem:[%s226 + $0x68] sm:$0xf] %v1333
      %1462 = vst [vmem:[%s226 + $0x6c] sm:$0xf] %v1334
      %1463 = vst [vmem:[%s226 + $0x70] sm:$0xf] %v1335
      %1464 = vst [vmem:[%s226 + $0x74] sm:$0xf] %v1336
      %1465 = vst [vmem:[%s226 + $0x78] sm:$0xf] %v1337
      %1466 = vst [vmem:[%s226 + $0x7c] sm:$0xf] %v1338
      %1467 = vst [vmem:[%s226 + $0x80] sm:$0xf] %v1339
      %1468 = vst [vmem:[%s226 + $0x84] sm:$0xf] %v1340
      %1469 = vst [vmem:[%s226 + $0x88] sm:$0xf] %v1341
      %1470 = vst [vmem:[%s226 + $0x8c] sm:$0xf] %v1342
      %1471 = vst [vmem:[%s226 + $0x90] sm:$0xf] %v1343
      %1472 = vst [vmem:[%s226 + $0x94] sm:$0xf] %v1344
      %1473 = vst [vmem:[%s226 + $0x98] sm:$0xf] %v1345
      %1474 = vst [vmem:[%s226 + $0x9c] sm:$0xf] %v1346
      %1475 = vst [vmem:[%s226 + $0xa0] sm:$0xf] %v1347
      %1476 = vst [vmem:[%s226 + $0xa4] sm:$0xf] %v1348
      %1477 = vst [vmem:[%s226 + $0xa8] sm:$0xf] %v1349
      %1478 = vst [vmem:[%s226 + $0xac] sm:$0xf] %v1350
      %1479 = vst [vmem:[%s226 + $0xb0] sm:$0xf] %v1351
      %1480 = vst [vmem:[%s226 + $0xb4] sm:$0xf] %v1352
      %1481 = vst [vmem:[%s226 + $0xb8] sm:$0xf] %v1353
      %1482 = vst [vmem:[%s226 + $0xbc] sm:$0xf] %v1354
      %1483 = vst [vmem:[%s226 + $0xc0] sm:$0xf] %v1355
      %1484 = vst [vmem:[%s226 + $0xc4] sm:$0xf] %v1356
      %1485 = vst [vmem:[%s226 + $0xc8] sm:$0xf] %v1357
      %1486 = vst [vmem:[%s226 + $0xcc] sm:$0xf] %v1358
      %1487 = vst [vmem:[%s226 + $0xd0] sm:$0xf] %v1359
      %1488 = vst [vmem:[%s226 + $0xd4] sm:$0xf] %v1360
      %1489 = vst [vmem:[%s226 + $0xd8] sm:$0xf] %v1361
      %1490 = vst [vmem:[%s226 + $0xdc] sm:$0xf] %v1362
      %1491 = vst [vmem:[%s226 + $0xe0] sm:$0xf] %v1363
      %1492 = vst [vmem:[%s226 + $0xe4] sm:$0xf] %v1364
      %1493 = vst [vmem:[%s226 + $0xe8] sm:$0xf] %v1365
      %1494 = vst [vmem:[%s226 + $0xec] sm:$0xf] %v1366
      %1495 = vst [vmem:[%s226 + $0xf0] sm:$0xf] %v1367
      %1496 = vst [vmem:[%s226 + $0xf4] sm:$0xf] %v1368
      %1497 = vst [vmem:[%s226 + $0xf8] sm:$0xf] %v1369
      %1498 = vst [vmem:[%s226 + $0xfc] sm:$0xf] %v1370
      %s1499 = smul.u32 64, %s16
      %p1500 = scmp.lt.s32.totalorder %s1499, 191
      %s1501 = scalar_select %p1500, %s1499, 191
      %s1502 = smul.addr %s1501, 4
      %s1503 = scalar_lea.vmem %s5, %s1502
      // Predicated region
      $region41: #{single_disc_forward.12} parent=39 // pred_check
        %p1504 = pneg %p144
      $region42: #{single_disc_forward.12} parent=39 // pred_check_branch
        %1506 = sbr.rel (%p1504) target = $region44
      $region43: #{single_disc_forward.12} parent=39 // pred_region
        %s1507 = smul.u32 64, %s16
      $region44: #{single_disc_forward.12} parent=39 // pred_fallthru
        _
    $region40: #{single_disc_forward.12} parent=5 // pred_fallthru
      _
    %p1508 = scmp.le.s32.totalorder 2, %s11
    // Predicated region
    $region45: #{single_disc_forward.12} parent=5 // pred_check
      %p1509 = pneg %p1508
    $region46: #{single_disc_forward.12} parent=5 // pred_check_branch
      %1511 = sbr.rel (%p1509) target = $region48
    $region47: #{single_disc_forward.12} parent=5 // pred_region
      %s1512 = ssub.s32 %s11, 2
      // Predicated region
      $region49: #{single_disc_forward.12} parent=47 // pred_check
        %p1513 = pneg %p150
      $region50: #{single_disc_forward.12} parent=47 // pred_check_branch
        %1515 = sbr.rel (%p1513) target = $region52
      $region51: #{single_disc_forward.12} parent=47 // pred_region
        %s1516 = smul.u32 64, %s17
        %p1517 = scmp.lt.s32.totalorder %s1516, 191
        %s1518 = scalar_select %p1517, %s1516, 191
        %s1519 = smul.addr %s1518, 4
        %s1520 = scalar_lea.vmem %s5, %s1519
      $region52: #{single_disc_forward.12} parent=47 // pred_fallthru
        _
    $region48: #{single_disc_forward.12} parent=5 // pred_fallthru
      _
  $region6: #{single_disc_forward.12} parent=0 // loop_footer
    %s15 = sadd.s32 1, %s11
  $region7: #{single_disc_forward.12} parent=0 // loop_footer_branch
    %10 = sbr.rel target = $region3
  $region8: #{single_disc_forward.12} parent=0 // loop_exit
    _

// kernel: single_disc_forward.13
$region0: #{single_disc_forward.13}
  #allocation0 [shape = 'u32[]', space=smem, size = 0x4, offset = 0x4, fixed_abs, tag = 'smem constant byte address 0x4 - core index']
  #allocation1 [shape = 'u32[144,128]{1,0:T(1,128)}', space=vmem, size = 0x12000, scoped, tag = 'internal scratch']
  %s0 = inlined_call_operand.vmem [shape: bf16[288,1152], index: 0, kind: input, shape index: {}]
  %s1 = inlined_call_operand.vmem [shape: bf16[1152,128], index: 1, kind: input, shape index: {}]
  %s2 = inlined_call_operand.vmem [shape: f32[1,128], index: 2, kind: input, shape index: {}]
  %s3 = inlined_call_operand.vmem [shape: f32[1,128], index: 3, kind: input, shape index: {}]
  %s4 = inlined_call_operand.vmem [shape: f32[1,128], index: 4, kind: input, shape index: {}]
  %s5 = inlined_call_operand.vmem [shape: bf16[288,128], index: 5, kind: output, shape index: {}]
  %s6 = sld [smem:[#allocation0]]
  $region53: #{single_disc_forward.13} parent=0
    _
  %s8 = ssub.s32 1, %s6
  %s9 = scalar_select 0, %s8, %s6
  loop: start=0, step=1, limit=4
  $region2: #{single_disc_forward.13} parent=0 // loop_pre_header
    _
  $region3: #{single_disc_forward.13} parent=0 // loop_header
    %s11 = sphi 0, %s15
    %p12 = scmp.ge.s32.totalorder %s11, 4
    %s21 = sphi 0, %s23
    %s24 = sphi 0, %s21
    %s25 = sphi 0, %s24
    %s41 = sphi 0, %s25
    %s45 = sphi 0, %s45
    %s47 = sphi 0, %s45
    %s48 = sphi 0, %s47
    %s62 = sphi 0, %s48
    %s66 = sphi 0, %s66
    %s68 = sphi 0, %s66
    %s69 = sphi 0, %s68
    %s83 = sphi 0, %s69
    %s87 = sphi 0, %s87
    %s89 = sphi 0, %s87
    %s90 = sphi 0, %s89
    %s104 = sphi 0, %s90
    %s108 = sphi 0, %s108
    %s110 = sphi 0, %s108
    %s111 = sphi 0, %s110
    %s125 = sphi 0, %s111
    %s131 = sphi 0, %s133
    %s134 = sphi 0, %s131
    %s135 = sphi 0, %s134
    %s151 = sphi 0, %s135
  $region4: #{single_disc_forward.13} parent=0 // loop_header_branch
    %14 = sbr.rel (%p12) target = $region8
  $region5: #{single_disc_forward.13} parent=0 // loop_body
    %s16 = ssub.s32 %s11, 1
    %s17 = ssub.s32 %s11, 2
    %s18 = sadd.s32 %s11, 1
    %s19 = ssub.s32 %s11, %s18
    %p20 = scmp.eq.s32.totalorder %s19, 0
    %s22 = sadd.s32 %s21, 1
    %s23 = scalar_select %p20, %s21, %s22
    %p26 = pneg %p20
    %p27 = scmp.eq.s32.totalorder %s11, 1
    %p28 = por %p26, %p27
    %p29 = scmp.ne.s32.totalorder %s21, %s24
    %p30 = scmp.eq.s32.totalorder %s11, 0
    %p31 = por %p29, %p30
    %p32 = scmp.ne.s32.totalorder %s21, %s24
    %p33 = scmp.eq.s32.totalorder %s16, 1
    %p34 = por %p32, %p33
    %p35 = scmp.ne.s32.totalorder %s24, %s25
    %p36 = scmp.eq.s32.totalorder %s16, 0
    %p37 = por %p35, %p36
    %p38 = scmp.ne.s32.totalorder %s24, %s25
    %p39 = scmp.eq.s32.totalorder %s17, 1
    %p40 = por %p38, %p39
    %p42 = scmp.ne.s32.totalorder %s25, %s41
    %p43 = scmp.eq.s32.totalorder %s17, 0
    %p44 = por %p42, %p43
    %s46 = sadd.s32 %s45, 1
    %p49 = scmp.eq.s32.totalorder %s11, 1
    %p50 = scmp.ne.s32.totalorder %s45, %s47
    %p51 = scmp.eq.s32.totalorder %s11, 0
    %p52 = por %p50, %p51
    %p53 = scmp.ne.s32.totalorder %s45, %s47
    %p54 = scmp.eq.s32.totalorder %s16, 1
    %p55 = por %p53, %p54
    %p56 = scmp.ne.s32.totalorder %s47, %s48
    %p57 = scmp.eq.s32.totalorder %s16, 0
    %p58 = por %p56, %p57
    %p59 = scmp.ne.s32.totalorder %s47, %s48
    %p60 = scmp.eq.s32.totalorder %s17, 1
    %p61 = por %p59, %p60
    %p63 = scmp.ne.s32.totalorder %s48, %s62
    %p64 = scmp.eq.s32.totalorder %s17, 0
    %p65 = por %p63, %p64
    %s67 = sadd.s32 %s66, 1
    %p70 = scmp.eq.s32.totalorder %s11, 1
    %p71 = scmp.ne.s32.totalorder %s66, %s68
    %p72 = scmp.eq.s32.totalorder %s11, 0
    %p73 = por %p71, %p72
    %p74 = scmp.ne.s32.totalorder %s66, %s68
    %p75 = scmp.eq.s32.totalorder %s16, 1
    %p76 = por %p74, %p75
    %p77 = scmp.ne.s32.totalorder %s68, %s69
    %p78 = scmp.eq.s32.totalorder %s16, 0
    %p79 = por %p77, %p78
    %p80 = scmp.ne.s32.totalorder %s68, %s69
    %p81 = scmp.eq.s32.totalorder %s17, 1
    %p82 = por %p80, %p81
    %p84 = scmp.ne.s32.totalorder %s69, %s83
    %p85 = scmp.eq.s32.totalorder %s17, 0
    %p86 = por %p84, %p85
    %s88 = sadd.s32 %s87, 1
    %p91 = scmp.eq.s32.totalorder %s11, 1
    %p92 = scmp.ne.s32.totalorder %s87, %s89
    %p93 = scmp.eq.s32.totalorder %s11, 0
    %p94 = por %p92, %p93
    %p95 = scmp.ne.s32.totalorder %s87, %s89
    %p96 = scmp.eq.s32.totalorder %s16, 1
    %p97 = por %p95, %p96
    %p98 = scmp.ne.s32.totalorder %s89, %s90
    %p99 = scmp.eq.s32.totalorder %s16, 0
    %p100 = por %p98, %p99
    %p101 = scmp.ne.s32.totalorder %s89, %s90
    %p102 = scmp.eq.s32.totalorder %s17, 1
    %p103 = por %p101, %p102
    %p105 = scmp.ne.s32.totalorder %s90, %s104
    %p106 = scmp.eq.s32.totalorder %s17, 0
    %p107 = por %p105, %p106
    %s109 = sadd.s32 %s108, 1
    %p112 = scmp.eq.s32.totalorder %s11, 1
    %p113 = scmp.ne.s32.totalorder %s108, %s110
    %p114 = scmp.eq.s32.totalorder %s11, 0
    %p115 = por %p113, %p114
    %p116 = scmp.ne.s32.totalorder %s108, %s110
    %p117 = scmp.eq.s32.totalorder %s16, 1
    %p118 = por %p116, %p117
    %p119 = scmp.ne.s32.totalorder %s110, %s111
    %p120 = scmp.eq.s32.totalorder %s16, 0
    %p121 = por %p119, %p120
    %p122 = scmp.ne.s32.totalorder %s110, %s111
    %p123 = scmp.eq.s32.totalorder %s17, 1
    %p124 = por %p122, %p123
    %p126 = scmp.ne.s32.totalorder %s111, %s125
    %p127 = scmp.eq.s32.totalorder %s17, 0
    %p128 = por %p126, %p127
    %s129 = ssub.s32 %s11, %s18
    %p130 = scmp.eq.s32.totalorder %s129, 0
    %s132 = sadd.s32 %s131, 1
    %s133 = scalar_select %p130, %s131, %s132
    %p136 = pneg %p130
    %p137 = scmp.eq.s32.totalorder %s11, 1
    %p138 = por %p136, %p137
    %p139 = scmp.ne.s32.totalorder %s131, %s134
    %p140 = scmp.eq.s32.totalorder %s11, 0
    %p141 = por %p139, %p140
    %p142 = scmp.ne.s32.totalorder %s131, %s134
    %p143 = scmp.eq.s32.totalorder %s16, 1
    %p144 = por %p142, %p143
    %p145 = scmp.ne.s32.totalorder %s134, %s135
    %p146 = scmp.eq.s32.totalorder %s16, 0
    %p147 = por %p145, %p146
    %p148 = scmp.ne.s32.totalorder %s134, %s135
    %p149 = scmp.eq.s32.totalorder %s17, 1
    %p150 = por %p148, %p149
    %p152 = scmp.ne.s32.totalorder %s135, %s151
    %p153 = scmp.eq.s32.totalorder %s17, 0
    %p154 = por %p152, %p153
    %p155 = scmp.le.s32.totalorder 1, %s11
    %p156 = scmp.lt.s32.totalorder %s11, 3
    %p157 = pnand %p155, %p156
    %p158 = pneg %p157
    // Predicated region
    $region9: #{single_disc_forward.13} parent=5 // pred_check
      _
    $region10: #{single_disc_forward.13} parent=5 // pred_check_branch
      %160 = sbr.rel (%p157) target = $region12
    $region11: #{single_disc_forward.13} parent=5 // pred_region
      %s161 = ssub.s32 %s11, 1
      // Predicated region
      $region13: #{single_disc_forward.13} parent=11 // pred_check
        %p162 = pneg %p58
      $region14: #{single_disc_forward.13} parent=11 // pred_check_branch
        %164 = sbr.rel (%p162) target = $region16
      $region15: #{single_disc_forward.13} parent=11 // pred_region
        _
      $region16: #{single_disc_forward.13} parent=11 // pred_fallthru
        _
      // Predicated region
      $region17: #{single_disc_forward.13} parent=11 // pred_check
        %p165 = pneg %p79
      $region18: #{single_disc_forward.13} parent=11 // pred_check_branch
        %167 = sbr.rel (%p165) target = $region20
      $region19: #{single_disc_forward.13} parent=11 // pred_region
        _
      $region20: #{single_disc_forward.13} parent=11 // pred_fallthru
        _
      // Predicated region
      $region21: #{single_disc_forward.13} parent=11 // pred_check
        %p168 = pneg %p100
      $region22: #{single_disc_forward.13} parent=11 // pred_check_branch
        %170 = sbr.rel (%p168) target = $region24
      $region23: #{single_disc_forward.13} parent=11 // pred_region
        _
      $region24: #{single_disc_forward.13} parent=11 // pred_fallthru
        _
      // Predicated region
      $region25: #{single_disc_forward.13} parent=11 // pred_check
        %p171 = pneg %p121
      $region26: #{single_disc_forward.13} parent=11 // pred_check_branch
        %173 = sbr.rel (%p171) target = $region28
      $region27: #{single_disc_forward.13} parent=11 // pred_region
        _
      $region28: #{single_disc_forward.13} parent=11 // pred_fallthru
        _
    $region12: #{single_disc_forward.13} parent=5 // pred_fallthru
      _
    %p174 = scmp.lt.s32.totalorder %s11, 2
    // Predicated region
    $region29: #{single_disc_forward.13} parent=5 // pred_check
      %p175 = pneg %p174
    $region30: #{single_disc_forward.13} parent=5 // pred_check_branch
      %177 = sbr.rel (%p175) target = $region32
    $region31: #{single_disc_forward.13} parent=5 // pred_region
      // Predicated region
      $region33: #{single_disc_forward.13} parent=31 // pred_check
        %p178 = pneg %p31
      $region34: #{single_disc_forward.13} parent=31 // pred_check_branch
        %180 = sbr.rel (%p178) target = $region36
      $region35: #{single_disc_forward.13} parent=31 // pred_region
        %s181 = smul.u32 18, %s11
        %p182 = scmp.lt.s32.totalorder %s181, 35
        %s183 = scalar_select %p182, %s181, 35
        %s184 = smul.addr %s183, 9
        %s185 = smul.addr %s184, 4
        %s186 = scalar_lea.vmem %s0, %s185
        %s187 = smul.u32 18, %s11
      $region36: #{single_disc_forward.13} parent=31 // pred_fallthru
        _
    $region32: #{single_disc_forward.13} parent=5 // pred_fallthru
      _
    %p188 = scmp.le.s32.totalorder 1, %s11
    %p189 = scmp.lt.s32.totalorder %s11, 3
    %p190 = pnand %p188, %p189
    %p191 = pneg %p190
    // Predicated region
    $region37: #{single_disc_forward.13} parent=5 // pred_check
      _
    $region38: #{single_disc_forward.13} parent=5 // pred_check_branch
      %193 = sbr.rel (%p190) target = $region40
    $region39: #{single_disc_forward.13} parent=5 // pred_region
      %s194 = ssub.s32 %s11, 1
      %s195 = smul.u32 18, %s16
      %p196 = scmp.lt.s32.totalorder %s195, 35
      %s197 = scalar_select %p196, %s195, 35
      %s198 = smul.addr %s197, 9
      %s199 = smul.addr %s198, 4
      %s200 = scalar_lea.vmem %s0, %s199
      %p201 = pneg %p37
      %p202 = pneg %p34
      %p203 = pneg %p58
      %p204 = pneg %p55
      %p205 = pneg %p79
      %p206 = pneg %p76
      %p207 = pneg %p100
      %p208 = pneg %p97
      %p209 = pneg %p121
      %p210 = pneg %p118
      %p211 = pneg %p147
      %p212 = pneg %p144
      %s213 = smul.u32 18, %s16
      %p214 = scmp.lt.s32.totalorder %s213, 35
      %s215 = scalar_select %p214, %s213, 35
      %s216 = smul.addr %s215, 4
      %s217 = scalar_lea.vmem %s5, %s216
      %s218 = smul.u32 18, %s16
      %p219 = scmp.lt.s32.totalorder %s218, 35
      %s220 = scalar_select %p219, %s218, 35
      %s221 = smul.addr %s220, 9
      %s222 = smul.addr %s221, 4
      %s223 = scalar_lea.vmem %s0, %s222
      %s224 = smul.u32 18, %s16
      %s225 = smul.u32 18, %s16
      %p226 = scmp.lt.s32.totalorder %s225, 35
      %s227 = scalar_select %p226, %s225, 35
      %s228 = smul.addr %s227, 4
      %s229 = scalar_lea.vmem %s5, %s228
      %s230 = smul.u32 18, %s16
      %v232 = vld [vmem:[%s223] sm:$0xff]
      %v233 = vld [vmem:[%s223 + $0x8] sm:$0xff]
      %v234 = vld [vmem:[%s223 + $0x10] sm:$0xff]
      %v235 = vld [vmem:[%s223 + $0x18] sm:$0xff]
      %v236 = vld [vmem:[%s223 + $0x20] sm:$0xf]
      %v237 = vld [vmem:[%s223 + $0x24] sm:$0xff]
      %v238 = vld [vmem:[%s223 + $0x2c] sm:$0xff]
      %v239 = vld [vmem:[%s223 + $0x34] sm:$0xff]
      %v240 = vld [vmem:[%s223 + $0x3c] sm:$0xff]
      %v241 = vld [vmem:[%s223 + $0x44] sm:$0xf]
      %v242 = vld [vmem:[%s223 + $0x48] sm:$0xff]
      %v243 = vld [vmem:[%s223 + $0x50] sm:$0xff]
      %v244 = vld [vmem:[%s223 + $0x58] sm:$0xff]
      %v245 = vld [vmem:[%s223 + $0x60] sm:$0xff]
      %v246 = vld [vmem:[%s223 + $0x68] sm:$0xf]
      %v247 = vld [vmem:[%s223 + $0x6c] sm:$0xff]
      %v248 = vld [vmem:[%s223 + $0x74] sm:$0xff]
      %v249 = vld [vmem:[%s223 + $0x7c] sm:$0xff]
      %v250 = vld [vmem:[%s223 + $0x84] sm:$0xff]
      %v251 = vld [vmem:[%s223 + $0x8c] sm:$0xf]
      %v252 = vld [vmem:[%s223 + $0x90] sm:$0xff]
      %v253 = vld [vmem:[%s223 + $0x98] sm:$0xff]
      %v254 = vld [vmem:[%s223 + $0xa0] sm:$0xff]
      %v255 = vld [vmem:[%s223 + $0xa8] sm:$0xff]
      %v256 = vld [vmem:[%s223 + $0xb0] sm:$0xf]
      %v257 = vld [vmem:[%s223 + $0xb4] sm:$0xff]
      %v258 = vld [vmem:[%s223 + $0xbc] sm:$0xff]
      %v259 = vld [vmem:[%s223 + $0xc4] sm:$0xff]
      %v260 = vld [vmem:[%s223 + $0xcc] sm:$0xff]
      %v261 = vld [vmem:[%s223 + $0xd4] sm:$0xf]
      %v262 = vld [vmem:[%s223 + $0xd8] sm:$0xff]
      %v263 = vld [vmem:[%s223 + $0xe0] sm:$0xff]
      %v264 = vld [vmem:[%s223 + $0xe8] sm:$0xff]
      %v265 = vld [vmem:[%s223 + $0xf0] sm:$0xff]
      %v266 = vld [vmem:[%s223 + $0xf8] sm:$0xf]
      %v267 = vld [vmem:[%s223 + $0xfc] sm:$0xff]
      %v268 = vld [vmem:[%s223 + $0x104] sm:$0xff]
      %v269 = vld [vmem:[%s223 + $0x10c] sm:$0xff]
      %v270 = vld [vmem:[%s223 + $0x114] sm:$0xff]
      %v271 = vld [vmem:[%s223 + $0x11c] sm:$0xf]
      %v272 = vld [vmem:[%s223 + $0x120] sm:$0xff]
      %v273 = vld [vmem:[%s223 + $0x128] sm:$0xff]
      %v274 = vld [vmem:[%s223 + $0x130] sm:$0xff]
      %v275 = vld [vmem:[%s223 + $0x138] sm:$0xff]
      %v276 = vld [vmem:[%s223 + $0x140] sm:$0xf]
      %v277 = vld [vmem:[%s223 + $0x144] sm:$0xff]
      %v278 = vld [vmem:[%s223 + $0x14c] sm:$0xff]
      %v279 = vld [vmem:[%s223 + $0x154] sm:$0xff]
      %v280 = vld [vmem:[%s223 + $0x15c] sm:$0xff]
      %v281 = vld [vmem:[%s223 + $0x164] sm:$0xf]
      %v282 = vld [vmem:[%s223 + $0x168] sm:$0xff]
      %v283 = vld [vmem:[%s223 + $0x170] sm:$0xff]
      %v284 = vld [vmem:[%s223 + $0x178] sm:$0xff]
      %v285 = vld [vmem:[%s223 + $0x180] sm:$0xff]
      %v286 = vld [vmem:[%s223 + $0x188] sm:$0xf]
      %v287 = vld [vmem:[%s223 + $0x18c] sm:$0xff]
      %v288 = vld [vmem:[%s223 + $0x194] sm:$0xff]
      %v289 = vld [vmem:[%s223 + $0x19c] sm:$0xff]
      %v290 = vld [vmem:[%s223 + $0x1a4] sm:$0xff]
      %v291 = vld [vmem:[%s223 + $0x1ac] sm:$0xf]
      %v292 = vld [vmem:[%s223 + $0x1b0] sm:$0xff]
      %v293 = vld [vmem:[%s223 + $0x1b8] sm:$0xff]
      %v294 = vld [vmem:[%s223 + $0x1c0] sm:$0xff]
      %v295 = vld [vmem:[%s223 + $0x1c8] sm:$0xff]
      %v296 = vld [vmem:[%s223 + $0x1d0] sm:$0xf]
      %v297 = vld [vmem:[%s223 + $0x1d4] sm:$0xff]
      %v298 = vld [vmem:[%s223 + $0x1dc] sm:$0xff]
      %v299 = vld [vmem:[%s223 + $0x1e4] sm:$0xff]
      %v300 = vld [vmem:[%s223 + $0x1ec] sm:$0xff]
      %v301 = vld [vmem:[%s223 + $0x1f4] sm:$0xf]
      %v302 = vld [vmem:[%s223 + $0x1f8] sm:$0xff]
      %v303 = vld [vmem:[%s223 + $0x200] sm:$0xff]
      %v304 = vld [vmem:[%s223 + $0x208] sm:$0xff]
      %v305 = vld [vmem:[%s223 + $0x210] sm:$0xff]
      %v306 = vld [vmem:[%s223 + $0x218] sm:$0xf]
      %v307 = vld [vmem:[%s223 + $0x21c] sm:$0xff]
      %v308 = vld [vmem:[%s223 + $0x224] sm:$0xff]
      %v309 = vld [vmem:[%s223 + $0x22c] sm:$0xff]
      %v310 = vld [vmem:[%s223 + $0x234] sm:$0xff]
      %v311 = vld [vmem:[%s223 + $0x23c] sm:$0xf]
      %v312 = vld [vmem:[%s223 + $0x240] sm:$0xff]
      %v313 = vld [vmem:[%s223 + $0x248] sm:$0xff]
      %v314 = vld [vmem:[%s223 + $0x250] sm:$0xff]
      %v315 = vld [vmem:[%s223 + $0x258] sm:$0xff]
      %v316 = vld [vmem:[%s223 + $0x260] sm:$0xf]
      %v317 = vld [vmem:[%s223 + $0x264] sm:$0xff]
      %v318 = vld [vmem:[%s223 + $0x26c] sm:$0xff]
      %v319 = vld [vmem:[%s223 + $0x274] sm:$0xff]
      %v320 = vld [vmem:[%s223 + $0x27c] sm:$0xff]
      %v321 = vld [vmem:[%s223 + $0x284] sm:$0xf]
      %v322 = vld [vmem:[%s1] sm:$0xf]
      %v323 = vld [vmem:[%s1 + $0x4] sm:$0xf]
      %v324 = vld [vmem:[%s1 + $0x8] sm:$0xf]
      %v325 = vld [vmem:[%s1 + $0xc] sm:$0xf]
      %v326 = vld [vmem:[%s1 + $0x10] sm:$0xf]
      %v327 = vld [vmem:[%s1 + $0x14] sm:$0xf]
      %v328 = vld [vmem:[%s1 + $0x18] sm:$0xf]
      %v329 = vld [vmem:[%s1 + $0x1c] sm:$0xf]
      %v330 = vld [vmem:[%s1 + $0x20] sm:$0xf]
      %v331 = vld [vmem:[%s1 + $0x24] sm:$0xf]
      %v332 = vld [vmem:[%s1 + $0x28] sm:$0xf]
      %v333 = vld [vmem:[%s1 + $0x2c] sm:$0xf]
      %v334 = vld [vmem:[%s1 + $0x30] sm:$0xf]
      %v335 = vld [vmem:[%s1 + $0x34] sm:$0xf]
      %v336 = vld [vmem:[%s1 + $0x38] sm:$0xf]
      %v337 = vld [vmem:[%s1 + $0x3c] sm:$0xf]
      %v338 = vld [vmem:[%s1 + $0x40] sm:$0xf]
      %v339 = vld [vmem:[%s1 + $0x44] sm:$0xf]
      %v340 = vld [vmem:[%s1 + $0x48] sm:$0xf]
      %v341 = vld [vmem:[%s1 + $0x4c] sm:$0xf]
      %v342 = vld [vmem:[%s1 + $0x50] sm:$0xf]
      %v343 = vld [vmem:[%s1 + $0x54] sm:$0xf]
      %v344 = vld [vmem:[%s1 + $0x58] sm:$0xf]
      %v345 = vld [vmem:[%s1 + $0x5c] sm:$0xf]
      %v346 = vld [vmem:[%s1 + $0x60] sm:$0xf]
      %v347 = vld [vmem:[%s1 + $0x64] sm:$0xf]
      %v348 = vld [vmem:[%s1 + $0x68] sm:$0xf]
      %v349 = vld [vmem:[%s1 + $0x6c] sm:$0xf]
      %v350 = vld [vmem:[%s1 + $0x70] sm:$0xf]
      %v351 = vld [vmem:[%s1 + $0x74] sm:$0xf]
      %v352 = vld [vmem:[%s1 + $0x78] sm:$0xf]
      %v353 = vld [vmem:[%s1 + $0x7c] sm:$0xf]
      %v354 = vld [vmem:[%s1 + $0x80] sm:$0xf]
      %v355 = vld [vmem:[%s1 + $0x84] sm:$0xf]
      %v356 = vld [vmem:[%s1 + $0x88] sm:$0xf]
      %v357 = vld [vmem:[%s1 + $0x8c] sm:$0xf]
      %v358 = vld [vmem:[%s1 + $0x90] sm:$0xf]
      %v359 = vld [vmem:[%s1 + $0x94] sm:$0xf]
      %v360 = vld [vmem:[%s1 + $0x98] sm:$0xf]
      %v361 = vld [vmem:[%s1 + $0x9c] sm:$0xf]
      %v362 = vld [vmem:[%s1 + $0xa0] sm:$0xf]
      %v363 = vld [vmem:[%s1 + $0xa4] sm:$0xf]
      %v364 = vld [vmem:[%s1 + $0xa8] sm:$0xf]
      %v365 = vld [vmem:[%s1 + $0xac] sm:$0xf]
      %v366 = vld [vmem:[%s1 + $0xb0] sm:$0xf]
      %v367 = vld [vmem:[%s1 + $0xb4] sm:$0xf]
      %v368 = vld [vmem:[%s1 + $0xb8] sm:$0xf]
      %v369 = vld [vmem:[%s1 + $0xbc] sm:$0xf]
      %v370 = vld [vmem:[%s1 + $0xc0] sm:$0xf]
      %v371 = vld [vmem:[%s1 + $0xc4] sm:$0xf]
      %v372 = vld [vmem:[%s1 + $0xc8] sm:$0xf]
      %v373 = vld [vmem:[%s1 + $0xcc] sm:$0xf]
      %v374 = vld [vmem:[%s1 + $0xd0] sm:$0xf]
      %v375 = vld [vmem:[%s1 + $0xd4] sm:$0xf]
      %v376 = vld [vmem:[%s1 + $0xd8] sm:$0xf]
      %v377 = vld [vmem:[%s1 + $0xdc] sm:$0xf]
      %v378 = vld [vmem:[%s1 + $0xe0] sm:$0xf]
      %v379 = vld [vmem:[%s1 + $0xe4] sm:$0xf]
      %v380 = vld [vmem:[%s1 + $0xe8] sm:$0xf]
      %v381 = vld [vmem:[%s1 + $0xec] sm:$0xf]
      %v382 = vld [vmem:[%s1 + $0xf0] sm:$0xf]
      %v383 = vld [vmem:[%s1 + $0xf4] sm:$0xf]
      %v384 = vld [vmem:[%s1 + $0xf8] sm:$0xf]
      %v385 = vld [vmem:[%s1 + $0xfc] sm:$0xf]
      %v386 = vld [vmem:[%s1 + $0x100] sm:$0xf]
      %v387 = vld [vmem:[%s1 + $0x104] sm:$0xf]
      %v388 = vld [vmem:[%s1 + $0x108] sm:$0xf]
      %v389 = vld [vmem:[%s1 + $0x10c] sm:$0xf]
      %v390 = vld [vmem:[%s1 + $0x110] sm:$0xf]
      %v391 = vld [vmem:[%s1 + $0x114] sm:$0xf]
      %v392 = vld [vmem:[%s1 + $0x118] sm:$0xf]
      %v393 = vld [vmem:[%s1 + $0x11c] sm:$0xf]
      %v394 = vld [vmem:[%s1 + $0x120] sm:$0xf]
      %v395 = vld [vmem:[%s1 + $0x124] sm:$0xf]
      %v396 = vld [vmem:[%s1 + $0x128] sm:$0xf]
      %v397 = vld [vmem:[%s1 + $0x12c] sm:$0xf]
      %v398 = vld [vmem:[%s1 + $0x130] sm:$0xf]
      %v399 = vld [vmem:[%s1 + $0x134] sm:$0xf]
      %v400 = vld [vmem:[%s1 + $0x138] sm:$0xf]
      %v401 = vld [vmem:[%s1 + $0x13c] sm:$0xf]
      %v402 = vld [vmem:[%s1 + $0x140] sm:$0xf]
      %v403 = vld [vmem:[%s1 + $0x144] sm:$0xf]
      %v404 = vld [vmem:[%s1 + $0x148] sm:$0xf]
      %v405 = vld [vmem:[%s1 + $0x14c] sm:$0xf]
      %v406 = vld [vmem:[%s1 + $0x150] sm:$0xf]
      %v407 = vld [vmem:[%s1 + $0x154] sm:$0xf]
      %v408 = vld [vmem:[%s1 + $0x158] sm:$0xf]
      %v409 = vld [vmem:[%s1 + $0x15c] sm:$0xf]
      %v410 = vld [vmem:[%s1 + $0x160] sm:$0xf]
      %v411 = vld [vmem:[%s1 + $0x164] sm:$0xf]
      %v412 = vld [vmem:[%s1 + $0x168] sm:$0xf]
      %v413 = vld [vmem:[%s1 + $0x16c] sm:$0xf]
      %v414 = vld [vmem:[%s1 + $0x170] sm:$0xf]
      %v415 = vld [vmem:[%s1 + $0x174] sm:$0xf]
      %v416 = vld [vmem:[%s1 + $0x178] sm:$0xf]
      %v417 = vld [vmem:[%s1 + $0x17c] sm:$0xf]
      %v418 = vld [vmem:[%s1 + $0x180] sm:$0xf]
      %v419 = vld [vmem:[%s1 + $0x184] sm:$0xf]
      %v420 = vld [vmem:[%s1 + $0x188] sm:$0xf]
      %v421 = vld [vmem:[%s1 + $0x18c] sm:$0xf]
      %v422 = vld [vmem:[%s1 + $0x190] sm:$0xf]
      %v423 = vld [vmem:[%s1 + $0x194] sm:$0xf]
      %v424 = vld [vmem:[%s1 + $0x198] sm:$0xf]
      %v425 = vld [vmem:[%s1 + $0x19c] sm:$0xf]
      %v426 = vld [vmem:[%s1 + $0x1a0] sm:$0xf]
      %v427 = vld [vmem:[%s1 + $0x1a4] sm:$0xf]
      %v428 = vld [vmem:[%s1 + $0x1a8] sm:$0xf]
      %v429 = vld [vmem:[%s1 + $0x1ac] sm:$0xf]
      %v430 = vld [vmem:[%s1 + $0x1b0] sm:$0xf]
      %v431 = vld [vmem:[%s1 + $0x1b4] sm:$0xf]
      %v432 = vld [vmem:[%s1 + $0x1b8] sm:$0xf]
      %v433 = vld [vmem:[%s1 + $0x1bc] sm:$0xf]
      %v434 = vld [vmem:[%s1 + $0x1c0] sm:$0xf]
      %v435 = vld [vmem:[%s1 + $0x1c4] sm:$0xf]
      %v436 = vld [vmem:[%s1 + $0x1c8] sm:$0xf]
      %v437 = vld [vmem:[%s1 + $0x1cc] sm:$0xf]
      %v438 = vld [vmem:[%s1 + $0x1d0] sm:$0xf]
      %v439 = vld [vmem:[%s1 + $0x1d4] sm:$0xf]
      %v440 = vld [vmem:[%s1 + $0x1d8] sm:$0xf]
      %v441 = vld [vmem:[%s1 + $0x1dc] sm:$0xf]
      %v442 = vld [vmem:[%s1 + $0x1e0] sm:$0xf]
      %v443 = vld [vmem:[%s1 + $0x1e4] sm:$0xf]
      %v444 = vld [vmem:[%s1 + $0x1e8] sm:$0xf]
      %v445 = vld [vmem:[%s1 + $0x1ec] sm:$0xf]
      %v446 = vld [vmem:[%s1 + $0x1f0] sm:$0xf]
      %v447 = vld [vmem:[%s1 + $0x1f4] sm:$0xf]
      %v448 = vld [vmem:[%s1 + $0x1f8] sm:$0xf]
      %v449 = vld [vmem:[%s1 + $0x1fc] sm:$0xf]
      %v450 = vld [vmem:[%s1 + $0x200] sm:$0xf]
      %v451 = vld [vmem:[%s1 + $0x204] sm:$0xf]
      %v452 = vld [vmem:[%s1 + $0x208] sm:$0xf]
      %v453 = vld [vmem:[%s1 + $0x20c] sm:$0xf]
      %v454 = vld [vmem:[%s1 + $0x210] sm:$0xf]
      %v455 = vld [vmem:[%s1 + $0x214] sm:$0xf]
      %v456 = vld [vmem:[%s1 + $0x218] sm:$0xf]
      %v457 = vld [vmem:[%s1 + $0x21c] sm:$0xf]
      %v458 = vld [vmem:[%s1 + $0x220] sm:$0xf]
      %v459 = vld [vmem:[%s1 + $0x224] sm:$0xf]
      %v460 = vld [vmem:[%s1 + $0x228] sm:$0xf]
      %v461 = vld [vmem:[%s1 + $0x22c] sm:$0xf]
      %v462 = vld [vmem:[%s1 + $0x230] sm:$0xf]
      %v463 = vld [vmem:[%s1 + $0x234] sm:$0xf]
      %v464 = vld [vmem:[%s1 + $0x238] sm:$0xf]
      %v465 = vld [vmem:[%s1 + $0x23c] sm:$0xf]
      %v466 = vld [vmem:[%s2] sm:$0x1]
      %v468 = vlaneseq
      %v469 = vshrl.u32 %v468, 7
      %v470 = vsub.s32 0, %v469
      %v471 = vrot.slane %v466, %v470
      %v563 = vunpack.c.l.b16 %v232
      %v564 = vunpack.c.h.b16 %v232
      %v565 = vunpack.c.l.b16 %v233
      %v566 = vunpack.c.h.b16 %v233
      %v567 = vunpack.c.l.b16 %v234
      %v568 = vunpack.c.h.b16 %v234
      %v569 = vunpack.c.l.b16 %v235
      %v570 = vunpack.c.h.b16 %v235
      %v571 = vunpack.c.l.b16 %v236
      %v572 = vunpack.c.l.b16 %v237
      %v573 = vunpack.c.h.b16 %v237
      %v574 = vunpack.c.l.b16 %v238
      %v575 = vunpack.c.h.b16 %v238
      %v576 = vunpack.c.l.b16 %v239
      %v577 = vunpack.c.h.b16 %v239
      %v578 = vunpack.c.l.b16 %v240
      %v579 = vunpack.c.h.b16 %v240
      %v580 = vunpack.c.l.b16 %v241
      %v581 = vunpack.c.l.b16 %v242
      %v582 = vunpack.c.h.b16 %v242
      %v583 = vunpack.c.l.b16 %v243
      %v584 = vunpack.c.h.b16 %v243
      %v585 = vunpack.c.l.b16 %v244
      %v586 = vunpack.c.h.b16 %v244
      %v587 = vunpack.c.l.b16 %v245
      %v588 = vunpack.c.h.b16 %v245
      %v589 = vunpack.c.l.b16 %v246
      %v590 = vunpack.c.l.b16 %v247
      %v591 = vunpack.c.h.b16 %v247
      %v592 = vunpack.c.l.b16 %v248
      %v593 = vunpack.c.h.b16 %v248
      %v594 = vunpack.c.l.b16 %v249
      %v595 = vunpack.c.h.b16 %v249
      %v596 = vunpack.c.l.b16 %v250
      %v597 = vunpack.c.h.b16 %v250
      %v598 = vunpack.c.l.b16 %v251
      %v599 = vunpack.c.l.b16 %v252
      %v600 = vunpack.c.h.b16 %v252
      %v601 = vunpack.c.l.b16 %v253
      %v602 = vunpack.c.h.b16 %v253
      %v603 = vunpack.c.l.b16 %v254
      %v604 = vunpack.c.h.b16 %v254
      %v605 = vunpack.c.l.b16 %v255
      %v606 = vunpack.c.h.b16 %v255
      %v607 = vunpack.c.l.b16 %v256
      %v608 = vunpack.c.l.b16 %v257
      %v609 = vunpack.c.h.b16 %v257
      %v610 = vunpack.c.l.b16 %v258
      %v611 = vunpack.c.h.b16 %v258
      %v612 = vunpack.c.l.b16 %v259
      %v613 = vunpack.c.h.b16 %v259
      %v614 = vunpack.c.l.b16 %v260
      %v615 = vunpack.c.h.b16 %v260
      %v616 = vunpack.c.l.b16 %v261
      %v617 = vunpack.c.l.b16 %v262
      %v618 = vunpack.c.h.b16 %v262
      %v619 = vunpack.c.l.b16 %v263
      %v620 = vunpack.c.h.b16 %v263
      %v621 = vunpack.c.l.b16 %v264
      %v622 = vunpack.c.h.b16 %v264
      %v623 = vunpack.c.l.b16 %v265
      %v624 = vunpack.c.h.b16 %v265
      %v625 = vunpack.c.l.b16 %v266
      %v626 = vunpack.c.l.b16 %v267
      %v627 = vunpack.c.h.b16 %v267
      %v628 = vunpack.c.l.b16 %v268
      %v629 = vunpack.c.h.b16 %v268
      %v630 = vunpack.c.l.b16 %v269
      %v631 = vunpack.c.h.b16 %v269
      %v632 = vunpack.c.l.b16 %v270
      %v633 = vunpack.c.h.b16 %v270
      %v634 = vunpack.c.l.b16 %v271
      %v635 = vunpack.c.l.b16 %v272
      %v636 = vunpack.c.h.b16 %v272
      %v637 = vunpack.c.l.b16 %v273
      %v638 = vunpack.c.h.b16 %v273
      %v639 = vunpack.c.l.b16 %v274
      %v640 = vunpack.c.h.b16 %v274
      %v641 = vunpack.c.l.b16 %v275
      %v642 = vunpack.c.h.b16 %v275
      %v643 = vunpack.c.l.b16 %v276
      %v644 = vunpack.c.l.b16 %v277
      %v645 = vunpack.c.h.b16 %v277
      %v646 = vunpack.c.l.b16 %v278
      %v647 = vunpack.c.h.b16 %v278
      %v648 = vunpack.c.l.b16 %v279
      %v649 = vunpack.c.h.b16 %v279
      %v650 = vunpack.c.l.b16 %v280
      %v651 = vunpack.c.h.b16 %v280
      %v652 = vunpack.c.l.b16 %v281
      %v653 = vunpack.c.l.b16 %v282
      %v654 = vunpack.c.h.b16 %v282
      %v655 = vunpack.c.l.b16 %v283
      %v656 = vunpack.c.h.b16 %v283
      %v657 = vunpack.c.l.b16 %v284
      %v658 = vunpack.c.h.b16 %v284
      %v659 = vunpack.c.l.b16 %v285
      %v660 = vunpack.c.h.b16 %v285
      %v661 = vunpack.c.l.b16 %v286
      %v662 = vunpack.c.l.b16 %v287
      %v663 = vunpack.c.h.b16 %v287
      %v664 = vunpack.c.l.b16 %v288
      %v665 = vunpack.c.h.b16 %v288
      %v666 = vunpack.c.l.b16 %v289
      %v667 = vunpack.c.h.b16 %v289
      %v668 = vunpack.c.l.b16 %v290
      %v669 = vunpack.c.h.b16 %v290
      %v670 = vunpack.c.l.b16 %v291
      %v671 = vunpack.c.l.b16 %v292
      %v672 = vunpack.c.h.b16 %v292
      %v673 = vunpack.c.l.b16 %v293
      %v674 = vunpack.c.h.b16 %v293
      %v675 = vunpack.c.l.b16 %v294
      %v676 = vunpack.c.h.b16 %v294
      %v677 = vunpack.c.l.b16 %v295
      %v678 = vunpack.c.h.b16 %v295
      %v679 = vunpack.c.l.b16 %v296
      %v680 = vunpack.c.l.b16 %v297
      %v681 = vunpack.c.h.b16 %v297
      %v682 = vunpack.c.l.b16 %v298
      %v683 = vunpack.c.h.b16 %v298
      %v684 = vunpack.c.l.b16 %v299
      %v685 = vunpack.c.h.b16 %v299
      %v686 = vunpack.c.l.b16 %v300
      %v687 = vunpack.c.h.b16 %v300
      %v688 = vunpack.c.l.b16 %v301
      %v689 = vunpack.c.l.b16 %v302
      %v690 = vunpack.c.h.b16 %v302
      %v691 = vunpack.c.l.b16 %v303
      %v692 = vunpack.c.h.b16 %v303
      %v693 = vunpack.c.l.b16 %v304
      %v694 = vunpack.c.h.b16 %v304
      %v695 = vunpack.c.l.b16 %v305
      %v696 = vunpack.c.h.b16 %v305
      %v697 = vunpack.c.l.b16 %v306
      %v698 = vunpack.c.l.b16 %v307
      %v699 = vunpack.c.h.b16 %v307
      %v700 = vunpack.c.l.b16 %v308
      %v701 = vunpack.c.h.b16 %v308
      %v702 = vunpack.c.l.b16 %v309
      %v703 = vunpack.c.h.b16 %v309
      %v704 = vunpack.c.l.b16 %v310
      %v705 = vunpack.c.h.b16 %v310
      %v706 = vunpack.c.l.b16 %v311
      %v707 = vunpack.c.l.b16 %v312
      %v708 = vunpack.c.h.b16 %v312
      %v709 = vunpack.c.l.b16 %v313
      %v710 = vunpack.c.h.b16 %v313
      %v711 = vunpack.c.l.b16 %v314
      %v712 = vunpack.c.h.b16 %v314
      %v713 = vunpack.c.l.b16 %v315
      %v714 = vunpack.c.h.b16 %v315
      %v715 = vunpack.c.l.b16 %v316
      %v716 = vunpack.c.l.b16 %v317
      %v717 = vunpack.c.h.b16 %v317
      %v718 = vunpack.c.l.b16 %v318
      %v719 = vunpack.c.h.b16 %v318
      %v720 = vunpack.c.l.b16 %v319
      %v721 = vunpack.c.h.b16 %v319
      %v722 = vunpack.c.l.b16 %v320
      %v723 = vunpack.c.h.b16 %v320
      %v724 = vunpack.c.l.b16 %v321
      %v725 = vpack.c.b16 %v572, %v563
      %v726 = vpack.c.b16 %v573, %v564
      %v727 = vpack.c.b16 %v574, %v565
      %v728 = vpack.c.b16 %v575, %v566
      %v729 = vpack.c.b16 %v576, %v567
      %v730 = vpack.c.b16 %v577, %v568
      %v731 = vpack.c.b16 %v578, %v569
      %v732 = vpack.c.b16 %v579, %v570
      %v733 = vpack.c.b16 %v580, %v571
      %v734 = vpack.c.b16 %v590, %v581
      %v735 = vpack.c.b16 %v591, %v582
      %v736 = vpack.c.b16 %v592, %v583
      %v737 = vpack.c.b16 %v593, %v584
      %v738 = vpack.c.b16 %v594, %v585
      %v739 = vpack.c.b16 %v595, %v586
      %v740 = vpack.c.b16 %v596, %v587
      %v741 = vpack.c.b16 %v597, %v588
      %v742 = vpack.c.b16 %v598, %v589
      %v743 = vpack.c.b16 %v608, %v599
      %v744 = vpack.c.b16 %v609, %v600
      %v745 = vpack.c.b16 %v610, %v601
      %v746 = vpack.c.b16 %v611, %v602
      %v747 = vpack.c.b16 %v612, %v603
      %v748 = vpack.c.b16 %v613, %v604
      %v749 = vpack.c.b16 %v614, %v605
      %v750 = vpack.c.b16 %v615, %v606
      %v751 = vpack.c.b16 %v616, %v607
      %v752 = vpack.c.b16 %v626, %v617
      %v753 = vpack.c.b16 %v627, %v618
      %v754 = vpack.c.b16 %v628, %v619
      %v755 = vpack.c.b16 %v629, %v620
      %v756 = vpack.c.b16 %v630, %v621
      %v757 = vpack.c.b16 %v631, %v622
      %v758 = vpack.c.b16 %v632, %v623
      %v759 = vpack.c.b16 %v633, %v624
      %v760 = vpack.c.b16 %v634, %v625
      %v761 = vpack.c.b16 %v644, %v635
      %v762 = vpack.c.b16 %v645, %v636
      %v763 = vpack.c.b16 %v646, %v637
      %v764 = vpack.c.b16 %v647, %v638
      %v765 = vpack.c.b16 %v648, %v639
      %v766 = vpack.c.b16 %v649, %v640
      %v767 = vpack.c.b16 %v650, %v641
      %v768 = vpack.c.b16 %v651, %v642
      %v769 = vpack.c.b16 %v652, %v643
      %v770 = vpack.c.b16 %v662, %v653
      %v771 = vpack.c.b16 %v663, %v654
      %v772 = vpack.c.b16 %v664, %v655
      %v773 = vpack.c.b16 %v665, %v656
      %v774 = vpack.c.b16 %v666, %v657
      %v775 = vpack.c.b16 %v667, %v658
      %v776 = vpack.c.b16 %v668, %v659
      %v777 = vpack.c.b16 %v669, %v660
      %v778 = vpack.c.b16 %v670, %v661
      %v779 = vpack.c.b16 %v680, %v671
      %v780 = vpack.c.b16 %v681, %v672
      %v781 = vpack.c.b16 %v682, %v673
      %v782 = vpack.c.b16 %v683, %v674
      %v783 = vpack.c.b16 %v684, %v675
      %v784 = vpack.c.b16 %v685, %v676
      %v785 = vpack.c.b16 %v686, %v677
      %v786 = vpack.c.b16 %v687, %v678
      %v787 = vpack.c.b16 %v688, %v679
      %v788 = vpack.c.b16 %v698, %v689
      %v789 = vpack.c.b16 %v699, %v690
      %v790 = vpack.c.b16 %v700, %v691
      %v791 = vpack.c.b16 %v701, %v692
      %v792 = vpack.c.b16 %v702, %v693
      %v793 = vpack.c.b16 %v703, %v694
      %v794 = vpack.c.b16 %v704, %v695
      %v795 = vpack.c.b16 %v705, %v696
      %v796 = vpack.c.b16 %v706, %v697
      %v797 = vpack.c.b16 %v716, %v707
      %v798 = vpack.c.b16 %v717, %v708
      %v799 = vpack.c.b16 %v718, %v709
      %v800 = vpack.c.b16 %v719, %v710
      %v801 = vpack.c.b16 %v720, %v711
      %v802 = vpack.c.b16 %v721, %v712
      %v803 = vpack.c.b16 %v722, %v713
      %v804 = vpack.c.b16 %v723, %v714
      %v805 = vpack.c.b16 %v724, %v715
      %v1031 = vunpack.c.l.b16 %v322
      %v1032 = vunpack.c.l.b16 %v323
      %v1033 = vunpack.c.l.b16 %v324
      %v1034 = vunpack.c.l.b16 %v325
      %v1035 = vunpack.c.l.b16 %v326
      %v1036 = vunpack.c.l.b16 %v327
      %v1037 = vunpack.c.l.b16 %v328
      %v1038 = vunpack.c.l.b16 %v329
      %v1039 = vunpack.c.l.b16 %v330
      %v1040 = vunpack.c.l.b16 %v331
      %v1041 = vunpack.c.l.b16 %v332
      %v1042 = vunpack.c.l.b16 %v333
      %v1043 = vunpack.c.l.b16 %v334
      %v1044 = vunpack.c.l.b16 %v335
      %v1045 = vunpack.c.l.b16 %v336
      %v1046 = vunpack.c.l.b16 %v337
      %v1047 = vunpack.c.l.b16 %v338
      %v1048 = vunpack.c.l.b16 %v339
      %v1049 = vunpack.c.l.b16 %v340
      %v1050 = vunpack.c.l.b16 %v341
      %v1051 = vunpack.c.l.b16 %v342
      %v1052 = vunpack.c.l.b16 %v343
      %v1053 = vunpack.c.l.b16 %v344
      %v1054 = vunpack.c.l.b16 %v345
      %v1055 = vunpack.c.l.b16 %v346
      %v1056 = vunpack.c.l.b16 %v347
      %v1057 = vunpack.c.l.b16 %v348
      %v1058 = vunpack.c.l.b16 %v349
      %v1059 = vunpack.c.l.b16 %v350
      %v1060 = vunpack.c.l.b16 %v351
      %v1061 = vunpack.c.l.b16 %v352
      %v1062 = vunpack.c.l.b16 %v353
      %v1063 = vunpack.c.l.b16 %v354
      %v1064 = vunpack.c.l.b16 %v355
      %v1065 = vunpack.c.l.b16 %v356
      %v1066 = vunpack.c.l.b16 %v357
      %v1067 = vunpack.c.l.b16 %v358
      %v1068 = vunpack.c.l.b16 %v359
      %v1069 = vunpack.c.l.b16 %v360
      %v1070 = vunpack.c.l.b16 %v361
      %v1071 = vunpack.c.l.b16 %v362
      %v1072 = vunpack.c.l.b16 %v363
      %v1073 = vunpack.c.l.b16 %v364
      %v1074 = vunpack.c.l.b16 %v365
      %v1075 = vunpack.c.l.b16 %v366
      %v1076 = vunpack.c.l.b16 %v367
      %v1077 = vunpack.c.l.b16 %v368
      %v1078 = vunpack.c.l.b16 %v369
      %v1079 = vunpack.c.l.b16 %v370
      %v1080 = vunpack.c.l.b16 %v371
      %v1081 = vunpack.c.l.b16 %v372
      %v1082 = vunpack.c.l.b16 %v373
      %v1083 = vunpack.c.l.b16 %v374
      %v1084 = vunpack.c.l.b16 %v375
      %v1085 = vunpack.c.l.b16 %v376
      %v1086 = vunpack.c.l.b16 %v377
      %v1087 = vunpack.c.l.b16 %v378
      %v1088 = vunpack.c.l.b16 %v379
      %v1089 = vunpack.c.l.b16 %v380
      %v1090 = vunpack.c.l.b16 %v381
      %v1091 = vunpack.c.l.b16 %v382
      %v1092 = vunpack.c.l.b16 %v383
      %v1093 = vunpack.c.l.b16 %v384
      %v1094 = vunpack.c.l.b16 %v385
      %v1095 = vunpack.c.l.b16 %v386
      %v1096 = vunpack.c.l.b16 %v387
      %v1097 = vunpack.c.l.b16 %v388
      %v1098 = vunpack.c.l.b16 %v389
      %v1099 = vunpack.c.l.b16 %v390
      %v1100 = vunpack.c.l.b16 %v391
      %v1101 = vunpack.c.l.b16 %v392
      %v1102 = vunpack.c.l.b16 %v393
      %v1103 = vunpack.c.l.b16 %v394
      %v1104 = vunpack.c.l.b16 %v395
      %v1105 = vunpack.c.l.b16 %v396
      %v1106 = vunpack.c.l.b16 %v397
      %v1107 = vunpack.c.l.b16 %v398
      %v1108 = vunpack.c.l.b16 %v399
      %v1109 = vunpack.c.l.b16 %v400
      %v1110 = vunpack.c.l.b16 %v401
      %v1111 = vunpack.c.l.b16 %v402
      %v1112 = vunpack.c.l.b16 %v403
      %v1113 = vunpack.c.l.b16 %v404
      %v1114 = vunpack.c.l.b16 %v405
      %v1115 = vunpack.c.l.b16 %v406
      %v1116 = vunpack.c.l.b16 %v407
      %v1117 = vunpack.c.l.b16 %v408
      %v1118 = vunpack.c.l.b16 %v409
      %v1119 = vunpack.c.l.b16 %v410
      %v1120 = vunpack.c.l.b16 %v411
      %v1121 = vunpack.c.l.b16 %v412
      %v1122 = vunpack.c.l.b16 %v413
      %v1123 = vunpack.c.l.b16 %v414
      %v1124 = vunpack.c.l.b16 %v415
      %v1125 = vunpack.c.l.b16 %v416
      %v1126 = vunpack.c.l.b16 %v417
      %v1127 = vunpack.c.l.b16 %v418
      %v1128 = vunpack.c.l.b16 %v419
      %v1129 = vunpack.c.l.b16 %v420
      %v1130 = vunpack.c.l.b16 %v421
      %v1131 = vunpack.c.l.b16 %v422
      %v1132 = vunpack.c.l.b16 %v423
      %v1133 = vunpack.c.l.b16 %v424
      %v1134 = vunpack.c.l.b16 %v425
      %v1135 = vunpack.c.l.b16 %v426
      %v1136 = vunpack.c.l.b16 %v427
      %v1137 = vunpack.c.l.b16 %v428
      %v1138 = vunpack.c.l.b16 %v429
      %v1139 = vunpack.c.l.b16 %v430
      %v1140 = vunpack.c.l.b16 %v431
      %v1141 = vunpack.c.l.b16 %v432
      %v1142 = vunpack.c.l.b16 %v433
      %v1143 = vunpack.c.l.b16 %v434
      %v1144 = vunpack.c.l.b16 %v435
      %v1145 = vunpack.c.l.b16 %v436
      %v1146 = vunpack.c.l.b16 %v437
      %v1147 = vunpack.c.l.b16 %v438
      %v1148 = vunpack.c.l.b16 %v439
      %v1149 = vunpack.c.l.b16 %v440
      %v1150 = vunpack.c.l.b16 %v441
      %v1151 = vunpack.c.l.b16 %v442
      %v1152 = vunpack.c.l.b16 %v443
      %v1153 = vunpack.c.l.b16 %v444
      %v1154 = vunpack.c.l.b16 %v445
      %v1155 = vunpack.c.l.b16 %v446
      %v1156 = vunpack.c.l.b16 %v447
      %v1157 = vunpack.c.l.b16 %v448
      %v1158 = vunpack.c.l.b16 %v449
      %v1159 = vunpack.c.l.b16 %v450
      %v1160 = vunpack.c.l.b16 %v451
      %v1161 = vunpack.c.l.b16 %v452
      %v1162 = vunpack.c.l.b16 %v453
      %v1163 = vunpack.c.l.b16 %v454
      %v1164 = vunpack.c.l.b16 %v455
      %v1165 = vunpack.c.l.b16 %v456
      %v1166 = vunpack.c.l.b16 %v457
      %v1167 = vunpack.c.l.b16 %v458
      %v1168 = vunpack.c.l.b16 %v459
      %v1169 = vunpack.c.l.b16 %v460
      %v1170 = vunpack.c.l.b16 %v461
      %v1171 = vunpack.c.l.b16 %v462
      %v1172 = vunpack.c.l.b16 %v463
      %v1173 = vunpack.c.l.b16 %v464
      %v1174 = vunpack.c.l.b16 %v465
      %v1175 = vpack.c.b16 %v1032, %v1031
      %v1176 = vpack.c.b16 %v1034, %v1033
      %v1177 = vpack.c.b16 %v1036, %v1035
      %v1178 = vpack.c.b16 %v1038, %v1037
      %v1179 = vpack.c.b16 %v1040, %v1039
      %v1180 = vpack.c.b16 %v1042, %v1041
      %v1181 = vpack.c.b16 %v1044, %v1043
      %v1182 = vpack.c.b16 %v1046, %v1045
      %v1183 = vpack.c.b16 %v1048, %v1047
      %v1184 = vpack.c.b16 %v1050, %v1049
      %v1185 = vpack.c.b16 %v1052, %v1051
      %v1186 = vpack.c.b16 %v1054, %v1053
      %v1187 = vpack.c.b16 %v1056, %v1055
      %v1188 = vpack.c.b16 %v1058, %v1057
      %v1189 = vpack.c.b16 %v1060, %v1059
      %v1190 = vpack.c.b16 %v1062, %v1061
      %v1191 = vpack.c.b16 %v1064, %v1063
      %v1192 = vpack.c.b16 %v1066, %v1065
      %v1193 = vpack.c.b16 %v1068, %v1067
      %v1194 = vpack.c.b16 %v1070, %v1069
      %v1195 = vpack.c.b16 %v1072, %v1071
      %v1196 = vpack.c.b16 %v1074, %v1073
      %v1197 = vpack.c.b16 %v1076, %v1075
      %v1198 = vpack.c.b16 %v1078, %v1077
      %v1199 = vpack.c.b16 %v1080, %v1079
      %v1200 = vpack.c.b16 %v1082, %v1081
      %v1201 = vpack.c.b16 %v1084, %v1083
      %v1202 = vpack.c.b16 %v1086, %v1085
      %v1203 = vpack.c.b16 %v1088, %v1087
      %v1204 = vpack.c.b16 %v1090, %v1089
      %v1205 = vpack.c.b16 %v1092, %v1091
      %v1206 = vpack.c.b16 %v1094, %v1093
      %v1207 = vpack.c.b16 %v1096, %v1095
      %v1208 = vpack.c.b16 %v1098, %v1097
      %v1209 = vpack.c.b16 %v1100, %v1099
      %v1210 = vpack.c.b16 %v1102, %v1101
      %v1211 = vpack.c.b16 %v1104, %v1103
      %v1212 = vpack.c.b16 %v1106, %v1105
      %v1213 = vpack.c.b16 %v1108, %v1107
      %v1214 = vpack.c.b16 %v1110, %v1109
      %v1215 = vpack.c.b16 %v1112, %v1111
      %v1216 = vpack.c.b16 %v1114, %v1113
      %v1217 = vpack.c.b16 %v1116, %v1115
      %v1218 = vpack.c.b16 %v1118, %v1117
      %v1219 = vpack.c.b16 %v1120, %v1119
      %v1220 = vpack.c.b16 %v1122, %v1121
      %v1221 = vpack.c.b16 %v1124, %v1123
      %v1222 = vpack.c.b16 %v1126, %v1125
      %v1223 = vpack.c.b16 %v1128, %v1127
      %v1224 = vpack.c.b16 %v1130, %v1129
      %v1225 = vpack.c.b16 %v1132, %v1131
      %v1226 = vpack.c.b16 %v1134, %v1133
      %v1227 = vpack.c.b16 %v1136, %v1135
      %v1228 = vpack.c.b16 %v1138, %v1137
      %v1229 = vpack.c.b16 %v1140, %v1139
      %v1230 = vpack.c.b16 %v1142, %v1141
      %v1231 = vpack.c.b16 %v1144, %v1143
      %v1232 = vpack.c.b16 %v1146, %v1145
      %v1233 = vpack.c.b16 %v1148, %v1147
      %v1234 = vpack.c.b16 %v1150, %v1149
      %v1235 = vpack.c.b16 %v1152, %v1151
      %v1236 = vpack.c.b16 %v1154, %v1153
      %v1237 = vpack.c.b16 %v1156, %v1155
      %v1238 = vpack.c.b16 %v1158, %v1157
      %v1239 = vpack.c.b16 %v1160, %v1159
      %v1240 = vpack.c.b16 %v1162, %v1161
      %v1241 = vpack.c.b16 %v1164, %v1163
      %v1242 = vpack.c.b16 %v1166, %v1165
      %v1243 = vpack.c.b16 %v1168, %v1167
      %v1244 = vpack.c.b16 %v1170, %v1169
      %v1245 = vpack.c.b16 %v1172, %v1171
      %v1246 = vpack.c.b16 %v1174, %v1173
      %1319 = vmatprep.subr.bf16.mxu0 0
      %1320 = vmatpush1.bf16.msra.mxu0 %v1175
      %1321 = vmatprep.subr.bf16.mxu0 0
      %1322 = vmatpush1.bf16.msra.mxu0 %v1176
      %1323 = vmatprep.subr.bf16.mxu0 0
      %1324 = vmatpush1.bf16.msra.mxu0 %v1177
      %1325 = vmatprep.subr.bf16.mxu0 0
      %1326 = vmatpush1.bf16.msra.mxu0 %v1178
      %1327 = vmatprep.subr.bf16.mxu0 0
      %1328 = vmatpush1.bf16.msra.mxu0 %v1179
      %1329 = vmatprep.subr.bf16.mxu0 0
      %1330 = vmatpush1.bf16.msra.mxu0 %v1180
      %1331 = vmatprep.subr.bf16.mxu0 0
      %1332 = vmatpush1.bf16.msra.mxu0 %v1181
      %1333 = vmatprep.subr.bf16.mxu0 0
      %1334 = vmatpush1.bf16.msra.mxu0 %v1182
      %1335 = vmatprep.subr.bf16.mxu0 0
      %1336 = vmatpush1.bf16.msra.mxu0 %v1183
      %1337 = vmatprep.subr.bf16.mxu0 0
      %1338 = vmatpush1.bf16.msra.mxu0 %v1184
      %1339 = vmatprep.subr.bf16.mxu0 0
      %1340 = vmatpush1.bf16.msra.mxu0 %v1185
      %1341 = vmatprep.subr.bf16.mxu0 0
      %1342 = vmatpush1.bf16.msra.mxu0 %v1186
      %1343 = vmatprep.subr.bf16.mxu0 0
      %1344 = vmatpush1.bf16.msra.mxu0 %v1187
      %1345 = vmatprep.subr.bf16.mxu0 0
      %1346 = vmatpush1.bf16.msra.mxu0 %v1188
      %1347 = vmatprep.subr.bf16.mxu0 0
      %1348 = vmatpush1.bf16.msra.mxu0 %v1189
      %1349 = vmatprep.subr.bf16.mxu0 0
      %1350 = vmatpush1.bf16.msra.mxu0 %v1190
      %1351 = vmatprep.mubr.bf16.mxu0 %v726
      %1352 = vmatmul.mubr.bf16.gmra.mrb[0].mxu0 %v725
      %v1353 = vpop.f32.mrb[0].mxu0
      %v1354 = vadd.f32 %v471, %v1353
      %v1355 = vpop.f32.mrb[0].mxu0
      %v1356 = vpop.f32.mrb[0].mxu0
      %v1357 = vadd.f32 %v471, %v1356
      %v1358 = vpop.f32.mrb[0].mxu0
      %1359 = vmatprep.mubr.bf16.mxu0 %v735
      %1360 = vmatmul.mubr.bf16.gmra.mrb[0].mxu0 %v734
      %v1361 = vpop.f32.mrb[0].mxu0
      %v1362 = vadd.f32 %v471, %v1361
      %v1363 = vpop.f32.mrb[0].mxu0
      %v1364 = vpop.f32.mrb[0].mxu0
      %v1365 = vadd.f32 %v471, %v1364
      %v1366 = vpop.f32.mrb[0].mxu0
      %1367 = vmatprep.mubr.bf16.mxu0 %v744
      %1368 = vmatmul.mubr.bf16.gmra.mrb[0].mxu0 %v743
      %v1369 = vpop.f32.mrb[0].mxu0
      %v1370 = vadd.f32 %v471, %v1369
      %v1371 = vpop.f32.mrb[0].mxu0
      %v1372 = vpop.f32.mrb[0].mxu0
      %v1373 = vadd.f32 %v471, %v1372
      %v1374 = vpop.f32.mrb[0].mxu0
      %1375 = vmatprep.mubr.bf16.mxu0 %v753
      %1376 = vmatmul.mubr.bf16.gmra.mrb[0].mxu0 %v752
      %v1377 = vpop.f32.mrb[0].mxu0
      %v1378 = vadd.f32 %v471, %v1377
      %v1379 = vpop.f32.mrb[0].mxu0
      %v1380 = vpop.f32.mrb[0].mxu0
      %v1381 = vadd.f32 %v471, %v1380
      %v1382 = vpop.f32.mrb[0].mxu0
      %1383 = vmatprep.mubr.bf16.mxu0 %v762
      %1384 = vmatmul.mubr.bf16.gmra.mrb[0].mxu0 %v761
      %v1385 = vpop.f32.mrb[0].mxu0
      %v1386 = vadd.f32 %v471, %v1385
      %v1387 = vpop.f32.mrb[0].mxu0
      %v1388 = vpop.f32.mrb[0].mxu0
      %v1389 = vadd.f32 %v471, %v1388
      %v1390 = vpop.f32.mrb[0].mxu0
      %1391 = vmatprep.mubr.bf16.mxu0 %v771
      %1392 = vmatmul.mubr.bf16.gmra.mrb[0].mxu0 %v770
      %v1393 = vpop.f32.mrb[0].mxu0
      %v1394 = vadd.f32 %v471, %v1393
      %v1395 = vpop.f32.mrb[0].mxu0
      %v1396 = vpop.f32.mrb[0].mxu0
      %v1397 = vadd.f32 %v471, %v1396
      %v1398 = vpop.f32.mrb[0].mxu0
      %1399 = vmatprep.mubr.bf16.mxu0 %v780
      %1400 = vmatmul.mubr.bf16.gmra.mrb[0].mxu0 %v779
      %v1401 = vpop.f32.mrb[0].mxu0
      %v1402 = vadd.f32 %v471, %v1401
      %v1403 = vpop.f32.mrb[0].mxu0
      %v1404 = vpop.f32.mrb[0].mxu0
      %v1405 = vadd.f32 %v471, %v1404
      %v1406 = vpop.f32.mrb[0].mxu0
      %1407 = vmatprep.mubr.bf16.mxu0 %v789
      %1408 = vmatmul.mubr.bf16.gmra.mrb[0].mxu0 %v788
      %v1409 = vpop.f32.mrb[0].mxu0
      %v1410 = vadd.f32 %v471, %v1409
      %v1411 = vpop.f32.mrb[0].mxu0
      %v1412 = vpop.f32.mrb[0].mxu0
      %v1413 = vadd.f32 %v471, %v1412
      %v1414 = vpop.f32.mrb[0].mxu0
      %1415 = vmatprep.mubr.bf16.mxu0 %v798
      %1416 = vmatmul.mubr.bf16.gmra.mrb[0].mxu0 %v797
      %v1417 = vpop.f32.mrb[0].mxu0
      %v1418 = vadd.f32 %v471, %v1417
      %v1419 = vpop.f32.mrb[0].mxu0
      %v1420 = vpop.f32.mrb[0].mxu0
      %v1421 = vadd.f32 %v471, %v1420
      %v1422 = vpop.f32.mrb[0].mxu0
      %1423 = vdwg.mxu0
      %1424 = vmatprep.subr.bf16.mxu0 0
      %1425 = vmatpush1.bf16.msra.mxu0 %v1191
      %1426 = vmatprep.subr.bf16.mxu0 0
      %1427 = vmatpush1.bf16.msra.mxu0 %v1192
      %1428 = vmatprep.subr.bf16.mxu0 0
      %1429 = vmatpush1.bf16.msra.mxu0 %v1193
      %1430 = vmatprep.subr.bf16.mxu0 0
      %1431 = vmatpush1.bf16.msra.mxu0 %v1194
      %1432 = vmatprep.subr.bf16.mxu0 0
      %1433 = vmatpush1.bf16.msra.mxu0 %v1195
      %1434 = vmatprep.subr.bf16.mxu0 0
      %1435 = vmatpush1.bf16.msra.mxu0 %v1196
      %1436 = vmatprep.subr.bf16.mxu0 0
      %1437 = vmatpush1.bf16.msra.mxu0 %v1197
      %1438 = vmatprep.subr.bf16.mxu0 0
      %1439 = vmatpush1.bf16.msra.mxu0 %v1198
      %1440 = vmatprep.subr.bf16.mxu0 0
      %1441 = vmatpush1.bf16.msra.mxu0 %v1199
      %1442 = vmatprep.subr.bf16.mxu0 0
      %1443 = vmatpush1.bf16.msra.mxu0 %v1200
      %1444 = vmatprep.subr.bf16.mxu0 0
      %1445 = vmatpush1.bf16.msra.mxu0 %v1201
      %1446 = vmatprep.subr.bf16.mxu0 0
      %1447 = vmatpush1.bf16.msra.mxu0 %v1202
      %1448 = vmatprep.subr.bf16.mxu0 0
      %1449 = vmatpush1.bf16.msra.mxu0 %v1203
      %1450 = vmatprep.subr.bf16.mxu0 0
      %1451 = vmatpush1.bf16.msra.mxu0 %v1204
      %1452 = vmatprep.subr.bf16.mxu0 0
      %1453 = vmatpush1.bf16.msra.mxu0 %v1205
      %1454 = vmatprep.subr.bf16.mxu0 0
      %1455 = vmatpush1.bf16.msra.mxu0 %v1206
      %1456 = vmatprep.mubr.bf16.mxu0 %v728
      %1457 = vmatmul.mubr.bf16.gmra.mrb[0].mxu0 %v727
      %v1458 = vpop.f32.mrb[0].mxu0
      %v1459 = vadd.f32 %v1354, %v1458
      %v1460 = vpop.f32.mrb[0].mxu0
      %v1461 = vpop.f32.mrb[0].mxu0
      %v1462 = vadd.f32 %v1357, %v1461
      %v1463 = vpop.f32.mrb[0].mxu0
      %1464 = vmatprep.mubr.bf16.mxu0 %v737
      %1465 = vmatmul.mubr.bf16.gmra.mrb[0].mxu0 %v736
      %v1466 = vpop.f32.mrb[0].mxu0
      %v1467 = vadd.f32 %v1362, %v1466
      %v1468 = vpop.f32.mrb[0].mxu0
      %v1469 = vpop.f32.mrb[0].mxu0
      %v1470 = vadd.f32 %v1365, %v1469
      %v1471 = vpop.f32.mrb[0].mxu0
      %1472 = vmatprep.mubr.bf16.mxu0 %v746
      %1473 = vmatmul.mubr.bf16.gmra.mrb[0].mxu0 %v745
      %v1474 = vpop.f32.mrb[0].mxu0
      %v1475 = vadd.f32 %v1370, %v1474
      %v1476 = vpop.f32.mrb[0].mxu0
      %v1477 = vpop.f32.mrb[0].mxu0
      %v1478 = vadd.f32 %v1373, %v1477
      %v1479 = vpop.f32.mrb[0].mxu0
      %1480 = vmatprep.mubr.bf16.mxu0 %v755
      %1481 = vmatmul.mubr.bf16.gmra.mrb[0].mxu0 %v754
      %v1482 = vpop.f32.mrb[0].mxu0
      %v1483 = vadd.f32 %v1378, %v1482
      %v1484 = vpop.f32.mrb[0].mxu0
      %v1485 = vpop.f32.mrb[0].mxu0
      %v1486 = vadd.f32 %v1381, %v1485
      %v1487 = vpop.f32.mrb[0].mxu0
      %1488 = vmatprep.mubr.bf16.mxu0 %v764
      %1489 = vmatmul.mubr.bf16.gmra.mrb[0].mxu0 %v763
      %v1490 = vpop.f32.mrb[0].mxu0
      %v1491 = vadd.f32 %v1386, %v1490
      %v1492 = vpop.f32.mrb[0].mxu0
      %v1493 = vpop.f32.mrb[0].mxu0
      %v1494 = vadd.f32 %v1389, %v1493
      %v1495 = vpop.f32.mrb[0].mxu0
      %1496 = vmatprep.mubr.bf16.mxu0 %v773
      %1497 = vmatmul.mubr.bf16.gmra.mrb[0].mxu0 %v772
      %v1498 = vpop.f32.mrb[0].mxu0
      %v1499 = vadd.f32 %v1394, %v1498
      %v1500 = vpop.f32.mrb[0].mxu0
      %v1501 = vpop.f32.mrb[0].mxu0
      %v1502 = vadd.f32 %v1397, %v1501
      %v1503 = vpop.f32.mrb[0].mxu0
      %1504 = vmatprep.mubr.bf16.mxu0 %v782
      %1505 = vmatmul.mubr.bf16.gmra.mrb[0].mxu0 %v781
      %v1506 = vpop.f32.mrb[0].mxu0
      %v1507 = vadd.f32 %v1402, %v1506
      %v1508 = vpop.f32.mrb[0].mxu0
      %v1509 = vpop.f32.mrb[0].mxu0
      %v1510 = vadd.f32 %v1405, %v1509
      %v1511 = vpop.f32.mrb[0].mxu0
      %1512 = vmatprep.mubr.bf16.mxu0 %v791
      %1513 = vmatmul.mubr.bf16.gmra.mrb[0].mxu0 %v790
      %v1514 = vpop.f32.mrb[0].mxu0
      %v1515 = vadd.f32 %v1410, %v1514
      %v1516 = vpop.f32.mrb[0].mxu0
      %v1517 = vpop.f32.mrb[0].mxu0
      %v1518 = vadd.f32 %v1413, %v1517
      %v1519 = vpop.f32.mrb[0].mxu0
      %1520 = vmatprep.mubr.bf16.mxu0 %v800
      %1521 = vmatmul.mubr.bf16.gmra.mrb[0].mxu0 %v799
      %v1522 = vpop.f32.mrb[0].mxu0
      %v1523 = vadd.f32 %v1418, %v1522
      %v1524 = vpop.f32.mrb[0].mxu0
      %v1525 = vpop.f32.mrb[0].mxu0
      %v1526 = vadd.f32 %v1421, %v1525
      %v1527 = vpop.f32.mrb[0].mxu0
      %1528 = vdwg.mxu0
      %1529 = vmatprep.subr.bf16.mxu0 0
      %1530 = vmatpush1.bf16.msra.mxu0 %v1207
      %1531 = vmatprep.subr.bf16.mxu0 0
      %1532 = vmatpush1.bf16.msra.mxu0 %v1208
      %1533 = vmatprep.subr.bf16.mxu0 0
      %1534 = vmatpush1.bf16.msra.mxu0 %v1209
      %1535 = vmatprep.subr.bf16.mxu0 0
      %1536 = vmatpush1.bf16.msra.mxu0 %v1210
      %1537 = vmatprep.subr.bf16.mxu0 0
      %1538 = vmatpush1.bf16.msra.mxu0 %v1211
      %1539 = vmatprep.subr.bf16.mxu0 0
      %1540 = vmatpush1.bf16.msra.mxu0 %v1212
      %1541 = vmatprep.subr.bf16.mxu0 0
      %1542 = vmatpush1.bf16.msra.mxu0 %v1213
      %1543 = vmatprep.subr.bf16.mxu0 0
      %1544 = vmatpush1.bf16.msra.mxu0 %v1214
      %1545 = vmatprep.subr.bf16.mxu0 0
      %1546 = vmatpush1.bf16.msra.mxu0 %v1215
      %1547 = vmatprep.subr.bf16.mxu0 0
      %1548 = vmatpush1.bf16.msra.mxu0 %v1216
      %1549 = vmatprep.subr.bf16.mxu0 0
      %1550 = vmatpush1.bf16.msra.mxu0 %v1217
      %1551 = vmatprep.subr.bf16.mxu0 0
      %1552 = vmatpush1.bf16.msra.mxu0 %v1218
      %1553 = vmatprep.subr.bf16.mxu0 0
      %1554 = vmatpush1.bf16.msra.mxu0 %v1219
      %1555 = vmatprep.subr.bf16.mxu0 0
      %1556 = vmatpush1.bf16.msra.mxu0 %v1220
      %1557 = vmatprep.subr.bf16.mxu0 0
      %1558 = vmatpush1.bf16.msra.mxu0 %v1221
      %1559 = vmatprep.subr.bf16.mxu0 0
      %1560 = vmatpush1.bf16.msra.mxu0 %v1222
      %1561 = vmatprep.mubr.bf16.mxu0 %v730
      %1562 = vmatmul.mubr.bf16.gmra.mrb[0].mxu0 %v729
      %v1563 = vpop.f32.mrb[0].mxu0
      %v1564 = vadd.f32 %v1459, %v1563
      %v1565 = vpop.f32.mrb[0].mxu0
      %v1566 = vpop.f32.mrb[0].mxu0
      %v1567 = vadd.f32 %v1462, %v1566
      %v1568 = vpop.f32.mrb[0].mxu0
      %1569 = vmatprep.mubr.bf16.mxu0 %v739
      %1570 = vmatmul.mubr.bf16.gmra.mrb[0].mxu0 %v738
      %v1571 = vpop.f32.mrb[0].mxu0
      %v1572 = vadd.f32 %v1467, %v1571
      %v1573 = vpop.f32.mrb[0].mxu0
      %v1574 = vpop.f32.mrb[0].mxu0
      %v1575 = vadd.f32 %v1470, %v1574
      %v1576 = vpop.f32.mrb[0].mxu0
      %1577 = vmatprep.mubr.bf16.mxu0 %v748
      %1578 = vmatmul.mubr.bf16.gmra.mrb[0].mxu0 %v747
      %v1579 = vpop.f32.mrb[0].mxu0
      %v1580 = vadd.f32 %v1475, %v1579
      %v1581 = vpop.f32.mrb[0].mxu0
      %v1582 = vpop.f32.mrb[0].mxu0
      %v1583 = vadd.f32 %v1478, %v1582
      %v1584 = vpop.f32.mrb[0].mxu0
      %1585 = vmatprep.mubr.bf16.mxu0 %v757
      %1586 = vmatmul.mubr.bf16.gmra.mrb[0].mxu0 %v756
      %v1587 = vpop.f32.mrb[0].mxu0
      %v1588 = vadd.f32 %v1483, %v1587
      %v1589 = vpop.f32.mrb[0].mxu0
      %v1590 = vpop.f32.mrb[0].mxu0
      %v1591 = vadd.f32 %v1486, %v1590
      %v1592 = vpop.f32.mrb[0].mxu0
      %1593 = vmatprep.mubr.bf16.mxu0 %v766
      %1594 = vmatmul.mubr.bf16.gmra.mrb[0].mxu0 %v765
      %v1595 = vpop.f32.mrb[0].mxu0
      %v1596 = vadd.f32 %v1491, %v1595
      %v1597 = vpop.f32.mrb[0].mxu0
      %v1598 = vpop.f32.mrb[0].mxu0
      %v1599 = vadd.f32 %v1494, %v1598
      %v1600 = vpop.f32.mrb[0].mxu0
      %1601 = vmatprep.mubr.bf16.mxu0 %v775
      %1602 = vmatmul.mubr.bf16.gmra.mrb[0].mxu0 %v774
      %v1603 = vpop.f32.mrb[0].mxu0
      %v1604 = vadd.f32 %v1499, %v1603
      %v1605 = vpop.f32.mrb[0].mxu0
      %v1606 = vpop.f32.mrb[0].mxu0
      %v1607 = vadd.f32 %v1502, %v1606
      %v1608 = vpop.f32.mrb[0].mxu0
      %1609 = vmatprep.mubr.bf16.mxu0 %v784
      %1610 = vmatmul.mubr.bf16.gmra.mrb[0].mxu0 %v783
      %v1611 = vpop.f32.mrb[0].mxu0
      %v1612 = vadd.f32 %v1507, %v1611
      %v1613 = vpop.f32.mrb[0].mxu0
      %v1614 = vpop.f32.mrb[0].mxu0
      %v1615 = vadd.f32 %v1510, %v1614
      %v1616 = vpop.f32.mrb[0].mxu0
      %1617 = vmatprep.mubr.bf16.mxu0 %v793
      %1618 = vmatmul.mubr.bf16.gmra.mrb[0].mxu0 %v792
      %v1619 = vpop.f32.mrb[0].mxu0
      %v1620 = vadd.f32 %v1515, %v1619
      %v1621 = vpop.f32.mrb[0].mxu0
      %v1622 = vpop.f32.mrb[0].mxu0
      %v1623 = vadd.f32 %v1518, %v1622
      %v1624 = vpop.f32.mrb[0].mxu0
      %1625 = vmatprep.mubr.bf16.mxu0 %v802
      %1626 = vmatmul.mubr.bf16.gmra.mrb[0].mxu0 %v801
      %v1627 = vpop.f32.mrb[0].mxu0
      %v1628 = vadd.f32 %v1523, %v1627
      %v1629 = vpop.f32.mrb[0].mxu0
      %v1630 = vpop.f32.mrb[0].mxu0
      %v1631 = vadd.f32 %v1526, %v1630
      %v1632 = vpop.f32.mrb[0].mxu0
      %1633 = vdwg.mxu0
      %1634 = vmatprep.subr.bf16.mxu0 0
      %1635 = vmatpush1.bf16.msra.mxu0 %v1223
      %1636 = vmatprep.subr.bf16.mxu0 0
      %1637 = vmatpush1.bf16.msra.mxu0 %v1224
      %1638 = vmatprep.subr.bf16.mxu0 0
      %1639 = vmatpush1.bf16.msra.mxu0 %v1225
      %1640 = vmatprep.subr.bf16.mxu0 0
      %1641 = vmatpush1.bf16.msra.mxu0 %v1226
      %1642 = vmatprep.subr.bf16.mxu0 0
      %1643 = vmatpush1.bf16.msra.mxu0 %v1227
      %1644 = vmatprep.subr.bf16.mxu0 0
      %1645 = vmatpush1.bf16.msra.mxu0 %v1228
      %1646 = vmatprep.subr.bf16.mxu0 0
      %1647 = vmatpush1.bf16.msra.mxu0 %v1229
      %1648 = vmatprep.subr.bf16.mxu0 0
      %1649 = vmatpush1.bf16.msra.mxu0 %v1230
      %1650 = vmatprep.subr.bf16.mxu0 0
      %1651 = vmatpush1.bf16.msra.mxu0 %v1231
      %1652 = vmatprep.subr.bf16.mxu0 0
      %1653 = vmatpush1.bf16.msra.mxu0 %v1232
      %1654 = vmatprep.subr.bf16.mxu0 0
      %1655 = vmatpush1.bf16.msra.mxu0 %v1233
      %1656 = vmatprep.subr.bf16.mxu0 0
      %1657 = vmatpush1.bf16.msra.mxu0 %v1234
      %1658 = vmatprep.subr.bf16.mxu0 0
      %1659 = vmatpush1.bf16.msra.mxu0 %v1235
      %1660 = vmatprep.subr.bf16.mxu0 0
      %1661 = vmatpush1.bf16.msra.mxu0 %v1236
      %1662 = vmatprep.subr.bf16.mxu0 0
      %1663 = vmatpush1.bf16.msra.mxu0 %v1237
      %1664 = vmatprep.subr.bf16.mxu0 0
      %1665 = vmatpush1.bf16.msra.mxu0 %v1238
      %1666 = vmatprep.mubr.bf16.mxu0 %v732
      %1667 = vmatmul.mubr.bf16.gmra.mrb[0].mxu0 %v731
      %v1668 = vpop.f32.mrb[0].mxu0
      %v1669 = vadd.f32 %v1564, %v1668
      %v1670 = vpop.f32.mrb[0].mxu0
      %v1671 = vpop.f32.mrb[0].mxu0
      %v1672 = vadd.f32 %v1567, %v1671
      %v1673 = vpop.f32.mrb[0].mxu0
      %1674 = vmatprep.mubr.bf16.mxu0 %v741
      %1675 = vmatmul.mubr.bf16.gmra.mrb[0].mxu0 %v740
      %v1676 = vpop.f32.mrb[0].mxu0
      %v1677 = vadd.f32 %v1572, %v1676
      %v1678 = vpop.f32.mrb[0].mxu0
      %v1679 = vpop.f32.mrb[0].mxu0
      %v1680 = vadd.f32 %v1575, %v1679
      %v1681 = vpop.f32.mrb[0].mxu0
      %1682 = vmatprep.mubr.bf16.mxu0 %v750
      %1683 = vmatmul.mubr.bf16.gmra.mrb[0].mxu0 %v749
      %v1684 = vpop.f32.mrb[0].mxu0
      %v1685 = vadd.f32 %v1580, %v1684
      %v1686 = vpop.f32.mrb[0].mxu0
      %v1687 = vpop.f32.mrb[0].mxu0
      %v1688 = vadd.f32 %v1583, %v1687
      %v1689 = vpop.f32.mrb[0].mxu0
      %1690 = vmatprep.mubr.bf16.mxu0 %v759
      %1691 = vmatmul.mubr.bf16.gmra.mrb[0].mxu0 %v758
      %v1692 = vpop.f32.mrb[0].mxu0
      %v1693 = vadd.f32 %v1588, %v1692
      %v1694 = vpop.f32.mrb[0].mxu0
      %v1695 = vpop.f32.mrb[0].mxu0
      %v1696 = vadd.f32 %v1591, %v1695
      %v1697 = vpop.f32.mrb[0].mxu0
      %1698 = vmatprep.mubr.bf16.mxu0 %v768
      %1699 = vmatmul.mubr.bf16.gmra.mrb[0].mxu0 %v767
      %v1700 = vpop.f32.mrb[0].mxu0
      %v1701 = vadd.f32 %v1596, %v1700
      %v1702 = vpop.f32.mrb[0].mxu0
      %v1703 = vpop.f32.mrb[0].mxu0
      %v1704 = vadd.f32 %v1599, %v1703
      %v1705 = vpop.f32.mrb[0].mxu0
      %1706 = vmatprep.mubr.bf16.mxu0 %v777
      %1707 = vmatmul.mubr.bf16.gmra.mrb[0].mxu0 %v776
      %v1708 = vpop.f32.mrb[0].mxu0
      %v1709 = vadd.f32 %v1604, %v1708
      %v1710 = vpop.f32.mrb[0].mxu0
      %v1711 = vpop.f32.mrb[0].mxu0
      %v1712 = vadd.f32 %v1607, %v1711
      %v1713 = vpop.f32.mrb[0].mxu0
      %1714 = vmatprep.mubr.bf16.mxu0 %v786
      %1715 = vmatmul.mubr.bf16.gmra.mrb[0].mxu0 %v785
      %v1716 = vpop.f32.mrb[0].mxu0
      %v1717 = vadd.f32 %v1612, %v1716
      %v1718 = vpop.f32.mrb[0].mxu0
      %v1719 = vpop.f32.mrb[0].mxu0
      %v1720 = vadd.f32 %v1615, %v1719
      %v1721 = vpop.f32.mrb[0].mxu0
      %1722 = vmatprep.mubr.bf16.mxu0 %v795
      %1723 = vmatmul.mubr.bf16.gmra.mrb[0].mxu0 %v794
      %v1724 = vpop.f32.mrb[0].mxu0
      %v1725 = vadd.f32 %v1620, %v1724
      %v1726 = vpop.f32.mrb[0].mxu0
      %v1727 = vpop.f32.mrb[0].mxu0
      %v1728 = vadd.f32 %v1623, %v1727
      %v1729 = vpop.f32.mrb[0].mxu0
      %1730 = vmatprep.mubr.bf16.mxu0 %v804
      %1731 = vmatmul.mubr.bf16.gmra.mrb[0].mxu0 %v803
      %v1732 = vpop.f32.mrb[0].mxu0
      %v1733 = vadd.f32 %v1628, %v1732
      %v1734 = vpop.f32.mrb[0].mxu0
      %v1735 = vpop.f32.mrb[0].mxu0
      %v1736 = vadd.f32 %v1631, %v1735
      %v1737 = vpop.f32.mrb[0].mxu0
      %1738 = vdwg.mxu0
      %1739 = vmatprep.subr.bf16.mxu0 0
      %1740 = vmatpush1.bf16.msra.mxu0 %v1239
      %1741 = vmatprep.subr.bf16.mxu0 0
      %1742 = vmatpush1.bf16.msra.mxu0 %v1240
      %1743 = vmatprep.subr.bf16.mxu0 0
      %1744 = vmatpush1.bf16.msra.mxu0 %v1241
      %1745 = vmatprep.subr.bf16.mxu0 0
      %1746 = vmatpush1.bf16.msra.mxu0 %v1242
      %1747 = vmatprep.subr.bf16.mxu0 0
      %1748 = vmatpush1.bf16.msra.mxu0 %v1243
      %1749 = vmatprep.subr.bf16.mxu0 0
      %1750 = vmatpush1.bf16.msra.mxu0 %v1244
      %1751 = vmatprep.subr.bf16.mxu0 0
      %1752 = vmatpush1.bf16.msra.mxu0 %v1245
      %1753 = vmatprep.subr.bf16.mxu0 0
      %1754 = vmatpush1.bf16.msra.mxu0 %v1246
      %1755 = vmatprep.subr.bf16.mxu0 0
      %1756 = vmatpush1.bf16.msra.mxu0 0
      %1757 = vmatprep.subr.bf16.mxu0 0
      %1758 = vmatpush1.bf16.msra.mxu0 0
      %1759 = vmatprep.subr.bf16.mxu0 0
      %1760 = vmatpush1.bf16.msra.mxu0 0
      %1761 = vmatprep.subr.bf16.mxu0 0
      %1762 = vmatpush1.bf16.msra.mxu0 0
      %1763 = vmatprep.subr.bf16.mxu0 0
      %1764 = vmatpush1.bf16.msra.mxu0 0
      %1765 = vmatprep.subr.bf16.mxu0 0
      %1766 = vmatpush1.bf16.msra.mxu0 0
      %1767 = vmatprep.subr.bf16.mxu0 0
      %1768 = vmatpush1.bf16.msra.mxu0 0
      %1769 = vmatprep.subr.bf16.mxu0 0
      %1770 = vmatpush1.bf16.msra.mxu0 0
      %1771 = vmatprep.mubr.bf16.mxu0 0
      %1772 = vmatmul.mubr.bf16.gmra.mrb[0].mxu0 %v733
      %v1773 = vpop.f32.mrb[0].mxu0
      %v1774 = vadd.f32 %v1669, %v1773
      %v1775 = vpop.f32.mrb[0].mxu0
      %v1776 = vpop.f32.mrb[0].mxu0
      %v1777 = vadd.f32 %v1672, %v1776
      %v1778 = vpop.f32.mrb[0].mxu0
      %1779 = vmatprep.mubr.bf16.mxu0 0
      %1780 = vmatmul.mubr.bf16.gmra.mrb[0].mxu0 %v742
      %v1781 = vpop.f32.mrb[0].mxu0
      %v1782 = vadd.f32 %v1677, %v1781
      %v1783 = vpop.f32.mrb[0].mxu0
      %v1784 = vpop.f32.mrb[0].mxu0
      %v1785 = vadd.f32 %v1680, %v1784
      %v1786 = vpop.f32.mrb[0].mxu0
      %1787 = vmatprep.mubr.bf16.mxu0 0
      %1788 = vmatmul.mubr.bf16.gmra.mrb[0].mxu0 %v751
      %v1789 = vpop.f32.mrb[0].mxu0
      %v1790 = vadd.f32 %v1685, %v1789
      %v1791 = vpop.f32.mrb[0].mxu0
      %v1792 = vpop.f32.mrb[0].mxu0
      %v1793 = vadd.f32 %v1688, %v1792
      %v1794 = vpop.f32.mrb[0].mxu0
      %1795 = vmatprep.mubr.bf16.mxu0 0
      %1796 = vmatmul.mubr.bf16.gmra.mrb[0].mxu0 %v760
      %v1797 = vpop.f32.mrb[0].mxu0
      %v1798 = vadd.f32 %v1693, %v1797
      %v1799 = vpop.f32.mrb[0].mxu0
      %v1800 = vpop.f32.mrb[0].mxu0
      %v1801 = vadd.f32 %v1696, %v1800
      %v1802 = vpop.f32.mrb[0].mxu0
      %1803 = vmatprep.mubr.bf16.mxu0 0
      %1804 = vmatmul.mubr.bf16.gmra.mrb[0].mxu0 %v769
      %v1805 = vpop.f32.mrb[0].mxu0
      %v1806 = vadd.f32 %v1701, %v1805
      %v1807 = vpop.f32.mrb[0].mxu0
      %v1808 = vpop.f32.mrb[0].mxu0
      %v1809 = vadd.f32 %v1704, %v1808
      %v1810 = vpop.f32.mrb[0].mxu0
      %1811 = vmatprep.mubr.bf16.mxu0 0
      %1812 = vmatmul.mubr.bf16.gmra.mrb[0].mxu0 %v778
      %v1813 = vpop.f32.mrb[0].mxu0
      %v1814 = vadd.f32 %v1709, %v1813
      %v1815 = vpop.f32.mrb[0].mxu0
      %v1816 = vpop.f32.mrb[0].mxu0
      %v1817 = vadd.f32 %v1712, %v1816
      %v1818 = vpop.f32.mrb[0].mxu0
      %1819 = vmatprep.mubr.bf16.mxu0 0
      %1820 = vmatmul.mubr.bf16.gmra.mrb[0].mxu0 %v787
      %v1821 = vpop.f32.mrb[0].mxu0
      %v1822 = vadd.f32 %v1717, %v1821
      %v1823 = vpop.f32.mrb[0].mxu0
      %v1824 = vpop.f32.mrb[0].mxu0
      %v1825 = vadd.f32 %v1720, %v1824
      %v1826 = vpop.f32.mrb[0].mxu0
      %1827 = vmatprep.mubr.bf16.mxu0 0
      %1828 = vmatmul.mubr.bf16.gmra.mrb[0].mxu0 %v796
      %v1829 = vpop.f32.mrb[0].mxu0
      %v1830 = vadd.f32 %v1725, %v1829
      %v1831 = vpop.f32.mrb[0].mxu0
      %v1832 = vpop.f32.mrb[0].mxu0
      %v1833 = vadd.f32 %v1728, %v1832
      %v1834 = vpop.f32.mrb[0].mxu0
      %1835 = vmatprep.mubr.bf16.mxu0 0
      %1836 = vmatmul.mubr.bf16.gmra.mrb[0].mxu0 %v805
      %v1837 = vpop.f32.mrb[0].mxu0
      %v1838 = vadd.f32 %v1733, %v1837
      %v1839 = vpop.f32.mrb[0].mxu0
      %v1840 = vpop.f32.mrb[0].mxu0
      %v1841 = vadd.f32 %v1736, %v1840
      %v1842 = vpop.f32.mrb[0].mxu0
      %1843 = vdwg.mxu0
      %vm1844 = vcmp.ge.f32.partialorder %v1774, 0.0
      %vm1845 = vcmp.ge.f32.partialorder %v1777, 0.0
      %vm1846 = vcmp.ge.f32.partialorder %v1782, 0.0
      %vm1847 = vcmp.ge.f32.partialorder %v1785, 0.0
      %vm1848 = vcmp.ge.f32.partialorder %v1790, 0.0
      %vm1849 = vcmp.ge.f32.partialorder %v1793, 0.0
      %vm1850 = vcmp.ge.f32.partialorder %v1798, 0.0
      %vm1851 = vcmp.ge.f32.partialorder %v1801, 0.0
      %vm1852 = vcmp.ge.f32.partialorder %v1806, 0.0
      %vm1853 = vcmp.ge.f32.partialorder %v1809, 0.0
      %vm1854 = vcmp.ge.f32.partialorder %v1814, 0.0
      %vm1855 = vcmp.ge.f32.partialorder %v1817, 0.0
      %vm1856 = vcmp.ge.f32.partialorder %v1822, 0.0
      %vm1857 = vcmp.ge.f32.partialorder %v1825, 0.0
      %vm1858 = vcmp.ge.f32.partialorder %v1830, 0.0
      %vm1859 = vcmp.ge.f32.partialorder %v1833, 0.0
      %vm1860 = vcmp.ge.f32.partialorder %v1838, 0.0
      %vm1861 = vcmp.ge.f32.partialorder %v1841, 0.0
      %v1862 = vmul.f32 %v1774, 0.2
      %v1863 = vmul.f32 %v1777, 0.2
      %v1864 = vmul.f32 %v1782, 0.2
      %v1865 = vmul.f32 %v1785, 0.2
      %v1866 = vmul.f32 %v1790, 0.2
      %v1867 = vmul.f32 %v1793, 0.2
      %v1868 = vmul.f32 %v1798, 0.2
      %v1869 = vmul.f32 %v1801, 0.2
      %v1870 = vmul.f32 %v1806, 0.2
      %v1871 = vmul.f32 %v1809, 0.2
      %v1872 = vmul.f32 %v1814, 0.2
      %v1873 = vmul.f32 %v1817, 0.2
      %v1874 = vmul.f32 %v1822, 0.2
      %v1875 = vmul.f32 %v1825, 0.2
      %v1876 = vmul.f32 %v1830, 0.2
      %v1877 = vmul.f32 %v1833, 0.2
      %v1878 = vmul.f32 %v1838, 0.2
      %v1879 = vmul.f32 %v1841, 0.2
      %v1880 = vsel %vm1844, %v1774, %v1862
      %v1881 = vsel %vm1845, %v1777, %v1863
      %v1882 = vsel %vm1846, %v1782, %v1864
      %v1883 = vsel %vm1847, %v1785, %v1865
      %v1884 = vsel %vm1848, %v1790, %v1866
      %v1885 = vsel %vm1849, %v1793, %v1867
      %v1886 = vsel %vm1850, %v1798, %v1868
      %v1887 = vsel %vm1851, %v1801, %v1869
      %v1888 = vsel %vm1852, %v1806, %v1870
      %v1889 = vsel %vm1853, %v1809, %v1871
      %v1890 = vsel %vm1854, %v1814, %v1872
      %v1891 = vsel %vm1855, %v1817, %v1873
      %v1892 = vsel %vm1856, %v1822, %v1874
      %v1893 = vsel %vm1857, %v1825, %v1875
      %v1894 = vsel %vm1858, %v1830, %v1876
      %v1895 = vsel %vm1859, %v1833, %v1877
      %v1896 = vsel %vm1860, %v1838, %v1878
      %v1897 = vsel %vm1861, %v1841, %v1879
      %v1898 = vld [vmem:[%s3] sm:$0x1]
      %v1900 = vlaneseq
      %v1901 = vshrl.u32 %v1900, 7
      %v1902 = vsub.s32 0, %v1901
      %v1903 = vrot.slane %v1898, %v1902
      %v1905 = vmul.f32 %v1880, %v1903
      %v1906 = vmul.f32 %v1881, %v1903
      %v1907 = vmul.f32 %v1882, %v1903
      %v1908 = vmul.f32 %v1883, %v1903
      %v1909 = vmul.f32 %v1884, %v1903
      %v1910 = vmul.f32 %v1885, %v1903
      %v1911 = vmul.f32 %v1886, %v1903
      %v1912 = vmul.f32 %v1887, %v1903
      %v1913 = vmul.f32 %v1888, %v1903
      %v1914 = vmul.f32 %v1889, %v1903
      %v1915 = vmul.f32 %v1890, %v1903
      %v1916 = vmul.f32 %v1891, %v1903
      %v1917 = vmul.f32 %v1892, %v1903
      %v1918 = vmul.f32 %v1893, %v1903
      %v1919 = vmul.f32 %v1894, %v1903
      %v1920 = vmul.f32 %v1895, %v1903
      %v1921 = vmul.f32 %v1896, %v1903
      %v1922 = vmul.f32 %v1897, %v1903
      %v1923 = vld [vmem:[%s4] sm:$0x1]
      %v1925 = vlaneseq
      %v1926 = vshrl.u32 %v1925, 7
      %v1927 = vsub.s32 0, %v1926
      %v1928 = vrot.slane %v1923, %v1927
      %v1930 = vadd.f32 %v1905, %v1928
      %v1931 = vadd.f32 %v1906, %v1928
      %v1932 = vadd.f32 %v1907, %v1928
      %v1933 = vadd.f32 %v1908, %v1928
      %v1934 = vadd.f32 %v1909, %v1928
      %v1935 = vadd.f32 %v1910, %v1928
      %v1936 = vadd.f32 %v1911, %v1928
      %v1937 = vadd.f32 %v1912, %v1928
      %v1938 = vadd.f32 %v1913, %v1928
      %v1939 = vadd.f32 %v1914, %v1928
      %v1940 = vadd.f32 %v1915, %v1928
      %v1941 = vadd.f32 %v1916, %v1928
      %v1942 = vadd.f32 %v1917, %v1928
      %v1943 = vadd.f32 %v1918, %v1928
      %v1944 = vadd.f32 %v1919, %v1928
      %v1945 = vadd.f32 %v1920, %v1928
      %v1946 = vadd.f32 %v1921, %v1928
      %v1947 = vadd.f32 %v1922, %v1928
      %v1948 = vpack.c.bf16 %v1931, %v1930
      %v1949 = vpack.c.bf16 %v1933, %v1932
      %v1950 = vpack.c.bf16 %v1935, %v1934
      %v1951 = vpack.c.bf16 %v1937, %v1936
      %v1952 = vpack.c.bf16 %v1939, %v1938
      %v1953 = vpack.c.bf16 %v1941, %v1940
      %v1954 = vpack.c.bf16 %v1943, %v1942
      %v1955 = vpack.c.bf16 %v1945, %v1944
      %v1956 = vpack.c.bf16 %v1947, %v1946
      %v1966 = vunpack.c.l.b16 %v1948
      %v1967 = vunpack.c.h.b16 %v1948
      %v1968 = vunpack.c.l.b16 %v1949
      %v1969 = vunpack.c.h.b16 %v1949
      %v1970 = vunpack.c.l.b16 %v1950
      %v1971 = vunpack.c.h.b16 %v1950
      %v1972 = vunpack.c.l.b16 %v1951
      %v1973 = vunpack.c.h.b16 %v1951
      %v1974 = vunpack.c.l.b16 %v1952
      %v1975 = vunpack.c.h.b16 %v1952
      %v1976 = vunpack.c.l.b16 %v1953
      %v1977 = vunpack.c.h.b16 %v1953
      %v1978 = vunpack.c.l.b16 %v1954
      %v1979 = vunpack.c.h.b16 %v1954
      %v1980 = vunpack.c.l.b16 %v1955
      %v1981 = vunpack.c.h.b16 %v1955
      %v1982 = vunpack.c.l.b16 %v1956
      %v1983 = vunpack.c.h.b16 %v1956
      %v1984 = vpack.c.b16 %v1966, %v1966
      %v1985 = vpack.c.b16 %v1967, %v1967
      %v1986 = vpack.c.b16 %v1968, %v1968
      %v1987 = vpack.c.b16 %v1969, %v1969
      %v1988 = vpack.c.b16 %v1970, %v1970
      %v1989 = vpack.c.b16 %v1971, %v1971
      %v1990 = vpack.c.b16 %v1972, %v1972
      %v1991 = vpack.c.b16 %v1973, %v1973
      %v1992 = vpack.c.b16 %v1974, %v1974
      %v1993 = vpack.c.b16 %v1975, %v1975
      %v1994 = vpack.c.b16 %v1976, %v1976
      %v1995 = vpack.c.b16 %v1977, %v1977
      %v1996 = vpack.c.b16 %v1978, %v1978
      %v1997 = vpack.c.b16 %v1979, %v1979
      %v1998 = vpack.c.b16 %v1980, %v1980
      %v1999 = vpack.c.b16 %v1981, %v1981
      %v2000 = vpack.c.b16 %v1982, %v1982
      %v2001 = vpack.c.b16 %v1983, %v1983
      %2020 = vst [vmem:[%s229] sm:$0xf] %v1984
      %2021 = vst [vmem:[%s229 + $0x4] sm:$0xf] %v1985
      %2022 = vst [vmem:[%s229 + $0x8] sm:$0xf] %v1986
      %2023 = vst [vmem:[%s229 + $0xc] sm:$0xf] %v1987
      %2024 = vst [vmem:[%s229 + $0x10] sm:$0xf] %v1988
      %2025 = vst [vmem:[%s229 + $0x14] sm:$0xf] %v1989
      %2026 = vst [vmem:[%s229 + $0x18] sm:$0xf] %v1990
      %2027 = vst [vmem:[%s229 + $0x1c] sm:$0xf] %v1991
      %2028 = vst [vmem:[%s229 + $0x20] sm:$0xf] %v1992
      %2029 = vst [vmem:[%s229 + $0x24] sm:$0xf] %v1993
      %2030 = vst [vmem:[%s229 + $0x28] sm:$0xf] %v1994
      %2031 = vst [vmem:[%s229 + $0x2c] sm:$0xf] %v1995
      %2032 = vst [vmem:[%s229 + $0x30] sm:$0xf] %v1996
      %2033 = vst [vmem:[%s229 + $0x34] sm:$0xf] %v1997
      %2034 = vst [vmem:[%s229 + $0x38] sm:$0xf] %v1998
      %2035 = vst [vmem:[%s229 + $0x3c] sm:$0xf] %v1999
      %2036 = vst [vmem:[%s229 + $0x40] sm:$0xf] %v2000
      %2037 = vst [vmem:[%s229 + $0x44] sm:$0xf] %v2001
      %s2038 = smul.u32 18, %s16
      %p2039 = scmp.lt.s32.totalorder %s2038, 35
      %s2040 = scalar_select %p2039, %s2038, 35
      %s2041 = smul.addr %s2040, 4
      %s2042 = scalar_lea.vmem %s5, %s2041
      // Predicated region
      $region41: #{single_disc_forward.13} parent=39 // pred_check
        %p2043 = pneg %p144
      $region42: #{single_disc_forward.13} parent=39 // pred_check_branch
        %2045 = sbr.rel (%p2043) target = $region44
      $region43: #{single_disc_forward.13} parent=39 // pred_region
        %s2046 = smul.u32 18, %s16
      $region44: #{single_disc_forward.13} parent=39 // pred_fallthru
        _
    $region40: #{single_disc_forward.13} parent=5 // pred_fallthru
      _
    %p2047 = scmp.le.s32.totalorder 2, %s11
    // Predicated region
    $region45: #{single_disc_forward.13} parent=5 // pred_check
      %p2048 = pneg %p2047
    $region46: #{single_disc_forward.13} parent=5 // pred_check_branch
      %2050 = sbr.rel (%p2048) target = $region48
    $region47: #{single_disc_forward.13} parent=5 // pred_region
      %s2051 = ssub.s32 %s11, 2
      // Predicated region
      $region49: #{single_disc_forward.13} parent=47 // pred_check
        %p2052 = pneg %p150
      $region50: #{single_disc_forward.13} parent=47 // pred_check_branch
        %2054 = sbr.rel (%p2052) target = $region52
      $region51: #{single_disc_forward.13} parent=47 // pred_region
        %s2055 = smul.u32 18, %s17
        %p2056 = scmp.lt.s32.totalorder %s2055, 35
        %s2057 = scalar_select %p2056, %s2055, 35
        %s2058 = smul.addr %s2057, 4
        %s2059 = scalar_lea.vmem %s5, %s2058
      $region52: #{single_disc_forward.13} parent=47 // pred_fallthru
        _
    $region48: #{single_disc_forward.13} parent=5 // pred_fallthru
      _
  $region6: #{single_disc_forward.13} parent=0 // loop_footer
    %s15 = sadd.s32 1, %s11
  $region7: #{single_disc_forward.13} parent=0 // loop_footer_branch
    %10 = sbr.rel target = $region3
  $region8: #{single_disc_forward.13} parent=0 // loop_exit
    _

// kernel: single_disc_forward.14
$region0: #{single_disc_forward.14}
  #allocation0 [shape = 'u32[]', space=smem, size = 0x4, offset = 0x4, fixed_abs, tag = 'smem constant byte address 0x4 - core index']
  #allocation1 [shape = 'u32[144,128]{1,0:T(1,128)}', space=vmem, size = 0x12000, scoped, tag = 'internal scratch']
  %s0 = inlined_call_operand.vmem [shape: bf16[72,1152], index: 0, kind: input, shape index: {}]
  %s1 = inlined_call_operand.vmem [shape: bf16[1152,128], index: 1, kind: input, shape index: {}]
  %s2 = inlined_call_operand.vmem [shape: f32[1,128], index: 2, kind: input, shape index: {}]
  %s3 = inlined_call_operand.vmem [shape: f32[1,128], index: 3, kind: input, shape index: {}]
  %s4 = inlined_call_operand.vmem [shape: f32[1,128], index: 4, kind: input, shape index: {}]
  %s5 = inlined_call_operand.vmem [shape: bf16[72,128], index: 5, kind: output, shape index: {}]
  %s6 = sld [smem:[#allocation0]]
  $region30: #{single_disc_forward.14} parent=0
    _
  %s8 = ssub.s32 1, %s6
  %s9 = scalar_select 0, %s8, %s6
  // Predicated region
  $region2: #{single_disc_forward.14} parent=0 // pred_check
    _
  $region3: #{single_disc_forward.14} parent=0 // pred_check_branch
    %11 = sbr.rel (0) target = $region5
  $region4: #{single_disc_forward.14} parent=0 // pred_region
    _
  $region5: #{single_disc_forward.14} parent=0 // pred_fallthru
    _
  // Predicated region
  $region6: #{single_disc_forward.14} parent=0 // pred_check
    _
  $region7: #{single_disc_forward.14} parent=0 // pred_check_branch
    %13 = sbr.rel (0) target = $region9
  $region8: #{single_disc_forward.14} parent=0 // pred_region
    _
  $region9: #{single_disc_forward.14} parent=0 // pred_fallthru
    _
  // Predicated region
  $region10: #{single_disc_forward.14} parent=0 // pred_check
    _
  $region11: #{single_disc_forward.14} parent=0 // pred_check_branch
    %15 = sbr.rel (0) target = $region13
  $region12: #{single_disc_forward.14} parent=0 // pred_region
    _
  $region13: #{single_disc_forward.14} parent=0 // pred_fallthru
    _
  // Predicated region
  $region14: #{single_disc_forward.14} parent=0 // pred_check
    _
  $region15: #{single_disc_forward.14} parent=0 // pred_check_branch
    %17 = sbr.rel (0) target = $region17
  $region16: #{single_disc_forward.14} parent=0 // pred_region
    _
  $region17: #{single_disc_forward.14} parent=0 // pred_fallthru
    _
  // Predicated region
  $region18: #{single_disc_forward.14} parent=0 // pred_check
    _
  $region19: #{single_disc_forward.14} parent=0 // pred_check_branch
    %19 = sbr.rel (0) target = $region21
  $region20: #{single_disc_forward.14} parent=0 // pred_region
    _
  $region21: #{single_disc_forward.14} parent=0 // pred_fallthru
    _
  %v21 = vld [vmem:[%s0] sm:$0xff]
  %v22 = vld [vmem:[%s0 + $0x8] sm:$0xff]
  %v23 = vld [vmem:[%s0 + $0x10] sm:$0xff]
  %v24 = vld [vmem:[%s0 + $0x18] sm:$0xff]
  %v25 = vld [vmem:[%s0 + $0x20] sm:$0xf]
  %v26 = vld [vmem:[%s0 + $0x24] sm:$0xff]
  %v27 = vld [vmem:[%s0 + $0x2c] sm:$0xff]
  %v28 = vld [vmem:[%s0 + $0x34] sm:$0xff]
  %v29 = vld [vmem:[%s0 + $0x3c] sm:$0xff]
  %v30 = vld [vmem:[%s0 + $0x44] sm:$0xf]
  %v31 = vld [vmem:[%s0 + $0x48] sm:$0xff]
  %v32 = vld [vmem:[%s0 + $0x50] sm:$0xff]
  %v33 = vld [vmem:[%s0 + $0x58] sm:$0xff]
  %v34 = vld [vmem:[%s0 + $0x60] sm:$0xff]
  %v35 = vld [vmem:[%s0 + $0x68] sm:$0xf]
  %v36 = vld [vmem:[%s0 + $0x6c] sm:$0xff]
  %v37 = vld [vmem:[%s0 + $0x74] sm:$0xff]
  %v38 = vld [vmem:[%s0 + $0x7c] sm:$0xff]
  %v39 = vld [vmem:[%s0 + $0x84] sm:$0xff]
  %v40 = vld [vmem:[%s0 + $0x8c] sm:$0xf]
  %v41 = vld [vmem:[%s0 + $0x90] sm:$0xff]
  %v42 = vld [vmem:[%s0 + $0x98] sm:$0xff]
  %v43 = vld [vmem:[%s0 + $0xa0] sm:$0xff]
  %v44 = vld [vmem:[%s0 + $0xa8] sm:$0xff]
  %v45 = vld [vmem:[%s0 + $0xb0] sm:$0xf]
  %v46 = vld [vmem:[%s0 + $0xb4] sm:$0xff]
  %v47 = vld [vmem:[%s0 + $0xbc] sm:$0xff]
  %v48 = vld [vmem:[%s0 + $0xc4] sm:$0xff]
  %v49 = vld [vmem:[%s0 + $0xcc] sm:$0xff]
  %v50 = vld [vmem:[%s0 + $0xd4] sm:$0xf]
  %v51 = vld [vmem:[%s0 + $0xd8] sm:$0xff]
  %v52 = vld [vmem:[%s0 + $0xe0] sm:$0xff]
  %v53 = vld [vmem:[%s0 + $0xe8] sm:$0xff]
  %v54 = vld [vmem:[%s0 + $0xf0] sm:$0xff]
  %v55 = vld [vmem:[%s0 + $0xf8] sm:$0xf]
  %v56 = vld [vmem:[%s0 + $0xfc] sm:$0xff]
  %v57 = vld [vmem:[%s0 + $0x104] sm:$0xff]
  %v58 = vld [vmem:[%s0 + $0x10c] sm:$0xff]
  %v59 = vld [vmem:[%s0 + $0x114] sm:$0xff]
  %v60 = vld [vmem:[%s0 + $0x11c] sm:$0xf]
  %v61 = vld [vmem:[%s0 + $0x120] sm:$0xff]
  %v62 = vld [vmem:[%s0 + $0x128] sm:$0xff]
  %v63 = vld [vmem:[%s0 + $0x130] sm:$0xff]
  %v64 = vld [vmem:[%s0 + $0x138] sm:$0xff]
  %v65 = vld [vmem:[%s0 + $0x140] sm:$0xf]
  %v66 = vld [vmem:[%s1] sm:$0xf]
  %v67 = vld [vmem:[%s1 + $0x4] sm:$0xf]
  %v68 = vld [vmem:[%s1 + $0x8] sm:$0xf]
  %v69 = vld [vmem:[%s1 + $0xc] sm:$0xf]
  %v70 = vld [vmem:[%s1 + $0x10] sm:$0xf]
  %v71 = vld [vmem:[%s1 + $0x14] sm:$0xf]
  %v72 = vld [vmem:[%s1 + $0x18] sm:$0xf]
  %v73 = vld [vmem:[%s1 + $0x1c] sm:$0xf]
  %v74 = vld [vmem:[%s1 + $0x20] sm:$0xf]
  %v75 = vld [vmem:[%s1 + $0x24] sm:$0xf]
  %v76 = vld [vmem:[%s1 + $0x28] sm:$0xf]
  %v77 = vld [vmem:[%s1 + $0x2c] sm:$0xf]
  %v78 = vld [vmem:[%s1 + $0x30] sm:$0xf]
  %v79 = vld [vmem:[%s1 + $0x34] sm:$0xf]
  %v80 = vld [vmem:[%s1 + $0x38] sm:$0xf]
  %v81 = vld [vmem:[%s1 + $0x3c] sm:$0xf]
  %v82 = vld [vmem:[%s1 + $0x40] sm:$0xf]
  %v83 = vld [vmem:[%s1 + $0x44] sm:$0xf]
  %v84 = vld [vmem:[%s1 + $0x48] sm:$0xf]
  %v85 = vld [vmem:[%s1 + $0x4c] sm:$0xf]
  %v86 = vld [vmem:[%s1 + $0x50] sm:$0xf]
  %v87 = vld [vmem:[%s1 + $0x54] sm:$0xf]
  %v88 = vld [vmem:[%s1 + $0x58] sm:$0xf]
  %v89 = vld [vmem:[%s1 + $0x5c] sm:$0xf]
  %v90 = vld [vmem:[%s1 + $0x60] sm:$0xf]
  %v91 = vld [vmem:[%s1 + $0x64] sm:$0xf]
  %v92 = vld [vmem:[%s1 + $0x68] sm:$0xf]
  %v93 = vld [vmem:[%s1 + $0x6c] sm:$0xf]
  %v94 = vld [vmem:[%s1 + $0x70] sm:$0xf]
  %v95 = vld [vmem:[%s1 + $0x74] sm:$0xf]
  %v96 = vld [vmem:[%s1 + $0x78] sm:$0xf]
  %v97 = vld [vmem:[%s1 + $0x7c] sm:$0xf]
  %v98 = vld [vmem:[%s1 + $0x80] sm:$0xf]
  %v99 = vld [vmem:[%s1 + $0x84] sm:$0xf]
  %v100 = vld [vmem:[%s1 + $0x88] sm:$0xf]
  %v101 = vld [vmem:[%s1 + $0x8c] sm:$0xf]
  %v102 = vld [vmem:[%s1 + $0x90] sm:$0xf]
  %v103 = vld [vmem:[%s1 + $0x94] sm:$0xf]
  %v104 = vld [vmem:[%s1 + $0x98] sm:$0xf]
  %v105 = vld [vmem:[%s1 + $0x9c] sm:$0xf]
  %v106 = vld [vmem:[%s1 + $0xa0] sm:$0xf]
  %v107 = vld [vmem:[%s1 + $0xa4] sm:$0xf]
  %v108 = vld [vmem:[%s1 + $0xa8] sm:$0xf]
  %v109 = vld [vmem:[%s1 + $0xac] sm:$0xf]
  %v110 = vld [vmem:[%s1 + $0xb0] sm:$0xf]
  %v111 = vld [vmem:[%s1 + $0xb4] sm:$0xf]
  %v112 = vld [vmem:[%s1 + $0xb8] sm:$0xf]
  %v113 = vld [vmem:[%s1 + $0xbc] sm:$0xf]
  %v114 = vld [vmem:[%s1 + $0xc0] sm:$0xf]
  %v115 = vld [vmem:[%s1 + $0xc4] sm:$0xf]
  %v116 = vld [vmem:[%s1 + $0xc8] sm:$0xf]
  %v117 = vld [vmem:[%s1 + $0xcc] sm:$0xf]
  %v118 = vld [vmem:[%s1 + $0xd0] sm:$0xf]
  %v119 = vld [vmem:[%s1 + $0xd4] sm:$0xf]
  %v120 = vld [vmem:[%s1 + $0xd8] sm:$0xf]
  %v121 = vld [vmem:[%s1 + $0xdc] sm:$0xf]
  %v122 = vld [vmem:[%s1 + $0xe0] sm:$0xf]
  %v123 = vld [vmem:[%s1 + $0xe4] sm:$0xf]
  %v124 = vld [vmem:[%s1 + $0xe8] sm:$0xf]
  %v125 = vld [vmem:[%s1 + $0xec] sm:$0xf]
  %v126 = vld [vmem:[%s1 + $0xf0] sm:$0xf]
  %v127 = vld [vmem:[%s1 + $0xf4] sm:$0xf]
  %v128 = vld [vmem:[%s1 + $0xf8] sm:$0xf]
  %v129 = vld [vmem:[%s1 + $0xfc] sm:$0xf]
  %v130 = vld [vmem:[%s1 + $0x100] sm:$0xf]
  %v131 = vld [vmem:[%s1 + $0x104] sm:$0xf]
  %v132 = vld [vmem:[%s1 + $0x108] sm:$0xf]
  %v133 = vld [vmem:[%s1 + $0x10c] sm:$0xf]
  %v134 = vld [vmem:[%s1 + $0x110] sm:$0xf]
  %v135 = vld [vmem:[%s1 + $0x114] sm:$0xf]
  %v136 = vld [vmem:[%s1 + $0x118] sm:$0xf]
  %v137 = vld [vmem:[%s1 + $0x11c] sm:$0xf]
  %v138 = vld [vmem:[%s1 + $0x120] sm:$0xf]
  %v139 = vld [vmem:[%s1 + $0x124] sm:$0xf]
  %v140 = vld [vmem:[%s1 + $0x128] sm:$0xf]
  %v141 = vld [vmem:[%s1 + $0x12c] sm:$0xf]
  %v142 = vld [vmem:[%s1 + $0x130] sm:$0xf]
  %v143 = vld [vmem:[%s1 + $0x134] sm:$0xf]
  %v144 = vld [vmem:[%s1 + $0x138] sm:$0xf]
  %v145 = vld [vmem:[%s1 + $0x13c] sm:$0xf]
  %v146 = vld [vmem:[%s1 + $0x140] sm:$0xf]
  %v147 = vld [vmem:[%s1 + $0x144] sm:$0xf]
  %v148 = vld [vmem:[%s1 + $0x148] sm:$0xf]
  %v149 = vld [vmem:[%s1 + $0x14c] sm:$0xf]
  %v150 = vld [vmem:[%s1 + $0x150] sm:$0xf]
  %v151 = vld [vmem:[%s1 + $0x154] sm:$0xf]
  %v152 = vld [vmem:[%s1 + $0x158] sm:$0xf]
  %v153 = vld [vmem:[%s1 + $0x15c] sm:$0xf]
  %v154 = vld [vmem:[%s1 + $0x160] sm:$0xf]
  %v155 = vld [vmem:[%s1 + $0x164] sm:$0xf]
  %v156 = vld [vmem:[%s1 + $0x168] sm:$0xf]
  %v157 = vld [vmem:[%s1 + $0x16c] sm:$0xf]
  %v158 = vld [vmem:[%s1 + $0x170] sm:$0xf]
  %v159 = vld [vmem:[%s1 + $0x174] sm:$0xf]
  %v160 = vld [vmem:[%s1 + $0x178] sm:$0xf]
  %v161 = vld [vmem:[%s1 + $0x17c] sm:$0xf]
  %v162 = vld [vmem:[%s1 + $0x180] sm:$0xf]
  %v163 = vld [vmem:[%s1 + $0x184] sm:$0xf]
  %v164 = vld [vmem:[%s1 + $0x188] sm:$0xf]
  %v165 = vld [vmem:[%s1 + $0x18c] sm:$0xf]
  %v166 = vld [vmem:[%s1 + $0x190] sm:$0xf]
  %v167 = vld [vmem:[%s1 + $0x194] sm:$0xf]
  %v168 = vld [vmem:[%s1 + $0x198] sm:$0xf]
  %v169 = vld [vmem:[%s1 + $0x19c] sm:$0xf]
  %v170 = vld [vmem:[%s1 + $0x1a0] sm:$0xf]
  %v171 = vld [vmem:[%s1 + $0x1a4] sm:$0xf]
  %v172 = vld [vmem:[%s1 + $0x1a8] sm:$0xf]
  %v173 = vld [vmem:[%s1 + $0x1ac] sm:$0xf]
  %v174 = vld [vmem:[%s1 + $0x1b0] sm:$0xf]
  %v175 = vld [vmem:[%s1 + $0x1b4] sm:$0xf]
  %v176 = vld [vmem:[%s1 + $0x1b8] sm:$0xf]
  %v177 = vld [vmem:[%s1 + $0x1bc] sm:$0xf]
  %v178 = vld [vmem:[%s1 + $0x1c0] sm:$0xf]
  %v179 = vld [vmem:[%s1 + $0x1c4] sm:$0xf]
  %v180 = vld [vmem:[%s1 + $0x1c8] sm:$0xf]
  %v181 = vld [vmem:[%s1 + $0x1cc] sm:$0xf]
  %v182 = vld [vmem:[%s1 + $0x1d0] sm:$0xf]
  %v183 = vld [vmem:[%s1 + $0x1d4] sm:$0xf]
  %v184 = vld [vmem:[%s1 + $0x1d8] sm:$0xf]
  %v185 = vld [vmem:[%s1 + $0x1dc] sm:$0xf]
  %v186 = vld [vmem:[%s1 + $0x1e0] sm:$0xf]
  %v187 = vld [vmem:[%s1 + $0x1e4] sm:$0xf]
  %v188 = vld [vmem:[%s1 + $0x1e8] sm:$0xf]
  %v189 = vld [vmem:[%s1 + $0x1ec] sm:$0xf]
  %v190 = vld [vmem:[%s1 + $0x1f0] sm:$0xf]
  %v191 = vld [vmem:[%s1 + $0x1f4] sm:$0xf]
  %v192 = vld [vmem:[%s1 + $0x1f8] sm:$0xf]
  %v193 = vld [vmem:[%s1 + $0x1fc] sm:$0xf]
  %v194 = vld [vmem:[%s1 + $0x200] sm:$0xf]
  %v195 = vld [vmem:[%s1 + $0x204] sm:$0xf]
  %v196 = vld [vmem:[%s1 + $0x208] sm:$0xf]
  %v197 = vld [vmem:[%s1 + $0x20c] sm:$0xf]
  %v198 = vld [vmem:[%s1 + $0x210] sm:$0xf]
  %v199 = vld [vmem:[%s1 + $0x214] sm:$0xf]
  %v200 = vld [vmem:[%s1 + $0x218] sm:$0xf]
  %v201 = vld [vmem:[%s1 + $0x21c] sm:$0xf]
  %v202 = vld [vmem:[%s1 + $0x220] sm:$0xf]
  %v203 = vld [vmem:[%s1 + $0x224] sm:$0xf]
  %v204 = vld [vmem:[%s1 + $0x228] sm:$0xf]
  %v205 = vld [vmem:[%s1 + $0x22c] sm:$0xf]
  %v206 = vld [vmem:[%s1 + $0x230] sm:$0xf]
  %v207 = vld [vmem:[%s1 + $0x234] sm:$0xf]
  %v208 = vld [vmem:[%s1 + $0x238] sm:$0xf]
  %v209 = vld [vmem:[%s1 + $0x23c] sm:$0xf]
  %v210 = vld [vmem:[%s2] sm:$0x1]
  %v212 = vlaneseq
  %v213 = vshrl.u32 %v212, 7
  %v214 = vsub.s32 0, %v213
  %v215 = vrot.slane %v210, %v214
  %v262 = vunpack.c.l.b16 %v21
  %v263 = vunpack.c.h.b16 %v21
  %v264 = vunpack.c.l.b16 %v22
  %v265 = vunpack.c.h.b16 %v22
  %v266 = vunpack.c.l.b16 %v23
  %v267 = vunpack.c.h.b16 %v23
  %v268 = vunpack.c.l.b16 %v24
  %v269 = vunpack.c.h.b16 %v24
  %v270 = vunpack.c.l.b16 %v25
  %v271 = vunpack.c.l.b16 %v26
  %v272 = vunpack.c.h.b16 %v26
  %v273 = vunpack.c.l.b16 %v27
  %v274 = vunpack.c.h.b16 %v27
  %v275 = vunpack.c.l.b16 %v28
  %v276 = vunpack.c.h.b16 %v28
  %v277 = vunpack.c.l.b16 %v29
  %v278 = vunpack.c.h.b16 %v29
  %v279 = vunpack.c.l.b16 %v30
  %v280 = vunpack.c.l.b16 %v31
  %v281 = vunpack.c.h.b16 %v31
  %v282 = vunpack.c.l.b16 %v32
  %v283 = vunpack.c.h.b16 %v32
  %v284 = vunpack.c.l.b16 %v33
  %v285 = vunpack.c.h.b16 %v33
  %v286 = vunpack.c.l.b16 %v34
  %v287 = vunpack.c.h.b16 %v34
  %v288 = vunpack.c.l.b16 %v35
  %v289 = vunpack.c.l.b16 %v36
  %v290 = vunpack.c.h.b16 %v36
  %v291 = vunpack.c.l.b16 %v37
  %v292 = vunpack.c.h.b16 %v37
  %v293 = vunpack.c.l.b16 %v38
  %v294 = vunpack.c.h.b16 %v38
  %v295 = vunpack.c.l.b16 %v39
  %v296 = vunpack.c.h.b16 %v39
  %v297 = vunpack.c.l.b16 %v40
  %v298 = vunpack.c.l.b16 %v41
  %v299 = vunpack.c.h.b16 %v41
  %v300 = vunpack.c.l.b16 %v42
  %v301 = vunpack.c.h.b16 %v42
  %v302 = vunpack.c.l.b16 %v43
  %v303 = vunpack.c.h.b16 %v43
  %v304 = vunpack.c.l.b16 %v44
  %v305 = vunpack.c.h.b16 %v44
  %v306 = vunpack.c.l.b16 %v45
  %v307 = vunpack.c.l.b16 %v46
  %v308 = vunpack.c.h.b16 %v46
  %v309 = vunpack.c.l.b16 %v47
  %v310 = vunpack.c.h.b16 %v47
  %v311 = vunpack.c.l.b16 %v48
  %v312 = vunpack.c.h.b16 %v48
  %v313 = vunpack.c.l.b16 %v49
  %v314 = vunpack.c.h.b16 %v49
  %v315 = vunpack.c.l.b16 %v50
  %v316 = vunpack.c.l.b16 %v51
  %v317 = vunpack.c.h.b16 %v51
  %v318 = vunpack.c.l.b16 %v52
  %v319 = vunpack.c.h.b16 %v52
  %v320 = vunpack.c.l.b16 %v53
  %v321 = vunpack.c.h.b16 %v53
  %v322 = vunpack.c.l.b16 %v54
  %v323 = vunpack.c.h.b16 %v54
  %v324 = vunpack.c.l.b16 %v55
  %v325 = vunpack.c.l.b16 %v56
  %v326 = vunpack.c.h.b16 %v56
  %v327 = vunpack.c.l.b16 %v57
  %v328 = vunpack.c.h.b16 %v57
  %v329 = vunpack.c.l.b16 %v58
  %v330 = vunpack.c.h.b16 %v58
  %v331 = vunpack.c.l.b16 %v59
  %v332 = vunpack.c.h.b16 %v59
  %v333 = vunpack.c.l.b16 %v60
  %v334 = vunpack.c.l.b16 %v61
  %v335 = vunpack.c.h.b16 %v61
  %v336 = vunpack.c.l.b16 %v62
  %v337 = vunpack.c.h.b16 %v62
  %v338 = vunpack.c.l.b16 %v63
  %v339 = vunpack.c.h.b16 %v63
  %v340 = vunpack.c.l.b16 %v64
  %v341 = vunpack.c.h.b16 %v64
  %v342 = vunpack.c.l.b16 %v65
  %v343 = vpack.c.b16 %v271, %v262
  %v344 = vpack.c.b16 %v272, %v263
  %v345 = vpack.c.b16 %v273, %v264
  %v346 = vpack.c.b16 %v274, %v265
  %v347 = vpack.c.b16 %v275, %v266
  %v348 = vpack.c.b16 %v276, %v267
  %v349 = vpack.c.b16 %v277, %v268
  %v350 = vpack.c.b16 %v278, %v269
  %v351 = vpack.c.b16 %v279, %v270
  %v352 = vpack.c.b16 %v289, %v280
  %v353 = vpack.c.b16 %v290, %v281
  %v354 = vpack.c.b16 %v291, %v282
  %v355 = vpack.c.b16 %v292, %v283
  %v356 = vpack.c.b16 %v293, %v284
  %v357 = vpack.c.b16 %v294, %v285
  %v358 = vpack.c.b16 %v295, %v286
  %v359 = vpack.c.b16 %v296, %v287
  %v360 = vpack.c.b16 %v297, %v288
  %v361 = vpack.c.b16 %v307, %v298
  %v362 = vpack.c.b16 %v308, %v299
  %v363 = vpack.c.b16 %v309, %v300
  %v364 = vpack.c.b16 %v310, %v301
  %v365 = vpack.c.b16 %v311, %v302
  %v366 = vpack.c.b16 %v312, %v303
  %v367 = vpack.c.b16 %v313, %v304
  %v368 = vpack.c.b16 %v314, %v305
  %v369 = vpack.c.b16 %v315, %v306
  %v370 = vpack.c.b16 %v325, %v316
  %v371 = vpack.c.b16 %v326, %v317
  %v372 = vpack.c.b16 %v327, %v318
  %v373 = vpack.c.b16 %v328, %v319
  %v374 = vpack.c.b16 %v329, %v320
  %v375 = vpack.c.b16 %v330, %v321
  %v376 = vpack.c.b16 %v331, %v322
  %v377 = vpack.c.b16 %v332, %v323
  %v378 = vpack.c.b16 %v333, %v324
  %v379 = vpack.c.b16 %v334, %v334
  %v380 = vpack.c.b16 %v335, %v335
  %v381 = vpack.c.b16 %v336, %v336
  %v382 = vpack.c.b16 %v337, %v337
  %v383 = vpack.c.b16 %v338, %v338
  %v384 = vpack.c.b16 %v339, %v339
  %v385 = vpack.c.b16 %v340, %v340
  %v386 = vpack.c.b16 %v341, %v341
  %v387 = vpack.c.b16 %v342, %v342
  %v577 = vunpack.c.l.b16 %v66
  %v578 = vunpack.c.l.b16 %v67
  %v579 = vunpack.c.l.b16 %v68
  %v580 = vunpack.c.l.b16 %v69
  %v581 = vunpack.c.l.b16 %v70
  %v582 = vunpack.c.l.b16 %v71
  %v583 = vunpack.c.l.b16 %v72
  %v584 = vunpack.c.l.b16 %v73
  %v585 = vunpack.c.l.b16 %v74
  %v586 = vunpack.c.l.b16 %v75
  %v587 = vunpack.c.l.b16 %v76
  %v588 = vunpack.c.l.b16 %v77
  %v589 = vunpack.c.l.b16 %v78
  %v590 = vunpack.c.l.b16 %v79
  %v591 = vunpack.c.l.b16 %v80
  %v592 = vunpack.c.l.b16 %v81
  %v593 = vunpack.c.l.b16 %v82
  %v594 = vunpack.c.l.b16 %v83
  %v595 = vunpack.c.l.b16 %v84
  %v596 = vunpack.c.l.b16 %v85
  %v597 = vunpack.c.l.b16 %v86
  %v598 = vunpack.c.l.b16 %v87
  %v599 = vunpack.c.l.b16 %v88
  %v600 = vunpack.c.l.b16 %v89
  %v601 = vunpack.c.l.b16 %v90
  %v602 = vunpack.c.l.b16 %v91
  %v603 = vunpack.c.l.b16 %v92
  %v604 = vunpack.c.l.b16 %v93
  %v605 = vunpack.c.l.b16 %v94
  %v606 = vunpack.c.l.b16 %v95
  %v607 = vunpack.c.l.b16 %v96
  %v608 = vunpack.c.l.b16 %v97
  %v609 = vunpack.c.l.b16 %v98
  %v610 = vunpack.c.l.b16 %v99
  %v611 = vunpack.c.l.b16 %v100
  %v612 = vunpack.c.l.b16 %v101
  %v613 = vunpack.c.l.b16 %v102
  %v614 = vunpack.c.l.b16 %v103
  %v615 = vunpack.c.l.b16 %v104
  %v616 = vunpack.c.l.b16 %v105
  %v617 = vunpack.c.l.b16 %v106
  %v618 = vunpack.c.l.b16 %v107
  %v619 = vunpack.c.l.b16 %v108
  %v620 = vunpack.c.l.b16 %v109
  %v621 = vunpack.c.l.b16 %v110
  %v622 = vunpack.c.l.b16 %v111
  %v623 = vunpack.c.l.b16 %v112
  %v624 = vunpack.c.l.b16 %v113
  %v625 = vunpack.c.l.b16 %v114
  %v626 = vunpack.c.l.b16 %v115
  %v627 = vunpack.c.l.b16 %v116
  %v628 = vunpack.c.l.b16 %v117
  %v629 = vunpack.c.l.b16 %v118
  %v630 = vunpack.c.l.b16 %v119
  %v631 = vunpack.c.l.b16 %v120
  %v632 = vunpack.c.l.b16 %v121
  %v633 = vunpack.c.l.b16 %v122
  %v634 = vunpack.c.l.b16 %v123
  %v635 = vunpack.c.l.b16 %v124
  %v636 = vunpack.c.l.b16 %v125
  %v637 = vunpack.c.l.b16 %v126
  %v638 = vunpack.c.l.b16 %v127
  %v639 = vunpack.c.l.b16 %v128
  %v640 = vunpack.c.l.b16 %v129
  %v641 = vunpack.c.l.b16 %v130
  %v642 = vunpack.c.l.b16 %v131
  %v643 = vunpack.c.l.b16 %v132
  %v644 = vunpack.c.l.b16 %v133
  %v645 = vunpack.c.l.b16 %v134
  %v646 = vunpack.c.l.b16 %v135
  %v647 = vunpack.c.l.b16 %v136
  %v648 = vunpack.c.l.b16 %v137
  %v649 = vunpack.c.l.b16 %v138
  %v650 = vunpack.c.l.b16 %v139
  %v651 = vunpack.c.l.b16 %v140
  %v652 = vunpack.c.l.b16 %v141
  %v653 = vunpack.c.l.b16 %v142
  %v654 = vunpack.c.l.b16 %v143
  %v655 = vunpack.c.l.b16 %v144
  %v656 = vunpack.c.l.b16 %v145
  %v657 = vunpack.c.l.b16 %v146
  %v658 = vunpack.c.l.b16 %v147
  %v659 = vunpack.c.l.b16 %v148
  %v660 = vunpack.c.l.b16 %v149
  %v661 = vunpack.c.l.b16 %v150
  %v662 = vunpack.c.l.b16 %v151
  %v663 = vunpack.c.l.b16 %v152
  %v664 = vunpack.c.l.b16 %v153
  %v665 = vunpack.c.l.b16 %v154
  %v666 = vunpack.c.l.b16 %v155
  %v667 = vunpack.c.l.b16 %v156
  %v668 = vunpack.c.l.b16 %v157
  %v669 = vunpack.c.l.b16 %v158
  %v670 = vunpack.c.l.b16 %v159
  %v671 = vunpack.c.l.b16 %v160
  %v672 = vunpack.c.l.b16 %v161
  %v673 = vunpack.c.l.b16 %v162
  %v674 = vunpack.c.l.b16 %v163
  %v675 = vunpack.c.l.b16 %v164
  %v676 = vunpack.c.l.b16 %v165
  %v677 = vunpack.c.l.b16 %v166
  %v678 = vunpack.c.l.b16 %v167
  %v679 = vunpack.c.l.b16 %v168
  %v680 = vunpack.c.l.b16 %v169
  %v681 = vunpack.c.l.b16 %v170
  %v682 = vunpack.c.l.b16 %v171
  %v683 = vunpack.c.l.b16 %v172
  %v684 = vunpack.c.l.b16 %v173
  %v685 = vunpack.c.l.b16 %v174
  %v686 = vunpack.c.l.b16 %v175
  %v687 = vunpack.c.l.b16 %v176
  %v688 = vunpack.c.l.b16 %v177
  %v689 = vunpack.c.l.b16 %v178
  %v690 = vunpack.c.l.b16 %v179
  %v691 = vunpack.c.l.b16 %v180
  %v692 = vunpack.c.l.b16 %v181
  %v693 = vunpack.c.l.b16 %v182
  %v694 = vunpack.c.l.b16 %v183
  %v695 = vunpack.c.l.b16 %v184
  %v696 = vunpack.c.l.b16 %v185
  %v697 = vunpack.c.l.b16 %v186
  %v698 = vunpack.c.l.b16 %v187
  %v699 = vunpack.c.l.b16 %v188
  %v700 = vunpack.c.l.b16 %v189
  %v701 = vunpack.c.l.b16 %v190
  %v702 = vunpack.c.l.b16 %v191
  %v703 = vunpack.c.l.b16 %v192
  %v704 = vunpack.c.l.b16 %v193
  %v705 = vunpack.c.l.b16 %v194
  %v706 = vunpack.c.l.b16 %v195
  %v707 = vunpack.c.l.b16 %v196
  %v708 = vunpack.c.l.b16 %v197
  %v709 = vunpack.c.l.b16 %v198
  %v710 = vunpack.c.l.b16 %v199
  %v711 = vunpack.c.l.b16 %v200
  %v712 = vunpack.c.l.b16 %v201
  %v713 = vunpack.c.l.b16 %v202
  %v714 = vunpack.c.l.b16 %v203
  %v715 = vunpack.c.l.b16 %v204
  %v716 = vunpack.c.l.b16 %v205
  %v717 = vunpack.c.l.b16 %v206
  %v718 = vunpack.c.l.b16 %v207
  %v719 = vunpack.c.l.b16 %v208
  %v720 = vunpack.c.l.b16 %v209
  %v721 = vpack.c.b16 %v578, %v577
  %v722 = vpack.c.b16 %v580, %v579
  %v723 = vpack.c.b16 %v582, %v581
  %v724 = vpack.c.b16 %v584, %v583
  %v725 = vpack.c.b16 %v586, %v585
  %v726 = vpack.c.b16 %v588, %v587
  %v727 = vpack.c.b16 %v590, %v589
  %v728 = vpack.c.b16 %v592, %v591
  %v729 = vpack.c.b16 %v594, %v593
  %v730 = vpack.c.b16 %v596, %v595
  %v731 = vpack.c.b16 %v598, %v597
  %v732 = vpack.c.b16 %v600, %v599
  %v733 = vpack.c.b16 %v602, %v601
  %v734 = vpack.c.b16 %v604, %v603
  %v735 = vpack.c.b16 %v606, %v605
  %v736 = vpack.c.b16 %v608, %v607
  %v737 = vpack.c.b16 %v610, %v609
  %v738 = vpack.c.b16 %v612, %v611
  %v739 = vpack.c.b16 %v614, %v613
  %v740 = vpack.c.b16 %v616, %v615
  %v741 = vpack.c.b16 %v618, %v617
  %v742 = vpack.c.b16 %v620, %v619
  %v743 = vpack.c.b16 %v622, %v621
  %v744 = vpack.c.b16 %v624, %v623
  %v745 = vpack.c.b16 %v626, %v625
  %v746 = vpack.c.b16 %v628, %v627
  %v747 = vpack.c.b16 %v630, %v629
  %v748 = vpack.c.b16 %v632, %v631
  %v749 = vpack.c.b16 %v634, %v633
  %v750 = vpack.c.b16 %v636, %v635
  %v751 = vpack.c.b16 %v638, %v637
  %v752 = vpack.c.b16 %v640, %v639
  %v753 = vpack.c.b16 %v642, %v641
  %v754 = vpack.c.b16 %v644, %v643
  %v755 = vpack.c.b16 %v646, %v645
  %v756 = vpack.c.b16 %v648, %v647
  %v757 = vpack.c.b16 %v650, %v649
  %v758 = vpack.c.b16 %v652, %v651
  %v759 = vpack.c.b16 %v654, %v653
  %v760 = vpack.c.b16 %v656, %v655
  %v761 = vpack.c.b16 %v658, %v657
  %v762 = vpack.c.b16 %v660, %v659
  %v763 = vpack.c.b16 %v662, %v661
  %v764 = vpack.c.b16 %v664, %v663
  %v765 = vpack.c.b16 %v666, %v665
  %v766 = vpack.c.b16 %v668, %v667
  %v767 = vpack.c.b16 %v670, %v669
  %v768 = vpack.c.b16 %v672, %v671
  %v769 = vpack.c.b16 %v674, %v673
  %v770 = vpack.c.b16 %v676, %v675
  %v771 = vpack.c.b16 %v678, %v677
  %v772 = vpack.c.b16 %v680, %v679
  %v773 = vpack.c.b16 %v682, %v681
  %v774 = vpack.c.b16 %v684, %v683
  %v775 = vpack.c.b16 %v686, %v685
  %v776 = vpack.c.b16 %v688, %v687
  %v777 = vpack.c.b16 %v690, %v689
  %v778 = vpack.c.b16 %v692, %v691
  %v779 = vpack.c.b16 %v694, %v693
  %v780 = vpack.c.b16 %v696, %v695
  %v781 = vpack.c.b16 %v698, %v697
  %v782 = vpack.c.b16 %v700, %v699
  %v783 = vpack.c.b16 %v702, %v701
  %v784 = vpack.c.b16 %v704, %v703
  %v785 = vpack.c.b16 %v706, %v705
  %v786 = vpack.c.b16 %v708, %v707
  %v787 = vpack.c.b16 %v710, %v709
  %v788 = vpack.c.b16 %v712, %v711
  %v789 = vpack.c.b16 %v714, %v713
  %v790 = vpack.c.b16 %v716, %v715
  %v791 = vpack.c.b16 %v718, %v717
  %v792 = vpack.c.b16 %v720, %v719
  %865 = vmatprep.subr.bf16.mxu0 0
  %866 = vmatpush1.bf16.msra.mxu0 %v721
  %867 = vmatprep.subr.bf16.mxu0 0
  %868 = vmatpush1.bf16.msra.mxu0 %v722
  %869 = vmatprep.subr.bf16.mxu0 0
  %870 = vmatpush1.bf16.msra.mxu0 %v723
  %871 = vmatprep.subr.bf16.mxu0 0
  %872 = vmatpush1.bf16.msra.mxu0 %v724
  %873 = vmatprep.subr.bf16.mxu0 0
  %874 = vmatpush1.bf16.msra.mxu0 %v725
  %875 = vmatprep.subr.bf16.mxu0 0
  %876 = vmatpush1.bf16.msra.mxu0 %v726
  %877 = vmatprep.subr.bf16.mxu0 0
  %878 = vmatpush1.bf16.msra.mxu0 %v727
  %879 = vmatprep.subr.bf16.mxu0 0
  %880 = vmatpush1.bf16.msra.mxu0 %v728
  %881 = vmatprep.subr.bf16.mxu0 0
  %882 = vmatpush1.bf16.msra.mxu0 %v729
  %883 = vmatprep.subr.bf16.mxu0 0
  %884 = vmatpush1.bf16.msra.mxu0 %v730
  %885 = vmatprep.subr.bf16.mxu0 0
  %886 = vmatpush1.bf16.msra.mxu0 %v731
  %887 = vmatprep.subr.bf16.mxu0 0
  %888 = vmatpush1.bf16.msra.mxu0 %v732
  %889 = vmatprep.subr.bf16.mxu0 0
  %890 = vmatpush1.bf16.msra.mxu0 %v733
  %891 = vmatprep.subr.bf16.mxu0 0
  %892 = vmatpush1.bf16.msra.mxu0 %v734
  %893 = vmatprep.subr.bf16.mxu0 0
  %894 = vmatpush1.bf16.msra.mxu0 %v735
  %895 = vmatprep.subr.bf16.mxu0 0
  %896 = vmatpush1.bf16.msra.mxu0 %v736
  %897 = vmatprep.mubr.bf16.mxu0 %v344
  %898 = vmatmul.mubr.bf16.gmra.mrb[0].mxu0 %v343
  %v899 = vpop.f32.mrb[0].mxu0
  %v900 = vadd.f32 %v215, %v899
  %v901 = vpop.f32.mrb[0].mxu0
  %v902 = vpop.f32.mrb[0].mxu0
  %v903 = vadd.f32 %v215, %v902
  %v904 = vpop.f32.mrb[0].mxu0
  %905 = vmatprep.mubr.bf16.mxu0 %v353
  %906 = vmatmul.mubr.bf16.gmra.mrb[0].mxu0 %v352
  %v907 = vpop.f32.mrb[0].mxu0
  %v908 = vadd.f32 %v215, %v907
  %v909 = vpop.f32.mrb[0].mxu0
  %v910 = vpop.f32.mrb[0].mxu0
  %v911 = vadd.f32 %v215, %v910
  %v912 = vpop.f32.mrb[0].mxu0
  %913 = vmatprep.mubr.bf16.mxu0 %v362
  %914 = vmatmul.mubr.bf16.gmra.mrb[0].mxu0 %v361
  %v915 = vpop.f32.mrb[0].mxu0
  %v916 = vadd.f32 %v215, %v915
  %v917 = vpop.f32.mrb[0].mxu0
  %v918 = vpop.f32.mrb[0].mxu0
  %v919 = vadd.f32 %v215, %v918
  %v920 = vpop.f32.mrb[0].mxu0
  %921 = vmatprep.mubr.bf16.mxu0 %v371
  %922 = vmatmul.mubr.bf16.gmra.mrb[0].mxu0 %v370
  %v923 = vpop.f32.mrb[0].mxu0
  %v924 = vadd.f32 %v215, %v923
  %v925 = vpop.f32.mrb[0].mxu0
  %v926 = vpop.f32.mrb[0].mxu0
  %v927 = vadd.f32 %v215, %v926
  %v928 = vpop.f32.mrb[0].mxu0
  %929 = vmatprep.mubr.bf16.mxu0 %v380
  %930 = vmatmul.mubr.bf16.gmra.mrb[0].mxu0 %v379
  %v931 = vpop.f32.mrb[0].mxu0
  %v932 = vadd.f32 %v215, %v931
  %v933 = vpop.f32.mrb[0].mxu0
  %v934 = vpop.f32.mrb[0].mxu0
  %v935 = vpop.f32.mrb[0].mxu0
  %936 = vdwg.mxu0
  %937 = vmatprep.subr.bf16.mxu0 0
  %938 = vmatpush1.bf16.msra.mxu0 %v737
  %939 = vmatprep.subr.bf16.mxu0 0
  %940 = vmatpush1.bf16.msra.mxu0 %v738
  %941 = vmatprep.subr.bf16.mxu0 0
  %942 = vmatpush1.bf16.msra.mxu0 %v739
  %943 = vmatprep.subr.bf16.mxu0 0
  %944 = vmatpush1.bf16.msra.mxu0 %v740
  %945 = vmatprep.subr.bf16.mxu0 0
  %946 = vmatpush1.bf16.msra.mxu0 %v741
  %947 = vmatprep.subr.bf16.mxu0 0
  %948 = vmatpush1.bf16.msra.mxu0 %v742
  %949 = vmatprep.subr.bf16.mxu0 0
  %950 = vmatpush1.bf16.msra.mxu0 %v743
  %951 = vmatprep.subr.bf16.mxu0 0
  %952 = vmatpush1.bf16.msra.mxu0 %v744
  %953 = vmatprep.subr.bf16.mxu0 0
  %954 = vmatpush1.bf16.msra.mxu0 %v745
  %955 = vmatprep.subr.bf16.mxu0 0
  %956 = vmatpush1.bf16.msra.mxu0 %v746
  %957 = vmatprep.subr.bf16.mxu0 0
  %958 = vmatpush1.bf16.msra.mxu0 %v747
  %959 = vmatprep.subr.bf16.mxu0 0
  %960 = vmatpush1.bf16.msra.mxu0 %v748
  %961 = vmatprep.subr.bf16.mxu0 0
  %962 = vmatpush1.bf16.msra.mxu0 %v749
  %963 = vmatprep.subr.bf16.mxu0 0
  %964 = vmatpush1.bf16.msra.mxu0 %v750
  %965 = vmatprep.subr.bf16.mxu0 0
  %966 = vmatpush1.bf16.msra.mxu0 %v751
  %967 = vmatprep.subr.bf16.mxu0 0
  %968 = vmatpush1.bf16.msra.mxu0 %v752
  %969 = vmatprep.mubr.bf16.mxu0 %v346
  %970 = vmatmul.mubr.bf16.gmra.mrb[0].mxu0 %v345
  %v971 = vpop.f32.mrb[0].mxu0
  %v972 = vadd.f32 %v900, %v971
  %v973 = vpop.f32.mrb[0].mxu0
  %v974 = vpop.f32.mrb[0].mxu0
  %v975 = vadd.f32 %v903, %v974
  %v976 = vpop.f32.mrb[0].mxu0
  %977 = vmatprep.mubr.bf16.mxu0 %v355
  %978 = vmatmul.mubr.bf16.gmra.mrb[0].mxu0 %v354
  %v979 = vpop.f32.mrb[0].mxu0
  %v980 = vadd.f32 %v908, %v979
  %v981 = vpop.f32.mrb[0].mxu0
  %v982 = vpop.f32.mrb[0].mxu0
  %v983 = vadd.f32 %v911, %v982
  %v984 = vpop.f32.mrb[0].mxu0
  %985 = vmatprep.mubr.bf16.mxu0 %v364
  %986 = vmatmul.mubr.bf16.gmra.mrb[0].mxu0 %v363
  %v987 = vpop.f32.mrb[0].mxu0
  %v988 = vadd.f32 %v916, %v987
  %v989 = vpop.f32.mrb[0].mxu0
  %v990 = vpop.f32.mrb[0].mxu0
  %v991 = vadd.f32 %v919, %v990
  %v992 = vpop.f32.mrb[0].mxu0
  %993 = vmatprep.mubr.bf16.mxu0 %v373
  %994 = vmatmul.mubr.bf16.gmra.mrb[0].mxu0 %v372
  %v995 = vpop.f32.mrb[0].mxu0
  %v996 = vadd.f32 %v924, %v995
  %v997 = vpop.f32.mrb[0].mxu0
  %v998 = vpop.f32.mrb[0].mxu0
  %v999 = vadd.f32 %v927, %v998
  %v1000 = vpop.f32.mrb[0].mxu0
  %1001 = vmatprep.mubr.bf16.mxu0 %v382
  %1002 = vmatmul.mubr.bf16.gmra.mrb[0].mxu0 %v381
  %v1003 = vpop.f32.mrb[0].mxu0
  %v1004 = vadd.f32 %v932, %v1003
  %v1005 = vpop.f32.mrb[0].mxu0
  %v1006 = vpop.f32.mrb[0].mxu0
  %v1007 = vpop.f32.mrb[0].mxu0
  %1008 = vdwg.mxu0
  %1009 = vmatprep.subr.bf16.mxu0 0
  %1010 = vmatpush1.bf16.msra.mxu0 %v753
  %1011 = vmatprep.subr.bf16.mxu0 0
  %1012 = vmatpush1.bf16.msra.mxu0 %v754
  %1013 = vmatprep.subr.bf16.mxu0 0
  %1014 = vmatpush1.bf16.msra.mxu0 %v755
  %1015 = vmatprep.subr.bf16.mxu0 0
  %1016 = vmatpush1.bf16.msra.mxu0 %v756
  %1017 = vmatprep.subr.bf16.mxu0 0
  %1018 = vmatpush1.bf16.msra.mxu0 %v757
  %1019 = vmatprep.subr.bf16.mxu0 0
  %1020 = vmatpush1.bf16.msra.mxu0 %v758
  %1021 = vmatprep.subr.bf16.mxu0 0
  %1022 = vmatpush1.bf16.msra.mxu0 %v759
  %1023 = vmatprep.subr.bf16.mxu0 0
  %1024 = vmatpush1.bf16.msra.mxu0 %v760
  %1025 = vmatprep.subr.bf16.mxu0 0
  %1026 = vmatpush1.bf16.msra.mxu0 %v761
  %1027 = vmatprep.subr.bf16.mxu0 0
  %1028 = vmatpush1.bf16.msra.mxu0 %v762
  %1029 = vmatprep.subr.bf16.mxu0 0
  %1030 = vmatpush1.bf16.msra.mxu0 %v763
  %1031 = vmatprep.subr.bf16.mxu0 0
  %1032 = vmatpush1.bf16.msra.mxu0 %v764
  %1033 = vmatprep.subr.bf16.mxu0 0
  %1034 = vmatpush1.bf16.msra.mxu0 %v765
  %1035 = vmatprep.subr.bf16.mxu0 0
  %1036 = vmatpush1.bf16.msra.mxu0 %v766
  %1037 = vmatprep.subr.bf16.mxu0 0
  %1038 = vmatpush1.bf16.msra.mxu0 %v767
  %1039 = vmatprep.subr.bf16.mxu0 0
  %1040 = vmatpush1.bf16.msra.mxu0 %v768
  %1041 = vmatprep.mubr.bf16.mxu0 %v348
  %1042 = vmatmul.mubr.bf16.gmra.mrb[0].mxu0 %v347
  %v1043 = vpop.f32.mrb[0].mxu0
  %v1044 = vadd.f32 %v972, %v1043
  %v1045 = vpop.f32.mrb[0].mxu0
  %v1046 = vpop.f32.mrb[0].mxu0
  %v1047 = vadd.f32 %v975, %v1046
  %v1048 = vpop.f32.mrb[0].mxu0
  %1049 = vmatprep.mubr.bf16.mxu0 %v357
  %1050 = vmatmul.mubr.bf16.gmra.mrb[0].mxu0 %v356
  %v1051 = vpop.f32.mrb[0].mxu0
  %v1052 = vadd.f32 %v980, %v1051
  %v1053 = vpop.f32.mrb[0].mxu0
  %v1054 = vpop.f32.mrb[0].mxu0
  %v1055 = vadd.f32 %v983, %v1054
  %v1056 = vpop.f32.mrb[0].mxu0
  %1057 = vmatprep.mubr.bf16.mxu0 %v366
  %1058 = vmatmul.mubr.bf16.gmra.mrb[0].mxu0 %v365
  %v1059 = vpop.f32.mrb[0].mxu0
  %v1060 = vadd.f32 %v988, %v1059
  %v1061 = vpop.f32.mrb[0].mxu0
  %v1062 = vpop.f32.mrb[0].mxu0
  %v1063 = vadd.f32 %v991, %v1062
  %v1064 = vpop.f32.mrb[0].mxu0
  %1065 = vmatprep.mubr.bf16.mxu0 %v375
  %1066 = vmatmul.mubr.bf16.gmra.mrb[0].mxu0 %v374
  %v1067 = vpop.f32.mrb[0].mxu0
  %v1068 = vadd.f32 %v996, %v1067
  %v1069 = vpop.f32.mrb[0].mxu0
  %v1070 = vpop.f32.mrb[0].mxu0
  %v1071 = vadd.f32 %v999, %v1070
  %v1072 = vpop.f32.mrb[0].mxu0
  %1073 = vmatprep.mubr.bf16.mxu0 %v384
  %1074 = vmatmul.mubr.bf16.gmra.mrb[0].mxu0 %v383
  %v1075 = vpop.f32.mrb[0].mxu0
  %v1076 = vadd.f32 %v1004, %v1075
  %v1077 = vpop.f32.mrb[0].mxu0
  %v1078 = vpop.f32.mrb[0].mxu0
  %v1079 = vpop.f32.mrb[0].mxu0
  %1080 = vdwg.mxu0
  %1081 = vmatprep.subr.bf16.mxu0 0
  %1082 = vmatpush1.bf16.msra.mxu0 %v769
  %1083 = vmatprep.subr.bf16.mxu0 0
  %1084 = vmatpush1.bf16.msra.mxu0 %v770
  %1085 = vmatprep.subr.bf16.mxu0 0
  %1086 = vmatpush1.bf16.msra.mxu0 %v771
  %1087 = vmatprep.subr.bf16.mxu0 0
  %1088 = vmatpush1.bf16.msra.mxu0 %v772
  %1089 = vmatprep.subr.bf16.mxu0 0
  %1090 = vmatpush1.bf16.msra.mxu0 %v773
  %1091 = vmatprep.subr.bf16.mxu0 0
  %1092 = vmatpush1.bf16.msra.mxu0 %v774
  %1093 = vmatprep.subr.bf16.mxu0 0
  %1094 = vmatpush1.bf16.msra.mxu0 %v775
  %1095 = vmatprep.subr.bf16.mxu0 0
  %1096 = vmatpush1.bf16.msra.mxu0 %v776
  %1097 = vmatprep.subr.bf16.mxu0 0
  %1098 = vmatpush1.bf16.msra.mxu0 %v777
  %1099 = vmatprep.subr.bf16.mxu0 0
  %1100 = vmatpush1.bf16.msra.mxu0 %v778
  %1101 = vmatprep.subr.bf16.mxu0 0
  %1102 = vmatpush1.bf16.msra.mxu0 %v779
  %1103 = vmatprep.subr.bf16.mxu0 0
  %1104 = vmatpush1.bf16.msra.mxu0 %v780
  %1105 = vmatprep.subr.bf16.mxu0 0
  %1106 = vmatpush1.bf16.msra.mxu0 %v781
  %1107 = vmatprep.subr.bf16.mxu0 0
  %1108 = vmatpush1.bf16.msra.mxu0 %v782
  %1109 = vmatprep.subr.bf16.mxu0 0
  %1110 = vmatpush1.bf16.msra.mxu0 %v783
  %1111 = vmatprep.subr.bf16.mxu0 0
  %1112 = vmatpush1.bf16.msra.mxu0 %v784
  %1113 = vmatprep.mubr.bf16.mxu0 %v350
  %1114 = vmatmul.mubr.bf16.gmra.mrb[0].mxu0 %v349
  %v1115 = vpop.f32.mrb[0].mxu0
  %v1116 = vadd.f32 %v1044, %v1115
  %v1117 = vpop.f32.mrb[0].mxu0
  %v1118 = vpop.f32.mrb[0].mxu0
  %v1119 = vadd.f32 %v1047, %v1118
  %v1120 = vpop.f32.mrb[0].mxu0
  %1121 = vmatprep.mubr.bf16.mxu0 %v359
  %1122 = vmatmul.mubr.bf16.gmra.mrb[0].mxu0 %v358
  %v1123 = vpop.f32.mrb[0].mxu0
  %v1124 = vadd.f32 %v1052, %v1123
  %v1125 = vpop.f32.mrb[0].mxu0
  %v1126 = vpop.f32.mrb[0].mxu0
  %v1127 = vadd.f32 %v1055, %v1126
  %v1128 = vpop.f32.mrb[0].mxu0
  %1129 = vmatprep.mubr.bf16.mxu0 %v368
  %1130 = vmatmul.mubr.bf16.gmra.mrb[0].mxu0 %v367
  %v1131 = vpop.f32.mrb[0].mxu0
  %v1132 = vadd.f32 %v1060, %v1131
  %v1133 = vpop.f32.mrb[0].mxu0
  %v1134 = vpop.f32.mrb[0].mxu0
  %v1135 = vadd.f32 %v1063, %v1134
  %v1136 = vpop.f32.mrb[0].mxu0
  %1137 = vmatprep.mubr.bf16.mxu0 %v377
  %1138 = vmatmul.mubr.bf16.gmra.mrb[0].mxu0 %v376
  %v1139 = vpop.f32.mrb[0].mxu0
  %v1140 = vadd.f32 %v1068, %v1139
  %v1141 = vpop.f32.mrb[0].mxu0
  %v1142 = vpop.f32.mrb[0].mxu0
  %v1143 = vadd.f32 %v1071, %v1142
  %v1144 = vpop.f32.mrb[0].mxu0
  %1145 = vmatprep.mubr.bf16.mxu0 %v386
  %1146 = vmatmul.mubr.bf16.gmra.mrb[0].mxu0 %v385
  %v1147 = vpop.f32.mrb[0].mxu0
  %v1148 = vadd.f32 %v1076, %v1147
  %v1149 = vpop.f32.mrb[0].mxu0
  %v1150 = vpop.f32.mrb[0].mxu0
  %v1151 = vpop.f32.mrb[0].mxu0
  %1152 = vdwg.mxu0
  %1153 = vmatprep.subr.bf16.mxu0 0
  %1154 = vmatpush1.bf16.msra.mxu0 %v785
  %1155 = vmatprep.subr.bf16.mxu0 0
  %1156 = vmatpush1.bf16.msra.mxu0 %v786
  %1157 = vmatprep.subr.bf16.mxu0 0
  %1158 = vmatpush1.bf16.msra.mxu0 %v787
  %1159 = vmatprep.subr.bf16.mxu0 0
  %1160 = vmatpush1.bf16.msra.mxu0 %v788
  %1161 = vmatprep.subr.bf16.mxu0 0
  %1162 = vmatpush1.bf16.msra.mxu0 %v789
  %1163 = vmatprep.subr.bf16.mxu0 0
  %1164 = vmatpush1.bf16.msra.mxu0 %v790
  %1165 = vmatprep.subr.bf16.mxu0 0
  %1166 = vmatpush1.bf16.msra.mxu0 %v791
  %1167 = vmatprep.subr.bf16.mxu0 0
  %1168 = vmatpush1.bf16.msra.mxu0 %v792
  %1169 = vmatprep.subr.bf16.mxu0 0
  %1170 = vmatpush1.bf16.msra.mxu0 0
  %1171 = vmatprep.subr.bf16.mxu0 0
  %1172 = vmatpush1.bf16.msra.mxu0 0
  %1173 = vmatprep.subr.bf16.mxu0 0
  %1174 = vmatpush1.bf16.msra.mxu0 0
  %1175 = vmatprep.subr.bf16.mxu0 0
  %1176 = vmatpush1.bf16.msra.mxu0 0
  %1177 = vmatprep.subr.bf16.mxu0 0
  %1178 = vmatpush1.bf16.msra.mxu0 0
  %1179 = vmatprep.subr.bf16.mxu0 0
  %1180 = vmatpush1.bf16.msra.mxu0 0
  %1181 = vmatprep.subr.bf16.mxu0 0
  %1182 = vmatpush1.bf16.msra.mxu0 0
  %1183 = vmatprep.subr.bf16.mxu0 0
  %1184 = vmatpush1.bf16.msra.mxu0 0
  %1185 = vmatprep.mubr.bf16.mxu0 0
  %1186 = vmatmul.mubr.bf16.gmra.mrb[0].mxu0 %v351
  %v1187 = vpop.f32.mrb[0].mxu0
  %v1188 = vadd.f32 %v1116, %v1187
  %v1189 = vpop.f32.mrb[0].mxu0
  %v1190 = vpop.f32.mrb[0].mxu0
  %v1191 = vadd.f32 %v1119, %v1190
  %v1192 = vpop.f32.mrb[0].mxu0
  %1193 = vmatprep.mubr.bf16.mxu0 0
  %1194 = vmatmul.mubr.bf16.gmra.mrb[0].mxu0 %v360
  %v1195 = vpop.f32.mrb[0].mxu0
  %v1196 = vadd.f32 %v1124, %v1195
  %v1197 = vpop.f32.mrb[0].mxu0
  %v1198 = vpop.f32.mrb[0].mxu0
  %v1199 = vadd.f32 %v1127, %v1198
  %v1200 = vpop.f32.mrb[0].mxu0
  %1201 = vmatprep.mubr.bf16.mxu0 0
  %1202 = vmatmul.mubr.bf16.gmra.mrb[0].mxu0 %v369
  %v1203 = vpop.f32.mrb[0].mxu0
  %v1204 = vadd.f32 %v1132, %v1203
  %v1205 = vpop.f32.mrb[0].mxu0
  %v1206 = vpop.f32.mrb[0].mxu0
  %v1207 = vadd.f32 %v1135, %v1206
  %v1208 = vpop.f32.mrb[0].mxu0
  %1209 = vmatprep.mubr.bf16.mxu0 0
  %1210 = vmatmul.mubr.bf16.gmra.mrb[0].mxu0 %v378
  %v1211 = vpop.f32.mrb[0].mxu0
  %v1212 = vadd.f32 %v1140, %v1211
  %v1213 = vpop.f32.mrb[0].mxu0
  %v1214 = vpop.f32.mrb[0].mxu0
  %v1215 = vadd.f32 %v1143, %v1214
  %v1216 = vpop.f32.mrb[0].mxu0
  %1217 = vmatprep.mubr.bf16.mxu0 0
  %1218 = vmatmul.mubr.bf16.gmra.mrb[0].mxu0 %v387
  %v1219 = vpop.f32.mrb[0].mxu0
  %v1220 = vadd.f32 %v1148, %v1219
  %v1221 = vpop.f32.mrb[0].mxu0
  %v1222 = vpop.f32.mrb[0].mxu0
  %v1223 = vpop.f32.mrb[0].mxu0
  %1224 = vdwg.mxu0
  %vm1225 = vcmp.ge.f32.partialorder %v1188, 0.0
  %vm1226 = vcmp.ge.f32.partialorder %v1191, 0.0
  %vm1227 = vcmp.ge.f32.partialorder %v1196, 0.0
  %vm1228 = vcmp.ge.f32.partialorder %v1199, 0.0
  %vm1229 = vcmp.ge.f32.partialorder %v1204, 0.0
  %vm1230 = vcmp.ge.f32.partialorder %v1207, 0.0
  %vm1231 = vcmp.ge.f32.partialorder %v1212, 0.0
  %vm1232 = vcmp.ge.f32.partialorder %v1215, 0.0
  %vm1233 = vcmp.ge.f32.partialorder %v1220, 0.0
  %v1234 = vmul.f32 %v1188, 0.2
  %v1235 = vmul.f32 %v1191, 0.2
  %v1236 = vmul.f32 %v1196, 0.2
  %v1237 = vmul.f32 %v1199, 0.2
  %v1238 = vmul.f32 %v1204, 0.2
  %v1239 = vmul.f32 %v1207, 0.2
  %v1240 = vmul.f32 %v1212, 0.2
  %v1241 = vmul.f32 %v1215, 0.2
  %v1242 = vmul.f32 %v1220, 0.2
  %v1243 = vsel %vm1225, %v1188, %v1234
  %v1244 = vsel %vm1226, %v1191, %v1235
  %v1245 = vsel %vm1227, %v1196, %v1236
  %v1246 = vsel %vm1228, %v1199, %v1237
  %v1247 = vsel %vm1229, %v1204, %v1238
  %v1248 = vsel %vm1230, %v1207, %v1239
  %v1249 = vsel %vm1231, %v1212, %v1240
  %v1250 = vsel %vm1232, %v1215, %v1241
  %v1251 = vsel %vm1233, %v1220, %v1242
  %v1252 = vld [vmem:[%s3] sm:$0x1]
  %v1254 = vlaneseq
  %v1255 = vshrl.u32 %v1254, 7
  %v1256 = vsub.s32 0, %v1255
  %v1257 = vrot.slane %v1252, %v1256
  %v1259 = vmul.f32 %v1243, %v1257
  %v1260 = vmul.f32 %v1244, %v1257
  %v1261 = vmul.f32 %v1245, %v1257
  %v1262 = vmul.f32 %v1246, %v1257
  %v1263 = vmul.f32 %v1247, %v1257
  %v1264 = vmul.f32 %v1248, %v1257
  %v1265 = vmul.f32 %v1249, %v1257
  %v1266 = vmul.f32 %v1250, %v1257
  %v1267 = vmul.f32 %v1251, %v1257
  %v1268 = vld [vmem:[%s4] sm:$0x1]
  %v1270 = vlaneseq
  %v1271 = vshrl.u32 %v1270, 7
  %v1272 = vsub.s32 0, %v1271
  %v1273 = vrot.slane %v1268, %v1272
  %v1275 = vadd.f32 %v1259, %v1273
  %v1276 = vadd.f32 %v1260, %v1273
  %v1277 = vadd.f32 %v1261, %v1273
  %v1278 = vadd.f32 %v1262, %v1273
  %v1279 = vadd.f32 %v1263, %v1273
  %v1280 = vadd.f32 %v1264, %v1273
  %v1281 = vadd.f32 %v1265, %v1273
  %v1282 = vadd.f32 %v1266, %v1273
  %v1283 = vadd.f32 %v1267, %v1273
  %v1284 = vpack.c.bf16 %v1276, %v1275
  %v1285 = vpack.c.bf16 %v1278, %v1277
  %v1286 = vpack.c.bf16 %v1280, %v1279
  %v1287 = vpack.c.bf16 %v1282, %v1281
  %v1288 = vpack.c.bf16 %v1283, %v1283
  %v1294 = vunpack.c.l.b16 %v1284
  %v1295 = vunpack.c.h.b16 %v1284
  %v1296 = vunpack.c.l.b16 %v1285
  %v1297 = vunpack.c.h.b16 %v1285
  %v1298 = vunpack.c.l.b16 %v1286
  %v1299 = vunpack.c.h.b16 %v1286
  %v1300 = vunpack.c.l.b16 %v1287
  %v1301 = vunpack.c.h.b16 %v1287
  %v1302 = vunpack.c.l.b16 %v1288
  %v1303 = vpack.c.b16 %v1294, %v1294
  %v1304 = vpack.c.b16 %v1295, %v1295
  %v1305 = vpack.c.b16 %v1296, %v1296
  %v1306 = vpack.c.b16 %v1297, %v1297
  %v1307 = vpack.c.b16 %v1298, %v1298
  %v1308 = vpack.c.b16 %v1299, %v1299
  %v1309 = vpack.c.b16 %v1300, %v1300
  %v1310 = vpack.c.b16 %v1301, %v1301
  %v1311 = vpack.c.b16 %v1302, %v1302
  %1321 = vst [vmem:[%s5] sm:$0xf] %v1303
  %1322 = vst [vmem:[%s5 + $0x4] sm:$0xf] %v1304
  %1323 = vst [vmem:[%s5 + $0x8] sm:$0xf] %v1305
  %1324 = vst [vmem:[%s5 + $0xc] sm:$0xf] %v1306
  %1325 = vst [vmem:[%s5 + $0x10] sm:$0xf] %v1307
  %1326 = vst [vmem:[%s5 + $0x14] sm:$0xf] %v1308
  %1327 = vst [vmem:[%s5 + $0x18] sm:$0xf] %v1309
  %1328 = vst [vmem:[%s5 + $0x1c] sm:$0xf] %v1310
  %1329 = vst [vmem:[%s5 + $0x20] sm:$0xf] %v1311
  // Predicated region
  $region22: #{single_disc_forward.14} parent=0 // pred_check
    _
  $region23: #{single_disc_forward.14} parent=0 // pred_check_branch
    %1331 = sbr.rel (0) target = $region25
  $region24: #{single_disc_forward.14} parent=0 // pred_region
    _
  $region25: #{single_disc_forward.14} parent=0 // pred_fallthru
    _
  // Predicated region
  $region26: #{single_disc_forward.14} parent=0 // pred_check
    _
  $region27: #{single_disc_forward.14} parent=0 // pred_check_branch
    %1333 = sbr.rel (0) target = $region29
  $region28: #{single_disc_forward.14} parent=0 // pred_region
    _
  $region29: #{single_disc_forward.14} parent=0 // pred_fallthru
    _

// kernel: single_disc_forward.9
$region0: #{single_disc_forward.9}
  #allocation0 [shape = 'u32[]', space=smem, size = 0x4, offset = 0x4, fixed_abs, tag = 'smem constant byte address 0x4 - core index']
  #allocation1 [shape = 'u32[144,128]{1,0:T(1,128)}', space=vmem, size = 0x12000, scoped, tag = 'internal scratch']
  %s0 = inlined_call_operand.vmem [shape: bf16[64,128], index: 0, kind: input, shape index: {}]
  %s1 = inlined_call_operand.vmem [shape: bf16[128,128], index: 1, kind: input, shape index: {}]
  %s2 = inlined_call_operand.vmem [shape: f32[1,128], index: 2, kind: input, shape index: {}]
  %s3 = inlined_call_operand.vmem [shape: f32[1,128], index: 3, kind: input, shape index: {}]
  %s4 = inlined_call_operand.vmem [shape: f32[1,128], index: 4, kind: input, shape index: {}]
  %s5 = inlined_call_operand.vmem [shape: bf16[64,128], index: 5, kind: output, shape index: {}]
  %s6 = sld [smem:[#allocation0]]
  $region30: #{single_disc_forward.9} parent=0
    _
  %s8 = ssub.s32 1, %s6
  %s9 = scalar_select 0, %s8, %s6
  // Predicated region
  $region2: #{single_disc_forward.9} parent=0 // pred_check
    _
  $region3: #{single_disc_forward.9} parent=0 // pred_check_branch
    %11 = sbr.rel (0) target = $region5
  $region4: #{single_disc_forward.9} parent=0 // pred_region
    _
  $region5: #{single_disc_forward.9} parent=0 // pred_fallthru
    _
  // Predicated region
  $region6: #{single_disc_forward.9} parent=0 // pred_check
    _
  $region7: #{single_disc_forward.9} parent=0 // pred_check_branch
    %13 = sbr.rel (0) target = $region9
  $region8: #{single_disc_forward.9} parent=0 // pred_region
    _
  $region9: #{single_disc_forward.9} parent=0 // pred_fallthru
    _
  // Predicated region
  $region10: #{single_disc_forward.9} parent=0 // pred_check
    _
  $region11: #{single_disc_forward.9} parent=0 // pred_check_branch
    %15 = sbr.rel (0) target = $region13
  $region12: #{single_disc_forward.9} parent=0 // pred_region
    _
  $region13: #{single_disc_forward.9} parent=0 // pred_fallthru
    _
  // Predicated region
  $region14: #{single_disc_forward.9} parent=0 // pred_check
    _
  $region15: #{single_disc_forward.9} parent=0 // pred_check_branch
    %17 = sbr.rel (0) target = $region17
  $region16: #{single_disc_forward.9} parent=0 // pred_region
    _
  $region17: #{single_disc_forward.9} parent=0 // pred_fallthru
    _
  // Predicated region
  $region18: #{single_disc_forward.9} parent=0 // pred_check
    _
  $region19: #{single_disc_forward.9} parent=0 // pred_check_branch
    %19 = sbr.rel (0) target = $region21
  $region20: #{single_disc_forward.9} parent=0 // pred_region
    _
  $region21: #{single_disc_forward.9} parent=0 // pred_fallthru
    _
  %v21 = vld [vmem:[%s0] sm:$0xf]
  %v22 = vld [vmem:[%s0 + $0x4] sm:$0xf]
  %v23 = vld [vmem:[%s0 + $0x8] sm:$0xf]
  %v24 = vld [vmem:[%s0 + $0xc] sm:$0xf]
  %v25 = vld [vmem:[%s0 + $0x10] sm:$0xf]
  %v26 = vld [vmem:[%s0 + $0x14] sm:$0xf]
  %v27 = vld [vmem:[%s0 + $0x18] sm:$0xf]
  %v28 = vld [vmem:[%s0 + $0x1c] sm:$0xf]
  %v29 = vld [vmem:[%s1] sm:$0xf]
  %v30 = vld [vmem:[%s1 + $0x4] sm:$0xf]
  %v31 = vld [vmem:[%s1 + $0x8] sm:$0xf]
  %v32 = vld [vmem:[%s1 + $0xc] sm:$0xf]
  %v33 = vld [vmem:[%s1 + $0x10] sm:$0xf]
  %v34 = vld [vmem:[%s1 + $0x14] sm:$0xf]
  %v35 = vld [vmem:[%s1 + $0x18] sm:$0xf]
  %v36 = vld [vmem:[%s1 + $0x1c] sm:$0xf]
  %v37 = vld [vmem:[%s1 + $0x20] sm:$0xf]
  %v38 = vld [vmem:[%s1 + $0x24] sm:$0xf]
  %v39 = vld [vmem:[%s1 + $0x28] sm:$0xf]
  %v40 = vld [vmem:[%s1 + $0x2c] sm:$0xf]
  %v41 = vld [vmem:[%s1 + $0x30] sm:$0xf]
  %v42 = vld [vmem:[%s1 + $0x34] sm:$0xf]
  %v43 = vld [vmem:[%s1 + $0x38] sm:$0xf]
  %v44 = vld [vmem:[%s1 + $0x3c] sm:$0xf]
  %v45 = vld [vmem:[%s2] sm:$0x1]
  %v47 = vlaneseq
  %v48 = vshrl.u32 %v47, 7
  %v49 = vsub.s32 0, %v48
  %v50 = vrot.slane %v45, %v49
  %v60 = vunpack.c.l.b16 %v21
  %v61 = vunpack.c.l.b16 %v22
  %v62 = vunpack.c.l.b16 %v23
  %v63 = vunpack.c.l.b16 %v24
  %v64 = vunpack.c.l.b16 %v25
  %v65 = vunpack.c.l.b16 %v26
  %v66 = vunpack.c.l.b16 %v27
  %v67 = vunpack.c.l.b16 %v28
  %v68 = vpack.c.b16 %v61, %v60
  %v69 = vpack.c.b16 %v63, %v62
  %v70 = vpack.c.b16 %v65, %v64
  %v71 = vpack.c.b16 %v67, %v66
  %v92 = vunpack.c.l.b16 %v29
  %v93 = vunpack.c.l.b16 %v30
  %v94 = vunpack.c.l.b16 %v31
  %v95 = vunpack.c.l.b16 %v32
  %v96 = vunpack.c.l.b16 %v33
  %v97 = vunpack.c.l.b16 %v34
  %v98 = vunpack.c.l.b16 %v35
  %v99 = vunpack.c.l.b16 %v36
  %v100 = vunpack.c.l.b16 %v37
  %v101 = vunpack.c.l.b16 %v38
  %v102 = vunpack.c.l.b16 %v39
  %v103 = vunpack.c.l.b16 %v40
  %v104 = vunpack.c.l.b16 %v41
  %v105 = vunpack.c.l.b16 %v42
  %v106 = vunpack.c.l.b16 %v43
  %v107 = vunpack.c.l.b16 %v44
  %v108 = vpack.c.b16 %v93, %v92
  %v109 = vpack.c.b16 %v95, %v94
  %v110 = vpack.c.b16 %v97, %v96
  %v111 = vpack.c.b16 %v99, %v98
  %v112 = vpack.c.b16 %v101, %v100
  %v113 = vpack.c.b16 %v103, %v102
  %v114 = vpack.c.b16 %v105, %v104
  %v115 = vpack.c.b16 %v107, %v106
  %124 = vmatprep.subr.bf16.mxu0 0
  %125 = vmatpush1.bf16.msra.mxu0 %v108
  %126 = vmatprep.subr.bf16.mxu0 0
  %127 = vmatpush1.bf16.msra.mxu0 %v109
  %128 = vmatprep.subr.bf16.mxu0 0
  %129 = vmatpush1.bf16.msra.mxu0 %v110
  %130 = vmatprep.subr.bf16.mxu0 0
  %131 = vmatpush1.bf16.msra.mxu0 %v111
  %132 = vmatprep.subr.bf16.mxu0 0
  %133 = vmatpush1.bf16.msra.mxu0 %v112
  %134 = vmatprep.subr.bf16.mxu0 0
  %135 = vmatpush1.bf16.msra.mxu0 %v113
  %136 = vmatprep.subr.bf16.mxu0 0
  %137 = vmatpush1.bf16.msra.mxu0 %v114
  %138 = vmatprep.subr.bf16.mxu0 0
  %139 = vmatpush1.bf16.msra.mxu0 %v115
  %140 = vmatprep.subr.bf16.mxu0 0
  %141 = vmatpush1.bf16.msra.mxu0 0
  %142 = vmatprep.subr.bf16.mxu0 0
  %143 = vmatpush1.bf16.msra.mxu0 0
  %144 = vmatprep.subr.bf16.mxu0 0
  %145 = vmatpush1.bf16.msra.mxu0 0
  %146 = vmatprep.subr.bf16.mxu0 0
  %147 = vmatpush1.bf16.msra.mxu0 0
  %148 = vmatprep.subr.bf16.mxu0 0
  %149 = vmatpush1.bf16.msra.mxu0 0
  %150 = vmatprep.subr.bf16.mxu0 0
  %151 = vmatpush1.bf16.msra.mxu0 0
  %152 = vmatprep.subr.bf16.mxu0 0
  %153 = vmatpush1.bf16.msra.mxu0 0
  %154 = vmatprep.subr.bf16.mxu0 0
  %155 = vmatpush1.bf16.msra.mxu0 0
  %156 = vmatprep.mubr.bf16.mxu0 0
  %157 = vmatmul.mubr.bf16.gmra.mrb[0].mxu0 %v68
  %v158 = vpop.f32.mrb[0].mxu0
  %v159 = vadd.f32 %v50, %v158
  %v160 = vpop.f32.mrb[0].mxu0
  %v161 = vpop.f32.mrb[0].mxu0
  %v162 = vadd.f32 %v50, %v161
  %v163 = vpop.f32.mrb[0].mxu0
  %164 = vmatprep.mubr.bf16.mxu0 0
  %165 = vmatmul.mubr.bf16.gmra.mrb[0].mxu0 %v69
  %v166 = vpop.f32.mrb[0].mxu0
  %v167 = vadd.f32 %v50, %v166
  %v168 = vpop.f32.mrb[0].mxu0
  %v169 = vpop.f32.mrb[0].mxu0
  %v170 = vadd.f32 %v50, %v169
  %v171 = vpop.f32.mrb[0].mxu0
  %172 = vmatprep.mubr.bf16.mxu0 0
  %173 = vmatmul.mubr.bf16.gmra.mrb[0].mxu0 %v70
  %v174 = vpop.f32.mrb[0].mxu0
  %v175 = vadd.f32 %v50, %v174
  %v176 = vpop.f32.mrb[0].mxu0
  %v177 = vpop.f32.mrb[0].mxu0
  %v178 = vadd.f32 %v50, %v177
  %v179 = vpop.f32.mrb[0].mxu0
  %180 = vmatprep.mubr.bf16.mxu0 0
  %181 = vmatmul.mubr.bf16.gmra.mrb[0].mxu0 %v71
  %v182 = vpop.f32.mrb[0].mxu0
  %v183 = vadd.f32 %v50, %v182
  %v184 = vpop.f32.mrb[0].mxu0
  %v185 = vpop.f32.mrb[0].mxu0
  %v186 = vadd.f32 %v50, %v185
  %v187 = vpop.f32.mrb[0].mxu0
  %188 = vdwg.mxu0
  %vm189 = vcmp.ge.f32.partialorder %v159, 0.0
  %vm190 = vcmp.ge.f32.partialorder %v162, 0.0
  %vm191 = vcmp.ge.f32.partialorder %v167, 0.0
  %vm192 = vcmp.ge.f32.partialorder %v170, 0.0
  %vm193 = vcmp.ge.f32.partialorder %v175, 0.0
  %vm194 = vcmp.ge.f32.partialorder %v178, 0.0
  %vm195 = vcmp.ge.f32.partialorder %v183, 0.0
  %vm196 = vcmp.ge.f32.partialorder %v186, 0.0
  %v197 = vmul.f32 %v159, 0.2
  %v198 = vmul.f32 %v162, 0.2
  %v199 = vmul.f32 %v167, 0.2
  %v200 = vmul.f32 %v170, 0.2
  %v201 = vmul.f32 %v175, 0.2
  %v202 = vmul.f32 %v178, 0.2
  %v203 = vmul.f32 %v183, 0.2
  %v204 = vmul.f32 %v186, 0.2
  %v205 = vsel %vm189, %v159, %v197
  %v206 = vsel %vm190, %v162, %v198
  %v207 = vsel %vm191, %v167, %v199
  %v208 = vsel %vm192, %v170, %v200
  %v209 = vsel %vm193, %v175, %v201
  %v210 = vsel %vm194, %v178, %v202
  %v211 = vsel %vm195, %v183, %v203
  %v212 = vsel %vm196, %v186, %v204
  %v213 = vld [vmem:[%s3] sm:$0x1]
  %v215 = vlaneseq
  %v216 = vshrl.u32 %v215, 7
  %v217 = vsub.s32 0, %v216
  %v218 = vrot.slane %v213, %v217
  %v220 = vmul.f32 %v205, %v218
  %v221 = vmul.f32 %v206, %v218
  %v222 = vmul.f32 %v207, %v218
  %v223 = vmul.f32 %v208, %v218
  %v224 = vmul.f32 %v209, %v218
  %v225 = vmul.f32 %v210, %v218
  %v226 = vmul.f32 %v211, %v218
  %v227 = vmul.f32 %v212, %v218
  %v228 = vld [vmem:[%s4] sm:$0x1]
  %v230 = vlaneseq
  %v231 = vshrl.u32 %v230, 7
  %v232 = vsub.s32 0, %v231
  %v233 = vrot.slane %v228, %v232
  %v235 = vadd.f32 %v220, %v233
  %v236 = vadd.f32 %v221, %v233
  %v237 = vadd.f32 %v222, %v233
  %v238 = vadd.f32 %v223, %v233
  %v239 = vadd.f32 %v224, %v233
  %v240 = vadd.f32 %v225, %v233
  %v241 = vadd.f32 %v226, %v233
  %v242 = vadd.f32 %v227, %v233
  %v243 = vpack.c.bf16 %v236, %v235
  %v244 = vpack.c.bf16 %v238, %v237
  %v245 = vpack.c.bf16 %v240, %v239
  %v246 = vpack.c.bf16 %v242, %v241
  %v251 = vunpack.c.l.b16 %v243
  %v252 = vunpack.c.h.b16 %v243
  %v253 = vunpack.c.l.b16 %v244
  %v254 = vunpack.c.h.b16 %v244
  %v255 = vunpack.c.l.b16 %v245
  %v256 = vunpack.c.h.b16 %v245
  %v257 = vunpack.c.l.b16 %v246
  %v258 = vunpack.c.h.b16 %v246
  %v259 = vpack.c.b16 %v251, %v251
  %v260 = vpack.c.b16 %v252, %v252
  %v261 = vpack.c.b16 %v253, %v253
  %v262 = vpack.c.b16 %v254, %v254
  %v263 = vpack.c.b16 %v255, %v255
  %v264 = vpack.c.b16 %v256, %v256
  %v265 = vpack.c.b16 %v257, %v257
  %v266 = vpack.c.b16 %v258, %v258
  %275 = vst [vmem:[%s5] sm:$0xf] %v259
  %276 = vst [vmem:[%s5 + $0x4] sm:$0xf] %v260
  %277 = vst [vmem:[%s5 + $0x8] sm:$0xf] %v261
  %278 = vst [vmem:[%s5 + $0xc] sm:$0xf] %v262
  %279 = vst [vmem:[%s5 + $0x10] sm:$0xf] %v263
  %280 = vst [vmem:[%s5 + $0x14] sm:$0xf] %v264
  %281 = vst [vmem:[%s5 + $0x18] sm:$0xf] %v265
  %282 = vst [vmem:[%s5 + $0x1c] sm:$0xf] %v266
  // Predicated region
  $region22: #{single_disc_forward.9} parent=0 // pred_check
    _
  $region23: #{single_disc_forward.9} parent=0 // pred_check_branch
    %284 = sbr.rel (0) target = $region25
  $region24: #{single_disc_forward.9} parent=0 // pred_region
    _
  $region25: #{single_disc_forward.9} parent=0 // pred_fallthru
    _
  // Predicated region
  $region26: #{single_disc_forward.9} parent=0 // pred_check
    _
  $region27: #{single_disc_forward.9} parent=0 // pred_check_branch
    %286 = sbr.rel (0) target = $region29
  $region28: #{single_disc_forward.9} parent=0 // pred_region
    _
  $region29: #{single_disc_forward.9} parent=0 // pred_fallthru
    _

// kernel: single_disc_forward.10
$region0: #{single_disc_forward.10}
  #allocation0 [shape = 'u32[]', space=smem, size = 0x4, offset = 0x4, fixed_abs, tag = 'smem constant byte address 0x4 - core index']
  #allocation1 [shape = 'u32[144,128]{1,0:T(1,128)}', space=vmem, size = 0x12000, scoped, tag = 'internal scratch']
  %s0 = inlined_call_operand.vmem [shape: bf16[16,1152], index: 0, kind: input, shape index: {}]
  %s1 = inlined_call_operand.vmem [shape: bf16[1152,128], index: 1, kind: input, shape index: {}]
  %s2 = inlined_call_operand.vmem [shape: f32[1,128], index: 2, kind: input, shape index: {}]
  %s3 = inlined_call_operand.vmem [shape: f32[1,128], index: 3, kind: input, shape index: {}]
  %s4 = inlined_call_operand.vmem [shape: f32[1,128], index: 4, kind: input, shape index: {}]
  %s5 = inlined_call_operand.vmem [shape: bf16[16,128], index: 5, kind: output, shape index: {}]
  %s6 = sld [smem:[#allocation0]]
  $region30: #{single_disc_forward.10} parent=0
    _
  %s8 = ssub.s32 1, %s6
  %s9 = scalar_select 0, %s8, %s6
  // Predicated region
  $region2: #{single_disc_forward.10} parent=0 // pred_check
    _
  $region3: #{single_disc_forward.10} parent=0 // pred_check_branch
    %11 = sbr.rel (0) target = $region5
  $region4: #{single_disc_forward.10} parent=0 // pred_region
    _
  $region5: #{single_disc_forward.10} parent=0 // pred_fallthru
    _
  // Predicated region
  $region6: #{single_disc_forward.10} parent=0 // pred_check
    _
  $region7: #{single_disc_forward.10} parent=0 // pred_check_branch
    %13 = sbr.rel (0) target = $region9
  $region8: #{single_disc_forward.10} parent=0 // pred_region
    _
  $region9: #{single_disc_forward.10} parent=0 // pred_fallthru
    _
  // Predicated region
  $region10: #{single_disc_forward.10} parent=0 // pred_check
    _
  $region11: #{single_disc_forward.10} parent=0 // pred_check_branch
    %15 = sbr.rel (0) target = $region13
  $region12: #{single_disc_forward.10} parent=0 // pred_region
    _
  $region13: #{single_disc_forward.10} parent=0 // pred_fallthru
    _
  // Predicated region
  $region14: #{single_disc_forward.10} parent=0 // pred_check
    _
  $region15: #{single_disc_forward.10} parent=0 // pred_check_branch
    %17 = sbr.rel (0) target = $region17
  $region16: #{single_disc_forward.10} parent=0 // pred_region
    _
  $region17: #{single_disc_forward.10} parent=0 // pred_fallthru
    _
  // Predicated region
  $region18: #{single_disc_forward.10} parent=0 // pred_check
    _
  $region19: #{single_disc_forward.10} parent=0 // pred_check_branch
    %19 = sbr.rel (0) target = $region21
  $region20: #{single_disc_forward.10} parent=0 // pred_region
    _
  $region21: #{single_disc_forward.10} parent=0 // pred_fallthru
    _
  %v21 = vld [vmem:[%s0] sm:$0xff]
  %v22 = vld [vmem:[%s0 + $0x8] sm:$0xff]
  %v23 = vld [vmem:[%s0 + $0x10] sm:$0xff]
  %v24 = vld [vmem:[%s0 + $0x18] sm:$0xff]
  %v25 = vld [vmem:[%s0 + $0x20] sm:$0xf]
  %v26 = vld [vmem:[%s0 + $0x24] sm:$0xff]
  %v27 = vld [vmem:[%s0 + $0x2c] sm:$0xff]
  %v28 = vld [vmem:[%s0 + $0x34] sm:$0xff]
  %v29 = vld [vmem:[%s0 + $0x3c] sm:$0xff]
  %v30 = vld [vmem:[%s0 + $0x44] sm:$0xf]
  %v31 = vld [vmem:[%s1] sm:$0xf]
  %v32 = vld [vmem:[%s1 + $0x4] sm:$0xf]
  %v33 = vld [vmem:[%s1 + $0x8] sm:$0xf]
  %v34 = vld [vmem:[%s1 + $0xc] sm:$0xf]
  %v35 = vld [vmem:[%s1 + $0x10] sm:$0xf]
  %v36 = vld [vmem:[%s1 + $0x14] sm:$0xf]
  %v37 = vld [vmem:[%s1 + $0x18] sm:$0xf]
  %v38 = vld [vmem:[%s1 + $0x1c] sm:$0xf]
  %v39 = vld [vmem:[%s1 + $0x20] sm:$0xf]
  %v40 = vld [vmem:[%s1 + $0x24] sm:$0xf]
  %v41 = vld [vmem:[%s1 + $0x28] sm:$0xf]
  %v42 = vld [vmem:[%s1 + $0x2c] sm:$0xf]
  %v43 = vld [vmem:[%s1 + $0x30] sm:$0xf]
  %v44 = vld [vmem:[%s1 + $0x34] sm:$0xf]
  %v45 = vld [vmem:[%s1 + $0x38] sm:$0xf]
  %v46 = vld [vmem:[%s1 + $0x3c] sm:$0xf]
  %v47 = vld [vmem:[%s1 + $0x40] sm:$0xf]
  %v48 = vld [vmem:[%s1 + $0x44] sm:$0xf]
  %v49 = vld [vmem:[%s1 + $0x48] sm:$0xf]
  %v50 = vld [vmem:[%s1 + $0x4c] sm:$0xf]
  %v51 = vld [vmem:[%s1 + $0x50] sm:$0xf]
  %v52 = vld [vmem:[%s1 + $0x54] sm:$0xf]
  %v53 = vld [vmem:[%s1 + $0x58] sm:$0xf]
  %v54 = vld [vmem:[%s1 + $0x5c] sm:$0xf]
  %v55 = vld [vmem:[%s1 + $0x60] sm:$0xf]
  %v56 = vld [vmem:[%s1 + $0x64] sm:$0xf]
  %v57 = vld [vmem:[%s1 + $0x68] sm:$0xf]
  %v58 = vld [vmem:[%s1 + $0x6c] sm:$0xf]
  %v59 = vld [vmem:[%s1 + $0x70] sm:$0xf]
  %v60 = vld [vmem:[%s1 + $0x74] sm:$0xf]
  %v61 = vld [vmem:[%s1 + $0x78] sm:$0xf]
  %v62 = vld [vmem:[%s1 + $0x7c] sm:$0xf]
  %v63 = vld [vmem:[%s1 + $0x80] sm:$0xf]
  %v64 = vld [vmem:[%s1 + $0x84] sm:$0xf]
  %v65 = vld [vmem:[%s1 + $0x88] sm:$0xf]
  %v66 = vld [vmem:[%s1 + $0x8c] sm:$0xf]
  %v67 = vld [vmem:[%s1 + $0x90] sm:$0xf]
  %v68 = vld [vmem:[%s1 + $0x94] sm:$0xf]
  %v69 = vld [vmem:[%s1 + $0x98] sm:$0xf]
  %v70 = vld [vmem:[%s1 + $0x9c] sm:$0xf]
  %v71 = vld [vmem:[%s1 + $0xa0] sm:$0xf]
  %v72 = vld [vmem:[%s1 + $0xa4] sm:$0xf]
  %v73 = vld [vmem:[%s1 + $0xa8] sm:$0xf]
  %v74 = vld [vmem:[%s1 + $0xac] sm:$0xf]
  %v75 = vld [vmem:[%s1 + $0xb0] sm:$0xf]
  %v76 = vld [vmem:[%s1 + $0xb4] sm:$0xf]
  %v77 = vld [vmem:[%s1 + $0xb8] sm:$0xf]
  %v78 = vld [vmem:[%s1 + $0xbc] sm:$0xf]
  %v79 = vld [vmem:[%s1 + $0xc0] sm:$0xf]
  %v80 = vld [vmem:[%s1 + $0xc4] sm:$0xf]
  %v81 = vld [vmem:[%s1 + $0xc8] sm:$0xf]
  %v82 = vld [vmem:[%s1 + $0xcc] sm:$0xf]
  %v83 = vld [vmem:[%s1 + $0xd0] sm:$0xf]
  %v84 = vld [vmem:[%s1 + $0xd4] sm:$0xf]
  %v85 = vld [vmem:[%s1 + $0xd8] sm:$0xf]
  %v86 = vld [vmem:[%s1 + $0xdc] sm:$0xf]
  %v87 = vld [vmem:[%s1 + $0xe0] sm:$0xf]
  %v88 = vld [vmem:[%s1 + $0xe4] sm:$0xf]
  %v89 = vld [vmem:[%s1 + $0xe8] sm:$0xf]
  %v90 = vld [vmem:[%s1 + $0xec] sm:$0xf]
  %v91 = vld [vmem:[%s1 + $0xf0] sm:$0xf]
  %v92 = vld [vmem:[%s1 + $0xf4] sm:$0xf]
  %v93 = vld [vmem:[%s1 + $0xf8] sm:$0xf]
  %v94 = vld [vmem:[%s1 + $0xfc] sm:$0xf]
  %v95 = vld [vmem:[%s1 + $0x100] sm:$0xf]
  %v96 = vld [vmem:[%s1 + $0x104] sm:$0xf]
  %v97 = vld [vmem:[%s1 + $0x108] sm:$0xf]
  %v98 = vld [vmem:[%s1 + $0x10c] sm:$0xf]
  %v99 = vld [vmem:[%s1 + $0x110] sm:$0xf]
  %v100 = vld [vmem:[%s1 + $0x114] sm:$0xf]
  %v101 = vld [vmem:[%s1 + $0x118] sm:$0xf]
  %v102 = vld [vmem:[%s1 + $0x11c] sm:$0xf]
  %v103 = vld [vmem:[%s1 + $0x120] sm:$0xf]
  %v104 = vld [vmem:[%s1 + $0x124] sm:$0xf]
  %v105 = vld [vmem:[%s1 + $0x128] sm:$0xf]
  %v106 = vld [vmem:[%s1 + $0x12c] sm:$0xf]
  %v107 = vld [vmem:[%s1 + $0x130] sm:$0xf]
  %v108 = vld [vmem:[%s1 + $0x134] sm:$0xf]
  %v109 = vld [vmem:[%s1 + $0x138] sm:$0xf]
  %v110 = vld [vmem:[%s1 + $0x13c] sm:$0xf]
  %v111 = vld [vmem:[%s1 + $0x140] sm:$0xf]
  %v112 = vld [vmem:[%s1 + $0x144] sm:$0xf]
  %v113 = vld [vmem:[%s1 + $0x148] sm:$0xf]
  %v114 = vld [vmem:[%s1 + $0x14c] sm:$0xf]
  %v115 = vld [vmem:[%s1 + $0x150] sm:$0xf]
  %v116 = vld [vmem:[%s1 + $0x154] sm:$0xf]
  %v117 = vld [vmem:[%s1 + $0x158] sm:$0xf]
  %v118 = vld [vmem:[%s1 + $0x15c] sm:$0xf]
  %v119 = vld [vmem:[%s1 + $0x160] sm:$0xf]
  %v120 = vld [vmem:[%s1 + $0x164] sm:$0xf]
  %v121 = vld [vmem:[%s1 + $0x168] sm:$0xf]
  %v122 = vld [vmem:[%s1 + $0x16c] sm:$0xf]
  %v123 = vld [vmem:[%s1 + $0x170] sm:$0xf]
  %v124 = vld [vmem:[%s1 + $0x174] sm:$0xf]
  %v125 = vld [vmem:[%s1 + $0x178] sm:$0xf]
  %v126 = vld [vmem:[%s1 + $0x17c] sm:$0xf]
  %v127 = vld [vmem:[%s1 + $0x180] sm:$0xf]
  %v128 = vld [vmem:[%s1 + $0x184] sm:$0xf]
  %v129 = vld [vmem:[%s1 + $0x188] sm:$0xf]
  %v130 = vld [vmem:[%s1 + $0x18c] sm:$0xf]
  %v131 = vld [vmem:[%s1 + $0x190] sm:$0xf]
  %v132 = vld [vmem:[%s1 + $0x194] sm:$0xf]
  %v133 = vld [vmem:[%s1 + $0x198] sm:$0xf]
  %v134 = vld [vmem:[%s1 + $0x19c] sm:$0xf]
  %v135 = vld [vmem:[%s1 + $0x1a0] sm:$0xf]
  %v136 = vld [vmem:[%s1 + $0x1a4] sm:$0xf]
  %v137 = vld [vmem:[%s1 + $0x1a8] sm:$0xf]
  %v138 = vld [vmem:[%s1 + $0x1ac] sm:$0xf]
  %v139 = vld [vmem:[%s1 + $0x1b0] sm:$0xf]
  %v140 = vld [vmem:[%s1 + $0x1b4] sm:$0xf]
  %v141 = vld [vmem:[%s1 + $0x1b8] sm:$0xf]
  %v142 = vld [vmem:[%s1 + $0x1bc] sm:$0xf]
  %v143 = vld [vmem:[%s1 + $0x1c0] sm:$0xf]
  %v144 = vld [vmem:[%s1 + $0x1c4] sm:$0xf]
  %v145 = vld [vmem:[%s1 + $0x1c8] sm:$0xf]
  %v146 = vld [vmem:[%s1 + $0x1cc] sm:$0xf]
  %v147 = vld [vmem:[%s1 + $0x1d0] sm:$0xf]
  %v148 = vld [vmem:[%s1 + $0x1d4] sm:$0xf]
  %v149 = vld [vmem:[%s1 + $0x1d8] sm:$0xf]
  %v150 = vld [vmem:[%s1 + $0x1dc] sm:$0xf]
  %v151 = vld [vmem:[%s1 + $0x1e0] sm:$0xf]
  %v152 = vld [vmem:[%s1 + $0x1e4] sm:$0xf]
  %v153 = vld [vmem:[%s1 + $0x1e8] sm:$0xf]
  %v154 = vld [vmem:[%s1 + $0x1ec] sm:$0xf]
  %v155 = vld [vmem:[%s1 + $0x1f0] sm:$0xf]
  %v156 = vld [vmem:[%s1 + $0x1f4] sm:$0xf]
  %v157 = vld [vmem:[%s1 + $0x1f8] sm:$0xf]
  %v158 = vld [vmem:[%s1 + $0x1fc] sm:$0xf]
  %v159 = vld [vmem:[%s1 + $0x200] sm:$0xf]
  %v160 = vld [vmem:[%s1 + $0x204] sm:$0xf]
  %v161 = vld [vmem:[%s1 + $0x208] sm:$0xf]
  %v162 = vld [vmem:[%s1 + $0x20c] sm:$0xf]
  %v163 = vld [vmem:[%s1 + $0x210] sm:$0xf]
  %v164 = vld [vmem:[%s1 + $0x214] sm:$0xf]
  %v165 = vld [vmem:[%s1 + $0x218] sm:$0xf]
  %v166 = vld [vmem:[%s1 + $0x21c] sm:$0xf]
  %v167 = vld [vmem:[%s1 + $0x220] sm:$0xf]
  %v168 = vld [vmem:[%s1 + $0x224] sm:$0xf]
  %v169 = vld [vmem:[%s1 + $0x228] sm:$0xf]
  %v170 = vld [vmem:[%s1 + $0x22c] sm:$0xf]
  %v171 = vld [vmem:[%s1 + $0x230] sm:$0xf]
  %v172 = vld [vmem:[%s1 + $0x234] sm:$0xf]
  %v173 = vld [vmem:[%s1 + $0x238] sm:$0xf]
  %v174 = vld [vmem:[%s1 + $0x23c] sm:$0xf]
  %v175 = vld [vmem:[%s2] sm:$0x1]
  %v177 = vlaneseq
  %v178 = vshrl.u32 %v177, 7
  %v179 = vsub.s32 0, %v178
  %v180 = vrot.slane %v175, %v179
  %v192 = vunpack.c.l.b16 %v21
  %v193 = vunpack.c.h.b16 %v21
  %v194 = vunpack.c.l.b16 %v22
  %v195 = vunpack.c.h.b16 %v22
  %v196 = vunpack.c.l.b16 %v23
  %v197 = vunpack.c.h.b16 %v23
  %v198 = vunpack.c.l.b16 %v24
  %v199 = vunpack.c.h.b16 %v24
  %v200 = vunpack.c.l.b16 %v25
  %v201 = vunpack.c.l.b16 %v26
  %v202 = vunpack.c.h.b16 %v26
  %v203 = vunpack.c.l.b16 %v27
  %v204 = vunpack.c.h.b16 %v27
  %v205 = vunpack.c.l.b16 %v28
  %v206 = vunpack.c.h.b16 %v28
  %v207 = vunpack.c.l.b16 %v29
  %v208 = vunpack.c.h.b16 %v29
  %v209 = vunpack.c.l.b16 %v30
  %v210 = vpack.c.b16 %v201, %v192
  %v211 = vpack.c.b16 %v202, %v193
  %v212 = vpack.c.b16 %v203, %v194
  %v213 = vpack.c.b16 %v204, %v195
  %v214 = vpack.c.b16 %v205, %v196
  %v215 = vpack.c.b16 %v206, %v197
  %v216 = vpack.c.b16 %v207, %v198
  %v217 = vpack.c.b16 %v208, %v199
  %v218 = vpack.c.b16 %v209, %v200
  %v372 = vunpack.c.l.b16 %v31
  %v373 = vunpack.c.l.b16 %v32
  %v374 = vunpack.c.l.b16 %v33
  %v375 = vunpack.c.l.b16 %v34
  %v376 = vunpack.c.l.b16 %v35
  %v377 = vunpack.c.l.b16 %v36
  %v378 = vunpack.c.l.b16 %v37
  %v379 = vunpack.c.l.b16 %v38
  %v380 = vunpack.c.l.b16 %v39
  %v381 = vunpack.c.l.b16 %v40
  %v382 = vunpack.c.l.b16 %v41
  %v383 = vunpack.c.l.b16 %v42
  %v384 = vunpack.c.l.b16 %v43
  %v385 = vunpack.c.l.b16 %v44
  %v386 = vunpack.c.l.b16 %v45
  %v387 = vunpack.c.l.b16 %v46
  %v388 = vunpack.c.l.b16 %v47
  %v389 = vunpack.c.l.b16 %v48
  %v390 = vunpack.c.l.b16 %v49
  %v391 = vunpack.c.l.b16 %v50
  %v392 = vunpack.c.l.b16 %v51
  %v393 = vunpack.c.l.b16 %v52
  %v394 = vunpack.c.l.b16 %v53
  %v395 = vunpack.c.l.b16 %v54
  %v396 = vunpack.c.l.b16 %v55
  %v397 = vunpack.c.l.b16 %v56
  %v398 = vunpack.c.l.b16 %v57
  %v399 = vunpack.c.l.b16 %v58
  %v400 = vunpack.c.l.b16 %v59
  %v401 = vunpack.c.l.b16 %v60
  %v402 = vunpack.c.l.b16 %v61
  %v403 = vunpack.c.l.b16 %v62
  %v404 = vunpack.c.l.b16 %v63
  %v405 = vunpack.c.l.b16 %v64
  %v406 = vunpack.c.l.b16 %v65
  %v407 = vunpack.c.l.b16 %v66
  %v408 = vunpack.c.l.b16 %v67
  %v409 = vunpack.c.l.b16 %v68
  %v410 = vunpack.c.l.b16 %v69
  %v411 = vunpack.c.l.b16 %v70
  %v412 = vunpack.c.l.b16 %v71
  %v413 = vunpack.c.l.b16 %v72
  %v414 = vunpack.c.l.b16 %v73
  %v415 = vunpack.c.l.b16 %v74
  %v416 = vunpack.c.l.b16 %v75
  %v417 = vunpack.c.l.b16 %v76
  %v418 = vunpack.c.l.b16 %v77
  %v419 = vunpack.c.l.b16 %v78
  %v420 = vunpack.c.l.b16 %v79
  %v421 = vunpack.c.l.b16 %v80
  %v422 = vunpack.c.l.b16 %v81
  %v423 = vunpack.c.l.b16 %v82
  %v424 = vunpack.c.l.b16 %v83
  %v425 = vunpack.c.l.b16 %v84
  %v426 = vunpack.c.l.b16 %v85
  %v427 = vunpack.c.l.b16 %v86
  %v428 = vunpack.c.l.b16 %v87
  %v429 = vunpack.c.l.b16 %v88
  %v430 = vunpack.c.l.b16 %v89
  %v431 = vunpack.c.l.b16 %v90
  %v432 = vunpack.c.l.b16 %v91
  %v433 = vunpack.c.l.b16 %v92
  %v434 = vunpack.c.l.b16 %v93
  %v435 = vunpack.c.l.b16 %v94
  %v436 = vunpack.c.l.b16 %v95
  %v437 = vunpack.c.l.b16 %v96
  %v438 = vunpack.c.l.b16 %v97
  %v439 = vunpack.c.l.b16 %v98
  %v440 = vunpack.c.l.b16 %v99
  %v441 = vunpack.c.l.b16 %v100
  %v442 = vunpack.c.l.b16 %v101
  %v443 = vunpack.c.l.b16 %v102
  %v444 = vunpack.c.l.b16 %v103
  %v445 = vunpack.c.l.b16 %v104
  %v446 = vunpack.c.l.b16 %v105
  %v447 = vunpack.c.l.b16 %v106
  %v448 = vunpack.c.l.b16 %v107
  %v449 = vunpack.c.l.b16 %v108
  %v450 = vunpack.c.l.b16 %v109
  %v451 = vunpack.c.l.b16 %v110
  %v452 = vunpack.c.l.b16 %v111
  %v453 = vunpack.c.l.b16 %v112
  %v454 = vunpack.c.l.b16 %v113
  %v455 = vunpack.c.l.b16 %v114
  %v456 = vunpack.c.l.b16 %v115
  %v457 = vunpack.c.l.b16 %v116
  %v458 = vunpack.c.l.b16 %v117
  %v459 = vunpack.c.l.b16 %v118
  %v460 = vunpack.c.l.b16 %v119
  %v461 = vunpack.c.l.b16 %v120
  %v462 = vunpack.c.l.b16 %v121
  %v463 = vunpack.c.l.b16 %v122
  %v464 = vunpack.c.l.b16 %v123
  %v465 = vunpack.c.l.b16 %v124
  %v466 = vunpack.c.l.b16 %v125
  %v467 = vunpack.c.l.b16 %v126
  %v468 = vunpack.c.l.b16 %v127
  %v469 = vunpack.c.l.b16 %v128
  %v470 = vunpack.c.l.b16 %v129
  %v471 = vunpack.c.l.b16 %v130
  %v472 = vunpack.c.l.b16 %v131
  %v473 = vunpack.c.l.b16 %v132
  %v474 = vunpack.c.l.b16 %v133
  %v475 = vunpack.c.l.b16 %v134
  %v476 = vunpack.c.l.b16 %v135
  %v477 = vunpack.c.l.b16 %v136
  %v478 = vunpack.c.l.b16 %v137
  %v479 = vunpack.c.l.b16 %v138
  %v480 = vunpack.c.l.b16 %v139
  %v481 = vunpack.c.l.b16 %v140
  %v482 = vunpack.c.l.b16 %v141
  %v483 = vunpack.c.l.b16 %v142
  %v484 = vunpack.c.l.b16 %v143
  %v485 = vunpack.c.l.b16 %v144
  %v486 = vunpack.c.l.b16 %v145
  %v487 = vunpack.c.l.b16 %v146
  %v488 = vunpack.c.l.b16 %v147
  %v489 = vunpack.c.l.b16 %v148
  %v490 = vunpack.c.l.b16 %v149
  %v491 = vunpack.c.l.b16 %v150
  %v492 = vunpack.c.l.b16 %v151
  %v493 = vunpack.c.l.b16 %v152
  %v494 = vunpack.c.l.b16 %v153
  %v495 = vunpack.c.l.b16 %v154
  %v496 = vunpack.c.l.b16 %v155
  %v497 = vunpack.c.l.b16 %v156
  %v498 = vunpack.c.l.b16 %v157
  %v499 = vunpack.c.l.b16 %v158
  %v500 = vunpack.c.l.b16 %v159
  %v501 = vunpack.c.l.b16 %v160
  %v502 = vunpack.c.l.b16 %v161
  %v503 = vunpack.c.l.b16 %v162
  %v504 = vunpack.c.l.b16 %v163
  %v505 = vunpack.c.l.b16 %v164
  %v506 = vunpack.c.l.b16 %v165
  %v507 = vunpack.c.l.b16 %v166
  %v508 = vunpack.c.l.b16 %v167
  %v509 = vunpack.c.l.b16 %v168
  %v510 = vunpack.c.l.b16 %v169
  %v511 = vunpack.c.l.b16 %v170
  %v512 = vunpack.c.l.b16 %v171
  %v513 = vunpack.c.l.b16 %v172
  %v514 = vunpack.c.l.b16 %v173
  %v515 = vunpack.c.l.b16 %v174
  %v516 = vpack.c.b16 %v373, %v372
  %v517 = vpack.c.b16 %v375, %v374
  %v518 = vpack.c.b16 %v377, %v376
  %v519 = vpack.c.b16 %v379, %v378
  %v520 = vpack.c.b16 %v381, %v380
  %v521 = vpack.c.b16 %v383, %v382
  %v522 = vpack.c.b16 %v385, %v384
  %v523 = vpack.c.b16 %v387, %v386
  %v524 = vpack.c.b16 %v389, %v388
  %v525 = vpack.c.b16 %v391, %v390
  %v526 = vpack.c.b16 %v393, %v392
  %v527 = vpack.c.b16 %v395, %v394
  %v528 = vpack.c.b16 %v397, %v396
  %v529 = vpack.c.b16 %v399, %v398
  %v530 = vpack.c.b16 %v401, %v400
  %v531 = vpack.c.b16 %v403, %v402
  %v532 = vpack.c.b16 %v405, %v404
  %v533 = vpack.c.b16 %v407, %v406
  %v534 = vpack.c.b16 %v409, %v408
  %v535 = vpack.c.b16 %v411, %v410
  %v536 = vpack.c.b16 %v413, %v412
  %v537 = vpack.c.b16 %v415, %v414
  %v538 = vpack.c.b16 %v417, %v416
  %v539 = vpack.c.b16 %v419, %v418
  %v540 = vpack.c.b16 %v421, %v420
  %v541 = vpack.c.b16 %v423, %v422
  %v542 = vpack.c.b16 %v425, %v424
  %v543 = vpack.c.b16 %v427, %v426
  %v544 = vpack.c.b16 %v429, %v428
  %v545 = vpack.c.b16 %v431, %v430
  %v546 = vpack.c.b16 %v433, %v432
  %v547 = vpack.c.b16 %v435, %v434
  %v548 = vpack.c.b16 %v437, %v436
  %v549 = vpack.c.b16 %v439, %v438
  %v550 = vpack.c.b16 %v441, %v440
  %v551 = vpack.c.b16 %v443, %v442
  %v552 = vpack.c.b16 %v445, %v444
  %v553 = vpack.c.b16 %v447, %v446
  %v554 = vpack.c.b16 %v449, %v448
  %v555 = vpack.c.b16 %v451, %v450
  %v556 = vpack.c.b16 %v453, %v452
  %v557 = vpack.c.b16 %v455, %v454
  %v558 = vpack.c.b16 %v457, %v456
  %v559 = vpack.c.b16 %v459, %v458
  %v560 = vpack.c.b16 %v461, %v460
  %v561 = vpack.c.b16 %v463, %v462
  %v562 = vpack.c.b16 %v465, %v464
  %v563 = vpack.c.b16 %v467, %v466
  %v564 = vpack.c.b16 %v469, %v468
  %v565 = vpack.c.b16 %v471, %v470
  %v566 = vpack.c.b16 %v473, %v472
  %v567 = vpack.c.b16 %v475, %v474
  %v568 = vpack.c.b16 %v477, %v476
  %v569 = vpack.c.b16 %v479, %v478
  %v570 = vpack.c.b16 %v481, %v480
  %v571 = vpack.c.b16 %v483, %v482
  %v572 = vpack.c.b16 %v485, %v484
  %v573 = vpack.c.b16 %v487, %v486
  %v574 = vpack.c.b16 %v489, %v488
  %v575 = vpack.c.b16 %v491, %v490
  %v576 = vpack.c.b16 %v493, %v492
  %v577 = vpack.c.b16 %v495, %v494
  %v578 = vpack.c.b16 %v497, %v496
  %v579 = vpack.c.b16 %v499, %v498
  %v580 = vpack.c.b16 %v501, %v500
  %v581 = vpack.c.b16 %v503, %v502
  %v582 = vpack.c.b16 %v505, %v504
  %v583 = vpack.c.b16 %v507, %v506
  %v584 = vpack.c.b16 %v509, %v508
  %v585 = vpack.c.b16 %v511, %v510
  %v586 = vpack.c.b16 %v513, %v512
  %v587 = vpack.c.b16 %v515, %v514
  %660 = vmatprep.subr.bf16.mxu0 0
  %661 = vmatpush1.bf16.msra.mxu0 %v516
  %662 = vmatprep.subr.bf16.mxu0 0
  %663 = vmatpush1.bf16.msra.mxu0 %v517
  %664 = vmatprep.subr.bf16.mxu0 0
  %665 = vmatpush1.bf16.msra.mxu0 %v518
  %666 = vmatprep.subr.bf16.mxu0 0
  %667 = vmatpush1.bf16.msra.mxu0 %v519
  %668 = vmatprep.subr.bf16.mxu0 0
  %669 = vmatpush1.bf16.msra.mxu0 %v520
  %670 = vmatprep.subr.bf16.mxu0 0
  %671 = vmatpush1.bf16.msra.mxu0 %v521
  %672 = vmatprep.subr.bf16.mxu0 0
  %673 = vmatpush1.bf16.msra.mxu0 %v522
  %674 = vmatprep.subr.bf16.mxu0 0
  %675 = vmatpush1.bf16.msra.mxu0 %v523
  %676 = vmatprep.subr.bf16.mxu0 0
  %677 = vmatpush1.bf16.msra.mxu0 %v524
  %678 = vmatprep.subr.bf16.mxu0 0
  %679 = vmatpush1.bf16.msra.mxu0 %v525
  %680 = vmatprep.subr.bf16.mxu0 0
  %681 = vmatpush1.bf16.msra.mxu0 %v526
  %682 = vmatprep.subr.bf16.mxu0 0
  %683 = vmatpush1.bf16.msra.mxu0 %v527
  %684 = vmatprep.subr.bf16.mxu0 0
  %685 = vmatpush1.bf16.msra.mxu0 %v528
  %686 = vmatprep.subr.bf16.mxu0 0
  %687 = vmatpush1.bf16.msra.mxu0 %v529
  %688 = vmatprep.subr.bf16.mxu0 0
  %689 = vmatpush1.bf16.msra.mxu0 %v530
  %690 = vmatprep.subr.bf16.mxu0 0
  %691 = vmatpush1.bf16.msra.mxu0 %v531
  %692 = vmatprep.mubr.bf16.mxu0 %v211
  %693 = vmatmul.mubr.bf16.gmra.mrb[0].mxu0 %v210
  %v694 = vpop.f32.mrb[0].mxu0
  %v695 = vadd.f32 %v180, %v694
  %v696 = vpop.f32.mrb[0].mxu0
  %v697 = vpop.f32.mrb[0].mxu0
  %v698 = vadd.f32 %v180, %v697
  %v699 = vpop.f32.mrb[0].mxu0
  %700 = vdwg.mxu0
  %701 = vmatprep.subr.bf16.mxu0 0
  %702 = vmatpush1.bf16.msra.mxu0 %v532
  %703 = vmatprep.subr.bf16.mxu0 0
  %704 = vmatpush1.bf16.msra.mxu0 %v533
  %705 = vmatprep.subr.bf16.mxu0 0
  %706 = vmatpush1.bf16.msra.mxu0 %v534
  %707 = vmatprep.subr.bf16.mxu0 0
  %708 = vmatpush1.bf16.msra.mxu0 %v535
  %709 = vmatprep.subr.bf16.mxu0 0
  %710 = vmatpush1.bf16.msra.mxu0 %v536
  %711 = vmatprep.subr.bf16.mxu0 0
  %712 = vmatpush1.bf16.msra.mxu0 %v537
  %713 = vmatprep.subr.bf16.mxu0 0
  %714 = vmatpush1.bf16.msra.mxu0 %v538
  %715 = vmatprep.subr.bf16.mxu0 0
  %716 = vmatpush1.bf16.msra.mxu0 %v539
  %717 = vmatprep.subr.bf16.mxu0 0
  %718 = vmatpush1.bf16.msra.mxu0 %v540
  %719 = vmatprep.subr.bf16.mxu0 0
  %720 = vmatpush1.bf16.msra.mxu0 %v541
  %721 = vmatprep.subr.bf16.mxu0 0
  %722 = vmatpush1.bf16.msra.mxu0 %v542
  %723 = vmatprep.subr.bf16.mxu0 0
  %724 = vmatpush1.bf16.msra.mxu0 %v543
  %725 = vmatprep.subr.bf16.mxu0 0
  %726 = vmatpush1.bf16.msra.mxu0 %v544
  %727 = vmatprep.subr.bf16.mxu0 0
  %728 = vmatpush1.bf16.msra.mxu0 %v545
  %729 = vmatprep.subr.bf16.mxu0 0
  %730 = vmatpush1.bf16.msra.mxu0 %v546
  %731 = vmatprep.subr.bf16.mxu0 0
  %732 = vmatpush1.bf16.msra.mxu0 %v547
  %733 = vmatprep.mubr.bf16.mxu0 %v213
  %734 = vmatmul.mubr.bf16.gmra.mrb[0].mxu0 %v212
  %v735 = vpop.f32.mrb[0].mxu0
  %v736 = vadd.f32 %v695, %v735
  %v737 = vpop.f32.mrb[0].mxu0
  %v738 = vpop.f32.mrb[0].mxu0
  %v739 = vadd.f32 %v698, %v738
  %v740 = vpop.f32.mrb[0].mxu0
  %741 = vdwg.mxu0
  %742 = vmatprep.subr.bf16.mxu0 0
  %743 = vmatpush1.bf16.msra.mxu0 %v548
  %744 = vmatprep.subr.bf16.mxu0 0
  %745 = vmatpush1.bf16.msra.mxu0 %v549
  %746 = vmatprep.subr.bf16.mxu0 0
  %747 = vmatpush1.bf16.msra.mxu0 %v550
  %748 = vmatprep.subr.bf16.mxu0 0
  %749 = vmatpush1.bf16.msra.mxu0 %v551
  %750 = vmatprep.subr.bf16.mxu0 0
  %751 = vmatpush1.bf16.msra.mxu0 %v552
  %752 = vmatprep.subr.bf16.mxu0 0
  %753 = vmatpush1.bf16.msra.mxu0 %v553
  %754 = vmatprep.subr.bf16.mxu0 0
  %755 = vmatpush1.bf16.msra.mxu0 %v554
  %756 = vmatprep.subr.bf16.mxu0 0
  %757 = vmatpush1.bf16.msra.mxu0 %v555
  %758 = vmatprep.subr.bf16.mxu0 0
  %759 = vmatpush1.bf16.msra.mxu0 %v556
  %760 = vmatprep.subr.bf16.mxu0 0
  %761 = vmatpush1.bf16.msra.mxu0 %v557
  %762 = vmatprep.subr.bf16.mxu0 0
  %763 = vmatpush1.bf16.msra.mxu0 %v558
  %764 = vmatprep.subr.bf16.mxu0 0
  %765 = vmatpush1.bf16.msra.mxu0 %v559
  %766 = vmatprep.subr.bf16.mxu0 0
  %767 = vmatpush1.bf16.msra.mxu0 %v560
  %768 = vmatprep.subr.bf16.mxu0 0
  %769 = vmatpush1.bf16.msra.mxu0 %v561
  %770 = vmatprep.subr.bf16.mxu0 0
  %771 = vmatpush1.bf16.msra.mxu0 %v562
  %772 = vmatprep.subr.bf16.mxu0 0
  %773 = vmatpush1.bf16.msra.mxu0 %v563
  %774 = vmatprep.mubr.bf16.mxu0 %v215
  %775 = vmatmul.mubr.bf16.gmra.mrb[0].mxu0 %v214
  %v776 = vpop.f32.mrb[0].mxu0
  %v777 = vadd.f32 %v736, %v776
  %v778 = vpop.f32.mrb[0].mxu0
  %v779 = vpop.f32.mrb[0].mxu0
  %v780 = vadd.f32 %v739, %v779
  %v781 = vpop.f32.mrb[0].mxu0
  %782 = vdwg.mxu0
  %783 = vmatprep.subr.bf16.mxu0 0
  %784 = vmatpush1.bf16.msra.mxu0 %v564
  %785 = vmatprep.subr.bf16.mxu0 0
  %786 = vmatpush1.bf16.msra.mxu0 %v565
  %787 = vmatprep.subr.bf16.mxu0 0
  %788 = vmatpush1.bf16.msra.mxu0 %v566
  %789 = vmatprep.subr.bf16.mxu0 0
  %790 = vmatpush1.bf16.msra.mxu0 %v567
  %791 = vmatprep.subr.bf16.mxu0 0
  %792 = vmatpush1.bf16.msra.mxu0 %v568
  %793 = vmatprep.subr.bf16.mxu0 0
  %794 = vmatpush1.bf16.msra.mxu0 %v569
  %795 = vmatprep.subr.bf16.mxu0 0
  %796 = vmatpush1.bf16.msra.mxu0 %v570
  %797 = vmatprep.subr.bf16.mxu0 0
  %798 = vmatpush1.bf16.msra.mxu0 %v571
  %799 = vmatprep.subr.bf16.mxu0 0
  %800 = vmatpush1.bf16.msra.mxu0 %v572
  %801 = vmatprep.subr.bf16.mxu0 0
  %802 = vmatpush1.bf16.msra.mxu0 %v573
  %803 = vmatprep.subr.bf16.mxu0 0
  %804 = vmatpush1.bf16.msra.mxu0 %v574
  %805 = vmatprep.subr.bf16.mxu0 0
  %806 = vmatpush1.bf16.msra.mxu0 %v575
  %807 = vmatprep.subr.bf16.mxu0 0
  %808 = vmatpush1.bf16.msra.mxu0 %v576
  %809 = vmatprep.subr.bf16.mxu0 0
  %810 = vmatpush1.bf16.msra.mxu0 %v577
  %811 = vmatprep.subr.bf16.mxu0 0
  %812 = vmatpush1.bf16.msra.mxu0 %v578
  %813 = vmatprep.subr.bf16.mxu0 0
  %814 = vmatpush1.bf16.msra.mxu0 %v579
  %815 = vmatprep.mubr.bf16.mxu0 %v217
  %816 = vmatmul.mubr.bf16.gmra.mrb[0].mxu0 %v216
  %v817 = vpop.f32.mrb[0].mxu0
  %v818 = vadd.f32 %v777, %v817
  %v819 = vpop.f32.mrb[0].mxu0
  %v820 = vpop.f32.mrb[0].mxu0
  %v821 = vadd.f32 %v780, %v820
  %v822 = vpop.f32.mrb[0].mxu0
  %823 = vdwg.mxu0
  %824 = vmatprep.subr.bf16.mxu0 0
  %825 = vmatpush1.bf16.msra.mxu0 %v580
  %826 = vmatprep.subr.bf16.mxu0 0
  %827 = vmatpush1.bf16.msra.mxu0 %v581
  %828 = vmatprep.subr.bf16.mxu0 0
  %829 = vmatpush1.bf16.msra.mxu0 %v582
  %830 = vmatprep.subr.bf16.mxu0 0
  %831 = vmatpush1.bf16.msra.mxu0 %v583
  %832 = vmatprep.subr.bf16.mxu0 0
  %833 = vmatpush1.bf16.msra.mxu0 %v584
  %834 = vmatprep.subr.bf16.mxu0 0
  %835 = vmatpush1.bf16.msra.mxu0 %v585
  %836 = vmatprep.subr.bf16.mxu0 0
  %837 = vmatpush1.bf16.msra.mxu0 %v586
  %838 = vmatprep.subr.bf16.mxu0 0
  %839 = vmatpush1.bf16.msra.mxu0 %v587
  %840 = vmatprep.subr.bf16.mxu0 0
  %841 = vmatpush1.bf16.msra.mxu0 0
  %842 = vmatprep.subr.bf16.mxu0 0
  %843 = vmatpush1.bf16.msra.mxu0 0
  %844 = vmatprep.subr.bf16.mxu0 0
  %845 = vmatpush1.bf16.msra.mxu0 0
  %846 = vmatprep.subr.bf16.mxu0 0
  %847 = vmatpush1.bf16.msra.mxu0 0
  %848 = vmatprep.subr.bf16.mxu0 0
  %849 = vmatpush1.bf16.msra.mxu0 0
  %850 = vmatprep.subr.bf16.mxu0 0
  %851 = vmatpush1.bf16.msra.mxu0 0
  %852 = vmatprep.subr.bf16.mxu0 0
  %853 = vmatpush1.bf16.msra.mxu0 0
  %854 = vmatprep.subr.bf16.mxu0 0
  %855 = vmatpush1.bf16.msra.mxu0 0
  %856 = vmatprep.mubr.bf16.mxu0 0
  %857 = vmatmul.mubr.bf16.gmra.mrb[0].mxu0 %v218
  %v858 = vpop.f32.mrb[0].mxu0
  %v859 = vadd.f32 %v818, %v858
  %v860 = vpop.f32.mrb[0].mxu0
  %v861 = vpop.f32.mrb[0].mxu0
  %v862 = vadd.f32 %v821, %v861
  %v863 = vpop.f32.mrb[0].mxu0
  %864 = vdwg.mxu0
  %vm865 = vcmp.ge.f32.partialorder %v859, 0.0
  %vm866 = vcmp.ge.f32.partialorder %v862, 0.0
  %v867 = vmul.f32 %v859, 0.2
  %v868 = vmul.f32 %v862, 0.2
  %v869 = vsel %vm865, %v859, %v867
  %v870 = vsel %vm866, %v862, %v868
  %v871 = vld [vmem:[%s3] sm:$0x1]
  %v873 = vlaneseq
  %v874 = vshrl.u32 %v873, 7
  %v875 = vsub.s32 0, %v874
  %v876 = vrot.slane %v871, %v875
  %v878 = vmul.f32 %v869, %v876
  %v879 = vmul.f32 %v870, %v876
  %v880 = vld [vmem:[%s4] sm:$0x1]
  %v882 = vlaneseq
  %v883 = vshrl.u32 %v882, 7
  %v884 = vsub.s32 0, %v883
  %v885 = vrot.slane %v880, %v884
  %v887 = vadd.f32 %v878, %v885
  %v888 = vadd.f32 %v879, %v885
  %v889 = vpack.c.bf16 %v888, %v887
  %v891 = vunpack.c.l.b16 %v889
  %v892 = vunpack.c.h.b16 %v889
  %v893 = vpack.c.b16 %v891, %v891
  %v894 = vpack.c.b16 %v892, %v892
  %897 = vst [vmem:[%s5] sm:$0xf] %v893
  %898 = vst [vmem:[%s5 + $0x4] sm:$0xf] %v894
  // Predicated region
  $region22: #{single_disc_forward.10} parent=0 // pred_check
    _
  $region23: #{single_disc_forward.10} parent=0 // pred_check_branch
    %900 = sbr.rel (0) target = $region25
  $region24: #{single_disc_forward.10} parent=0 // pred_region
    _
  $region25: #{single_disc_forward.10} parent=0 // pred_fallthru
    _
  // Predicated region
  $region26: #{single_disc_forward.10} parent=0 // pred_check
    _
  $region27: #{single_disc_forward.10} parent=0 // pred_check_branch
    %902 = sbr.rel (0) target = $region29
  $region28: #{single_disc_forward.10} parent=0 // pred_region
    _
  $region29: #{single_disc_forward.10} parent=0 // pred_fallthru
    _

// kernel: single_disc_forward.11
$region0: #{single_disc_forward.11}
  #allocation0 [shape = 'u32[]', space=smem, size = 0x4, offset = 0x4, fixed_abs, tag = 'smem constant byte address 0x4 - core index']
  #allocation1 [shape = 'u32[144,128]{1,0:T(1,128)}', space=vmem, size = 0x12000, scoped, tag = 'internal scratch']
  %s0 = inlined_call_operand.vmem [shape: bf16[8,1152], index: 0, kind: input, shape index: {}]
  %s1 = inlined_call_operand.vmem [shape: bf16[1152,128], index: 1, kind: input, shape index: {}]
  %s2 = inlined_call_operand.vmem [shape: f32[1,128], index: 2, kind: input, shape index: {}]
  %s3 = inlined_call_operand.vmem [shape: f32[1,128], index: 3, kind: input, shape index: {}]
  %s4 = inlined_call_operand.vmem [shape: f32[1,128], index: 4, kind: input, shape index: {}]
  %s5 = inlined_call_operand.vmem [shape: bf16[8,128], index: 5, kind: output, shape index: {}]
  %s6 = sld [smem:[#allocation0]]
  $region30: #{single_disc_forward.11} parent=0
    _
  %s8 = ssub.s32 1, %s6
  %s9 = scalar_select 0, %s8, %s6
  // Predicated region
  $region2: #{single_disc_forward.11} parent=0 // pred_check
    _
  $region3: #{single_disc_forward.11} parent=0 // pred_check_branch
    %11 = sbr.rel (0) target = $region5
  $region4: #{single_disc_forward.11} parent=0 // pred_region
    _
  $region5: #{single_disc_forward.11} parent=0 // pred_fallthru
    _
  // Predicated region
  $region6: #{single_disc_forward.11} parent=0 // pred_check
    _
  $region7: #{single_disc_forward.11} parent=0 // pred_check_branch
    %13 = sbr.rel (0) target = $region9
  $region8: #{single_disc_forward.11} parent=0 // pred_region
    _
  $region9: #{single_disc_forward.11} parent=0 // pred_fallthru
    _
  // Predicated region
  $region10: #{single_disc_forward.11} parent=0 // pred_check
    _
  $region11: #{single_disc_forward.11} parent=0 // pred_check_branch
    %15 = sbr.rel (0) target = $region13
  $region12: #{single_disc_forward.11} parent=0 // pred_region
    _
  $region13: #{single_disc_forward.11} parent=0 // pred_fallthru
    _
  // Predicated region
  $region14: #{single_disc_forward.11} parent=0 // pred_check
    _
  $region15: #{single_disc_forward.11} parent=0 // pred_check_branch
    %17 = sbr.rel (0) target = $region17
  $region16: #{single_disc_forward.11} parent=0 // pred_region
    _
  $region17: #{single_disc_forward.11} parent=0 // pred_fallthru
    _
  // Predicated region
  $region18: #{single_disc_forward.11} parent=0 // pred_check
    _
  $region19: #{single_disc_forward.11} parent=0 // pred_check_branch
    %19 = sbr.rel (0) target = $region21
  $region20: #{single_disc_forward.11} parent=0 // pred_region
    _
  $region21: #{single_disc_forward.11} parent=0 // pred_fallthru
    _
  %v21 = vld [vmem:[%s0] sm:$0xff]
  %v22 = vld [vmem:[%s0 + $0x8] sm:$0xff]
  %v23 = vld [vmem:[%s0 + $0x10] sm:$0xff]
  %v24 = vld [vmem:[%s0 + $0x18] sm:$0xff]
  %v25 = vld [vmem:[%s0 + $0x20] sm:$0xf]
  %v26 = vld [vmem:[%s1] sm:$0xf]
  %v27 = vld [vmem:[%s1 + $0x4] sm:$0xf]
  %v28 = vld [vmem:[%s1 + $0x8] sm:$0xf]
  %v29 = vld [vmem:[%s1 + $0xc] sm:$0xf]
  %v30 = vld [vmem:[%s1 + $0x10] sm:$0xf]
  %v31 = vld [vmem:[%s1 + $0x14] sm:$0xf]
  %v32 = vld [vmem:[%s1 + $0x18] sm:$0xf]
  %v33 = vld [vmem:[%s1 + $0x1c] sm:$0xf]
  %v34 = vld [vmem:[%s1 + $0x20] sm:$0xf]
  %v35 = vld [vmem:[%s1 + $0x24] sm:$0xf]
  %v36 = vld [vmem:[%s1 + $0x28] sm:$0xf]
  %v37 = vld [vmem:[%s1 + $0x2c] sm:$0xf]
  %v38 = vld [vmem:[%s1 + $0x30] sm:$0xf]
  %v39 = vld [vmem:[%s1 + $0x34] sm:$0xf]
  %v40 = vld [vmem:[%s1 + $0x38] sm:$0xf]
  %v41 = vld [vmem:[%s1 + $0x3c] sm:$0xf]
  %v42 = vld [vmem:[%s1 + $0x40] sm:$0xf]
  %v43 = vld [vmem:[%s1 + $0x44] sm:$0xf]
  %v44 = vld [vmem:[%s1 + $0x48] sm:$0xf]
  %v45 = vld [vmem:[%s1 + $0x4c] sm:$0xf]
  %v46 = vld [vmem:[%s1 + $0x50] sm:$0xf]
  %v47 = vld [vmem:[%s1 + $0x54] sm:$0xf]
  %v48 = vld [vmem:[%s1 + $0x58] sm:$0xf]
  %v49 = vld [vmem:[%s1 + $0x5c] sm:$0xf]
  %v50 = vld [vmem:[%s1 + $0x60] sm:$0xf]
  %v51 = vld [vmem:[%s1 + $0x64] sm:$0xf]
  %v52 = vld [vmem:[%s1 + $0x68] sm:$0xf]
  %v53 = vld [vmem:[%s1 + $0x6c] sm:$0xf]
  %v54 = vld [vmem:[%s1 + $0x70] sm:$0xf]
  %v55 = vld [vmem:[%s1 + $0x74] sm:$0xf]
  %v56 = vld [vmem:[%s1 + $0x78] sm:$0xf]
  %v57 = vld [vmem:[%s1 + $0x7c] sm:$0xf]
  %v58 = vld [vmem:[%s1 + $0x80] sm:$0xf]
  %v59 = vld [vmem:[%s1 + $0x84] sm:$0xf]
  %v60 = vld [vmem:[%s1 + $0x88] sm:$0xf]
  %v61 = vld [vmem:[%s1 + $0x8c] sm:$0xf]
  %v62 = vld [vmem:[%s1 + $0x90] sm:$0xf]
  %v63 = vld [vmem:[%s1 + $0x94] sm:$0xf]
  %v64 = vld [vmem:[%s1 + $0x98] sm:$0xf]
  %v65 = vld [vmem:[%s1 + $0x9c] sm:$0xf]
  %v66 = vld [vmem:[%s1 + $0xa0] sm:$0xf]
  %v67 = vld [vmem:[%s1 + $0xa4] sm:$0xf]
  %v68 = vld [vmem:[%s1 + $0xa8] sm:$0xf]
  %v69 = vld [vmem:[%s1 + $0xac] sm:$0xf]
  %v70 = vld [vmem:[%s1 + $0xb0] sm:$0xf]
  %v71 = vld [vmem:[%s1 + $0xb4] sm:$0xf]
  %v72 = vld [vmem:[%s1 + $0xb8] sm:$0xf]
  %v73 = vld [vmem:[%s1 + $0xbc] sm:$0xf]
  %v74 = vld [vmem:[%s1 + $0xc0] sm:$0xf]
  %v75 = vld [vmem:[%s1 + $0xc4] sm:$0xf]
  %v76 = vld [vmem:[%s1 + $0xc8] sm:$0xf]
  %v77 = vld [vmem:[%s1 + $0xcc] sm:$0xf]
  %v78 = vld [vmem:[%s1 + $0xd0] sm:$0xf]
  %v79 = vld [vmem:[%s1 + $0xd4] sm:$0xf]
  %v80 = vld [vmem:[%s1 + $0xd8] sm:$0xf]
  %v81 = vld [vmem:[%s1 + $0xdc] sm:$0xf]
  %v82 = vld [vmem:[%s1 + $0xe0] sm:$0xf]
  %v83 = vld [vmem:[%s1 + $0xe4] sm:$0xf]
  %v84 = vld [vmem:[%s1 + $0xe8] sm:$0xf]
  %v85 = vld [vmem:[%s1 + $0xec] sm:$0xf]
  %v86 = vld [vmem:[%s1 + $0xf0] sm:$0xf]
  %v87 = vld [vmem:[%s1 + $0xf4] sm:$0xf]
  %v88 = vld [vmem:[%s1 + $0xf8] sm:$0xf]
  %v89 = vld [vmem:[%s1 + $0xfc] sm:$0xf]
  %v90 = vld [vmem:[%s1 + $0x100] sm:$0xf]
  %v91 = vld [vmem:[%s1 + $0x104] sm:$0xf]
  %v92 = vld [vmem:[%s1 + $0x108] sm:$0xf]
  %v93 = vld [vmem:[%s1 + $0x10c] sm:$0xf]
  %v94 = vld [vmem:[%s1 + $0x110] sm:$0xf]
  %v95 = vld [vmem:[%s1 + $0x114] sm:$0xf]
  %v96 = vld [vmem:[%s1 + $0x118] sm:$0xf]
  %v97 = vld [vmem:[%s1 + $0x11c] sm:$0xf]
  %v98 = vld [vmem:[%s1 + $0x120] sm:$0xf]
  %v99 = vld [vmem:[%s1 + $0x124] sm:$0xf]
  %v100 = vld [vmem:[%s1 + $0x128] sm:$0xf]
  %v101 = vld [vmem:[%s1 + $0x12c] sm:$0xf]
  %v102 = vld [vmem:[%s1 + $0x130] sm:$0xf]
  %v103 = vld [vmem:[%s1 + $0x134] sm:$0xf]
  %v104 = vld [vmem:[%s1 + $0x138] sm:$0xf]
  %v105 = vld [vmem:[%s1 + $0x13c] sm:$0xf]
  %v106 = vld [vmem:[%s1 + $0x140] sm:$0xf]
  %v107 = vld [vmem:[%s1 + $0x144] sm:$0xf]
  %v108 = vld [vmem:[%s1 + $0x148] sm:$0xf]
  %v109 = vld [vmem:[%s1 + $0x14c] sm:$0xf]
  %v110 = vld [vmem:[%s1 + $0x150] sm:$0xf]
  %v111 = vld [vmem:[%s1 + $0x154] sm:$0xf]
  %v112 = vld [vmem:[%s1 + $0x158] sm:$0xf]
  %v113 = vld [vmem:[%s1 + $0x15c] sm:$0xf]
  %v114 = vld [vmem:[%s1 + $0x160] sm:$0xf]
  %v115 = vld [vmem:[%s1 + $0x164] sm:$0xf]
  %v116 = vld [vmem:[%s1 + $0x168] sm:$0xf]
  %v117 = vld [vmem:[%s1 + $0x16c] sm:$0xf]
  %v118 = vld [vmem:[%s1 + $0x170] sm:$0xf]
  %v119 = vld [vmem:[%s1 + $0x174] sm:$0xf]
  %v120 = vld [vmem:[%s1 + $0x178] sm:$0xf]
  %v121 = vld [vmem:[%s1 + $0x17c] sm:$0xf]
  %v122 = vld [vmem:[%s1 + $0x180] sm:$0xf]
  %v123 = vld [vmem:[%s1 + $0x184] sm:$0xf]
  %v124 = vld [vmem:[%s1 + $0x188] sm:$0xf]
  %v125 = vld [vmem:[%s1 + $0x18c] sm:$0xf]
  %v126 = vld [vmem:[%s1 + $0x190] sm:$0xf]
  %v127 = vld [vmem:[%s1 + $0x194] sm:$0xf]
  %v128 = vld [vmem:[%s1 + $0x198] sm:$0xf]
  %v129 = vld [vmem:[%s1 + $0x19c] sm:$0xf]
  %v130 = vld [vmem:[%s1 + $0x1a0] sm:$0xf]
  %v131 = vld [vmem:[%s1 + $0x1a4] sm:$0xf]
  %v132 = vld [vmem:[%s1 + $0x1a8] sm:$0xf]
  %v133 = vld [vmem:[%s1 + $0x1ac] sm:$0xf]
  %v134 = vld [vmem:[%s1 + $0x1b0] sm:$0xf]
  %v135 = vld [vmem:[%s1 + $0x1b4] sm:$0xf]
  %v136 = vld [vmem:[%s1 + $0x1b8] sm:$0xf]
  %v137 = vld [vmem:[%s1 + $0x1bc] sm:$0xf]
  %v138 = vld [vmem:[%s1 + $0x1c0] sm:$0xf]
  %v139 = vld [vmem:[%s1 + $0x1c4] sm:$0xf]
  %v140 = vld [vmem:[%s1 + $0x1c8] sm:$0xf]
  %v141 = vld [vmem:[%s1 + $0x1cc] sm:$0xf]
  %v142 = vld [vmem:[%s1 + $0x1d0] sm:$0xf]
  %v143 = vld [vmem:[%s1 + $0x1d4] sm:$0xf]
  %v144 = vld [vmem:[%s1 + $0x1d8] sm:$0xf]
  %v145 = vld [vmem:[%s1 + $0x1dc] sm:$0xf]
  %v146 = vld [vmem:[%s1 + $0x1e0] sm:$0xf]
  %v147 = vld [vmem:[%s1 + $0x1e4] sm:$0xf]
  %v148 = vld [vmem:[%s1 + $0x1e8] sm:$0xf]
  %v149 = vld [vmem:[%s1 + $0x1ec] sm:$0xf]
  %v150 = vld [vmem:[%s1 + $0x1f0] sm:$0xf]
  %v151 = vld [vmem:[%s1 + $0x1f4] sm:$0xf]
  %v152 = vld [vmem:[%s1 + $0x1f8] sm:$0xf]
  %v153 = vld [vmem:[%s1 + $0x1fc] sm:$0xf]
  %v154 = vld [vmem:[%s1 + $0x200] sm:$0xf]
  %v155 = vld [vmem:[%s1 + $0x204] sm:$0xf]
  %v156 = vld [vmem:[%s1 + $0x208] sm:$0xf]
  %v157 = vld [vmem:[%s1 + $0x20c] sm:$0xf]
  %v158 = vld [vmem:[%s1 + $0x210] sm:$0xf]
  %v159 = vld [vmem:[%s1 + $0x214] sm:$0xf]
  %v160 = vld [vmem:[%s1 + $0x218] sm:$0xf]
  %v161 = vld [vmem:[%s1 + $0x21c] sm:$0xf]
  %v162 = vld [vmem:[%s1 + $0x220] sm:$0xf]
  %v163 = vld [vmem:[%s1 + $0x224] sm:$0xf]
  %v164 = vld [vmem:[%s1 + $0x228] sm:$0xf]
  %v165 = vld [vmem:[%s1 + $0x22c] sm:$0xf]
  %v166 = vld [vmem:[%s1 + $0x230] sm:$0xf]
  %v167 = vld [vmem:[%s1 + $0x234] sm:$0xf]
  %v168 = vld [vmem:[%s1 + $0x238] sm:$0xf]
  %v169 = vld [vmem:[%s1 + $0x23c] sm:$0xf]
  %v170 = vld [vmem:[%s2] sm:$0x1]
  %v172 = vlaneseq
  %v173 = vshrl.u32 %v172, 7
  %v174 = vsub.s32 0, %v173
  %v175 = vrot.slane %v170, %v174
  %v182 = vunpack.c.l.b16 %v21
  %v183 = vunpack.c.h.b16 %v21
  %v184 = vunpack.c.l.b16 %v22
  %v185 = vunpack.c.h.b16 %v22
  %v186 = vunpack.c.l.b16 %v23
  %v187 = vunpack.c.h.b16 %v23
  %v188 = vunpack.c.l.b16 %v24
  %v189 = vunpack.c.h.b16 %v24
  %v190 = vunpack.c.l.b16 %v25
  %v191 = vpack.c.b16 %v182, %v182
  %v192 = vpack.c.b16 %v183, %v183
  %v193 = vpack.c.b16 %v184, %v184
  %v194 = vpack.c.b16 %v185, %v185
  %v195 = vpack.c.b16 %v186, %v186
  %v196 = vpack.c.b16 %v187, %v187
  %v197 = vpack.c.b16 %v188, %v188
  %v198 = vpack.c.b16 %v189, %v189
  %v199 = vpack.c.b16 %v190, %v190
  %v353 = vunpack.c.l.b16 %v26
  %v354 = vunpack.c.l.b16 %v27
  %v355 = vunpack.c.l.b16 %v28
  %v356 = vunpack.c.l.b16 %v29
  %v357 = vunpack.c.l.b16 %v30
  %v358 = vunpack.c.l.b16 %v31
  %v359 = vunpack.c.l.b16 %v32
  %v360 = vunpack.c.l.b16 %v33
  %v361 = vunpack.c.l.b16 %v34
  %v362 = vunpack.c.l.b16 %v35
  %v363 = vunpack.c.l.b16 %v36
  %v364 = vunpack.c.l.b16 %v37
  %v365 = vunpack.c.l.b16 %v38
  %v366 = vunpack.c.l.b16 %v39
  %v367 = vunpack.c.l.b16 %v40
  %v368 = vunpack.c.l.b16 %v41
  %v369 = vunpack.c.l.b16 %v42
  %v370 = vunpack.c.l.b16 %v43
  %v371 = vunpack.c.l.b16 %v44
  %v372 = vunpack.c.l.b16 %v45
  %v373 = vunpack.c.l.b16 %v46
  %v374 = vunpack.c.l.b16 %v47
  %v375 = vunpack.c.l.b16 %v48
  %v376 = vunpack.c.l.b16 %v49
  %v377 = vunpack.c.l.b16 %v50
  %v378 = vunpack.c.l.b16 %v51
  %v379 = vunpack.c.l.b16 %v52
  %v380 = vunpack.c.l.b16 %v53
  %v381 = vunpack.c.l.b16 %v54
  %v382 = vunpack.c.l.b16 %v55
  %v383 = vunpack.c.l.b16 %v56
  %v384 = vunpack.c.l.b16 %v57
  %v385 = vunpack.c.l.b16 %v58
  %v386 = vunpack.c.l.b16 %v59
  %v387 = vunpack.c.l.b16 %v60
  %v388 = vunpack.c.l.b16 %v61
  %v389 = vunpack.c.l.b16 %v62
  %v390 = vunpack.c.l.b16 %v63
  %v391 = vunpack.c.l.b16 %v64
  %v392 = vunpack.c.l.b16 %v65
  %v393 = vunpack.c.l.b16 %v66
  %v394 = vunpack.c.l.b16 %v67
  %v395 = vunpack.c.l.b16 %v68
  %v396 = vunpack.c.l.b16 %v69
  %v397 = vunpack.c.l.b16 %v70
  %v398 = vunpack.c.l.b16 %v71
  %v399 = vunpack.c.l.b16 %v72
  %v400 = vunpack.c.l.b16 %v73
  %v401 = vunpack.c.l.b16 %v74
  %v402 = vunpack.c.l.b16 %v75
  %v403 = vunpack.c.l.b16 %v76
  %v404 = vunpack.c.l.b16 %v77
  %v405 = vunpack.c.l.b16 %v78
  %v406 = vunpack.c.l.b16 %v79
  %v407 = vunpack.c.l.b16 %v80
  %v408 = vunpack.c.l.b16 %v81
  %v409 = vunpack.c.l.b16 %v82
  %v410 = vunpack.c.l.b16 %v83
  %v411 = vunpack.c.l.b16 %v84
  %v412 = vunpack.c.l.b16 %v85
  %v413 = vunpack.c.l.b16 %v86
  %v414 = vunpack.c.l.b16 %v87
  %v415 = vunpack.c.l.b16 %v88
  %v416 = vunpack.c.l.b16 %v89
  %v417 = vunpack.c.l.b16 %v90
  %v418 = vunpack.c.l.b16 %v91
  %v419 = vunpack.c.l.b16 %v92
  %v420 = vunpack.c.l.b16 %v93
  %v421 = vunpack.c.l.b16 %v94
  %v422 = vunpack.c.l.b16 %v95
  %v423 = vunpack.c.l.b16 %v96
  %v424 = vunpack.c.l.b16 %v97
  %v425 = vunpack.c.l.b16 %v98
  %v426 = vunpack.c.l.b16 %v99
  %v427 = vunpack.c.l.b16 %v100
  %v428 = vunpack.c.l.b16 %v101
  %v429 = vunpack.c.l.b16 %v102
  %v430 = vunpack.c.l.b16 %v103
  %v431 = vunpack.c.l.b16 %v104
  %v432 = vunpack.c.l.b16 %v105
  %v433 = vunpack.c.l.b16 %v106
  %v434 = vunpack.c.l.b16 %v107
  %v435 = vunpack.c.l.b16 %v108
  %v436 = vunpack.c.l.b16 %v109
  %v437 = vunpack.c.l.b16 %v110
  %v438 = vunpack.c.l.b16 %v111
  %v439 = vunpack.c.l.b16 %v112
  %v440 = vunpack.c.l.b16 %v113
  %v441 = vunpack.c.l.b16 %v114
  %v442 = vunpack.c.l.b16 %v115
  %v443 = vunpack.c.l.b16 %v116
  %v444 = vunpack.c.l.b16 %v117
  %v445 = vunpack.c.l.b16 %v118
  %v446 = vunpack.c.l.b16 %v119
  %v447 = vunpack.c.l.b16 %v120
  %v448 = vunpack.c.l.b16 %v121
  %v449 = vunpack.c.l.b16 %v122
  %v450 = vunpack.c.l.b16 %v123
  %v451 = vunpack.c.l.b16 %v124
  %v452 = vunpack.c.l.b16 %v125
  %v453 = vunpack.c.l.b16 %v126
  %v454 = vunpack.c.l.b16 %v127
  %v455 = vunpack.c.l.b16 %v128
  %v456 = vunpack.c.l.b16 %v129
  %v457 = vunpack.c.l.b16 %v130
  %v458 = vunpack.c.l.b16 %v131
  %v459 = vunpack.c.l.b16 %v132
  %v460 = vunpack.c.l.b16 %v133
  %v461 = vunpack.c.l.b16 %v134
  %v462 = vunpack.c.l.b16 %v135
  %v463 = vunpack.c.l.b16 %v136
  %v464 = vunpack.c.l.b16 %v137
  %v465 = vunpack.c.l.b16 %v138
  %v466 = vunpack.c.l.b16 %v139
  %v467 = vunpack.c.l.b16 %v140
  %v468 = vunpack.c.l.b16 %v141
  %v469 = vunpack.c.l.b16 %v142
  %v470 = vunpack.c.l.b16 %v143
  %v471 = vunpack.c.l.b16 %v144
  %v472 = vunpack.c.l.b16 %v145
  %v473 = vunpack.c.l.b16 %v146
  %v474 = vunpack.c.l.b16 %v147
  %v475 = vunpack.c.l.b16 %v148
  %v476 = vunpack.c.l.b16 %v149
  %v477 = vunpack.c.l.b16 %v150
  %v478 = vunpack.c.l.b16 %v151
  %v479 = vunpack.c.l.b16 %v152
  %v480 = vunpack.c.l.b16 %v153
  %v481 = vunpack.c.l.b16 %v154
  %v482 = vunpack.c.l.b16 %v155
  %v483 = vunpack.c.l.b16 %v156
  %v484 = vunpack.c.l.b16 %v157
  %v485 = vunpack.c.l.b16 %v158
  %v486 = vunpack.c.l.b16 %v159
  %v487 = vunpack.c.l.b16 %v160
  %v488 = vunpack.c.l.b16 %v161
  %v489 = vunpack.c.l.b16 %v162
  %v490 = vunpack.c.l.b16 %v163
  %v491 = vunpack.c.l.b16 %v164
  %v492 = vunpack.c.l.b16 %v165
  %v493 = vunpack.c.l.b16 %v166
  %v494 = vunpack.c.l.b16 %v167
  %v495 = vunpack.c.l.b16 %v168
  %v496 = vunpack.c.l.b16 %v169
  %v497 = vpack.c.b16 %v354, %v353
  %v498 = vpack.c.b16 %v356, %v355
  %v499 = vpack.c.b16 %v358, %v357
  %v500 = vpack.c.b16 %v360, %v359
  %v501 = vpack.c.b16 %v362, %v361
  %v502 = vpack.c.b16 %v364, %v363
  %v503 = vpack.c.b16 %v366, %v365
  %v504 = vpack.c.b16 %v368, %v367
  %v505 = vpack.c.b16 %v370, %v369
  %v506 = vpack.c.b16 %v372, %v371
  %v507 = vpack.c.b16 %v374, %v373
  %v508 = vpack.c.b16 %v376, %v375
  %v509 = vpack.c.b16 %v378, %v377
  %v510 = vpack.c.b16 %v380, %v379
  %v511 = vpack.c.b16 %v382, %v381
  %v512 = vpack.c.b16 %v384, %v383
  %v513 = vpack.c.b16 %v386, %v385
  %v514 = vpack.c.b16 %v388, %v387
  %v515 = vpack.c.b16 %v390, %v389
  %v516 = vpack.c.b16 %v392, %v391
  %v517 = vpack.c.b16 %v394, %v393
  %v518 = vpack.c.b16 %v396, %v395
  %v519 = vpack.c.b16 %v398, %v397
  %v520 = vpack.c.b16 %v400, %v399
  %v521 = vpack.c.b16 %v402, %v401
  %v522 = vpack.c.b16 %v404, %v403
  %v523 = vpack.c.b16 %v406, %v405
  %v524 = vpack.c.b16 %v408, %v407
  %v525 = vpack.c.b16 %v410, %v409
  %v526 = vpack.c.b16 %v412, %v411
  %v527 = vpack.c.b16 %v414, %v413
  %v528 = vpack.c.b16 %v416, %v415
  %v529 = vpack.c.b16 %v418, %v417
  %v530 = vpack.c.b16 %v420, %v419
  %v531 = vpack.c.b16 %v422, %v421
  %v532 = vpack.c.b16 %v424, %v423
  %v533 = vpack.c.b16 %v426, %v425
  %v534 = vpack.c.b16 %v428, %v427
  %v535 = vpack.c.b16 %v430, %v429
  %v536 = vpack.c.b16 %v432, %v431
  %v537 = vpack.c.b16 %v434, %v433
  %v538 = vpack.c.b16 %v436, %v435
  %v539 = vpack.c.b16 %v438, %v437
  %v540 = vpack.c.b16 %v440, %v439
  %v541 = vpack.c.b16 %v442, %v441
  %v542 = vpack.c.b16 %v444, %v443
  %v543 = vpack.c.b16 %v446, %v445
  %v544 = vpack.c.b16 %v448, %v447
  %v545 = vpack.c.b16 %v450, %v449
  %v546 = vpack.c.b16 %v452, %v451
  %v547 = vpack.c.b16 %v454, %v453
  %v548 = vpack.c.b16 %v456, %v455
  %v549 = vpack.c.b16 %v458, %v457
  %v550 = vpack.c.b16 %v460, %v459
  %v551 = vpack.c.b16 %v462, %v461
  %v552 = vpack.c.b16 %v464, %v463
  %v553 = vpack.c.b16 %v466, %v465
  %v554 = vpack.c.b16 %v468, %v467
  %v555 = vpack.c.b16 %v470, %v469
  %v556 = vpack.c.b16 %v472, %v471
  %v557 = vpack.c.b16 %v474, %v473
  %v558 = vpack.c.b16 %v476, %v475
  %v559 = vpack.c.b16 %v478, %v477
  %v560 = vpack.c.b16 %v480, %v479
  %v561 = vpack.c.b16 %v482, %v481
  %v562 = vpack.c.b16 %v484, %v483
  %v563 = vpack.c.b16 %v486, %v485
  %v564 = vpack.c.b16 %v488, %v487
  %v565 = vpack.c.b16 %v490, %v489
  %v566 = vpack.c.b16 %v492, %v491
  %v567 = vpack.c.b16 %v494, %v493
  %v568 = vpack.c.b16 %v496, %v495
  %641 = vmatprep.subr.bf16.mxu0 0
  %642 = vmatpush1.bf16.msra.mxu0 %v497
  %643 = vmatprep.subr.bf16.mxu0 0
  %644 = vmatpush1.bf16.msra.mxu0 %v498
  %645 = vmatprep.subr.bf16.mxu0 0
  %646 = vmatpush1.bf16.msra.mxu0 %v499
  %647 = vmatprep.subr.bf16.mxu0 0
  %648 = vmatpush1.bf16.msra.mxu0 %v500
  %649 = vmatprep.subr.bf16.mxu0 0
  %650 = vmatpush1.bf16.msra.mxu0 %v501
  %651 = vmatprep.subr.bf16.mxu0 0
  %652 = vmatpush1.bf16.msra.mxu0 %v502
  %653 = vmatprep.subr.bf16.mxu0 0
  %654 = vmatpush1.bf16.msra.mxu0 %v503
  %655 = vmatprep.subr.bf16.mxu0 0
  %656 = vmatpush1.bf16.msra.mxu0 %v504
  %657 = vmatprep.subr.bf16.mxu0 0
  %658 = vmatpush1.bf16.msra.mxu0 %v505
  %659 = vmatprep.subr.bf16.mxu0 0
  %660 = vmatpush1.bf16.msra.mxu0 %v506
  %661 = vmatprep.subr.bf16.mxu0 0
  %662 = vmatpush1.bf16.msra.mxu0 %v507
  %663 = vmatprep.subr.bf16.mxu0 0
  %664 = vmatpush1.bf16.msra.mxu0 %v508
  %665 = vmatprep.subr.bf16.mxu0 0
  %666 = vmatpush1.bf16.msra.mxu0 %v509
  %667 = vmatprep.subr.bf16.mxu0 0
  %668 = vmatpush1.bf16.msra.mxu0 %v510
  %669 = vmatprep.subr.bf16.mxu0 0
  %670 = vmatpush1.bf16.msra.mxu0 %v511
  %671 = vmatprep.subr.bf16.mxu0 0
  %672 = vmatpush1.bf16.msra.mxu0 %v512
  %673 = vmatprep.mubr.bf16.mxu0 %v192
  %674 = vmatmul.mubr.bf16.gmra.mrb[0].mxu0 %v191
  %v675 = vpop.f32.mrb[0].mxu0
  %v676 = vadd.f32 %v175, %v675
  %v677 = vpop.f32.mrb[0].mxu0
  %v678 = vpop.f32.mrb[0].mxu0
  %v679 = vpop.f32.mrb[0].mxu0
  %680 = vdwg.mxu0
  %681 = vmatprep.subr.bf16.mxu0 0
  %682 = vmatpush1.bf16.msra.mxu0 %v513
  %683 = vmatprep.subr.bf16.mxu0 0
  %684 = vmatpush1.bf16.msra.mxu0 %v514
  %685 = vmatprep.subr.bf16.mxu0 0
  %686 = vmatpush1.bf16.msra.mxu0 %v515
  %687 = vmatprep.subr.bf16.mxu0 0
  %688 = vmatpush1.bf16.msra.mxu0 %v516
  %689 = vmatprep.subr.bf16.mxu0 0
  %690 = vmatpush1.bf16.msra.mxu0 %v517
  %691 = vmatprep.subr.bf16.mxu0 0
  %692 = vmatpush1.bf16.msra.mxu0 %v518
  %693 = vmatprep.subr.bf16.mxu0 0
  %694 = vmatpush1.bf16.msra.mxu0 %v519
  %695 = vmatprep.subr.bf16.mxu0 0
  %696 = vmatpush1.bf16.msra.mxu0 %v520
  %697 = vmatprep.subr.bf16.mxu0 0
  %698 = vmatpush1.bf16.msra.mxu0 %v521
  %699 = vmatprep.subr.bf16.mxu0 0
  %700 = vmatpush1.bf16.msra.mxu0 %v522
  %701 = vmatprep.subr.bf16.mxu0 0
  %702 = vmatpush1.bf16.msra.mxu0 %v523
  %703 = vmatprep.subr.bf16.mxu0 0
  %704 = vmatpush1.bf16.msra.mxu0 %v524
  %705 = vmatprep.subr.bf16.mxu0 0
  %706 = vmatpush1.bf16.msra.mxu0 %v525
  %707 = vmatprep.subr.bf16.mxu0 0
  %708 = vmatpush1.bf16.msra.mxu0 %v526
  %709 = vmatprep.subr.bf16.mxu0 0
  %710 = vmatpush1.bf16.msra.mxu0 %v527
  %711 = vmatprep.subr.bf16.mxu0 0
  %712 = vmatpush1.bf16.msra.mxu0 %v528
  %713 = vmatprep.mubr.bf16.mxu0 %v194
  %714 = vmatmul.mubr.bf16.gmra.mrb[0].mxu0 %v193
  %v715 = vpop.f32.mrb[0].mxu0
  %v716 = vadd.f32 %v676, %v715
  %v717 = vpop.f32.mrb[0].mxu0
  %v718 = vpop.f32.mrb[0].mxu0
  %v719 = vpop.f32.mrb[0].mxu0
  %720 = vdwg.mxu0
  %721 = vmatprep.subr.bf16.mxu0 0
  %722 = vmatpush1.bf16.msra.mxu0 %v529
  %723 = vmatprep.subr.bf16.mxu0 0
  %724 = vmatpush1.bf16.msra.mxu0 %v530
  %725 = vmatprep.subr.bf16.mxu0 0
  %726 = vmatpush1.bf16.msra.mxu0 %v531
  %727 = vmatprep.subr.bf16.mxu0 0
  %728 = vmatpush1.bf16.msra.mxu0 %v532
  %729 = vmatprep.subr.bf16.mxu0 0
  %730 = vmatpush1.bf16.msra.mxu0 %v533
  %731 = vmatprep.subr.bf16.mxu0 0
  %732 = vmatpush1.bf16.msra.mxu0 %v534
  %733 = vmatprep.subr.bf16.mxu0 0
  %734 = vmatpush1.bf16.msra.mxu0 %v535
  %735 = vmatprep.subr.bf16.mxu0 0
  %736 = vmatpush1.bf16.msra.mxu0 %v536
  %737 = vmatprep.subr.bf16.mxu0 0
  %738 = vmatpush1.bf16.msra.mxu0 %v537
  %739 = vmatprep.subr.bf16.mxu0 0
  %740 = vmatpush1.bf16.msra.mxu0 %v538
  %741 = vmatprep.subr.bf16.mxu0 0
  %742 = vmatpush1.bf16.msra.mxu0 %v539
  %743 = vmatprep.subr.bf16.mxu0 0
  %744 = vmatpush1.bf16.msra.mxu0 %v540
  %745 = vmatprep.subr.bf16.mxu0 0
  %746 = vmatpush1.bf16.msra.mxu0 %v541
  %747 = vmatprep.subr.bf16.mxu0 0
  %748 = vmatpush1.bf16.msra.mxu0 %v542
  %749 = vmatprep.subr.bf16.mxu0 0
  %750 = vmatpush1.bf16.msra.mxu0 %v543
  %751 = vmatprep.subr.bf16.mxu0 0
  %752 = vmatpush1.bf16.msra.mxu0 %v544
  %753 = vmatprep.mubr.bf16.mxu0 %v196
  %754 = vmatmul.mubr.bf16.gmra.mrb[0].mxu0 %v195
  %v755 = vpop.f32.mrb[0].mxu0
  %v756 = vadd.f32 %v716, %v755
  %v757 = vpop.f32.mrb[0].mxu0
  %v758 = vpop.f32.mrb[0].mxu0
  %v759 = vpop.f32.mrb[0].mxu0
  %760 = vdwg.mxu0
  %761 = vmatprep.subr.bf16.mxu0 0
  %762 = vmatpush1.bf16.msra.mxu0 %v545
  %763 = vmatprep.subr.bf16.mxu0 0
  %764 = vmatpush1.bf16.msra.mxu0 %v546
  %765 = vmatprep.subr.bf16.mxu0 0
  %766 = vmatpush1.bf16.msra.mxu0 %v547
  %767 = vmatprep.subr.bf16.mxu0 0
  %768 = vmatpush1.bf16.msra.mxu0 %v548
  %769 = vmatprep.subr.bf16.mxu0 0
  %770 = vmatpush1.bf16.msra.mxu0 %v549
  %771 = vmatprep.subr.bf16.mxu0 0
  %772 = vmatpush1.bf16.msra.mxu0 %v550
  %773 = vmatprep.subr.bf16.mxu0 0
  %774 = vmatpush1.bf16.msra.mxu0 %v551
  %775 = vmatprep.subr.bf16.mxu0 0
  %776 = vmatpush1.bf16.msra.mxu0 %v552
  %777 = vmatprep.subr.bf16.mxu0 0
  %778 = vmatpush1.bf16.msra.mxu0 %v553
  %779 = vmatprep.subr.bf16.mxu0 0
  %780 = vmatpush1.bf16.msra.mxu0 %v554
  %781 = vmatprep.subr.bf16.mxu0 0
  %782 = vmatpush1.bf16.msra.mxu0 %v555
  %783 = vmatprep.subr.bf16.mxu0 0
  %784 = vmatpush1.bf16.msra.mxu0 %v556
  %785 = vmatprep.subr.bf16.mxu0 0
  %786 = vmatpush1.bf16.msra.mxu0 %v557
  %787 = vmatprep.subr.bf16.mxu0 0
  %788 = vmatpush1.bf16.msra.mxu0 %v558
  %789 = vmatprep.subr.bf16.mxu0 0
  %790 = vmatpush1.bf16.msra.mxu0 %v559
  %791 = vmatprep.subr.bf16.mxu0 0
  %792 = vmatpush1.bf16.msra.mxu0 %v560
  %793 = vmatprep.mubr.bf16.mxu0 %v198
  %794 = vmatmul.mubr.bf16.gmra.mrb[0].mxu0 %v197
  %v795 = vpop.f32.mrb[0].mxu0
  %v796 = vadd.f32 %v756, %v795
  %v797 = vpop.f32.mrb[0].mxu0
  %v798 = vpop.f32.mrb[0].mxu0
  %v799 = vpop.f32.mrb[0].mxu0
  %800 = vdwg.mxu0
  %801 = vmatprep.subr.bf16.mxu0 0
  %802 = vmatpush1.bf16.msra.mxu0 %v561
  %803 = vmatprep.subr.bf16.mxu0 0
  %804 = vmatpush1.bf16.msra.mxu0 %v562
  %805 = vmatprep.subr.bf16.mxu0 0
  %806 = vmatpush1.bf16.msra.mxu0 %v563
  %807 = vmatprep.subr.bf16.mxu0 0
  %808 = vmatpush1.bf16.msra.mxu0 %v564
  %809 = vmatprep.subr.bf16.mxu0 0
  %810 = vmatpush1.bf16.msra.mxu0 %v565
  %811 = vmatprep.subr.bf16.mxu0 0
  %812 = vmatpush1.bf16.msra.mxu0 %v566
  %813 = vmatprep.subr.bf16.mxu0 0
  %814 = vmatpush1.bf16.msra.mxu0 %v567
  %815 = vmatprep.subr.bf16.mxu0 0
  %816 = vmatpush1.bf16.msra.mxu0 %v568
  %817 = vmatprep.subr.bf16.mxu0 0
  %818 = vmatpush1.bf16.msra.mxu0 0
  %819 = vmatprep.subr.bf16.mxu0 0
  %820 = vmatpush1.bf16.msra.mxu0 0
  %821 = vmatprep.subr.bf16.mxu0 0
  %822 = vmatpush1.bf16.msra.mxu0 0
  %823 = vmatprep.subr.bf16.mxu0 0
  %824 = vmatpush1.bf16.msra.mxu0 0
  %825 = vmatprep.subr.bf16.mxu0 0
  %826 = vmatpush1.bf16.msra.mxu0 0
  %827 = vmatprep.subr.bf16.mxu0 0
  %828 = vmatpush1.bf16.msra.mxu0 0
  %829 = vmatprep.subr.bf16.mxu0 0
  %830 = vmatpush1.bf16.msra.mxu0 0
  %831 = vmatprep.subr.bf16.mxu0 0
  %832 = vmatpush1.bf16.msra.mxu0 0
  %833 = vmatprep.mubr.bf16.mxu0 0
  %834 = vmatmul.mubr.bf16.gmra.mrb[0].mxu0 %v199
  %v835 = vpop.f32.mrb[0].mxu0
  %v836 = vadd.f32 %v796, %v835
  %v837 = vpop.f32.mrb[0].mxu0
  %v838 = vpop.f32.mrb[0].mxu0
  %v839 = vpop.f32.mrb[0].mxu0
  %840 = vdwg.mxu0
  %vm841 = vcmp.ge.f32.partialorder %v836, 0.0
  %v842 = vmul.f32 %v836, 0.2
  %v843 = vsel %vm841, %v836, %v842
  %v844 = vld [vmem:[%s3] sm:$0x1]
  %v846 = vlaneseq
  %v847 = vshrl.u32 %v846, 7
  %v848 = vsub.s32 0, %v847
  %v849 = vrot.slane %v844, %v848
  %v851 = vmul.f32 %v843, %v849
  %v852 = vld [vmem:[%s4] sm:$0x1]
  %v854 = vlaneseq
  %v855 = vshrl.u32 %v854, 7
  %v856 = vsub.s32 0, %v855
  %v857 = vrot.slane %v852, %v856
  %v859 = vadd.f32 %v851, %v857
  %v860 = vpack.c.bf16 %v859, %v859
  %861 = vst [vmem:[%s5] sm:$0xf] %v860
  // Predicated region
  $region22: #{single_disc_forward.11} parent=0 // pred_check
    _
  $region23: #{single_disc_forward.11} parent=0 // pred_check_branch
    %863 = sbr.rel (0) target = $region25
  $region24: #{single_disc_forward.11} parent=0 // pred_region
    _
  $region25: #{single_disc_forward.11} parent=0 // pred_fallthru
    _
  // Predicated region
  $region26: #{single_disc_forward.11} parent=0 // pred_check
    _
  $region27: #{single_disc_forward.11} parent=0 // pred_check_branch
    %865 = sbr.rel (0) target = $region29
  $region28: #{single_disc_forward.11} parent=0 // pred_region
    _
  $region29: #{single_disc_forward.11} parent=0 // pred_fallthru
    _

// kernel: single_disc_forward.15
$region0: #{single_disc_forward.15}
  #allocation0 [shape = 'u32[]', space=smem, size = 0x4, offset = 0x4, fixed_abs, tag = 'smem constant byte address 0x4 - core index']
  #allocation1 [shape = 'u32[144,128]{1,0:T(1,128)}', space=vmem, size = 0x12000, scoped, tag = 'internal scratch']
  %s0 = inlined_call_operand.vmem [shape: bf16[8,256], index: 0, kind: input, shape index: {}]
  %s1 = inlined_call_operand.vmem [shape: bf16[8,2304], index: 1, kind: input, shape index: {}]
  %s2 = inlined_call_operand.vmem [shape: bf16[8,2304], index: 2, kind: input, shape index: {}]
  %s3 = inlined_call_operand.vmem [shape: bf16[256,2], index: 3, kind: input, shape index: {}]
  %s4 = inlined_call_operand.vmem [shape: bf16[2304,2], index: 4, kind: input, shape index: {}]
  %s5 = inlined_call_operand.vmem [shape: f32[1,2], index: 5, kind: input, shape index: {}]
  %s6 = inlined_call_operand.vmem [shape: f32[8,2], index: 6, kind: output, shape index: {}]
  %s7 = sld [smem:[#allocation0]]
  $region34: #{single_disc_forward.15} parent=0
    _
  %s9 = ssub.s32 1, %s7
  %s10 = scalar_select 0, %s9, %s7
  // Predicated region
  $region2: #{single_disc_forward.15} parent=0 // pred_check
    _
  $region3: #{single_disc_forward.15} parent=0 // pred_check_branch
    %12 = sbr.rel (0) target = $region5
  $region4: #{single_disc_forward.15} parent=0 // pred_region
    _
  $region5: #{single_disc_forward.15} parent=0 // pred_fallthru
    _
  // Predicated region
  $region6: #{single_disc_forward.15} parent=0 // pred_check
    _
  $region7: #{single_disc_forward.15} parent=0 // pred_check_branch
    %14 = sbr.rel (0) target = $region9
  $region8: #{single_disc_forward.15} parent=0 // pred_region
    _
  $region9: #{single_disc_forward.15} parent=0 // pred_fallthru
    _
  // Predicated region
  $region10: #{single_disc_forward.15} parent=0 // pred_check
    _
  $region11: #{single_disc_forward.15} parent=0 // pred_check_branch
    %16 = sbr.rel (0) target = $region13
  $region12: #{single_disc_forward.15} parent=0 // pred_region
    _
  $region13: #{single_disc_forward.15} parent=0 // pred_fallthru
    _
  // Predicated region
  $region14: #{single_disc_forward.15} parent=0 // pred_check
    _
  $region15: #{single_disc_forward.15} parent=0 // pred_check_branch
    %18 = sbr.rel (0) target = $region17
  $region16: #{single_disc_forward.15} parent=0 // pred_region
    _
  $region17: #{single_disc_forward.15} parent=0 // pred_fallthru
    _
  // Predicated region
  $region18: #{single_disc_forward.15} parent=0 // pred_check
    _
  $region19: #{single_disc_forward.15} parent=0 // pred_check_branch
    %20 = sbr.rel (0) target = $region21
  $region20: #{single_disc_forward.15} parent=0 // pred_region
    _
  $region21: #{single_disc_forward.15} parent=0 // pred_fallthru
    _
  // Predicated region
  $region22: #{single_disc_forward.15} parent=0 // pred_check
    _
  $region23: #{single_disc_forward.15} parent=0 // pred_check_branch
    %22 = sbr.rel (0) target = $region25
  $region24: #{single_disc_forward.15} parent=0 // pred_region
    _
  $region25: #{single_disc_forward.15} parent=0 // pred_fallthru
    _
  %v24 = vld [vmem:[%s0] sm:$0xff]
  %v25 = vld [vmem:[%s3] sm:$0xf]
  %v26 = vld [vmem:[%s3 + $0x4] sm:$0xf]
  %v27 = vld [vmem:[%s3 + $0x8] sm:$0xf]
  %v28 = vld [vmem:[%s3 + $0xc] sm:$0xf]
  %v29 = vld [vmem:[%s3 + $0x10] sm:$0xf]
  %v30 = vld [vmem:[%s3 + $0x14] sm:$0xf]
  %v31 = vld [vmem:[%s3 + $0x18] sm:$0xf]
  %v32 = vld [vmem:[%s3 + $0x1c] sm:$0xf]
  %v33 = vld [vmem:[%s3 + $0x20] sm:$0xf]
  %v34 = vld [vmem:[%s3 + $0x24] sm:$0xf]
  %v35 = vld [vmem:[%s3 + $0x28] sm:$0xf]
  %v36 = vld [vmem:[%s3 + $0x2c] sm:$0xf]
  %v37 = vld [vmem:[%s3 + $0x30] sm:$0xf]
  %v38 = vld [vmem:[%s3 + $0x34] sm:$0xf]
  %v39 = vld [vmem:[%s3 + $0x38] sm:$0xf]
  %v40 = vld [vmem:[%s3 + $0x3c] sm:$0xf]
  %v41 = vld [vmem:[%s3 + $0x40] sm:$0xf]
  %v42 = vld [vmem:[%s3 + $0x44] sm:$0xf]
  %v43 = vld [vmem:[%s3 + $0x48] sm:$0xf]
  %v44 = vld [vmem:[%s3 + $0x4c] sm:$0xf]
  %v45 = vld [vmem:[%s3 + $0x50] sm:$0xf]
  %v46 = vld [vmem:[%s3 + $0x54] sm:$0xf]
  %v47 = vld [vmem:[%s3 + $0x58] sm:$0xf]
  %v48 = vld [vmem:[%s3 + $0x5c] sm:$0xf]
  %v49 = vld [vmem:[%s3 + $0x60] sm:$0xf]
  %v50 = vld [vmem:[%s3 + $0x64] sm:$0xf]
  %v51 = vld [vmem:[%s3 + $0x68] sm:$0xf]
  %v52 = vld [vmem:[%s3 + $0x6c] sm:$0xf]
  %v53 = vld [vmem:[%s3 + $0x70] sm:$0xf]
  %v54 = vld [vmem:[%s3 + $0x74] sm:$0xf]
  %v55 = vld [vmem:[%s3 + $0x78] sm:$0xf]
  %v56 = vld [vmem:[%s3 + $0x7c] sm:$0xf]
  %v57 = vld [vmem:[%s1] sm:$0xff]
  %v58 = vld [vmem:[%s1 + $0x8] sm:$0xff]
  %v59 = vld [vmem:[%s1 + $0x10] sm:$0xff]
  %v60 = vld [vmem:[%s1 + $0x18] sm:$0xff]
  %v61 = vld [vmem:[%s1 + $0x20] sm:$0xff]
  %v62 = vld [vmem:[%s1 + $0x28] sm:$0xff]
  %v63 = vld [vmem:[%s1 + $0x30] sm:$0xff]
  %v64 = vld [vmem:[%s1 + $0x38] sm:$0xff]
  %v65 = vld [vmem:[%s1 + $0x40] sm:$0xff]
  %v66 = vld [vmem:[%s4] sm:$0xf]
  %v67 = vld [vmem:[%s4 + $0x4] sm:$0xf]
  %v68 = vld [vmem:[%s4 + $0x8] sm:$0xf]
  %v69 = vld [vmem:[%s4 + $0xc] sm:$0xf]
  %v70 = vld [vmem:[%s4 + $0x10] sm:$0xf]
  %v71 = vld [vmem:[%s4 + $0x14] sm:$0xf]
  %v72 = vld [vmem:[%s4 + $0x18] sm:$0xf]
  %v73 = vld [vmem:[%s4 + $0x1c] sm:$0xf]
  %v74 = vld [vmem:[%s4 + $0x20] sm:$0xf]
  %v75 = vld [vmem:[%s4 + $0x24] sm:$0xf]
  %v76 = vld [vmem:[%s4 + $0x28] sm:$0xf]
  %v77 = vld [vmem:[%s4 + $0x2c] sm:$0xf]
  %v78 = vld [vmem:[%s4 + $0x30] sm:$0xf]
  %v79 = vld [vmem:[%s4 + $0x34] sm:$0xf]
  %v80 = vld [vmem:[%s4 + $0x38] sm:$0xf]
  %v81 = vld [vmem:[%s4 + $0x3c] sm:$0xf]
  %v82 = vld [vmem:[%s4 + $0x40] sm:$0xf]
  %v83 = vld [vmem:[%s4 + $0x44] sm:$0xf]
  %v84 = vld [vmem:[%s4 + $0x48] sm:$0xf]
  %v85 = vld [vmem:[%s4 + $0x4c] sm:$0xf]
  %v86 = vld [vmem:[%s4 + $0x50] sm:$0xf]
  %v87 = vld [vmem:[%s4 + $0x54] sm:$0xf]
  %v88 = vld [vmem:[%s4 + $0x58] sm:$0xf]
  %v89 = vld [vmem:[%s4 + $0x5c] sm:$0xf]
  %v90 = vld [vmem:[%s4 + $0x60] sm:$0xf]
  %v91 = vld [vmem:[%s4 + $0x64] sm:$0xf]
  %v92 = vld [vmem:[%s4 + $0x68] sm:$0xf]
  %v93 = vld [vmem:[%s4 + $0x6c] sm:$0xf]
  %v94 = vld [vmem:[%s4 + $0x70] sm:$0xf]
  %v95 = vld [vmem:[%s4 + $0x74] sm:$0xf]
  %v96 = vld [vmem:[%s4 + $0x78] sm:$0xf]
  %v97 = vld [vmem:[%s4 + $0x7c] sm:$0xf]
  %v98 = vld [vmem:[%s4 + $0x80] sm:$0xf]
  %v99 = vld [vmem:[%s4 + $0x84] sm:$0xf]
  %v100 = vld [vmem:[%s4 + $0x88] sm:$0xf]
  %v101 = vld [vmem:[%s4 + $0x8c] sm:$0xf]
  %v102 = vld [vmem:[%s4 + $0x90] sm:$0xf]
  %v103 = vld [vmem:[%s4 + $0x94] sm:$0xf]
  %v104 = vld [vmem:[%s4 + $0x98] sm:$0xf]
  %v105 = vld [vmem:[%s4 + $0x9c] sm:$0xf]
  %v106 = vld [vmem:[%s4 + $0xa0] sm:$0xf]
  %v107 = vld [vmem:[%s4 + $0xa4] sm:$0xf]
  %v108 = vld [vmem:[%s4 + $0xa8] sm:$0xf]
  %v109 = vld [vmem:[%s4 + $0xac] sm:$0xf]
  %v110 = vld [vmem:[%s4 + $0xb0] sm:$0xf]
  %v111 = vld [vmem:[%s4 + $0xb4] sm:$0xf]
  %v112 = vld [vmem:[%s4 + $0xb8] sm:$0xf]
  %v113 = vld [vmem:[%s4 + $0xbc] sm:$0xf]
  %v114 = vld [vmem:[%s4 + $0xc0] sm:$0xf]
  %v115 = vld [vmem:[%s4 + $0xc4] sm:$0xf]
  %v116 = vld [vmem:[%s4 + $0xc8] sm:$0xf]
  %v117 = vld [vmem:[%s4 + $0xcc] sm:$0xf]
  %v118 = vld [vmem:[%s4 + $0xd0] sm:$0xf]
  %v119 = vld [vmem:[%s4 + $0xd4] sm:$0xf]
  %v120 = vld [vmem:[%s4 + $0xd8] sm:$0xf]
  %v121 = vld [vmem:[%s4 + $0xdc] sm:$0xf]
  %v122 = vld [vmem:[%s4 + $0xe0] sm:$0xf]
  %v123 = vld [vmem:[%s4 + $0xe4] sm:$0xf]
  %v124 = vld [vmem:[%s4 + $0xe8] sm:$0xf]
  %v125 = vld [vmem:[%s4 + $0xec] sm:$0xf]
  %v126 = vld [vmem:[%s4 + $0xf0] sm:$0xf]
  %v127 = vld [vmem:[%s4 + $0xf4] sm:$0xf]
  %v128 = vld [vmem:[%s4 + $0xf8] sm:$0xf]
  %v129 = vld [vmem:[%s4 + $0xfc] sm:$0xf]
  %v130 = vld [vmem:[%s4 + $0x100] sm:$0xf]
  %v131 = vld [vmem:[%s4 + $0x104] sm:$0xf]
  %v132 = vld [vmem:[%s4 + $0x108] sm:$0xf]
  %v133 = vld [vmem:[%s4 + $0x10c] sm:$0xf]
  %v134 = vld [vmem:[%s4 + $0x110] sm:$0xf]
  %v135 = vld [vmem:[%s4 + $0x114] sm:$0xf]
  %v136 = vld [vmem:[%s4 + $0x118] sm:$0xf]
  %v137 = vld [vmem:[%s4 + $0x11c] sm:$0xf]
  %v138 = vld [vmem:[%s4 + $0x120] sm:$0xf]
  %v139 = vld [vmem:[%s4 + $0x124] sm:$0xf]
  %v140 = vld [vmem:[%s4 + $0x128] sm:$0xf]
  %v141 = vld [vmem:[%s4 + $0x12c] sm:$0xf]
  %v142 = vld [vmem:[%s4 + $0x130] sm:$0xf]
  %v143 = vld [vmem:[%s4 + $0x134] sm:$0xf]
  %v144 = vld [vmem:[%s4 + $0x138] sm:$0xf]
  %v145 = vld [vmem:[%s4 + $0x13c] sm:$0xf]
  %v146 = vld [vmem:[%s4 + $0x140] sm:$0xf]
  %v147 = vld [vmem:[%s4 + $0x144] sm:$0xf]
  %v148 = vld [vmem:[%s4 + $0x148] sm:$0xf]
  %v149 = vld [vmem:[%s4 + $0x14c] sm:$0xf]
  %v150 = vld [vmem:[%s4 + $0x150] sm:$0xf]
  %v151 = vld [vmem:[%s4 + $0x154] sm:$0xf]
  %v152 = vld [vmem:[%s4 + $0x158] sm:$0xf]
  %v153 = vld [vmem:[%s4 + $0x15c] sm:$0xf]
  %v154 = vld [vmem:[%s4 + $0x160] sm:$0xf]
  %v155 = vld [vmem:[%s4 + $0x164] sm:$0xf]
  %v156 = vld [vmem:[%s4 + $0x168] sm:$0xf]
  %v157 = vld [vmem:[%s4 + $0x16c] sm:$0xf]
  %v158 = vld [vmem:[%s4 + $0x170] sm:$0xf]
  %v159 = vld [vmem:[%s4 + $0x174] sm:$0xf]
  %v160 = vld [vmem:[%s4 + $0x178] sm:$0xf]
  %v161 = vld [vmem:[%s4 + $0x17c] sm:$0xf]
  %v162 = vld [vmem:[%s4 + $0x180] sm:$0xf]
  %v163 = vld [vmem:[%s4 + $0x184] sm:$0xf]
  %v164 = vld [vmem:[%s4 + $0x188] sm:$0xf]
  %v165 = vld [vmem:[%s4 + $0x18c] sm:$0xf]
  %v166 = vld [vmem:[%s4 + $0x190] sm:$0xf]
  %v167 = vld [vmem:[%s4 + $0x194] sm:$0xf]
  %v168 = vld [vmem:[%s4 + $0x198] sm:$0xf]
  %v169 = vld [vmem:[%s4 + $0x19c] sm:$0xf]
  %v170 = vld [vmem:[%s4 + $0x1a0] sm:$0xf]
  %v171 = vld [vmem:[%s4 + $0x1a4] sm:$0xf]
  %v172 = vld [vmem:[%s4 + $0x1a8] sm:$0xf]
  %v173 = vld [vmem:[%s4 + $0x1ac] sm:$0xf]
  %v174 = vld [vmem:[%s4 + $0x1b0] sm:$0xf]
  %v175 = vld [vmem:[%s4 + $0x1b4] sm:$0xf]
  %v176 = vld [vmem:[%s4 + $0x1b8] sm:$0xf]
  %v177 = vld [vmem:[%s4 + $0x1bc] sm:$0xf]
  %v178 = vld [vmem:[%s4 + $0x1c0] sm:$0xf]
  %v179 = vld [vmem:[%s4 + $0x1c4] sm:$0xf]
  %v180 = vld [vmem:[%s4 + $0x1c8] sm:$0xf]
  %v181 = vld [vmem:[%s4 + $0x1cc] sm:$0xf]
  %v182 = vld [vmem:[%s4 + $0x1d0] sm:$0xf]
  %v183 = vld [vmem:[%s4 + $0x1d4] sm:$0xf]
  %v184 = vld [vmem:[%s4 + $0x1d8] sm:$0xf]
  %v185 = vld [vmem:[%s4 + $0x1dc] sm:$0xf]
  %v186 = vld [vmem:[%s4 + $0x1e0] sm:$0xf]
  %v187 = vld [vmem:[%s4 + $0x1e4] sm:$0xf]
  %v188 = vld [vmem:[%s4 + $0x1e8] sm:$0xf]
  %v189 = vld [vmem:[%s4 + $0x1ec] sm:$0xf]
  %v190 = vld [vmem:[%s4 + $0x1f0] sm:$0xf]
  %v191 = vld [vmem:[%s4 + $0x1f4] sm:$0xf]
  %v192 = vld [vmem:[%s4 + $0x1f8] sm:$0xf]
  %v193 = vld [vmem:[%s4 + $0x1fc] sm:$0xf]
  %v194 = vld [vmem:[%s4 + $0x200] sm:$0xf]
  %v195 = vld [vmem:[%s4 + $0x204] sm:$0xf]
  %v196 = vld [vmem:[%s4 + $0x208] sm:$0xf]
  %v197 = vld [vmem:[%s4 + $0x20c] sm:$0xf]
  %v198 = vld [vmem:[%s4 + $0x210] sm:$0xf]
  %v199 = vld [vmem:[%s4 + $0x214] sm:$0xf]
  %v200 = vld [vmem:[%s4 + $0x218] sm:$0xf]
  %v201 = vld [vmem:[%s4 + $0x21c] sm:$0xf]
  %v202 = vld [vmem:[%s4 + $0x220] sm:$0xf]
  %v203 = vld [vmem:[%s4 + $0x224] sm:$0xf]
  %v204 = vld [vmem:[%s4 + $0x228] sm:$0xf]
  %v205 = vld [vmem:[%s4 + $0x22c] sm:$0xf]
  %v206 = vld [vmem:[%s4 + $0x230] sm:$0xf]
  %v207 = vld [vmem:[%s4 + $0x234] sm:$0xf]
  %v208 = vld [vmem:[%s4 + $0x238] sm:$0xf]
  %v209 = vld [vmem:[%s4 + $0x23c] sm:$0xf]
  %v210 = vld [vmem:[%s4 + $0x240] sm:$0xf]
  %v211 = vld [vmem:[%s4 + $0x244] sm:$0xf]
  %v212 = vld [vmem:[%s4 + $0x248] sm:$0xf]
  %v213 = vld [vmem:[%s4 + $0x24c] sm:$0xf]
  %v214 = vld [vmem:[%s4 + $0x250] sm:$0xf]
  %v215 = vld [vmem:[%s4 + $0x254] sm:$0xf]
  %v216 = vld [vmem:[%s4 + $0x258] sm:$0xf]
  %v217 = vld [vmem:[%s4 + $0x25c] sm:$0xf]
  %v218 = vld [vmem:[%s4 + $0x260] sm:$0xf]
  %v219 = vld [vmem:[%s4 + $0x264] sm:$0xf]
  %v220 = vld [vmem:[%s4 + $0x268] sm:$0xf]
  %v221 = vld [vmem:[%s4 + $0x26c] sm:$0xf]
  %v222 = vld [vmem:[%s4 + $0x270] sm:$0xf]
  %v223 = vld [vmem:[%s4 + $0x274] sm:$0xf]
  %v224 = vld [vmem:[%s4 + $0x278] sm:$0xf]
  %v225 = vld [vmem:[%s4 + $0x27c] sm:$0xf]
  %v226 = vld [vmem:[%s4 + $0x280] sm:$0xf]
  %v227 = vld [vmem:[%s4 + $0x284] sm:$0xf]
  %v228 = vld [vmem:[%s4 + $0x288] sm:$0xf]
  %v229 = vld [vmem:[%s4 + $0x28c] sm:$0xf]
  %v230 = vld [vmem:[%s4 + $0x290] sm:$0xf]
  %v231 = vld [vmem:[%s4 + $0x294] sm:$0xf]
  %v232 = vld [vmem:[%s4 + $0x298] sm:$0xf]
  %v233 = vld [vmem:[%s4 + $0x29c] sm:$0xf]
  %v234 = vld [vmem:[%s4 + $0x2a0] sm:$0xf]
  %v235 = vld [vmem:[%s4 + $0x2a4] sm:$0xf]
  %v236 = vld [vmem:[%s4 + $0x2a8] sm:$0xf]
  %v237 = vld [vmem:[%s4 + $0x2ac] sm:$0xf]
  %v238 = vld [vmem:[%s4 + $0x2b0] sm:$0xf]
  %v239 = vld [vmem:[%s4 + $0x2b4] sm:$0xf]
  %v240 = vld [vmem:[%s4 + $0x2b8] sm:$0xf]
  %v241 = vld [vmem:[%s4 + $0x2bc] sm:$0xf]
  %v242 = vld [vmem:[%s4 + $0x2c0] sm:$0xf]
  %v243 = vld [vmem:[%s4 + $0x2c4] sm:$0xf]
  %v244 = vld [vmem:[%s4 + $0x2c8] sm:$0xf]
  %v245 = vld [vmem:[%s4 + $0x2cc] sm:$0xf]
  %v246 = vld [vmem:[%s4 + $0x2d0] sm:$0xf]
  %v247 = vld [vmem:[%s4 + $0x2d4] sm:$0xf]
  %v248 = vld [vmem:[%s4 + $0x2d8] sm:$0xf]
  %v249 = vld [vmem:[%s4 + $0x2dc] sm:$0xf]
  %v250 = vld [vmem:[%s4 + $0x2e0] sm:$0xf]
  %v251 = vld [vmem:[%s4 + $0x2e4] sm:$0xf]
  %v252 = vld [vmem:[%s4 + $0x2e8] sm:$0xf]
  %v253 = vld [vmem:[%s4 + $0x2ec] sm:$0xf]
  %v254 = vld [vmem:[%s4 + $0x2f0] sm:$0xf]
  %v255 = vld [vmem:[%s4 + $0x2f4] sm:$0xf]
  %v256 = vld [vmem:[%s4 + $0x2f8] sm:$0xf]
  %v257 = vld [vmem:[%s4 + $0x2fc] sm:$0xf]
  %v258 = vld [vmem:[%s4 + $0x300] sm:$0xf]
  %v259 = vld [vmem:[%s4 + $0x304] sm:$0xf]
  %v260 = vld [vmem:[%s4 + $0x308] sm:$0xf]
  %v261 = vld [vmem:[%s4 + $0x30c] sm:$0xf]
  %v262 = vld [vmem:[%s4 + $0x310] sm:$0xf]
  %v263 = vld [vmem:[%s4 + $0x314] sm:$0xf]
  %v264 = vld [vmem:[%s4 + $0x318] sm:$0xf]
  %v265 = vld [vmem:[%s4 + $0x31c] sm:$0xf]
  %v266 = vld [vmem:[%s4 + $0x320] sm:$0xf]
  %v267 = vld [vmem:[%s4 + $0x324] sm:$0xf]
  %v268 = vld [vmem:[%s4 + $0x328] sm:$0xf]
  %v269 = vld [vmem:[%s4 + $0x32c] sm:$0xf]
  %v270 = vld [vmem:[%s4 + $0x330] sm:$0xf]
  %v271 = vld [vmem:[%s4 + $0x334] sm:$0xf]
  %v272 = vld [vmem:[%s4 + $0x338] sm:$0xf]
  %v273 = vld [vmem:[%s4 + $0x33c] sm:$0xf]
  %v274 = vld [vmem:[%s4 + $0x340] sm:$0xf]
  %v275 = vld [vmem:[%s4 + $0x344] sm:$0xf]
  %v276 = vld [vmem:[%s4 + $0x348] sm:$0xf]
  %v277 = vld [vmem:[%s4 + $0x34c] sm:$0xf]
  %v278 = vld [vmem:[%s4 + $0x350] sm:$0xf]
  %v279 = vld [vmem:[%s4 + $0x354] sm:$0xf]
  %v280 = vld [vmem:[%s4 + $0x358] sm:$0xf]
  %v281 = vld [vmem:[%s4 + $0x35c] sm:$0xf]
  %v282 = vld [vmem:[%s4 + $0x360] sm:$0xf]
  %v283 = vld [vmem:[%s4 + $0x364] sm:$0xf]
  %v284 = vld [vmem:[%s4 + $0x368] sm:$0xf]
  %v285 = vld [vmem:[%s4 + $0x36c] sm:$0xf]
  %v286 = vld [vmem:[%s4 + $0x370] sm:$0xf]
  %v287 = vld [vmem:[%s4 + $0x374] sm:$0xf]
  %v288 = vld [vmem:[%s4 + $0x378] sm:$0xf]
  %v289 = vld [vmem:[%s4 + $0x37c] sm:$0xf]
  %v290 = vld [vmem:[%s4 + $0x380] sm:$0xf]
  %v291 = vld [vmem:[%s4 + $0x384] sm:$0xf]
  %v292 = vld [vmem:[%s4 + $0x388] sm:$0xf]
  %v293 = vld [vmem:[%s4 + $0x38c] sm:$0xf]
  %v294 = vld [vmem:[%s4 + $0x390] sm:$0xf]
  %v295 = vld [vmem:[%s4 + $0x394] sm:$0xf]
  %v296 = vld [vmem:[%s4 + $0x398] sm:$0xf]
  %v297 = vld [vmem:[%s4 + $0x39c] sm:$0xf]
  %v298 = vld [vmem:[%s4 + $0x3a0] sm:$0xf]
  %v299 = vld [vmem:[%s4 + $0x3a4] sm:$0xf]
  %v300 = vld [vmem:[%s4 + $0x3a8] sm:$0xf]
  %v301 = vld [vmem:[%s4 + $0x3ac] sm:$0xf]
  %v302 = vld [vmem:[%s4 + $0x3b0] sm:$0xf]
  %v303 = vld [vmem:[%s4 + $0x3b4] sm:$0xf]
  %v304 = vld [vmem:[%s4 + $0x3b8] sm:$0xf]
  %v305 = vld [vmem:[%s4 + $0x3bc] sm:$0xf]
  %v306 = vld [vmem:[%s4 + $0x3c0] sm:$0xf]
  %v307 = vld [vmem:[%s4 + $0x3c4] sm:$0xf]
  %v308 = vld [vmem:[%s4 + $0x3c8] sm:$0xf]
  %v309 = vld [vmem:[%s4 + $0x3cc] sm:$0xf]
  %v310 = vld [vmem:[%s4 + $0x3d0] sm:$0xf]
  %v311 = vld [vmem:[%s4 + $0x3d4] sm:$0xf]
  %v312 = vld [vmem:[%s4 + $0x3d8] sm:$0xf]
  %v313 = vld [vmem:[%s4 + $0x3dc] sm:$0xf]
  %v314 = vld [vmem:[%s4 + $0x3e0] sm:$0xf]
  %v315 = vld [vmem:[%s4 + $0x3e4] sm:$0xf]
  %v316 = vld [vmem:[%s4 + $0x3e8] sm:$0xf]
  %v317 = vld [vmem:[%s4 + $0x3ec] sm:$0xf]
  %v318 = vld [vmem:[%s4 + $0x3f0] sm:$0xf]
  %v319 = vld [vmem:[%s4 + $0x3f4] sm:$0xf]
  %v320 = vld [vmem:[%s4 + $0x3f8] sm:$0xf]
  %v321 = vld [vmem:[%s4 + $0x3fc] sm:$0xf]
  %v322 = vld [vmem:[%s4 + $0x400] sm:$0xf]
  %v323 = vld [vmem:[%s4 + $0x404] sm:$0xf]
  %v324 = vld [vmem:[%s4 + $0x408] sm:$0xf]
  %v325 = vld [vmem:[%s4 + $0x40c] sm:$0xf]
  %v326 = vld [vmem:[%s4 + $0x410] sm:$0xf]
  %v327 = vld [vmem:[%s4 + $0x414] sm:$0xf]
  %v328 = vld [vmem:[%s4 + $0x418] sm:$0xf]
  %v329 = vld [vmem:[%s4 + $0x41c] sm:$0xf]
  %v330 = vld [vmem:[%s4 + $0x420] sm:$0xf]
  %v331 = vld [vmem:[%s4 + $0x424] sm:$0xf]
  %v332 = vld [vmem:[%s4 + $0x428] sm:$0xf]
  %v333 = vld [vmem:[%s4 + $0x42c] sm:$0xf]
  %v334 = vld [vmem:[%s4 + $0x430] sm:$0xf]
  %v335 = vld [vmem:[%s4 + $0x434] sm:$0xf]
  %v336 = vld [vmem:[%s4 + $0x438] sm:$0xf]
  %v337 = vld [vmem:[%s4 + $0x43c] sm:$0xf]
  %v338 = vld [vmem:[%s4 + $0x440] sm:$0xf]
  %v339 = vld [vmem:[%s4 + $0x444] sm:$0xf]
  %v340 = vld [vmem:[%s4 + $0x448] sm:$0xf]
  %v341 = vld [vmem:[%s4 + $0x44c] sm:$0xf]
  %v342 = vld [vmem:[%s4 + $0x450] sm:$0xf]
  %v343 = vld [vmem:[%s4 + $0x454] sm:$0xf]
  %v344 = vld [vmem:[%s4 + $0x458] sm:$0xf]
  %v345 = vld [vmem:[%s4 + $0x45c] sm:$0xf]
  %v346 = vld [vmem:[%s4 + $0x460] sm:$0xf]
  %v347 = vld [vmem:[%s4 + $0x464] sm:$0xf]
  %v348 = vld [vmem:[%s4 + $0x468] sm:$0xf]
  %v349 = vld [vmem:[%s4 + $0x46c] sm:$0xf]
  %v350 = vld [vmem:[%s4 + $0x470] sm:$0xf]
  %v351 = vld [vmem:[%s4 + $0x474] sm:$0xf]
  %v352 = vld [vmem:[%s4 + $0x478] sm:$0xf]
  %v353 = vld [vmem:[%s4 + $0x47c] sm:$0xf]
  %v363 = vunpack.c.l.b16 %v57
  %v364 = vunpack.c.h.b16 %v57
  %v365 = vunpack.c.l.b16 %v58
  %v366 = vunpack.c.h.b16 %v58
  %v367 = vunpack.c.l.b16 %v59
  %v368 = vunpack.c.h.b16 %v59
  %v369 = vunpack.c.l.b16 %v60
  %v370 = vunpack.c.h.b16 %v60
  %v371 = vunpack.c.l.b16 %v61
  %v372 = vunpack.c.h.b16 %v61
  %v373 = vunpack.c.l.b16 %v62
  %v374 = vunpack.c.h.b16 %v62
  %v375 = vunpack.c.l.b16 %v63
  %v376 = vunpack.c.h.b16 %v63
  %v377 = vunpack.c.l.b16 %v64
  %v378 = vunpack.c.h.b16 %v64
  %v379 = vunpack.c.l.b16 %v65
  %v380 = vunpack.c.h.b16 %v65
  %v381 = vpack.c.b16 %v363, %v363
  %v382 = vpack.c.b16 %v364, %v364
  %v383 = vpack.c.b16 %v365, %v365
  %v384 = vpack.c.b16 %v366, %v366
  %v385 = vpack.c.b16 %v367, %v367
  %v386 = vpack.c.b16 %v368, %v368
  %v387 = vpack.c.b16 %v369, %v369
  %v388 = vpack.c.b16 %v370, %v370
  %v389 = vpack.c.b16 %v371, %v371
  %v390 = vpack.c.b16 %v372, %v372
  %v391 = vpack.c.b16 %v373, %v373
  %v392 = vpack.c.b16 %v374, %v374
  %v393 = vpack.c.b16 %v375, %v375
  %v394 = vpack.c.b16 %v376, %v376
  %v395 = vpack.c.b16 %v377, %v377
  %v396 = vpack.c.b16 %v378, %v378
  %v397 = vpack.c.b16 %v379, %v379
  %v398 = vpack.c.b16 %v380, %v380
  %v705 = vunpack.c.l.b16 %v66
  %v706 = vunpack.c.l.b16 %v67
  %v707 = vunpack.c.l.b16 %v68
  %v708 = vunpack.c.l.b16 %v69
  %v709 = vunpack.c.l.b16 %v70
  %v710 = vunpack.c.l.b16 %v71
  %v711 = vunpack.c.l.b16 %v72
  %v712 = vunpack.c.l.b16 %v73
  %v713 = vunpack.c.l.b16 %v74
  %v714 = vunpack.c.l.b16 %v75
  %v715 = vunpack.c.l.b16 %v76
  %v716 = vunpack.c.l.b16 %v77
  %v717 = vunpack.c.l.b16 %v78
  %v718 = vunpack.c.l.b16 %v79
  %v719 = vunpack.c.l.b16 %v80
  %v720 = vunpack.c.l.b16 %v81
  %v721 = vunpack.c.l.b16 %v82
  %v722 = vunpack.c.l.b16 %v83
  %v723 = vunpack.c.l.b16 %v84
  %v724 = vunpack.c.l.b16 %v85
  %v725 = vunpack.c.l.b16 %v86
  %v726 = vunpack.c.l.b16 %v87
  %v727 = vunpack.c.l.b16 %v88
  %v728 = vunpack.c.l.b16 %v89
  %v729 = vunpack.c.l.b16 %v90
  %v730 = vunpack.c.l.b16 %v91
  %v731 = vunpack.c.l.b16 %v92
  %v732 = vunpack.c.l.b16 %v93
  %v733 = vunpack.c.l.b16 %v94
  %v734 = vunpack.c.l.b16 %v95
  %v735 = vunpack.c.l.b16 %v96
  %v736 = vunpack.c.l.b16 %v97
  %v737 = vunpack.c.l.b16 %v98
  %v738 = vunpack.c.l.b16 %v99
  %v739 = vunpack.c.l.b16 %v100
  %v740 = vunpack.c.l.b16 %v101
  %v741 = vunpack.c.l.b16 %v102
  %v742 = vunpack.c.l.b16 %v103
  %v743 = vunpack.c.l.b16 %v104
  %v744 = vunpack.c.l.b16 %v105
  %v745 = vunpack.c.l.b16 %v106
  %v746 = vunpack.c.l.b16 %v107
  %v747 = vunpack.c.l.b16 %v108
  %v748 = vunpack.c.l.b16 %v109
  %v749 = vunpack.c.l.b16 %v110
  %v750 = vunpack.c.l.b16 %v111
  %v751 = vunpack.c.l.b16 %v112
  %v752 = vunpack.c.l.b16 %v113
  %v753 = vunpack.c.l.b16 %v114
  %v754 = vunpack.c.l.b16 %v115
  %v755 = vunpack.c.l.b16 %v116
  %v756 = vunpack.c.l.b16 %v117
  %v757 = vunpack.c.l.b16 %v118
  %v758 = vunpack.c.l.b16 %v119
  %v759 = vunpack.c.l.b16 %v120
  %v760 = vunpack.c.l.b16 %v121
  %v761 = vunpack.c.l.b16 %v122
  %v762 = vunpack.c.l.b16 %v123
  %v763 = vunpack.c.l.b16 %v124
  %v764 = vunpack.c.l.b16 %v125
  %v765 = vunpack.c.l.b16 %v126
  %v766 = vunpack.c.l.b16 %v127
  %v767 = vunpack.c.l.b16 %v128
  %v768 = vunpack.c.l.b16 %v129
  %v769 = vunpack.c.l.b16 %v130
  %v770 = vunpack.c.l.b16 %v131
  %v771 = vunpack.c.l.b16 %v132
  %v772 = vunpack.c.l.b16 %v133
  %v773 = vunpack.c.l.b16 %v134
  %v774 = vunpack.c.l.b16 %v135
  %v775 = vunpack.c.l.b16 %v136
  %v776 = vunpack.c.l.b16 %v137
  %v777 = vunpack.c.l.b16 %v138
  %v778 = vunpack.c.l.b16 %v139
  %v779 = vunpack.c.l.b16 %v140
  %v780 = vunpack.c.l.b16 %v141
  %v781 = vunpack.c.l.b16 %v142
  %v782 = vunpack.c.l.b16 %v143
  %v783 = vunpack.c.l.b16 %v144
  %v784 = vunpack.c.l.b16 %v145
  %v785 = vunpack.c.l.b16 %v146
  %v786 = vunpack.c.l.b16 %v147
  %v787 = vunpack.c.l.b16 %v148
  %v788 = vunpack.c.l.b16 %v149
  %v789 = vunpack.c.l.b16 %v150
  %v790 = vunpack.c.l.b16 %v151
  %v791 = vunpack.c.l.b16 %v152
  %v792 = vunpack.c.l.b16 %v153
  %v793 = vunpack.c.l.b16 %v154
  %v794 = vunpack.c.l.b16 %v155
  %v795 = vunpack.c.l.b16 %v156
  %v796 = vunpack.c.l.b16 %v157
  %v797 = vunpack.c.l.b16 %v158
  %v798 = vunpack.c.l.b16 %v159
  %v799 = vunpack.c.l.b16 %v160
  %v800 = vunpack.c.l.b16 %v161
  %v801 = vunpack.c.l.b16 %v162
  %v802 = vunpack.c.l.b16 %v163
  %v803 = vunpack.c.l.b16 %v164
  %v804 = vunpack.c.l.b16 %v165
  %v805 = vunpack.c.l.b16 %v166
  %v806 = vunpack.c.l.b16 %v167
  %v807 = vunpack.c.l.b16 %v168
  %v808 = vunpack.c.l.b16 %v169
  %v809 = vunpack.c.l.b16 %v170
  %v810 = vunpack.c.l.b16 %v171
  %v811 = vunpack.c.l.b16 %v172
  %v812 = vunpack.c.l.b16 %v173
  %v813 = vunpack.c.l.b16 %v174
  %v814 = vunpack.c.l.b16 %v175
  %v815 = vunpack.c.l.b16 %v176
  %v816 = vunpack.c.l.b16 %v177
  %v817 = vunpack.c.l.b16 %v178
  %v818 = vunpack.c.l.b16 %v179
  %v819 = vunpack.c.l.b16 %v180
  %v820 = vunpack.c.l.b16 %v181
  %v821 = vunpack.c.l.b16 %v182
  %v822 = vunpack.c.l.b16 %v183
  %v823 = vunpack.c.l.b16 %v184
  %v824 = vunpack.c.l.b16 %v185
  %v825 = vunpack.c.l.b16 %v186
  %v826 = vunpack.c.l.b16 %v187
  %v827 = vunpack.c.l.b16 %v188
  %v828 = vunpack.c.l.b16 %v189
  %v829 = vunpack.c.l.b16 %v190
  %v830 = vunpack.c.l.b16 %v191
  %v831 = vunpack.c.l.b16 %v192
  %v832 = vunpack.c.l.b16 %v193
  %v833 = vunpack.c.l.b16 %v194
  %v834 = vunpack.c.l.b16 %v195
  %v835 = vunpack.c.l.b16 %v196
  %v836 = vunpack.c.l.b16 %v197
  %v837 = vunpack.c.l.b16 %v198
  %v838 = vunpack.c.l.b16 %v199
  %v839 = vunpack.c.l.b16 %v200
  %v840 = vunpack.c.l.b16 %v201
  %v841 = vunpack.c.l.b16 %v202
  %v842 = vunpack.c.l.b16 %v203
  %v843 = vunpack.c.l.b16 %v204
  %v844 = vunpack.c.l.b16 %v205
  %v845 = vunpack.c.l.b16 %v206
  %v846 = vunpack.c.l.b16 %v207
  %v847 = vunpack.c.l.b16 %v208
  %v848 = vunpack.c.l.b16 %v209
  %v849 = vunpack.c.l.b16 %v210
  %v850 = vunpack.c.l.b16 %v211
  %v851 = vunpack.c.l.b16 %v212
  %v852 = vunpack.c.l.b16 %v213
  %v853 = vunpack.c.l.b16 %v214
  %v854 = vunpack.c.l.b16 %v215
  %v855 = vunpack.c.l.b16 %v216
  %v856 = vunpack.c.l.b16 %v217
  %v857 = vunpack.c.l.b16 %v218
  %v858 = vunpack.c.l.b16 %v219
  %v859 = vunpack.c.l.b16 %v220
  %v860 = vunpack.c.l.b16 %v221
  %v861 = vunpack.c.l.b16 %v222
  %v862 = vunpack.c.l.b16 %v223
  %v863 = vunpack.c.l.b16 %v224
  %v864 = vunpack.c.l.b16 %v225
  %v865 = vunpack.c.l.b16 %v226
  %v866 = vunpack.c.l.b16 %v227
  %v867 = vunpack.c.l.b16 %v228
  %v868 = vunpack.c.l.b16 %v229
  %v869 = vunpack.c.l.b16 %v230
  %v870 = vunpack.c.l.b16 %v231
  %v871 = vunpack.c.l.b16 %v232
  %v872 = vunpack.c.l.b16 %v233
  %v873 = vunpack.c.l.b16 %v234
  %v874 = vunpack.c.l.b16 %v235
  %v875 = vunpack.c.l.b16 %v236
  %v876 = vunpack.c.l.b16 %v237
  %v877 = vunpack.c.l.b16 %v238
  %v878 = vunpack.c.l.b16 %v239
  %v879 = vunpack.c.l.b16 %v240
  %v880 = vunpack.c.l.b16 %v241
  %v881 = vunpack.c.l.b16 %v242
  %v882 = vunpack.c.l.b16 %v243
  %v883 = vunpack.c.l.b16 %v244
  %v884 = vunpack.c.l.b16 %v245
  %v885 = vunpack.c.l.b16 %v246
  %v886 = vunpack.c.l.b16 %v247
  %v887 = vunpack.c.l.b16 %v248
  %v888 = vunpack.c.l.b16 %v249
  %v889 = vunpack.c.l.b16 %v250
  %v890 = vunpack.c.l.b16 %v251
  %v891 = vunpack.c.l.b16 %v252
  %v892 = vunpack.c.l.b16 %v253
  %v893 = vunpack.c.l.b16 %v254
  %v894 = vunpack.c.l.b16 %v255
  %v895 = vunpack.c.l.b16 %v256
  %v896 = vunpack.c.l.b16 %v257
  %v897 = vunpack.c.l.b16 %v258
  %v898 = vunpack.c.l.b16 %v259
  %v899 = vunpack.c.l.b16 %v260
  %v900 = vunpack.c.l.b16 %v261
  %v901 = vunpack.c.l.b16 %v262
  %v902 = vunpack.c.l.b16 %v263
  %v903 = vunpack.c.l.b16 %v264
  %v904 = vunpack.c.l.b16 %v265
  %v905 = vunpack.c.l.b16 %v266
  %v906 = vunpack.c.l.b16 %v267
  %v907 = vunpack.c.l.b16 %v268
  %v908 = vunpack.c.l.b16 %v269
  %v909 = vunpack.c.l.b16 %v270
  %v910 = vunpack.c.l.b16 %v271
  %v911 = vunpack.c.l.b16 %v272
  %v912 = vunpack.c.l.b16 %v273
  %v913 = vunpack.c.l.b16 %v274
  %v914 = vunpack.c.l.b16 %v275
  %v915 = vunpack.c.l.b16 %v276
  %v916 = vunpack.c.l.b16 %v277
  %v917 = vunpack.c.l.b16 %v278
  %v918 = vunpack.c.l.b16 %v279
  %v919 = vunpack.c.l.b16 %v280
  %v920 = vunpack.c.l.b16 %v281
  %v921 = vunpack.c.l.b16 %v282
  %v922 = vunpack.c.l.b16 %v283
  %v923 = vunpack.c.l.b16 %v284
  %v924 = vunpack.c.l.b16 %v285
  %v925 = vunpack.c.l.b16 %v286
  %v926 = vunpack.c.l.b16 %v287
  %v927 = vunpack.c.l.b16 %v288
  %v928 = vunpack.c.l.b16 %v289
  %v929 = vunpack.c.l.b16 %v290
  %v930 = vunpack.c.l.b16 %v291
  %v931 = vunpack.c.l.b16 %v292
  %v932 = vunpack.c.l.b16 %v293
  %v933 = vunpack.c.l.b16 %v294
  %v934 = vunpack.c.l.b16 %v295
  %v935 = vunpack.c.l.b16 %v296
  %v936 = vunpack.c.l.b16 %v297
  %v937 = vunpack.c.l.b16 %v298
  %v938 = vunpack.c.l.b16 %v299
  %v939 = vunpack.c.l.b16 %v300
  %v940 = vunpack.c.l.b16 %v301
  %v941 = vunpack.c.l.b16 %v302
  %v942 = vunpack.c.l.b16 %v303
  %v943 = vunpack.c.l.b16 %v304
  %v944 = vunpack.c.l.b16 %v305
  %v945 = vunpack.c.l.b16 %v306
  %v946 = vunpack.c.l.b16 %v307
  %v947 = vunpack.c.l.b16 %v308
  %v948 = vunpack.c.l.b16 %v309
  %v949 = vunpack.c.l.b16 %v310
  %v950 = vunpack.c.l.b16 %v311
  %v951 = vunpack.c.l.b16 %v312
  %v952 = vunpack.c.l.b16 %v313
  %v953 = vunpack.c.l.b16 %v314
  %v954 = vunpack.c.l.b16 %v315
  %v955 = vunpack.c.l.b16 %v316
  %v956 = vunpack.c.l.b16 %v317
  %v957 = vunpack.c.l.b16 %v318
  %v958 = vunpack.c.l.b16 %v319
  %v959 = vunpack.c.l.b16 %v320
  %v960 = vunpack.c.l.b16 %v321
  %v961 = vunpack.c.l.b16 %v322
  %v962 = vunpack.c.l.b16 %v323
  %v963 = vunpack.c.l.b16 %v324
  %v964 = vunpack.c.l.b16 %v325
  %v965 = vunpack.c.l.b16 %v326
  %v966 = vunpack.c.l.b16 %v327
  %v967 = vunpack.c.l.b16 %v328
  %v968 = vunpack.c.l.b16 %v329
  %v969 = vunpack.c.l.b16 %v330
  %v970 = vunpack.c.l.b16 %v331
  %v971 = vunpack.c.l.b16 %v332
  %v972 = vunpack.c.l.b16 %v333
  %v973 = vunpack.c.l.b16 %v334
  %v974 = vunpack.c.l.b16 %v335
  %v975 = vunpack.c.l.b16 %v336
  %v976 = vunpack.c.l.b16 %v337
  %v977 = vunpack.c.l.b16 %v338
  %v978 = vunpack.c.l.b16 %v339
  %v979 = vunpack.c.l.b16 %v340
  %v980 = vunpack.c.l.b16 %v341
  %v981 = vunpack.c.l.b16 %v342
  %v982 = vunpack.c.l.b16 %v343
  %v983 = vunpack.c.l.b16 %v344
  %v984 = vunpack.c.l.b16 %v345
  %v985 = vunpack.c.l.b16 %v346
  %v986 = vunpack.c.l.b16 %v347
  %v987 = vunpack.c.l.b16 %v348
  %v988 = vunpack.c.l.b16 %v349
  %v989 = vunpack.c.l.b16 %v350
  %v990 = vunpack.c.l.b16 %v351
  %v991 = vunpack.c.l.b16 %v352
  %v992 = vunpack.c.l.b16 %v353
  %v993 = vpack.c.b16 %v706, %v705
  %v994 = vpack.c.b16 %v708, %v707
  %v995 = vpack.c.b16 %v710, %v709
  %v996 = vpack.c.b16 %v712, %v711
  %v997 = vpack.c.b16 %v714, %v713
  %v998 = vpack.c.b16 %v716, %v715
  %v999 = vpack.c.b16 %v718, %v717
  %v1000 = vpack.c.b16 %v720, %v719
  %v1001 = vpack.c.b16 %v722, %v721
  %v1002 = vpack.c.b16 %v724, %v723
  %v1003 = vpack.c.b16 %v726, %v725
  %v1004 = vpack.c.b16 %v728, %v727
  %v1005 = vpack.c.b16 %v730, %v729
  %v1006 = vpack.c.b16 %v732, %v731
  %v1007 = vpack.c.b16 %v734, %v733
  %v1008 = vpack.c.b16 %v736, %v735
  %v1009 = vpack.c.b16 %v738, %v737
  %v1010 = vpack.c.b16 %v740, %v739
  %v1011 = vpack.c.b16 %v742, %v741
  %v1012 = vpack.c.b16 %v744, %v743
  %v1013 = vpack.c.b16 %v746, %v745
  %v1014 = vpack.c.b16 %v748, %v747
  %v1015 = vpack.c.b16 %v750, %v749
  %v1016 = vpack.c.b16 %v752, %v751
  %v1017 = vpack.c.b16 %v754, %v753
  %v1018 = vpack.c.b16 %v756, %v755
  %v1019 = vpack.c.b16 %v758, %v757
  %v1020 = vpack.c.b16 %v760, %v759
  %v1021 = vpack.c.b16 %v762, %v761
  %v1022 = vpack.c.b16 %v764, %v763
  %v1023 = vpack.c.b16 %v766, %v765
  %v1024 = vpack.c.b16 %v768, %v767
  %v1025 = vpack.c.b16 %v770, %v769
  %v1026 = vpack.c.b16 %v772, %v771
  %v1027 = vpack.c.b16 %v774, %v773
  %v1028 = vpack.c.b16 %v776, %v775
  %v1029 = vpack.c.b16 %v778, %v777
  %v1030 = vpack.c.b16 %v780, %v779
  %v1031 = vpack.c.b16 %v782, %v781
  %v1032 = vpack.c.b16 %v784, %v783
  %v1033 = vpack.c.b16 %v786, %v785
  %v1034 = vpack.c.b16 %v788, %v787
  %v1035 = vpack.c.b16 %v790, %v789
  %v1036 = vpack.c.b16 %v792, %v791
  %v1037 = vpack.c.b16 %v794, %v793
  %v1038 = vpack.c.b16 %v796, %v795
  %v1039 = vpack.c.b16 %v798, %v797
  %v1040 = vpack.c.b16 %v800, %v799
  %v1041 = vpack.c.b16 %v802, %v801
  %v1042 = vpack.c.b16 %v804, %v803
  %v1043 = vpack.c.b16 %v806, %v805
  %v1044 = vpack.c.b16 %v808, %v807
  %v1045 = vpack.c.b16 %v810, %v809
  %v1046 = vpack.c.b16 %v812, %v811
  %v1047 = vpack.c.b16 %v814, %v813
  %v1048 = vpack.c.b16 %v816, %v815
  %v1049 = vpack.c.b16 %v818, %v817
  %v1050 = vpack.c.b16 %v820, %v819
  %v1051 = vpack.c.b16 %v822, %v821
  %v1052 = vpack.c.b16 %v824, %v823
  %v1053 = vpack.c.b16 %v826, %v825
  %v1054 = vpack.c.b16 %v828, %v827
  %v1055 = vpack.c.b16 %v830, %v829
  %v1056 = vpack.c.b16 %v832, %v831
  %v1057 = vpack.c.b16 %v834, %v833
  %v1058 = vpack.c.b16 %v836, %v835
  %v1059 = vpack.c.b16 %v838, %v837
  %v1060 = vpack.c.b16 %v840, %v839
  %v1061 = vpack.c.b16 %v842, %v841
  %v1062 = vpack.c.b16 %v844, %v843
  %v1063 = vpack.c.b16 %v846, %v845
  %v1064 = vpack.c.b16 %v848, %v847
  %v1065 = vpack.c.b16 %v850, %v849
  %v1066 = vpack.c.b16 %v852, %v851
  %v1067 = vpack.c.b16 %v854, %v853
  %v1068 = vpack.c.b16 %v856, %v855
  %v1069 = vpack.c.b16 %v858, %v857
  %v1070 = vpack.c.b16 %v860, %v859
  %v1071 = vpack.c.b16 %v862, %v861
  %v1072 = vpack.c.b16 %v864, %v863
  %v1073 = vpack.c.b16 %v866, %v865
  %v1074 = vpack.c.b16 %v868, %v867
  %v1075 = vpack.c.b16 %v870, %v869
  %v1076 = vpack.c.b16 %v872, %v871
  %v1077 = vpack.c.b16 %v874, %v873
  %v1078 = vpack.c.b16 %v876, %v875
  %v1079 = vpack.c.b16 %v878, %v877
  %v1080 = vpack.c.b16 %v880, %v879
  %v1081 = vpack.c.b16 %v882, %v881
  %v1082 = vpack.c.b16 %v884, %v883
  %v1083 = vpack.c.b16 %v886, %v885
  %v1084 = vpack.c.b16 %v888, %v887
  %v1085 = vpack.c.b16 %v890, %v889
  %v1086 = vpack.c.b16 %v892, %v891
  %v1087 = vpack.c.b16 %v894, %v893
  %v1088 = vpack.c.b16 %v896, %v895
  %v1089 = vpack.c.b16 %v898, %v897
  %v1090 = vpack.c.b16 %v900, %v899
  %v1091 = vpack.c.b16 %v902, %v901
  %v1092 = vpack.c.b16 %v904, %v903
  %v1093 = vpack.c.b16 %v906, %v905
  %v1094 = vpack.c.b16 %v908, %v907
  %v1095 = vpack.c.b16 %v910, %v909
  %v1096 = vpack.c.b16 %v912, %v911
  %v1097 = vpack.c.b16 %v914, %v913
  %v1098 = vpack.c.b16 %v916, %v915
  %v1099 = vpack.c.b16 %v918, %v917
  %v1100 = vpack.c.b16 %v920, %v919
  %v1101 = vpack.c.b16 %v922, %v921
  %v1102 = vpack.c.b16 %v924, %v923
  %v1103 = vpack.c.b16 %v926, %v925
  %v1104 = vpack.c.b16 %v928, %v927
  %v1105 = vpack.c.b16 %v930, %v929
  %v1106 = vpack.c.b16 %v932, %v931
  %v1107 = vpack.c.b16 %v934, %v933
  %v1108 = vpack.c.b16 %v936, %v935
  %v1109 = vpack.c.b16 %v938, %v937
  %v1110 = vpack.c.b16 %v940, %v939
  %v1111 = vpack.c.b16 %v942, %v941
  %v1112 = vpack.c.b16 %v944, %v943
  %v1113 = vpack.c.b16 %v946, %v945
  %v1114 = vpack.c.b16 %v948, %v947
  %v1115 = vpack.c.b16 %v950, %v949
  %v1116 = vpack.c.b16 %v952, %v951
  %v1117 = vpack.c.b16 %v954, %v953
  %v1118 = vpack.c.b16 %v956, %v955
  %v1119 = vpack.c.b16 %v958, %v957
  %v1120 = vpack.c.b16 %v960, %v959
  %v1121 = vpack.c.b16 %v962, %v961
  %v1122 = vpack.c.b16 %v964, %v963
  %v1123 = vpack.c.b16 %v966, %v965
  %v1124 = vpack.c.b16 %v968, %v967
  %v1125 = vpack.c.b16 %v970, %v969
  %v1126 = vpack.c.b16 %v972, %v971
  %v1127 = vpack.c.b16 %v974, %v973
  %v1128 = vpack.c.b16 %v976, %v975
  %v1129 = vpack.c.b16 %v978, %v977
  %v1130 = vpack.c.b16 %v980, %v979
  %v1131 = vpack.c.b16 %v982, %v981
  %v1132 = vpack.c.b16 %v984, %v983
  %v1133 = vpack.c.b16 %v986, %v985
  %v1134 = vpack.c.b16 %v988, %v987
  %v1135 = vpack.c.b16 %v990, %v989
  %v1136 = vpack.c.b16 %v992, %v991
  %1281 = vmatprep.subr.bf16.mxu0 0
  %1282 = vmatpush1.bf16.msra.mxu0 %v993
  %1283 = vmatprep.subr.bf16.mxu0 0
  %1284 = vmatpush1.bf16.msra.mxu0 %v994
  %1285 = vmatprep.subr.bf16.mxu0 0
  %1286 = vmatpush1.bf16.msra.mxu0 %v995
  %1287 = vmatprep.subr.bf16.mxu0 0
  %1288 = vmatpush1.bf16.msra.mxu0 %v996
  %1289 = vmatprep.subr.bf16.mxu0 0
  %1290 = vmatpush1.bf16.msra.mxu0 %v997
  %1291 = vmatprep.subr.bf16.mxu0 0
  %1292 = vmatpush1.bf16.msra.mxu0 %v998
  %1293 = vmatprep.subr.bf16.mxu0 0
  %1294 = vmatpush1.bf16.msra.mxu0 %v999
  %1295 = vmatprep.subr.bf16.mxu0 0
  %1296 = vmatpush1.bf16.msra.mxu0 %v1000
  %1297 = vmatprep.subr.bf16.mxu0 0
  %1298 = vmatpush1.bf16.msra.mxu0 %v1001
  %1299 = vmatprep.subr.bf16.mxu0 0
  %1300 = vmatpush1.bf16.msra.mxu0 %v1002
  %1301 = vmatprep.subr.bf16.mxu0 0
  %1302 = vmatpush1.bf16.msra.mxu0 %v1003
  %1303 = vmatprep.subr.bf16.mxu0 0
  %1304 = vmatpush1.bf16.msra.mxu0 %v1004
  %1305 = vmatprep.subr.bf16.mxu0 0
  %1306 = vmatpush1.bf16.msra.mxu0 %v1005
  %1307 = vmatprep.subr.bf16.mxu0 0
  %1308 = vmatpush1.bf16.msra.mxu0 %v1006
  %1309 = vmatprep.subr.bf16.mxu0 0
  %1310 = vmatpush1.bf16.msra.mxu0 %v1007
  %1311 = vmatprep.subr.bf16.mxu0 0
  %1312 = vmatpush1.bf16.msra.mxu0 %v1008
  %1313 = vmatprep.mubr.bf16.mxu0 %v382
  %1314 = vmatmul.mubr.bf16.gmra.mrb[0].mxu0 %v381
  %v1315 = vpop.f32.mrb[0].mxu0
  %v1316 = vadd.f32 0.0, %v1315
  %v1317 = vpop.f32.mrb[0].mxu0
  %v1318 = vpop.f32.mrb[0].mxu0
  %v1319 = vpop.f32.mrb[0].mxu0
  %1320 = vdwg.mxu0
  %1321 = vmatprep.subr.bf16.mxu0 0
  %1322 = vmatpush1.bf16.msra.mxu0 %v1009
  %1323 = vmatprep.subr.bf16.mxu0 0
  %1324 = vmatpush1.bf16.msra.mxu0 %v1010
  %1325 = vmatprep.subr.bf16.mxu0 0
  %1326 = vmatpush1.bf16.msra.mxu0 %v1011
  %1327 = vmatprep.subr.bf16.mxu0 0
  %1328 = vmatpush1.bf16.msra.mxu0 %v1012
  %1329 = vmatprep.subr.bf16.mxu0 0
  %1330 = vmatpush1.bf16.msra.mxu0 %v1013
  %1331 = vmatprep.subr.bf16.mxu0 0
  %1332 = vmatpush1.bf16.msra.mxu0 %v1014
  %1333 = vmatprep.subr.bf16.mxu0 0
  %1334 = vmatpush1.bf16.msra.mxu0 %v1015
  %1335 = vmatprep.subr.bf16.mxu0 0
  %1336 = vmatpush1.bf16.msra.mxu0 %v1016
  %1337 = vmatprep.subr.bf16.mxu0 0
  %1338 = vmatpush1.bf16.msra.mxu0 %v1017
  %1339 = vmatprep.subr.bf16.mxu0 0
  %1340 = vmatpush1.bf16.msra.mxu0 %v1018
  %1341 = vmatprep.subr.bf16.mxu0 0
  %1342 = vmatpush1.bf16.msra.mxu0 %v1019
  %1343 = vmatprep.subr.bf16.mxu0 0
  %1344 = vmatpush1.bf16.msra.mxu0 %v1020
  %1345 = vmatprep.subr.bf16.mxu0 0
  %1346 = vmatpush1.bf16.msra.mxu0 %v1021
  %1347 = vmatprep.subr.bf16.mxu0 0
  %1348 = vmatpush1.bf16.msra.mxu0 %v1022
  %1349 = vmatprep.subr.bf16.mxu0 0
  %1350 = vmatpush1.bf16.msra.mxu0 %v1023
  %1351 = vmatprep.subr.bf16.mxu0 0
  %1352 = vmatpush1.bf16.msra.mxu0 %v1024
  %1353 = vmatprep.mubr.bf16.mxu0 %v384
  %1354 = vmatmul.mubr.bf16.gmra.mrb[0].mxu0 %v383
  %v1355 = vpop.f32.mrb[0].mxu0
  %v1356 = vadd.f32 %v1316, %v1355
  %v1357 = vpop.f32.mrb[0].mxu0
  %v1358 = vpop.f32.mrb[0].mxu0
  %v1359 = vpop.f32.mrb[0].mxu0
  %1360 = vdwg.mxu0
  %1361 = vmatprep.subr.bf16.mxu0 0
  %1362 = vmatpush1.bf16.msra.mxu0 %v1025
  %1363 = vmatprep.subr.bf16.mxu0 0
  %1364 = vmatpush1.bf16.msra.mxu0 %v1026
  %1365 = vmatprep.subr.bf16.mxu0 0
  %1366 = vmatpush1.bf16.msra.mxu0 %v1027
  %1367 = vmatprep.subr.bf16.mxu0 0
  %1368 = vmatpush1.bf16.msra.mxu0 %v1028
  %1369 = vmatprep.subr.bf16.mxu0 0
  %1370 = vmatpush1.bf16.msra.mxu0 %v1029
  %1371 = vmatprep.subr.bf16.mxu0 0
  %1372 = vmatpush1.bf16.msra.mxu0 %v1030
  %1373 = vmatprep.subr.bf16.mxu0 0
  %1374 = vmatpush1.bf16.msra.mxu0 %v1031
  %1375 = vmatprep.subr.bf16.mxu0 0
  %1376 = vmatpush1.bf16.msra.mxu0 %v1032
  %1377 = vmatprep.subr.bf16.mxu0 0
  %1378 = vmatpush1.bf16.msra.mxu0 %v1033
  %1379 = vmatprep.subr.bf16.mxu0 0
  %1380 = vmatpush1.bf16.msra.mxu0 %v1034
  %1381 = vmatprep.subr.bf16.mxu0 0
  %1382 = vmatpush1.bf16.msra.mxu0 %v1035
  %1383 = vmatprep.subr.bf16.mxu0 0
  %1384 = vmatpush1.bf16.msra.mxu0 %v1036
  %1385 = vmatprep.subr.bf16.mxu0 0
  %1386 = vmatpush1.bf16.msra.mxu0 %v1037
  %1387 = vmatprep.subr.bf16.mxu0 0
  %1388 = vmatpush1.bf16.msra.mxu0 %v1038
  %1389 = vmatprep.subr.bf16.mxu0 0
  %1390 = vmatpush1.bf16.msra.mxu0 %v1039
  %1391 = vmatprep.subr.bf16.mxu0 0
  %1392 = vmatpush1.bf16.msra.mxu0 %v1040
  %1393 = vmatprep.mubr.bf16.mxu0 %v386
  %1394 = vmatmul.mubr.bf16.gmra.mrb[0].mxu0 %v385
  %v1395 = vpop.f32.mrb[0].mxu0
  %v1396 = vadd.f32 %v1356, %v1395
  %v1397 = vpop.f32.mrb[0].mxu0
  %v1398 = vpop.f32.mrb[0].mxu0
  %v1399 = vpop.f32.mrb[0].mxu0
  %1400 = vdwg.mxu0
  %1401 = vmatprep.subr.bf16.mxu0 0
  %1402 = vmatpush1.bf16.msra.mxu0 %v1041
  %1403 = vmatprep.subr.bf16.mxu0 0
  %1404 = vmatpush1.bf16.msra.mxu0 %v1042
  %1405 = vmatprep.subr.bf16.mxu0 0
  %1406 = vmatpush1.bf16.msra.mxu0 %v1043
  %1407 = vmatprep.subr.bf16.mxu0 0
  %1408 = vmatpush1.bf16.msra.mxu0 %v1044
  %1409 = vmatprep.subr.bf16.mxu0 0
  %1410 = vmatpush1.bf16.msra.mxu0 %v1045
  %1411 = vmatprep.subr.bf16.mxu0 0
  %1412 = vmatpush1.bf16.msra.mxu0 %v1046
  %1413 = vmatprep.subr.bf16.mxu0 0
  %1414 = vmatpush1.bf16.msra.mxu0 %v1047
  %1415 = vmatprep.subr.bf16.mxu0 0
  %1416 = vmatpush1.bf16.msra.mxu0 %v1048
  %1417 = vmatprep.subr.bf16.mxu0 0
  %1418 = vmatpush1.bf16.msra.mxu0 %v1049
  %1419 = vmatprep.subr.bf16.mxu0 0
  %1420 = vmatpush1.bf16.msra.mxu0 %v1050
  %1421 = vmatprep.subr.bf16.mxu0 0
  %1422 = vmatpush1.bf16.msra.mxu0 %v1051
  %1423 = vmatprep.subr.bf16.mxu0 0
  %1424 = vmatpush1.bf16.msra.mxu0 %v1052
  %1425 = vmatprep.subr.bf16.mxu0 0
  %1426 = vmatpush1.bf16.msra.mxu0 %v1053
  %1427 = vmatprep.subr.bf16.mxu0 0
  %1428 = vmatpush1.bf16.msra.mxu0 %v1054
  %1429 = vmatprep.subr.bf16.mxu0 0
  %1430 = vmatpush1.bf16.msra.mxu0 %v1055
  %1431 = vmatprep.subr.bf16.mxu0 0
  %1432 = vmatpush1.bf16.msra.mxu0 %v1056
  %1433 = vmatprep.mubr.bf16.mxu0 %v388
  %1434 = vmatmul.mubr.bf16.gmra.mrb[0].mxu0 %v387
  %v1435 = vpop.f32.mrb[0].mxu0
  %v1436 = vadd.f32 %v1396, %v1435
  %v1437 = vpop.f32.mrb[0].mxu0
  %v1438 = vpop.f32.mrb[0].mxu0
  %v1439 = vpop.f32.mrb[0].mxu0
  %1440 = vdwg.mxu0
  %1441 = vmatprep.subr.bf16.mxu0 0
  %1442 = vmatpush1.bf16.msra.mxu0 %v1057
  %1443 = vmatprep.subr.bf16.mxu0 0
  %1444 = vmatpush1.bf16.msra.mxu0 %v1058
  %1445 = vmatprep.subr.bf16.mxu0 0
  %1446 = vmatpush1.bf16.msra.mxu0 %v1059
  %1447 = vmatprep.subr.bf16.mxu0 0
  %1448 = vmatpush1.bf16.msra.mxu0 %v1060
  %1449 = vmatprep.subr.bf16.mxu0 0
  %1450 = vmatpush1.bf16.msra.mxu0 %v1061
  %1451 = vmatprep.subr.bf16.mxu0 0
  %1452 = vmatpush1.bf16.msra.mxu0 %v1062
  %1453 = vmatprep.subr.bf16.mxu0 0
  %1454 = vmatpush1.bf16.msra.mxu0 %v1063
  %1455 = vmatprep.subr.bf16.mxu0 0
  %1456 = vmatpush1.bf16.msra.mxu0 %v1064
  %1457 = vmatprep.subr.bf16.mxu0 0
  %1458 = vmatpush1.bf16.msra.mxu0 %v1065
  %1459 = vmatprep.subr.bf16.mxu0 0
  %1460 = vmatpush1.bf16.msra.mxu0 %v1066
  %1461 = vmatprep.subr.bf16.mxu0 0
  %1462 = vmatpush1.bf16.msra.mxu0 %v1067
  %1463 = vmatprep.subr.bf16.mxu0 0
  %1464 = vmatpush1.bf16.msra.mxu0 %v1068
  %1465 = vmatprep.subr.bf16.mxu0 0
  %1466 = vmatpush1.bf16.msra.mxu0 %v1069
  %1467 = vmatprep.subr.bf16.mxu0 0
  %1468 = vmatpush1.bf16.msra.mxu0 %v1070
  %1469 = vmatprep.subr.bf16.mxu0 0
  %1470 = vmatpush1.bf16.msra.mxu0 %v1071
  %1471 = vmatprep.subr.bf16.mxu0 0
  %1472 = vmatpush1.bf16.msra.mxu0 %v1072
  %1473 = vmatprep.mubr.bf16.mxu0 %v390
  %1474 = vmatmul.mubr.bf16.gmra.mrb[0].mxu0 %v389
  %v1475 = vpop.f32.mrb[0].mxu0
  %v1476 = vadd.f32 %v1436, %v1475
  %v1477 = vpop.f32.mrb[0].mxu0
  %v1478 = vpop.f32.mrb[0].mxu0
  %v1479 = vpop.f32.mrb[0].mxu0
  %1480 = vdwg.mxu0
  %1481 = vmatprep.subr.bf16.mxu0 0
  %1482 = vmatpush1.bf16.msra.mxu0 %v1073
  %1483 = vmatprep.subr.bf16.mxu0 0
  %1484 = vmatpush1.bf16.msra.mxu0 %v1074
  %1485 = vmatprep.subr.bf16.mxu0 0
  %1486 = vmatpush1.bf16.msra.mxu0 %v1075
  %1487 = vmatprep.subr.bf16.mxu0 0
  %1488 = vmatpush1.bf16.msra.mxu0 %v1076
  %1489 = vmatprep.subr.bf16.mxu0 0
  %1490 = vmatpush1.bf16.msra.mxu0 %v1077
  %1491 = vmatprep.subr.bf16.mxu0 0
  %1492 = vmatpush1.bf16.msra.mxu0 %v1078
  %1493 = vmatprep.subr.bf16.mxu0 0
  %1494 = vmatpush1.bf16.msra.mxu0 %v1079
  %1495 = vmatprep.subr.bf16.mxu0 0
  %1496 = vmatpush1.bf16.msra.mxu0 %v1080
  %1497 = vmatprep.subr.bf16.mxu0 0
  %1498 = vmatpush1.bf16.msra.mxu0 %v1081
  %1499 = vmatprep.subr.bf16.mxu0 0
  %1500 = vmatpush1.bf16.msra.mxu0 %v1082
  %1501 = vmatprep.subr.bf16.mxu0 0
  %1502 = vmatpush1.bf16.msra.mxu0 %v1083
  %1503 = vmatprep.subr.bf16.mxu0 0
  %1504 = vmatpush1.bf16.msra.mxu0 %v1084
  %1505 = vmatprep.subr.bf16.mxu0 0
  %1506 = vmatpush1.bf16.msra.mxu0 %v1085
  %1507 = vmatprep.subr.bf16.mxu0 0
  %1508 = vmatpush1.bf16.msra.mxu0 %v1086
  %1509 = vmatprep.subr.bf16.mxu0 0
  %1510 = vmatpush1.bf16.msra.mxu0 %v1087
  %1511 = vmatprep.subr.bf16.mxu0 0
  %1512 = vmatpush1.bf16.msra.mxu0 %v1088
  %1513 = vmatprep.mubr.bf16.mxu0 %v392
  %1514 = vmatmul.mubr.bf16.gmra.mrb[0].mxu0 %v391
  %v1515 = vpop.f32.mrb[0].mxu0
  %v1516 = vadd.f32 %v1476, %v1515
  %v1517 = vpop.f32.mrb[0].mxu0
  %v1518 = vpop.f32.mrb[0].mxu0
  %v1519 = vpop.f32.mrb[0].mxu0
  %1520 = vdwg.mxu0
  %1521 = vmatprep.subr.bf16.mxu0 0
  %1522 = vmatpush1.bf16.msra.mxu0 %v1089
  %1523 = vmatprep.subr.bf16.mxu0 0
  %1524 = vmatpush1.bf16.msra.mxu0 %v1090
  %1525 = vmatprep.subr.bf16.mxu0 0
  %1526 = vmatpush1.bf16.msra.mxu0 %v1091
  %1527 = vmatprep.subr.bf16.mxu0 0
  %1528 = vmatpush1.bf16.msra.mxu0 %v1092
  %1529 = vmatprep.subr.bf16.mxu0 0
  %1530 = vmatpush1.bf16.msra.mxu0 %v1093
  %1531 = vmatprep.subr.bf16.mxu0 0
  %1532 = vmatpush1.bf16.msra.mxu0 %v1094
  %1533 = vmatprep.subr.bf16.mxu0 0
  %1534 = vmatpush1.bf16.msra.mxu0 %v1095
  %1535 = vmatprep.subr.bf16.mxu0 0
  %1536 = vmatpush1.bf16.msra.mxu0 %v1096
  %1537 = vmatprep.subr.bf16.mxu0 0
  %1538 = vmatpush1.bf16.msra.mxu0 %v1097
  %1539 = vmatprep.subr.bf16.mxu0 0
  %1540 = vmatpush1.bf16.msra.mxu0 %v1098
  %1541 = vmatprep.subr.bf16.mxu0 0
  %1542 = vmatpush1.bf16.msra.mxu0 %v1099
  %1543 = vmatprep.subr.bf16.mxu0 0
  %1544 = vmatpush1.bf16.msra.mxu0 %v1100
  %1545 = vmatprep.subr.bf16.mxu0 0
  %1546 = vmatpush1.bf16.msra.mxu0 %v1101
  %1547 = vmatprep.subr.bf16.mxu0 0
  %1548 = vmatpush1.bf16.msra.mxu0 %v1102
  %1549 = vmatprep.subr.bf16.mxu0 0
  %1550 = vmatpush1.bf16.msra.mxu0 %v1103
  %1551 = vmatprep.subr.bf16.mxu0 0
  %1552 = vmatpush1.bf16.msra.mxu0 %v1104
  %1553 = vmatprep.mubr.bf16.mxu0 %v394
  %1554 = vmatmul.mubr.bf16.gmra.mrb[0].mxu0 %v393
  %v1555 = vpop.f32.mrb[0].mxu0
  %v1556 = vadd.f32 %v1516, %v1555
  %v1557 = vpop.f32.mrb[0].mxu0
  %v1558 = vpop.f32.mrb[0].mxu0
  %v1559 = vpop.f32.mrb[0].mxu0
  %1560 = vdwg.mxu0
  %1561 = vmatprep.subr.bf16.mxu0 0
  %1562 = vmatpush1.bf16.msra.mxu0 %v1105
  %1563 = vmatprep.subr.bf16.mxu0 0
  %1564 = vmatpush1.bf16.msra.mxu0 %v1106
  %1565 = vmatprep.subr.bf16.mxu0 0
  %1566 = vmatpush1.bf16.msra.mxu0 %v1107
  %1567 = vmatprep.subr.bf16.mxu0 0
  %1568 = vmatpush1.bf16.msra.mxu0 %v1108
  %1569 = vmatprep.subr.bf16.mxu0 0
  %1570 = vmatpush1.bf16.msra.mxu0 %v1109
  %1571 = vmatprep.subr.bf16.mxu0 0
  %1572 = vmatpush1.bf16.msra.mxu0 %v1110
  %1573 = vmatprep.subr.bf16.mxu0 0
  %1574 = vmatpush1.bf16.msra.mxu0 %v1111
  %1575 = vmatprep.subr.bf16.mxu0 0
  %1576 = vmatpush1.bf16.msra.mxu0 %v1112
  %1577 = vmatprep.subr.bf16.mxu0 0
  %1578 = vmatpush1.bf16.msra.mxu0 %v1113
  %1579 = vmatprep.subr.bf16.mxu0 0
  %1580 = vmatpush1.bf16.msra.mxu0 %v1114
  %1581 = vmatprep.subr.bf16.mxu0 0
  %1582 = vmatpush1.bf16.msra.mxu0 %v1115
  %1583 = vmatprep.subr.bf16.mxu0 0
  %1584 = vmatpush1.bf16.msra.mxu0 %v1116
  %1585 = vmatprep.subr.bf16.mxu0 0
  %1586 = vmatpush1.bf16.msra.mxu0 %v1117
  %1587 = vmatprep.subr.bf16.mxu0 0
  %1588 = vmatpush1.bf16.msra.mxu0 %v1118
  %1589 = vmatprep.subr.bf16.mxu0 0
  %1590 = vmatpush1.bf16.msra.mxu0 %v1119
  %1591 = vmatprep.subr.bf16.mxu0 0
  %1592 = vmatpush1.bf16.msra.mxu0 %v1120
  %1593 = vmatprep.mubr.bf16.mxu0 %v396
  %1594 = vmatmul.mubr.bf16.gmra.mrb[0].mxu0 %v395
  %v1595 = vpop.f32.mrb[0].mxu0
  %v1596 = vadd.f32 %v1556, %v1595
  %v1597 = vpop.f32.mrb[0].mxu0
  %v1598 = vpop.f32.mrb[0].mxu0
  %v1599 = vpop.f32.mrb[0].mxu0
  %1600 = vdwg.mxu0
  %1601 = vmatprep.subr.bf16.mxu0 0
  %1602 = vmatpush1.bf16.msra.mxu0 %v1121
  %1603 = vmatprep.subr.bf16.mxu0 0
  %1604 = vmatpush1.bf16.msra.mxu0 %v1122
  %1605 = vmatprep.subr.bf16.mxu0 0
  %1606 = vmatpush1.bf16.msra.mxu0 %v1123
  %1607 = vmatprep.subr.bf16.mxu0 0
  %1608 = vmatpush1.bf16.msra.mxu0 %v1124
  %1609 = vmatprep.subr.bf16.mxu0 0
  %1610 = vmatpush1.bf16.msra.mxu0 %v1125
  %1611 = vmatprep.subr.bf16.mxu0 0
  %1612 = vmatpush1.bf16.msra.mxu0 %v1126
  %1613 = vmatprep.subr.bf16.mxu0 0
  %1614 = vmatpush1.bf16.msra.mxu0 %v1127
  %1615 = vmatprep.subr.bf16.mxu0 0
  %1616 = vmatpush1.bf16.msra.mxu0 %v1128
  %1617 = vmatprep.subr.bf16.mxu0 0
  %1618 = vmatpush1.bf16.msra.mxu0 %v1129
  %1619 = vmatprep.subr.bf16.mxu0 0
  %1620 = vmatpush1.bf16.msra.mxu0 %v1130
  %1621 = vmatprep.subr.bf16.mxu0 0
  %1622 = vmatpush1.bf16.msra.mxu0 %v1131
  %1623 = vmatprep.subr.bf16.mxu0 0
  %1624 = vmatpush1.bf16.msra.mxu0 %v1132
  %1625 = vmatprep.subr.bf16.mxu0 0
  %1626 = vmatpush1.bf16.msra.mxu0 %v1133
  %1627 = vmatprep.subr.bf16.mxu0 0
  %1628 = vmatpush1.bf16.msra.mxu0 %v1134
  %1629 = vmatprep.subr.bf16.mxu0 0
  %1630 = vmatpush1.bf16.msra.mxu0 %v1135
  %1631 = vmatprep.subr.bf16.mxu0 0
  %1632 = vmatpush1.bf16.msra.mxu0 %v1136
  %1633 = vmatprep.mubr.bf16.mxu0 %v398
  %1634 = vmatmul.mubr.bf16.gmra.mrb[0].mxu0 %v397
  %v1635 = vpop.f32.mrb[0].mxu0
  %v1636 = vadd.f32 %v1596, %v1635
  %v1637 = vpop.f32.mrb[0].mxu0
  %v1638 = vpop.f32.mrb[0].mxu0
  %v1639 = vpop.f32.mrb[0].mxu0
  %1640 = vdwg.mxu0
  %v1641 = vld [vmem:[%s2] sm:$0xff]
  %v1642 = vld [vmem:[%s2 + $0x8] sm:$0xff]
  %v1643 = vld [vmem:[%s2 + $0x10] sm:$0xff]
  %v1644 = vld [vmem:[%s2 + $0x18] sm:$0xff]
  %v1645 = vld [vmem:[%s2 + $0x20] sm:$0xff]
  %v1646 = vld [vmem:[%s2 + $0x28] sm:$0xff]
  %v1647 = vld [vmem:[%s2 + $0x30] sm:$0xff]
  %v1648 = vld [vmem:[%s2 + $0x38] sm:$0xff]
  %v1649 = vld [vmem:[%s2 + $0x40] sm:$0xff]
  %v1659 = vunpack.c.l.b16 %v1641
  %v1660 = vunpack.c.h.b16 %v1641
  %v1661 = vunpack.c.l.b16 %v1642
  %v1662 = vunpack.c.h.b16 %v1642
  %v1663 = vunpack.c.l.b16 %v1643
  %v1664 = vunpack.c.h.b16 %v1643
  %v1665 = vunpack.c.l.b16 %v1644
  %v1666 = vunpack.c.h.b16 %v1644
  %v1667 = vunpack.c.l.b16 %v1645
  %v1668 = vunpack.c.h.b16 %v1645
  %v1669 = vunpack.c.l.b16 %v1646
  %v1670 = vunpack.c.h.b16 %v1646
  %v1671 = vunpack.c.l.b16 %v1647
  %v1672 = vunpack.c.h.b16 %v1647
  %v1673 = vunpack.c.l.b16 %v1648
  %v1674 = vunpack.c.h.b16 %v1648
  %v1675 = vunpack.c.l.b16 %v1649
  %v1676 = vunpack.c.h.b16 %v1649
  %v1677 = vpack.c.b16 %v1659, %v1659
  %v1678 = vpack.c.b16 %v1660, %v1660
  %v1679 = vpack.c.b16 %v1661, %v1661
  %v1680 = vpack.c.b16 %v1662, %v1662
  %v1681 = vpack.c.b16 %v1663, %v1663
  %v1682 = vpack.c.b16 %v1664, %v1664
  %v1683 = vpack.c.b16 %v1665, %v1665
  %v1684 = vpack.c.b16 %v1666, %v1666
  %v1685 = vpack.c.b16 %v1667, %v1667
  %v1686 = vpack.c.b16 %v1668, %v1668
  %v1687 = vpack.c.b16 %v1669, %v1669
  %v1688 = vpack.c.b16 %v1670, %v1670
  %v1689 = vpack.c.b16 %v1671, %v1671
  %v1690 = vpack.c.b16 %v1672, %v1672
  %v1691 = vpack.c.b16 %v1673, %v1673
  %v1692 = vpack.c.b16 %v1674, %v1674
  %v1693 = vpack.c.b16 %v1675, %v1675
  %v1694 = vpack.c.b16 %v1676, %v1676
  %1713 = vmatprep.subr.bf16.mxu0 0
  %1714 = vmatpush1.bf16.msra.mxu0 %v993
  %1715 = vmatprep.subr.bf16.mxu0 0
  %1716 = vmatpush1.bf16.msra.mxu0 %v994
  %1717 = vmatprep.subr.bf16.mxu0 0
  %1718 = vmatpush1.bf16.msra.mxu0 %v995
  %1719 = vmatprep.subr.bf16.mxu0 0
  %1720 = vmatpush1.bf16.msra.mxu0 %v996
  %1721 = vmatprep.subr.bf16.mxu0 0
  %1722 = vmatpush1.bf16.msra.mxu0 %v997
  %1723 = vmatprep.subr.bf16.mxu0 0
  %1724 = vmatpush1.bf16.msra.mxu0 %v998
  %1725 = vmatprep.subr.bf16.mxu0 0
  %1726 = vmatpush1.bf16.msra.mxu0 %v999
  %1727 = vmatprep.subr.bf16.mxu0 0
  %1728 = vmatpush1.bf16.msra.mxu0 %v1000
  %1729 = vmatprep.subr.bf16.mxu0 0
  %1730 = vmatpush1.bf16.msra.mxu0 %v1001
  %1731 = vmatprep.subr.bf16.mxu0 0
  %1732 = vmatpush1.bf16.msra.mxu0 %v1002
  %1733 = vmatprep.subr.bf16.mxu0 0
  %1734 = vmatpush1.bf16.msra.mxu0 %v1003
  %1735 = vmatprep.subr.bf16.mxu0 0
  %1736 = vmatpush1.bf16.msra.mxu0 %v1004
  %1737 = vmatprep.subr.bf16.mxu0 0
  %1738 = vmatpush1.bf16.msra.mxu0 %v1005
  %1739 = vmatprep.subr.bf16.mxu0 0
  %1740 = vmatpush1.bf16.msra.mxu0 %v1006
  %1741 = vmatprep.subr.bf16.mxu0 0
  %1742 = vmatpush1.bf16.msra.mxu0 %v1007
  %1743 = vmatprep.subr.bf16.mxu0 0
  %1744 = vmatpush1.bf16.msra.mxu0 %v1008
  %1745 = vmatprep.mubr.bf16.mxu0 %v1678
  %1746 = vmatmul.mubr.bf16.gmra.mrb[0].mxu0 %v1677
  %v1747 = vpop.f32.mrb[0].mxu0
  %v1748 = vadd.f32 0.0, %v1747
  %v1749 = vpop.f32.mrb[0].mxu0
  %v1750 = vpop.f32.mrb[0].mxu0
  %v1751 = vpop.f32.mrb[0].mxu0
  %1752 = vdwg.mxu0
  %1753 = vmatprep.subr.bf16.mxu0 0
  %1754 = vmatpush1.bf16.msra.mxu0 %v1009
  %1755 = vmatprep.subr.bf16.mxu0 0
  %1756 = vmatpush1.bf16.msra.mxu0 %v1010
  %1757 = vmatprep.subr.bf16.mxu0 0
  %1758 = vmatpush1.bf16.msra.mxu0 %v1011
  %1759 = vmatprep.subr.bf16.mxu0 0
  %1760 = vmatpush1.bf16.msra.mxu0 %v1012
  %1761 = vmatprep.subr.bf16.mxu0 0
  %1762 = vmatpush1.bf16.msra.mxu0 %v1013
  %1763 = vmatprep.subr.bf16.mxu0 0
  %1764 = vmatpush1.bf16.msra.mxu0 %v1014
  %1765 = vmatprep.subr.bf16.mxu0 0
  %1766 = vmatpush1.bf16.msra.mxu0 %v1015
  %1767 = vmatprep.subr.bf16.mxu0 0
  %1768 = vmatpush1.bf16.msra.mxu0 %v1016
  %1769 = vmatprep.subr.bf16.mxu0 0
  %1770 = vmatpush1.bf16.msra.mxu0 %v1017
  %1771 = vmatprep.subr.bf16.mxu0 0
  %1772 = vmatpush1.bf16.msra.mxu0 %v1018
  %1773 = vmatprep.subr.bf16.mxu0 0
  %1774 = vmatpush1.bf16.msra.mxu0 %v1019
  %1775 = vmatprep.subr.bf16.mxu0 0
  %1776 = vmatpush1.bf16.msra.mxu0 %v1020
  %1777 = vmatprep.subr.bf16.mxu0 0
  %1778 = vmatpush1.bf16.msra.mxu0 %v1021
  %1779 = vmatprep.subr.bf16.mxu0 0
  %1780 = vmatpush1.bf16.msra.mxu0 %v1022
  %1781 = vmatprep.subr.bf16.mxu0 0
  %1782 = vmatpush1.bf16.msra.mxu0 %v1023
  %1783 = vmatprep.subr.bf16.mxu0 0
  %1784 = vmatpush1.bf16.msra.mxu0 %v1024
  %1785 = vmatprep.mubr.bf16.mxu0 %v1680
  %1786 = vmatmul.mubr.bf16.gmra.mrb[0].mxu0 %v1679
  %v1787 = vpop.f32.mrb[0].mxu0
  %v1788 = vadd.f32 %v1748, %v1787
  %v1789 = vpop.f32.mrb[0].mxu0
  %v1790 = vpop.f32.mrb[0].mxu0
  %v1791 = vpop.f32.mrb[0].mxu0
  %1792 = vdwg.mxu0
  %1793 = vmatprep.subr.bf16.mxu0 0
  %1794 = vmatpush1.bf16.msra.mxu0 %v1025
  %1795 = vmatprep.subr.bf16.mxu0 0
  %1796 = vmatpush1.bf16.msra.mxu0 %v1026
  %1797 = vmatprep.subr.bf16.mxu0 0
  %1798 = vmatpush1.bf16.msra.mxu0 %v1027
  %1799 = vmatprep.subr.bf16.mxu0 0
  %1800 = vmatpush1.bf16.msra.mxu0 %v1028
  %1801 = vmatprep.subr.bf16.mxu0 0
  %1802 = vmatpush1.bf16.msra.mxu0 %v1029
  %1803 = vmatprep.subr.bf16.mxu0 0
  %1804 = vmatpush1.bf16.msra.mxu0 %v1030
  %1805 = vmatprep.subr.bf16.mxu0 0
  %1806 = vmatpush1.bf16.msra.mxu0 %v1031
  %1807 = vmatprep.subr.bf16.mxu0 0
  %1808 = vmatpush1.bf16.msra.mxu0 %v1032
  %1809 = vmatprep.subr.bf16.mxu0 0
  %1810 = vmatpush1.bf16.msra.mxu0 %v1033
  %1811 = vmatprep.subr.bf16.mxu0 0
  %1812 = vmatpush1.bf16.msra.mxu0 %v1034
  %1813 = vmatprep.subr.bf16.mxu0 0
  %1814 = vmatpush1.bf16.msra.mxu0 %v1035
  %1815 = vmatprep.subr.bf16.mxu0 0
  %1816 = vmatpush1.bf16.msra.mxu0 %v1036
  %1817 = vmatprep.subr.bf16.mxu0 0
  %1818 = vmatpush1.bf16.msra.mxu0 %v1037
  %1819 = vmatprep.subr.bf16.mxu0 0
  %1820 = vmatpush1.bf16.msra.mxu0 %v1038
  %1821 = vmatprep.subr.bf16.mxu0 0
  %1822 = vmatpush1.bf16.msra.mxu0 %v1039
  %1823 = vmatprep.subr.bf16.mxu0 0
  %1824 = vmatpush1.bf16.msra.mxu0 %v1040
  %1825 = vmatprep.mubr.bf16.mxu0 %v1682
  %1826 = vmatmul.mubr.bf16.gmra.mrb[0].mxu0 %v1681
  %v1827 = vpop.f32.mrb[0].mxu0
  %v1828 = vadd.f32 %v1788, %v1827
  %v1829 = vpop.f32.mrb[0].mxu0
  %v1830 = vpop.f32.mrb[0].mxu0
  %v1831 = vpop.f32.mrb[0].mxu0
  %1832 = vdwg.mxu0
  %1833 = vmatprep.subr.bf16.mxu0 0
  %1834 = vmatpush1.bf16.msra.mxu0 %v1041
  %1835 = vmatprep.subr.bf16.mxu0 0
  %1836 = vmatpush1.bf16.msra.mxu0 %v1042
  %1837 = vmatprep.subr.bf16.mxu0 0
  %1838 = vmatpush1.bf16.msra.mxu0 %v1043
  %1839 = vmatprep.subr.bf16.mxu0 0
  %1840 = vmatpush1.bf16.msra.mxu0 %v1044
  %1841 = vmatprep.subr.bf16.mxu0 0
  %1842 = vmatpush1.bf16.msra.mxu0 %v1045
  %1843 = vmatprep.subr.bf16.mxu0 0
  %1844 = vmatpush1.bf16.msra.mxu0 %v1046
  %1845 = vmatprep.subr.bf16.mxu0 0
  %1846 = vmatpush1.bf16.msra.mxu0 %v1047
  %1847 = vmatprep.subr.bf16.mxu0 0
  %1848 = vmatpush1.bf16.msra.mxu0 %v1048
  %1849 = vmatprep.subr.bf16.mxu0 0
  %1850 = vmatpush1.bf16.msra.mxu0 %v1049
  %1851 = vmatprep.subr.bf16.mxu0 0
  %1852 = vmatpush1.bf16.msra.mxu0 %v1050
  %1853 = vmatprep.subr.bf16.mxu0 0
  %1854 = vmatpush1.bf16.msra.mxu0 %v1051
  %1855 = vmatprep.subr.bf16.mxu0 0
  %1856 = vmatpush1.bf16.msra.mxu0 %v1052
  %1857 = vmatprep.subr.bf16.mxu0 0
  %1858 = vmatpush1.bf16.msra.mxu0 %v1053
  %1859 = vmatprep.subr.bf16.mxu0 0
  %1860 = vmatpush1.bf16.msra.mxu0 %v1054
  %1861 = vmatprep.subr.bf16.mxu0 0
  %1862 = vmatpush1.bf16.msra.mxu0 %v1055
  %1863 = vmatprep.subr.bf16.mxu0 0
  %1864 = vmatpush1.bf16.msra.mxu0 %v1056
  %1865 = vmatprep.mubr.bf16.mxu0 %v1684
  %1866 = vmatmul.mubr.bf16.gmra.mrb[0].mxu0 %v1683
  %v1867 = vpop.f32.mrb[0].mxu0
  %v1868 = vadd.f32 %v1828, %v1867
  %v1869 = vpop.f32.mrb[0].mxu0
  %v1870 = vpop.f32.mrb[0].mxu0
  %v1871 = vpop.f32.mrb[0].mxu0
  %1872 = vdwg.mxu0
  %1873 = vmatprep.subr.bf16.mxu0 0
  %1874 = vmatpush1.bf16.msra.mxu0 %v1057
  %1875 = vmatprep.subr.bf16.mxu0 0
  %1876 = vmatpush1.bf16.msra.mxu0 %v1058
  %1877 = vmatprep.subr.bf16.mxu0 0
  %1878 = vmatpush1.bf16.msra.mxu0 %v1059
  %1879 = vmatprep.subr.bf16.mxu0 0
  %1880 = vmatpush1.bf16.msra.mxu0 %v1060
  %1881 = vmatprep.subr.bf16.mxu0 0
  %1882 = vmatpush1.bf16.msra.mxu0 %v1061
  %1883 = vmatprep.subr.bf16.mxu0 0
  %1884 = vmatpush1.bf16.msra.mxu0 %v1062
  %1885 = vmatprep.subr.bf16.mxu0 0
  %1886 = vmatpush1.bf16.msra.mxu0 %v1063
  %1887 = vmatprep.subr.bf16.mxu0 0
  %1888 = vmatpush1.bf16.msra.mxu0 %v1064
  %1889 = vmatprep.subr.bf16.mxu0 0
  %1890 = vmatpush1.bf16.msra.mxu0 %v1065
  %1891 = vmatprep.subr.bf16.mxu0 0
  %1892 = vmatpush1.bf16.msra.mxu0 %v1066
  %1893 = vmatprep.subr.bf16.mxu0 0
  %1894 = vmatpush1.bf16.msra.mxu0 %v1067
  %1895 = vmatprep.subr.bf16.mxu0 0
  %1896 = vmatpush1.bf16.msra.mxu0 %v1068
  %1897 = vmatprep.subr.bf16.mxu0 0
  %1898 = vmatpush1.bf16.msra.mxu0 %v1069
  %1899 = vmatprep.subr.bf16.mxu0 0
  %1900 = vmatpush1.bf16.msra.mxu0 %v1070
  %1901 = vmatprep.subr.bf16.mxu0 0
  %1902 = vmatpush1.bf16.msra.mxu0 %v1071
  %1903 = vmatprep.subr.bf16.mxu0 0
  %1904 = vmatpush1.bf16.msra.mxu0 %v1072
  %1905 = vmatprep.mubr.bf16.mxu0 %v1686
  %1906 = vmatmul.mubr.bf16.gmra.mrb[0].mxu0 %v1685
  %v1907 = vpop.f32.mrb[0].mxu0
  %v1908 = vadd.f32 %v1868, %v1907
  %v1909 = vpop.f32.mrb[0].mxu0
  %v1910 = vpop.f32.mrb[0].mxu0
  %v1911 = vpop.f32.mrb[0].mxu0
  %1912 = vdwg.mxu0
  %1913 = vmatprep.subr.bf16.mxu0 0
  %1914 = vmatpush1.bf16.msra.mxu0 %v1073
  %1915 = vmatprep.subr.bf16.mxu0 0
  %1916 = vmatpush1.bf16.msra.mxu0 %v1074
  %1917 = vmatprep.subr.bf16.mxu0 0
  %1918 = vmatpush1.bf16.msra.mxu0 %v1075
  %1919 = vmatprep.subr.bf16.mxu0 0
  %1920 = vmatpush1.bf16.msra.mxu0 %v1076
  %1921 = vmatprep.subr.bf16.mxu0 0
  %1922 = vmatpush1.bf16.msra.mxu0 %v1077
  %1923 = vmatprep.subr.bf16.mxu0 0
  %1924 = vmatpush1.bf16.msra.mxu0 %v1078
  %1925 = vmatprep.subr.bf16.mxu0 0
  %1926 = vmatpush1.bf16.msra.mxu0 %v1079
  %1927 = vmatprep.subr.bf16.mxu0 0
  %1928 = vmatpush1.bf16.msra.mxu0 %v1080
  %1929 = vmatprep.subr.bf16.mxu0 0
  %1930 = vmatpush1.bf16.msra.mxu0 %v1081
  %1931 = vmatprep.subr.bf16.mxu0 0
  %1932 = vmatpush1.bf16.msra.mxu0 %v1082
  %1933 = vmatprep.subr.bf16.mxu0 0
  %1934 = vmatpush1.bf16.msra.mxu0 %v1083
  %1935 = vmatprep.subr.bf16.mxu0 0
  %1936 = vmatpush1.bf16.msra.mxu0 %v1084
  %1937 = vmatprep.subr.bf16.mxu0 0
  %1938 = vmatpush1.bf16.msra.mxu0 %v1085
  %1939 = vmatprep.subr.bf16.mxu0 0
  %1940 = vmatpush1.bf16.msra.mxu0 %v1086
  %1941 = vmatprep.subr.bf16.mxu0 0
  %1942 = vmatpush1.bf16.msra.mxu0 %v1087
  %1943 = vmatprep.subr.bf16.mxu0 0
  %1944 = vmatpush1.bf16.msra.mxu0 %v1088
  %1945 = vmatprep.mubr.bf16.mxu0 %v1688
  %1946 = vmatmul.mubr.bf16.gmra.mrb[0].mxu0 %v1687
  %v1947 = vpop.f32.mrb[0].mxu0
  %v1948 = vadd.f32 %v1908, %v1947
  %v1949 = vpop.f32.mrb[0].mxu0
  %v1950 = vpop.f32.mrb[0].mxu0
  %v1951 = vpop.f32.mrb[0].mxu0
  %1952 = vdwg.mxu0
  %1953 = vmatprep.subr.bf16.mxu0 0
  %1954 = vmatpush1.bf16.msra.mxu0 %v1089
  %1955 = vmatprep.subr.bf16.mxu0 0
  %1956 = vmatpush1.bf16.msra.mxu0 %v1090
  %1957 = vmatprep.subr.bf16.mxu0 0
  %1958 = vmatpush1.bf16.msra.mxu0 %v1091
  %1959 = vmatprep.subr.bf16.mxu0 0
  %1960 = vmatpush1.bf16.msra.mxu0 %v1092
  %1961 = vmatprep.subr.bf16.mxu0 0
  %1962 = vmatpush1.bf16.msra.mxu0 %v1093
  %1963 = vmatprep.subr.bf16.mxu0 0
  %1964 = vmatpush1.bf16.msra.mxu0 %v1094
  %1965 = vmatprep.subr.bf16.mxu0 0
  %1966 = vmatpush1.bf16.msra.mxu0 %v1095
  %1967 = vmatprep.subr.bf16.mxu0 0
  %1968 = vmatpush1.bf16.msra.mxu0 %v1096
  %1969 = vmatprep.subr.bf16.mxu0 0
  %1970 = vmatpush1.bf16.msra.mxu0 %v1097
  %1971 = vmatprep.subr.bf16.mxu0 0
  %1972 = vmatpush1.bf16.msra.mxu0 %v1098
  %1973 = vmatprep.subr.bf16.mxu0 0
  %1974 = vmatpush1.bf16.msra.mxu0 %v1099
  %1975 = vmatprep.subr.bf16.mxu0 0
  %1976 = vmatpush1.bf16.msra.mxu0 %v1100
  %1977 = vmatprep.subr.bf16.mxu0 0
  %1978 = vmatpush1.bf16.msra.mxu0 %v1101
  %1979 = vmatprep.subr.bf16.mxu0 0
  %1980 = vmatpush1.bf16.msra.mxu0 %v1102
  %1981 = vmatprep.subr.bf16.mxu0 0
  %1982 = vmatpush1.bf16.msra.mxu0 %v1103
  %1983 = vmatprep.subr.bf16.mxu0 0
  %1984 = vmatpush1.bf16.msra.mxu0 %v1104
  %1985 = vmatprep.mubr.bf16.mxu0 %v1690
  %1986 = vmatmul.mubr.bf16.gmra.mrb[0].mxu0 %v1689
  %v1987 = vpop.f32.mrb[0].mxu0
  %v1988 = vadd.f32 %v1948, %v1987
  %v1989 = vpop.f32.mrb[0].mxu0
  %v1990 = vpop.f32.mrb[0].mxu0
  %v1991 = vpop.f32.mrb[0].mxu0
  %1992 = vdwg.mxu0
  %1993 = vmatprep.subr.bf16.mxu0 0
  %1994 = vmatpush1.bf16.msra.mxu0 %v1105
  %1995 = vmatprep.subr.bf16.mxu0 0
  %1996 = vmatpush1.bf16.msra.mxu0 %v1106
  %1997 = vmatprep.subr.bf16.mxu0 0
  %1998 = vmatpush1.bf16.msra.mxu0 %v1107
  %1999 = vmatprep.subr.bf16.mxu0 0
  %2000 = vmatpush1.bf16.msra.mxu0 %v1108
  %2001 = vmatprep.subr.bf16.mxu0 0
  %2002 = vmatpush1.bf16.msra.mxu0 %v1109
  %2003 = vmatprep.subr.bf16.mxu0 0
  %2004 = vmatpush1.bf16.msra.mxu0 %v1110
  %2005 = vmatprep.subr.bf16.mxu0 0
  %2006 = vmatpush1.bf16.msra.mxu0 %v1111
  %2007 = vmatprep.subr.bf16.mxu0 0
  %2008 = vmatpush1.bf16.msra.mxu0 %v1112
  %2009 = vmatprep.subr.bf16.mxu0 0
  %2010 = vmatpush1.bf16.msra.mxu0 %v1113
  %2011 = vmatprep.subr.bf16.mxu0 0
  %2012 = vmatpush1.bf16.msra.mxu0 %v1114
  %2013 = vmatprep.subr.bf16.mxu0 0
  %2014 = vmatpush1.bf16.msra.mxu0 %v1115
  %2015 = vmatprep.subr.bf16.mxu0 0
  %2016 = vmatpush1.bf16.msra.mxu0 %v1116
  %2017 = vmatprep.subr.bf16.mxu0 0
  %2018 = vmatpush1.bf16.msra.mxu0 %v1117
  %2019 = vmatprep.subr.bf16.mxu0 0
  %2020 = vmatpush1.bf16.msra.mxu0 %v1118
  %2021 = vmatprep.subr.bf16.mxu0 0
  %2022 = vmatpush1.bf16.msra.mxu0 %v1119
  %2023 = vmatprep.subr.bf16.mxu0 0
  %2024 = vmatpush1.bf16.msra.mxu0 %v1120
  %2025 = vmatprep.mubr.bf16.mxu0 %v1692
  %2026 = vmatmul.mubr.bf16.gmra.mrb[0].mxu0 %v1691
  %v2027 = vpop.f32.mrb[0].mxu0
  %v2028 = vadd.f32 %v1988, %v2027
  %v2029 = vpop.f32.mrb[0].mxu0
  %v2030 = vpop.f32.mrb[0].mxu0
  %v2031 = vpop.f32.mrb[0].mxu0
  %2032 = vdwg.mxu0
  %2033 = vmatprep.subr.bf16.mxu0 0
  %2034 = vmatpush1.bf16.msra.mxu0 %v1121
  %2035 = vmatprep.subr.bf16.mxu0 0
  %2036 = vmatpush1.bf16.msra.mxu0 %v1122
  %2037 = vmatprep.subr.bf16.mxu0 0
  %2038 = vmatpush1.bf16.msra.mxu0 %v1123
  %2039 = vmatprep.subr.bf16.mxu0 0
  %2040 = vmatpush1.bf16.msra.mxu0 %v1124
  %2041 = vmatprep.subr.bf16.mxu0 0
  %2042 = vmatpush1.bf16.msra.mxu0 %v1125
  %2043 = vmatprep.subr.bf16.mxu0 0
  %2044 = vmatpush1.bf16.msra.mxu0 %v1126
  %2045 = vmatprep.subr.bf16.mxu0 0
  %2046 = vmatpush1.bf16.msra.mxu0 %v1127
  %2047 = vmatprep.subr.bf16.mxu0 0
  %2048 = vmatpush1.bf16.msra.mxu0 %v1128
  %2049 = vmatprep.subr.bf16.mxu0 0
  %2050 = vmatpush1.bf16.msra.mxu0 %v1129
  %2051 = vmatprep.subr.bf16.mxu0 0
  %2052 = vmatpush1.bf16.msra.mxu0 %v1130
  %2053 = vmatprep.subr.bf16.mxu0 0
  %2054 = vmatpush1.bf16.msra.mxu0 %v1131
  %2055 = vmatprep.subr.bf16.mxu0 0
  %2056 = vmatpush1.bf16.msra.mxu0 %v1132
  %2057 = vmatprep.subr.bf16.mxu0 0
  %2058 = vmatpush1.bf16.msra.mxu0 %v1133
  %2059 = vmatprep.subr.bf16.mxu0 0
  %2060 = vmatpush1.bf16.msra.mxu0 %v1134
  %2061 = vmatprep.subr.bf16.mxu0 0
  %2062 = vmatpush1.bf16.msra.mxu0 %v1135
  %2063 = vmatprep.subr.bf16.mxu0 0
  %2064 = vmatpush1.bf16.msra.mxu0 %v1136
  %2065 = vmatprep.mubr.bf16.mxu0 %v1694
  %2066 = vmatmul.mubr.bf16.gmra.mrb[0].mxu0 %v1693
  %v2067 = vpop.f32.mrb[0].mxu0
  %v2068 = vadd.f32 %v2028, %v2067
  %v2069 = vpop.f32.mrb[0].mxu0
  %v2070 = vpop.f32.mrb[0].mxu0
  %v2071 = vpop.f32.mrb[0].mxu0
  %2072 = vdwg.mxu0
  %v2073 = vlaneseq
  %v2074 = vand.u32 %v2073, 127
  %vm2075 = vcmp.eq.s32.totalorder %v2074, 0
  %v2076 = vsel %vm2075, %v1636, %v2068
  %v2078 = vunpack.c.l.b16 %v24
  %v2079 = vunpack.c.h.b16 %v24
  %v2080 = vpack.c.b16 %v2078, %v2078
  %v2081 = vpack.c.b16 %v2079, %v2079
  %v2116 = vunpack.c.l.b16 %v25
  %v2117 = vunpack.c.l.b16 %v26
  %v2118 = vunpack.c.l.b16 %v27
  %v2119 = vunpack.c.l.b16 %v28
  %v2120 = vunpack.c.l.b16 %v29
  %v2121 = vunpack.c.l.b16 %v30
  %v2122 = vunpack.c.l.b16 %v31
  %v2123 = vunpack.c.l.b16 %v32
  %v2124 = vunpack.c.l.b16 %v33
  %v2125 = vunpack.c.l.b16 %v34
  %v2126 = vunpack.c.l.b16 %v35
  %v2127 = vunpack.c.l.b16 %v36
  %v2128 = vunpack.c.l.b16 %v37
  %v2129 = vunpack.c.l.b16 %v38
  %v2130 = vunpack.c.l.b16 %v39
  %v2131 = vunpack.c.l.b16 %v40
  %v2132 = vunpack.c.l.b16 %v41
  %v2133 = vunpack.c.l.b16 %v42
  %v2134 = vunpack.c.l.b16 %v43
  %v2135 = vunpack.c.l.b16 %v44
  %v2136 = vunpack.c.l.b16 %v45
  %v2137 = vunpack.c.l.b16 %v46
  %v2138 = vunpack.c.l.b16 %v47
  %v2139 = vunpack.c.l.b16 %v48
  %v2140 = vunpack.c.l.b16 %v49
  %v2141 = vunpack.c.l.b16 %v50
  %v2142 = vunpack.c.l.b16 %v51
  %v2143 = vunpack.c.l.b16 %v52
  %v2144 = vunpack.c.l.b16 %v53
  %v2145 = vunpack.c.l.b16 %v54
  %v2146 = vunpack.c.l.b16 %v55
  %v2147 = vunpack.c.l.b16 %v56
  %v2148 = vpack.c.b16 %v2117, %v2116
  %v2149 = vpack.c.b16 %v2119, %v2118
  %v2150 = vpack.c.b16 %v2121, %v2120
  %v2151 = vpack.c.b16 %v2123, %v2122
  %v2152 = vpack.c.b16 %v2125, %v2124
  %v2153 = vpack.c.b16 %v2127, %v2126
  %v2154 = vpack.c.b16 %v2129, %v2128
  %v2155 = vpack.c.b16 %v2131, %v2130
  %v2156 = vpack.c.b16 %v2133, %v2132
  %v2157 = vpack.c.b16 %v2135, %v2134
  %v2158 = vpack.c.b16 %v2137, %v2136
  %v2159 = vpack.c.b16 %v2139, %v2138
  %v2160 = vpack.c.b16 %v2141, %v2140
  %v2161 = vpack.c.b16 %v2143, %v2142
  %v2162 = vpack.c.b16 %v2145, %v2144
  %v2163 = vpack.c.b16 %v2147, %v2146
  %2180 = vmatprep.subr.bf16.mxu0 0
  %2181 = vmatpush1.bf16.msra.mxu0 %v2148
  %2182 = vmatprep.subr.bf16.mxu0 0
  %2183 = vmatpush1.bf16.msra.mxu0 %v2149
  %2184 = vmatprep.subr.bf16.mxu0 0
  %2185 = vmatpush1.bf16.msra.mxu0 %v2150
  %2186 = vmatprep.subr.bf16.mxu0 0
  %2187 = vmatpush1.bf16.msra.mxu0 %v2151
  %2188 = vmatprep.subr.bf16.mxu0 0
  %2189 = vmatpush1.bf16.msra.mxu0 %v2152
  %2190 = vmatprep.subr.bf16.mxu0 0
  %2191 = vmatpush1.bf16.msra.mxu0 %v2153
  %2192 = vmatprep.subr.bf16.mxu0 0
  %2193 = vmatpush1.bf16.msra.mxu0 %v2154
  %2194 = vmatprep.subr.bf16.mxu0 0
  %2195 = vmatpush1.bf16.msra.mxu0 %v2155
  %2196 = vmatprep.subr.bf16.mxu0 0
  %2197 = vmatpush1.bf16.msra.mxu0 %v2156
  %2198 = vmatprep.subr.bf16.mxu0 0
  %2199 = vmatpush1.bf16.msra.mxu0 %v2157
  %2200 = vmatprep.subr.bf16.mxu0 0
  %2201 = vmatpush1.bf16.msra.mxu0 %v2158
  %2202 = vmatprep.subr.bf16.mxu0 0
  %2203 = vmatpush1.bf16.msra.mxu0 %v2159
  %2204 = vmatprep.subr.bf16.mxu0 0
  %2205 = vmatpush1.bf16.msra.mxu0 %v2160
  %2206 = vmatprep.subr.bf16.mxu0 0
  %2207 = vmatpush1.bf16.msra.mxu0 %v2161
  %2208 = vmatprep.subr.bf16.mxu0 0
  %2209 = vmatpush1.bf16.msra.mxu0 %v2162
  %2210 = vmatprep.subr.bf16.mxu0 0
  %2211 = vmatpush1.bf16.msra.mxu0 %v2163
  %2212 = vmatprep.mubr.bf16.mxu0 %v2081
  %2213 = vmatmul.mubr.bf16.gmra.mrb[0].mxu0 %v2080
  %v2214 = vpop.f32.mrb[0].mxu0
  %v2215 = vadd.f32 %v2076, %v2214
  %v2216 = vpop.f32.mrb[0].mxu0
  %v2217 = vpop.f32.mrb[0].mxu0
  %v2218 = vpop.f32.mrb[0].mxu0
  %2219 = vdwg.mxu0
  %v2220 = vld [vmem:[%s5] sm:$0x1]
  %v2222 = vlaneseq
  %v2223 = vshrl.u32 %v2222, 7
  %v2224 = vsub.s32 0, %v2223
  %v2225 = vrot.slane %v2220, %v2224
  %v2227 = vadd.f32 %v2215, %v2225
  %vm2228 = vcmask 15360
  %2229 = vst.msk [vmem:[%s6] sm:$0xff] %vm2228, %v2227
  // Predicated region
  $region26: #{single_disc_forward.15} parent=0 // pred_check
    _
  $region27: #{single_disc_forward.15} parent=0 // pred_check_branch
    %2231 = sbr.rel (0) target = $region29
  $region28: #{single_disc_forward.15} parent=0 // pred_region
    _
  $region29: #{single_disc_forward.15} parent=0 // pred_fallthru
    _
  // Predicated region
  $region30: #{single_disc_forward.15} parent=0 // pred_check
    _
  $region31: #{single_disc_forward.15} parent=0 // pred_check_branch
    %2233 = sbr.rel (0) target = $region33
  $region32: #{single_disc_forward.15} parent=0 // pred_region
    _
  $region33: #{single_disc_forward.15} parent=0 // pred_fallthru
    _

</llo_original>
